<compile_context>
chip_gen: v6e
topology: v6e:2x2x1
jax: 0.10.0
libtpu: 0.0.40
codegen_flags: <defaults>
</compile_context>

<pallas_src>
import jax
import jax.numpy as jnp
from jax import lax
from jax.experimental import pallas as pl
from jax.experimental.pallas import tpu as pltpu

# ---------------------------------------------------------------------------
# Static model configuration (Python ints — never traced)
# ---------------------------------------------------------------------------
BN_EPS = 1e-5
IMAGE_CHANNELS = 4
MAX_FILTERS = 32
NUM_LAYERS = 2
KERNEL = 2
STRIDE = 2
LATENT_DIM = 16
IMG_DIM = 16
BATCH = 2

C1 = MAX_FILTERS // (2 ** (NUM_LAYERS - 1))      # 16 channels after enc layer 1
C2 = MAX_FILTERS                                 # 32 channels after enc layer 2
GRID = IMG_DIM // (STRIDE ** NUM_LAYERS)         # 4  : coarsest spatial grid
NGRP = GRID * GRID                               # 16 : coarse cells per image
ROWS = NGRP * BATCH                              # 32 : slab rows, ordered (H2, W2, n)
HIDDEN = C2 * NGRP                               # 512
F_IN = (STRIDE ** NUM_LAYERS) ** 2 * IMAGE_CHANNELS   # 64 : (h1,w1,h0,w0,c)
F_OUT = (STRIDE ** NUM_LAYERS) ** 2 * IMAGE_CHANNELS  # 64 : (kh1,kw1,kh0,kw0,c)

# Row offsets inside the packed parameter slabs (all static Python ints)
W64_ENC_W1 = 0            # (64, 64)  encoder conv1, block-diag over (h1,w1)
W64_DEC_W1 = 64           # (32, 64)  decoder deconv1
W64_DEC_W2 = 96           # (64, 64)  decoder deconv2, block-diag over (kh1,kw1)
W64_P4G = 160             # (64, 64)  grouped-BN fold (4 groups x 16 ch), 1/count folded
W64_P16G = 224            # (64, 64)  grouped-BN fold (16 groups x 4 ch), 1/count folded
W64_BN = 288              # 6 rows: enc_g1, enc_b1, dec_g1, dec_b1, dec_g2, dec_b2
W64_ROWS = 296

W32_ENC_W2 = 0            # (64, 32)  encoder conv2
W32_MULV = 64             # (512, 32) [w_mu | w_log_var], slab-ordered rows
W32_ENC_G2 = 576          # (1, 32)
W32_ENC_B2 = 577          # (1, 32)
W32_B_MULV = 578          # (1, 32)   [b_mu | b_log_var]
W32_ROWS = 584

WD_W = 0                  # (16, 512) decoder Linear weight (lane-dense output)
WD_B = 16                 # (1, 512)
WD_ROWS = 24


def _vmem_spec():
    return pl.BlockSpec(memory_space=pltpu.MemorySpace.VMEM)


# ---------------------------------------------------------------------------
# The single fused kernel
# ---------------------------------------------------------------------------
def vae_kernel(xq_ref, eps_ref, w64_ref, w32_ref, wd_ref,
               o_ref, mu_ref, lv_ref, hid_scr, dsl_scr):
    def bn_grouped(y, p_off, g_row, b_row):
        """Train-mode BN where columns are (group, channel): one matmul per
        statistic with the precomputed fold/broadcast matrix P (count folded)."""
        p = w64_ref[p_off:p_off + 64, :]
        mean = jnp.dot(jnp.sum(y, axis=0, keepdims=True), p,
                       preferred_element_type=jnp.float32)
        ex2 = jnp.dot(jnp.sum(y * y, axis=0, keepdims=True), p,
                      preferred_element_type=jnp.float32)
        var = ex2 - mean * mean
        gamma = w64_ref[W64_BN + g_row:W64_BN + g_row + 1, :]
        beta = w64_ref[W64_BN + b_row:W64_BN + b_row + 1, :]
        return (y - mean) * lax.rsqrt(var + BN_EPS) * gamma + beta

    # ---------------- encoder: Conv(4->16)+BN+ReLU ; Conv(16->32)+BN+ReLU ----
    y1 = jnp.dot(xq_ref[...], w64_ref[W64_ENC_W1:W64_ENC_W1 + 64, :],
                 preferred_element_type=jnp.float32)                 # (32, 64)
    y1 = jnp.maximum(bn_grouped(y1, W64_P4G, 0, 1), 0.0)

    y2 = jnp.dot(y1, w32_ref[W32_ENC_W2:W32_ENC_W2 + 64, :],
                 preferred_element_type=jnp.float32)                 # (32, 32)
    mean2 = jnp.sum(y2, axis=0, keepdims=True) * (1.0 / ROWS)
    ex22 = jnp.sum(y2 * y2, axis=0, keepdims=True) * (1.0 / ROWS)
    var2 = ex22 - mean2 * mean2
    h = jnp.maximum((y2 - mean2) * lax.rsqrt(var2 + BN_EPS)
                    * w32_ref[W32_ENC_G2:W32_ENC_G2 + 1, :]
                    + w32_ref[W32_ENC_B2:W32_ENC_B2 + 1, :], 0.0)    # (32, 32)

    # ------- flatten (ROWS, C2) -> (BATCH, HIDDEN): pure layout via scratch --
    dsl_scr[...] = h
    for g in range(NGRP):
        hid_scr[:, C2 * g:C2 * (g + 1)] = dsl_scr[BATCH * g:BATCH * (g + 1), :]
    hidden = hid_scr[...]                                            # (2, 512)

    # ------- fused fc_mu / fc_log_var + reparameterize -----------------------
    mulv = (jnp.dot(hidden, w32_ref[W32_MULV:W32_MULV + HIDDEN, :],
                    preferred_element_type=jnp.float32)
            + w32_ref[W32_B_MULV:W32_B_MULV + 1, :])                 # (2, 32)
    mu = mulv[:, 0:LATENT_DIM]
    lv = mulv[:, LATENT_DIM:2 * LATENT_DIM]
    mu_ref[...] = mu
    lv_ref[...] = lv
    # TODO(synk): torch.randn_like noise is supplied as the explicit `eps`
    # input (deterministic & checkable) instead of pltpu.prng_* in-kernel.
    z = mu + eps_ref[...] * jnp.exp(0.5 * lv)                        # (2, 16)

    # ------- decoder Linear (lane-dense (2,512)) then unflatten to the slab --
    d = (jnp.dot(z, wd_ref[WD_W:WD_W + LATENT_DIM, :],
                 preferred_element_type=jnp.float32)
         + wd_ref[WD_B:WD_B + 1, :])                                 # (2, 512)
    hid_scr[...] = d
    for g in range(NGRP):
        dsl_scr[BATCH * g:BATCH * (g + 1), :] = hid_scr[:, C2 * g:C2 * (g + 1)]
    d0 = dsl_scr[...]                                                # (32, 32)

    # ---------------- decoder: ConvT(32->16)+BN+ReLU ; ConvT(16->4)+BN+Sigmoid
    t1 = jnp.dot(d0, w64_ref[W64_DEC_W1:W64_DEC_W1 + C2, :],
                 preferred_element_type=jnp.float32)                 # (32, 64)
    t1 = jnp.maximum(bn_grouped(t1, W64_P4G, 2, 3), 0.0)

    t2 = jnp.dot(t1, w64_ref[W64_DEC_W2:W64_DEC_W2 + 64, :],
                 preferred_element_type=jnp.float32)                 # (32, 64)
    t2 = bn_grouped(t2, W64_P16G, 4, 5)
    # sigmoid with the divide on the EUP (idle in the epilogue)
    o_ref[...] = pl.reciprocal(1.0 + jnp.exp(-t2), approx=True)


# ---------------------------------------------------------------------------
# Parameter construction (torch layouts) and host-side one-time repack
# ---------------------------------------------------------------------------
def build_params(key):
    ks = iter(jax.random.split(key, 20))

    def nrm(shape, scale):
        return scale * jax.random.normal(next(ks), shape, jnp.float32)

    p = {}
    # encoder: Conv2d(4->16, k2, s2, bias=False)+BN ; Conv2d(16->32)+BN
    p["enc_w1"] = nrm((C1, IMAGE_CHANNELS, KERNEL, KERNEL), 0.2)
    p["enc_g1"] = 1.0 + nrm((C1,), 0.1)
    p["enc_b1"] = nrm((C1,), 0.1)
    p["enc_w2"] = nrm((C2, C1, KERNEL, KERNEL), 0.1)
    p["enc_g2"] = 1.0 + nrm((C2,), 0.1)
    p["enc_b2"] = nrm((C2,), 0.1)
    # latent heads (torch Linear: (out, in) + bias)
    p["w_mu"] = nrm((LATENT_DIM, HIDDEN), 0.05)
    p["b_mu"] = nrm((LATENT_DIM,), 0.05)
    p["w_lv"] = nrm((LATENT_DIM, HIDDEN), 0.05)
    p["b_lv"] = nrm((LATENT_DIM,), 0.05)
    # decoder
    p["dec_lin_w"] = nrm((HIDDEN, LATENT_DIM), 0.05)
    p["dec_lin_b"] = nrm((HIDDEN,), 0.05)
    p["dec_w1"] = nrm((C2, C1, KERNEL, KERNEL), 0.1)   # ConvTranspose2d(32->16)
    p["dec_g1"] = 1.0 + nrm((C1,), 0.1)
    p["dec_b1"] = nrm((C1,), 0.1)
    p["dec_w2"] = nrm((C1, IMAGE_CHANNELS, KERNEL, KERNEL), 0.1)  # ConvT(16->4)
    p["dec_g2"] = 1.0 + nrm((IMAGE_CHANNELS,), 0.1)
    p["dec_b2"] = nrm((IMAGE_CHANNELS,), 0.1)
    return p


def prep_params(p):
    """One-time host-side repack of torch-layout weights into 3 packed slabs."""
    f32 = jnp.float32
    eye4 = jnp.eye(4, dtype=f32)

    # ---- (., 64)-wide slab --------------------------------------------------
    w1f = p["enc_w1"].transpose(2, 3, 1, 0).reshape(KERNEL * KERNEL * IMAGE_CHANNELS, C1)
    enc_w1 = jnp.kron(eye4, w1f)                                            # (64, 64)
    dec_w1 = p["dec_w1"].transpose(0, 2, 3, 1).reshape(C2, 4 * C1)          # (32, 64)
    wd2f = p["dec_w2"].transpose(0, 2, 3, 1).reshape(C1, 4 * IMAGE_CHANNELS)
    dec_w2 = jnp.kron(eye4, wd2f)                                           # (64, 64)
    # grouped-BN fold/broadcast matrices with 1/count folded in
    p4g = jnp.kron(jnp.ones((4, 4), dtype=f32),
                   jnp.eye(C1, dtype=f32)) / (4.0 * ROWS)                   # (64, 64)
    p16g = jnp.kron(jnp.ones((16, 16), dtype=f32),
                    jnp.eye(IMAGE_CHANNELS, dtype=f32)) / (16.0 * ROWS)     # (64, 64)
    bn_rows = jnp.stack([
        jnp.tile(p["enc_g1"], 4), jnp.tile(p["enc_b1"], 4),
        jnp.tile(p["dec_g1"], 4), jnp.tile(p["dec_b1"], 4),
        jnp.tile(p["dec_g2"], 16), jnp.tile(p["dec_b2"], 16)], axis=0)      # (6, 64)
    w64 = jnp.concatenate(
        [enc_w1, dec_w1, dec_w2, p4g, p16g, bn_rows,
         jnp.zeros((W64_ROWS - 294, 64), f32)], axis=0).astype(f32)         # (296, 64)

    # ---- (., 32)-wide slab --------------------------------------------------
    enc_w2 = p["enc_w2"].transpose(2, 3, 1, 0).reshape(4 * C1, C2)          # (64, 32)

    def fc_in_perm(w):  # torch (L, HIDDEN) NCHW-flatten -> (HIDDEN, L) slab-order
        return (w.reshape(LATENT_DIM, C2, GRID, GRID)
                 .transpose(2, 3, 1, 0).reshape(HIDDEN, LATENT_DIM))

    w_mulv = jnp.concatenate([fc_in_perm(p["w_mu"]), fc_in_perm(p["w_lv"])],
                             axis=1)                                        # (512, 32)
    small32 = jnp.stack([p["enc_g2"], p["enc_b2"],
                         jnp.concatenate([p["b_mu"], p["b_lv"]])], axis=0)  # (3, 32)
    w32 = jnp.concatenate(
        [enc_w2, w_mulv, small32,
         jnp.zeros((W32_ROWS - 579, C2), f32)], axis=0).astype(f32)         # (584, 32)

    # ---- (., 512)-wide slab: decoder Linear (lane-dense output) -------------
    w_dec = (p["dec_lin_w"].reshape(C2, GRID, GRID, LATENT_DIM)
             .transpose(1, 2, 0, 3).reshape(HIDDEN, LATENT_DIM).T)          # (16, 512)
    b_dec = (p["dec_lin_b"].reshape(C2, GRID, GRID)
             .transpose(1, 2, 0).reshape(1, HIDDEN))                        # (1, 512)
    wd = jnp.concatenate([w_dec, b_dec,
                          jnp.zeros((WD_ROWS - 17, HIDDEN), f32)],
                         axis=0).astype(f32)                                # (24, 512)

    return {"w64": w64, "w32": w32, "wd": wd}


# ---------------------------------------------------------------------------
# Full forward pass: ONE pallas_call; layout conversion only at input / output
# ---------------------------------------------------------------------------
def vae_forward(pp, x, eps):
    # NCHW -> slab: rows=(H2, W2, n), cols=(h1, w1, h0, w0, c)
    xq = (x.reshape(BATCH, IMAGE_CHANNELS, GRID, 2, 2, GRID, 2, 2)
           .transpose(2, 5, 0, 3, 6, 4, 7, 1)
           .reshape(ROWS, F_IN))

    o, mu, log_var = pl.pallas_call(
        vae_kernel,
        out_shape=(jax.ShapeDtypeStruct((ROWS, F_OUT), jnp.float32),
                   jax.ShapeDtypeStruct((BATCH, LATENT_DIM), jnp.float32),
                   jax.ShapeDtypeStruct((BATCH, LATENT_DIM), jnp.float32)),
        in_specs=[_vmem_spec()] * 5,
        out_specs=(_vmem_spec(), _vmem_spec(), _vmem_spec()),
        scratch_shapes=[pltpu.VMEM((BATCH, HIDDEN), jnp.float32),
                        pltpu.VMEM((ROWS, C2), jnp.float32)],
    )(xq, eps, pp["w64"], pp["w32"], pp["wd"])

    # slab -> NCHW
    recon = (o.reshape(GRID, GRID, BATCH, 2, 2, 2, 2, IMAGE_CHANNELS)
              .transpose(2, 7, 0, 3, 5, 1, 4, 6)
              .reshape(BATCH, IMAGE_CHANNELS, IMG_DIM, IMG_DIM))
    return recon, mu, log_var


# ---------------------------------------------------------------------------
# Plain-JAX reference (mirrors the PyTorch module in train() mode)
# ---------------------------------------------------------------------------
def reference_forward(p, x, eps):
    def bn(x4, g, b):
        mean = jnp.mean(x4, axis=(0, 2, 3), keepdims=True)
        var = jnp.mean((x4 - mean) ** 2, axis=(0, 2, 3), keepdims=True)
        return ((x4 - mean) * lax.rsqrt(var + BN_EPS)
                * g.reshape(1, -1, 1, 1) + b.reshape(1, -1, 1, 1))

    def conv_s2(x4, w):        # k=2, s=2, valid, NCHW / OIHW, bias=False
        n, c, hh, ww = x4.shape
        xr = x4.reshape(n, c, hh // 2, 2, ww // 2, 2)
        return jnp.einsum("nciajb,ocab->noij", xr, w)

    def deconv_s2(x4, w):      # ConvTranspose2d k=2, s=2, weight (Cin,Cout,2,2)
        n, c, hh, ww = x4.shape
        y = jnp.einsum("ncij,coab->noiajb", x4, w)
        return y.reshape(n, w.shape[1], 2 * hh, 2 * ww)

    h = jnp.maximum(bn(conv_s2(x, p["enc_w1"]), p["enc_g1"], p["enc_b1"]), 0.0)
    h = jnp.maximum(bn(conv_s2(h, p["enc_w2"]), p["enc_g2"], p["enc_b2"]), 0.0)
    hidden = h.reshape(h.shape[0], -1)
    mu = hidden @ p["w_mu"].T + p["b_mu"]
    lv = hidden @ p["w_lv"].T + p["b_lv"]
    z = mu + eps * jnp.exp(0.5 * lv)
    d = (z @ p["dec_lin_w"].T + p["dec_lin_b"]).reshape(-1, MAX_FILTERS, GRID, GRID)
    d = jnp.maximum(bn(deconv_s2(d, p["dec_w1"]), p["dec_g1"], p["dec_b1"]), 0.0)
    d = bn(deconv_s2(d, p["dec_w2"]), p["dec_g2"], p["dec_b2"])
    return jax.nn.sigmoid(d), mu, lv


if __name__ == "__main__":
    # full f32 matmul precision so the kernel and the reference agree closely
    jax.config.update("jax_default_matmul_precision", "float32")

    key = jax.random.PRNGKey(0)
    k_param, k_x, k_eps = jax.random.split(key, 3)

    raw = build_params(k_param)
    pp = prep_params(raw)
    x = jax.random.normal(k_x, (BATCH, IMAGE_CHANNELS, IMG_DIM, IMG_DIM), jnp.float32)
    eps = jax.random.normal(k_eps, (BATCH, LATENT_DIM), jnp.float32)

    recon, mu, log_var = jax.jit(vae_forward)(pp, x, eps)
    jax.block_until_ready((recon, mu, log_var))

    assert recon.shape == (BATCH, IMAGE_CHANNELS, IMG_DIM, IMG_DIM)
    assert mu.shape == (BATCH, LATENT_DIM) and log_var.shape == (BATCH, LATENT_DIM)
    assert bool(jnp.all(jnp.isfinite(recon)))

    # numerical check against an independent plain-JAX implementation
    r_recon, r_mu, r_lv = reference_forward(raw, x, eps)
    ok = (bool(jnp.allclose(recon, r_recon, rtol=2e-2, atol=2e-2))
          and bool(jnp.allclose(mu, r_mu, rtol=2e-2, atol=2e-2))
          and bool(jnp.allclose(log_var, r_lv, rtol=2e-2, atol=2e-2)))
    assert ok, "Pallas VAE forward does not match reference"

    print("KERNEL_OK")
</pallas_src>

<mosaic_0001>
module attributes {stable_mosaic.version = 11 : i64} {
  func.func @vae_kernel(%arg0: memref<32x64xf32, #tpu.memory_space<vmem>>, %arg1: memref<2x16xf32, #tpu.memory_space<vmem>>, %arg2: memref<296x64xf32, #tpu.memory_space<vmem>>, %arg3: memref<584x32xf32, #tpu.memory_space<vmem>>, %arg4: memref<24x512xf32, #tpu.memory_space<vmem>>, %arg5: memref<32x64xf32, #tpu.memory_space<vmem>>, %arg6: memref<2x16xf32, #tpu.memory_space<vmem>>, %arg7: memref<2x16xf32, #tpu.memory_space<vmem>>, %arg8: memref<2x512xf32, #tpu.memory_space<vmem>>, %arg9: memref<32x32xf32, #tpu.memory_space<vmem>>) attributes {dimension_semantics = [], scalar_prefetch = 0 : i64, scratch_operands = 2 : i64, tpu.core_type = #tpu.core_type<tc>} {
    %c0 = arith.constant 0 : index
    %c0_0 = arith.constant 0 : index
    %0 = vector.load %arg0[%c0, %c0_0] : memref<32x64xf32, #tpu.memory_space<vmem>>, vector<32x64xf32>
    %c0_1 = arith.constant 0 : index
    %c0_2 = arith.constant 0 : index
    %1 = vector.load %arg2[%c0_1, %c0_2] : memref<296x64xf32, #tpu.memory_space<vmem>>, vector<64x64xf32>
    %cst = arith.constant dense<0.000000e+00> : vector<32x64xf32>
    %2 = tpu.matmul %0, %1, %cst {dimension_numbers = #tpu.dot_dimension_numbers<[1], [0], [0], [1], [0, 0, 1, 1], [], []>, precision = #tpu.contract_precision<fp32>} : vector<32x64xf32>, vector<64x64xf32>, vector<32x64xf32> -> vector<32x64xf32>
    %c160 = arith.constant 160 : index
    %c0_3 = arith.constant 0 : index
    %3 = vector.load %arg2[%c160, %c0_3] : memref<296x64xf32, #tpu.memory_space<vmem>>, vector<64x64xf32>
    %cst_4 = arith.constant dense<0.000000e+00> : vector<64xf32>
    %4 = vector.multi_reduction <add>, %2, %cst_4 [0] : vector<32x64xf32> to vector<64xf32>
    %5 = vector.shape_cast %4 : vector<64xf32> to vector<1x64xf32>
    %cst_5 = arith.constant dense<0.000000e+00> : vector<1x64xf32>
    %6 = tpu.matmul %5, %3, %cst_5 {dimension_numbers = #tpu.dot_dimension_numbers<[1], [0], [0], [1], [0, 0, 1, 1], [], []>, precision = #tpu.contract_precision<fp32>} : vector<1x64xf32>, vector<64x64xf32>, vector<1x64xf32> -> vector<1x64xf32>
    %7 = arith.mulf %2, %2 : vector<32x64xf32>
    %cst_6 = arith.constant dense<0.000000e+00> : vector<64xf32>
    %8 = vector.multi_reduction <add>, %7, %cst_6 [0] : vector<32x64xf32> to vector<64xf32>
    %9 = vector.shape_cast %8 : vector<64xf32> to vector<1x64xf32>
    %cst_7 = arith.constant dense<0.000000e+00> : vector<1x64xf32>
    %10 = tpu.matmul %9, %3, %cst_7 {dimension_numbers = #tpu.dot_dimension_numbers<[1], [0], [0], [1], [0, 0, 1, 1], [], []>, precision = #tpu.contract_precision<fp32>} : vector<1x64xf32>, vector<64x64xf32>, vector<1x64xf32> -> vector<1x64xf32>
    %11 = arith.mulf %6, %6 : vector<1x64xf32>
    %12 = arith.subf %10, %11 : vector<1x64xf32>
    %c288 = arith.constant 288 : index
    %c0_8 = arith.constant 0 : index
    %13 = vector.load %arg2[%c288, %c0_8] : memref<296x64xf32, #tpu.memory_space<vmem>>, vector<1x64xf32>
    %c289 = arith.constant 289 : index
    %c0_9 = arith.constant 0 : index
    %14 = vector.load %arg2[%c289, %c0_9] : memref<296x64xf32, #tpu.memory_space<vmem>>, vector<1x64xf32>
    %15 = vector.broadcast %6 : vector<1x64xf32> to vector<32x64xf32>
    %16 = arith.subf %2, %15 : vector<32x64xf32>
    %cst_10 = arith.constant 9.99999974E-6 : f32
    %17 = vector.broadcast %cst_10 : f32 to vector<1x64xf32>
    %18 = arith.addf %12, %17 : vector<1x64xf32>
    %19 = math.rsqrt %18 : vector<1x64xf32>
    %20 = vector.broadcast %19 : vector<1x64xf32> to vector<32x64xf32>
    %21 = arith.mulf %16, %20 : vector<32x64xf32>
    %22 = vector.broadcast %13 : vector<1x64xf32> to vector<32x64xf32>
    %23 = arith.mulf %21, %22 : vector<32x64xf32>
    %24 = vector.broadcast %14 : vector<1x64xf32> to vector<32x64xf32>
    %25 = arith.addf %23, %24 : vector<32x64xf32>
    %cst_11 = arith.constant 0.000000e+00 : f32
    %26 = vector.broadcast %cst_11 : f32 to vector<32x64xf32>
    %27 = arith.maximumf %25, %26 : vector<32x64xf32>
    %c0_12 = arith.constant 0 : index
    %c0_13 = arith.constant 0 : index
    %28 = vector.load %arg3[%c0_12, %c0_13] : memref<584x32xf32, #tpu.memory_space<vmem>>, vector<64x32xf32>
    %cst_14 = arith.constant dense<0.000000e+00> : vector<32x32xf32>
    %29 = tpu.matmul %27, %28, %cst_14 {dimension_numbers = #tpu.dot_dimension_numbers<[1], [0], [0], [1], [0, 0, 1, 1], [], []>, precision = #tpu.contract_precision<fp32>} : vector<32x64xf32>, vector<64x32xf32>, vector<32x32xf32> -> vector<32x32xf32>
    %cst_15 = arith.constant dense<0.000000e+00> : vector<32xf32>
    %30 = vector.multi_reduction <add>, %29, %cst_15 [0] : vector<32x32xf32> to vector<32xf32>
    %31 = vector.shape_cast %30 : vector<32xf32> to vector<1x32xf32>
    %cst_16 = arith.constant 3.125000e-02 : f32
    %32 = vector.broadcast %cst_16 : f32 to vector<1x32xf32>
    %33 = arith.mulf %31, %32 : vector<1x32xf32>
    %34 = arith.mulf %29, %29 : vector<32x32xf32>
    %cst_17 = arith.constant dense<0.000000e+00> : vector<32xf32>
    %35 = vector.multi_reduction <add>, %34, %cst_17 [0] : vector<32x32xf32> to vector<32xf32>
    %36 = vector.shape_cast %35 : vector<32xf32> to vector<1x32xf32>
    %cst_18 = arith.constant 3.125000e-02 : f32
    %37 = vector.broadcast %cst_18 : f32 to vector<1x32xf32>
    %38 = arith.mulf %36, %37 : vector<1x32xf32>
    %39 = arith.mulf %33, %33 : vector<1x32xf32>
    %40 = arith.subf %38, %39 : vector<1x32xf32>
    %41 = vector.broadcast %33 : vector<1x32xf32> to vector<32x32xf32>
    %42 = arith.subf %29, %41 : vector<32x32xf32>
    %cst_19 = arith.constant 9.99999974E-6 : f32
    %43 = vector.broadcast %cst_19 : f32 to vector<1x32xf32>
    %44 = arith.addf %40, %43 : vector<1x32xf32>
    %45 = math.rsqrt %44 : vector<1x32xf32>
    %46 = vector.broadcast %45 : vector<1x32xf32> to vector<32x32xf32>
    %47 = arith.mulf %42, %46 : vector<32x32xf32>
    %c576 = arith.constant 576 : index
    %c0_20 = arith.constant 0 : index
    %48 = vector.load %arg3[%c576, %c0_20] : memref<584x32xf32, #tpu.memory_space<vmem>>, vector<1x32xf32>
    %49 = vector.broadcast %48 : vector<1x32xf32> to vector<32x32xf32>
    %50 = arith.mulf %47, %49 : vector<32x32xf32>
    %c577 = arith.constant 577 : index
    %c0_21 = arith.constant 0 : index
    %51 = vector.load %arg3[%c577, %c0_21] : memref<584x32xf32, #tpu.memory_space<vmem>>, vector<1x32xf32>
    %52 = vector.broadcast %51 : vector<1x32xf32> to vector<32x32xf32>
    %53 = arith.addf %50, %52 : vector<32x32xf32>
    %cst_22 = arith.constant 0.000000e+00 : f32
    %54 = vector.broadcast %cst_22 : f32 to vector<32x32xf32>
    %55 = arith.maximumf %53, %54 : vector<32x32xf32>
    %c0_23 = arith.constant 0 : index
    %c0_24 = arith.constant 0 : index
    %56 = vector.load %arg9[%c0_23, %c0_24] : memref<32x32xf32, #tpu.memory_space<vmem>>, vector<32x32xf32>
    tpu.vector_store %arg9[%c0_23, %c0_24], %55 {strides = array<i32>} : memref<32x32xf32, #tpu.memory_space<vmem>>, vector<32x32xf32>,
    %c0_25 = arith.constant 0 : index
    %c0_26 = arith.constant 0 : index
    %57 = vector.load %arg9[%c0_25, %c0_26] : memref<32x32xf32, #tpu.memory_space<vmem>>, vector<2x32xf32>
    %c0_27 = arith.constant 0 : index
    %c0_28 = arith.constant 0 : index
    %58 = vector.load %arg8[%c0_27, %c0_28] : memref<2x512xf32, #tpu.memory_space<vmem>>, vector<2x32xf32>
    tpu.vector_store %arg8[%c0_27, %c0_28], %57 {strides = array<i32>} : memref<2x512xf32, #tpu.memory_space<vmem>>, vector<2x32xf32>,
    %c2 = arith.constant 2 : index
    %c0_29 = arith.constant 0 : index
    %59 = vector.load %arg9[%c2, %c0_29] : memref<32x32xf32, #tpu.memory_space<vmem>>, vector<2x32xf32>
    %c0_30 = arith.constant 0 : index
    %c32 = arith.constant 32 : index
    %60 = vector.load %arg8[%c0_30, %c32] : memref<2x512xf32, #tpu.memory_space<vmem>>, vector<2x32xf32>
    tpu.vector_store %arg8[%c0_30, %c32], %59 {strides = array<i32>} : memref<2x512xf32, #tpu.memory_space<vmem>>, vector<2x32xf32>,
    %c4 = arith.constant 4 : index
    %c0_31 = arith.constant 0 : index
    %61 = vector.load %arg9[%c4, %c0_31] : memref<32x32xf32, #tpu.memory_space<vmem>>, vector<2x32xf32>
    %c0_32 = arith.constant 0 : index
    %c64 = arith.constant 64 : index
    %62 = vector.load %arg8[%c0_32, %c64] : memref<2x512xf32, #tpu.memory_space<vmem>>, vector<2x32xf32>
    tpu.vector_store %arg8[%c0_32, %c64], %61 {strides = array<i32>} : memref<2x512xf32, #tpu.memory_space<vmem>>, vector<2x32xf32>,
    %c6 = arith.constant 6 : index
    %c0_33 = arith.constant 0 : index
    %63 = vector.load %arg9[%c6, %c0_33] : memref<32x32xf32, #tpu.memory_space<vmem>>, vector<2x32xf32>
    %c0_34 = arith.constant 0 : index
    %c96 = arith.constant 96 : index
    %64 = vector.load %arg8[%c0_34, %c96] : memref<2x512xf32, #tpu.memory_space<vmem>>, vector<2x32xf32>
    tpu.vector_store %arg8[%c0_34, %c96], %63 {strides = array<i32>} : memref<2x512xf32, #tpu.memory_space<vmem>>, vector<2x32xf32>,
    %c8 = arith.constant 8 : index
    %c0_35 = arith.constant 0 : index
    %65 = vector.load %arg9[%c8, %c0_35] : memref<32x32xf32, #tpu.memory_space<vmem>>, vector<2x32xf32>
    %c0_36 = arith.constant 0 : index
    %c128 = arith.constant 128 : index
    %66 = vector.load %arg8[%c0_36, %c128] : memref<2x512xf32, #tpu.memory_space<vmem>>, vector<2x32xf32>
    tpu.vector_store %arg8[%c0_36, %c128], %65 {strides = array<i32>} : memref<2x512xf32, #tpu.memory_space<vmem>>, vector<2x32xf32>,
    %c10 = arith.constant 10 : index
    %c0_37 = arith.constant 0 : index
    %67 = vector.load %arg9[%c10, %c0_37] : memref<32x32xf32, #tpu.memory_space<vmem>>, vector<2x32xf32>
    %c0_38 = arith.constant 0 : index
    %c160_39 = arith.constant 160 : index
    %68 = vector.load %arg8[%c0_38, %c160_39] : memref<2x512xf32, #tpu.memory_space<vmem>>, vector<2x32xf32>
    tpu.vector_store %arg8[%c0_38, %c160_39], %67 {strides = array<i32>} : memref<2x512xf32, #tpu.memory_space<vmem>>, vector<2x32xf32>,
    %c12 = arith.constant 12 : index
    %c0_40 = arith.constant 0 : index
    %69 = vector.load %arg9[%c12, %c0_40] : memref<32x32xf32, #tpu.memory_space<vmem>>, vector<2x32xf32>
    %c0_41 = arith.constant 0 : index
    %c192 = arith.constant 192 : index
    %70 = vector.load %arg8[%c0_41, %c192] : memref<2x512xf32, #tpu.memory_space<vmem>>, vector<2x32xf32>
    tpu.vector_store %arg8[%c0_41, %c192], %69 {strides = array<i32>} : memref<2x512xf32, #tpu.memory_space<vmem>>, vector<2x32xf32>,
    %c14 = arith.constant 14 : index
    %c0_42 = arith.constant 0 : index
    %71 = vector.load %arg9[%c14, %c0_42] : memref<32x32xf32, #tpu.memory_space<vmem>>, vector<2x32xf32>
    %c0_43 = arith.constant 0 : index
    %c224 = arith.constant 224 : index
    %72 = vector.load %arg8[%c0_43, %c224] : memref<2x512xf32, #tpu.memory_space<vmem>>, vector<2x32xf32>
    tpu.vector_store %arg8[%c0_43, %c224], %71 {strides = array<i32>} : memref<2x512xf32, #tpu.memory_space<vmem>>, vector<2x32xf32>,
    %c16 = arith.constant 16 : index
    %c0_44 = arith.constant 0 : index
    %73 = vector.load %arg9[%c16, %c0_44] : memref<32x32xf32, #tpu.memory_space<vmem>>, vector<2x32xf32>
    %c0_45 = arith.constant 0 : index
    %c256 = arith.constant 256 : index
    %74 = vector.load %arg8[%c0_45, %c256] : memref<2x512xf32, #tpu.memory_space<vmem>>, vector<2x32xf32>
    tpu.vector_store %arg8[%c0_45, %c256], %73 {strides = array<i32>} : memref<2x512xf32, #tpu.memory_space<vmem>>, vector<2x32xf32>,
    %c18 = arith.constant 18 : index
    %c0_46 = arith.constant 0 : index
    %75 = vector.load %arg9[%c18, %c0_46] : memref<32x32xf32, #tpu.memory_space<vmem>>, vector<2x32xf32>
    %c0_47 = arith.constant 0 : index
    %c288_48 = arith.constant 288 : index
    %76 = vector.load %arg8[%c0_47, %c288_48] : memref<2x512xf32, #tpu.memory_space<vmem>>, vector<2x32xf32>
    tpu.vector_store %arg8[%c0_47, %c288_48], %75 {strides = array<i32>} : memref<2x512xf32, #tpu.memory_space<vmem>>, vector<2x32xf32>,
    %c20 = arith.constant 20 : index
    %c0_49 = arith.constant 0 : index
    %77 = vector.load %arg9[%c20, %c0_49] : memref<32x32xf32, #tpu.memory_space<vmem>>, vector<2x32xf32>
    %c0_50 = arith.constant 0 : index
    %c320 = arith.constant 320 : index
    %78 = vector.load %arg8[%c0_50, %c320] : memref<2x512xf32, #tpu.memory_space<vmem>>, vector<2x32xf32>
    tpu.vector_store %arg8[%c0_50, %c320], %77 {strides = array<i32>} : memref<2x512xf32, #tpu.memory_space<vmem>>, vector<2x32xf32>,
    %c22 = arith.constant 22 : index
    %c0_51 = arith.constant 0 : index
    %79 = vector.load %arg9[%c22, %c0_51] : memref<32x32xf32, #tpu.memory_space<vmem>>, vector<2x32xf32>
    %c0_52 = arith.constant 0 : index
    %c352 = arith.constant 352 : index
    %80 = vector.load %arg8[%c0_52, %c352] : memref<2x512xf32, #tpu.memory_space<vmem>>, vector<2x32xf32>
    tpu.vector_store %arg8[%c0_52, %c352], %79 {strides = array<i32>} : memref<2x512xf32, #tpu.memory_space<vmem>>, vector<2x32xf32>,
    %c24 = arith.constant 24 : index
    %c0_53 = arith.constant 0 : index
    %81 = vector.load %arg9[%c24, %c0_53] : memref<32x32xf32, #tpu.memory_space<vmem>>, vector<2x32xf32>
    %c0_54 = arith.constant 0 : index
    %c384 = arith.constant 384 : index
    %82 = vector.load %arg8[%c0_54, %c384] : memref<2x512xf32, #tpu.memory_space<vmem>>, vector<2x32xf32>
    tpu.vector_store %arg8[%c0_54, %c384], %81 {strides = array<i32>} : memref<2x512xf32, #tpu.memory_space<vmem>>, vector<2x32xf32>,
    %c26 = arith.constant 26 : index
    %c0_55 = arith.constant 0 : index
    %83 = vector.load %arg9[%c26, %c0_55] : memref<32x32xf32, #tpu.memory_space<vmem>>, vector<2x32xf32>
    %c0_56 = arith.constant 0 : index
    %c416 = arith.constant 416 : index
    %84 = vector.load %arg8[%c0_56, %c416] : memref<2x512xf32, #tpu.memory_space<vmem>>, vector<2x32xf32>
    tpu.vector_store %arg8[%c0_56, %c416], %83 {strides = array<i32>} : memref<2x512xf32, #tpu.memory_space<vmem>>, vector<2x32xf32>,
    %c28 = arith.constant 28 : index
    %c0_57 = arith.constant 0 : index
    %85 = vector.load %arg9[%c28, %c0_57] : memref<32x32xf32, #tpu.memory_space<vmem>>, vector<2x32xf32>
    %c0_58 = arith.constant 0 : index
    %c448 = arith.constant 448 : index
    %86 = vector.load %arg8[%c0_58, %c448] : memref<2x512xf32, #tpu.memory_space<vmem>>, vector<2x32xf32>
    tpu.vector_store %arg8[%c0_58, %c448], %85 {strides = array<i32>} : memref<2x512xf32, #tpu.memory_space<vmem>>, vector<2x32xf32>,
    %c30 = arith.constant 30 : index
    %c0_59 = arith.constant 0 : index
    %87 = vector.load %arg9[%c30, %c0_59] : memref<32x32xf32, #tpu.memory_space<vmem>>, vector<2x32xf32>
    %c0_60 = arith.constant 0 : index
    %c480 = arith.constant 480 : index
    %88 = vector.load %arg8[%c0_60, %c480] : memref<2x512xf32, #tpu.memory_space<vmem>>, vector<2x32xf32>
    tpu.vector_store %arg8[%c0_60, %c480], %87 {strides = array<i32>} : memref<2x512xf32, #tpu.memory_space<vmem>>, vector<2x32xf32>,
    %c0_61 = arith.constant 0 : index
    %c0_62 = arith.constant 0 : index
    %89 = vector.load %arg8[%c0_61, %c0_62] : memref<2x512xf32, #tpu.memory_space<vmem>>, vector<2x512xf32>
    %c64_63 = arith.constant 64 : index
    %c0_64 = arith.constant 0 : index
    %90 = vector.load %arg3[%c64_63, %c0_64] : memref<584x32xf32, #tpu.memory_space<vmem>>, vector<512x32xf32>
    %cst_65 = arith.constant dense<0.000000e+00> : vector<2x32xf32>
    %91 = tpu.matmul %89, %90, %cst_65 {dimension_numbers = #tpu.dot_dimension_numbers<[1], [0], [0], [1], [0, 0, 1, 1], [], []>, precision = #tpu.contract_precision<fp32>} : vector<2x512xf32>, vector<512x32xf32>, vector<2x32xf32> -> vector<2x32xf32>
    %c578 = arith.constant 578 : index
    %c0_66 = arith.constant 0 : index
    %92 = vector.load %arg3[%c578, %c0_66] : memref<584x32xf32, #tpu.memory_space<vmem>>, vector<1x32xf32>
    %93 = vector.broadcast %92 : vector<1x32xf32> to vector<2x32xf32>
    %94 = arith.addf %91, %93 : vector<2x32xf32>
    %95 = vector.extract_strided_slice %94 {offsets = [0, 0], sizes = [2, 16], strides = [1, 1]} : vector<2x32xf32> to vector<2x16xf32>
    %96 = vector.extract_strided_slice %94 {offsets = [0, 16], sizes = [2, 16], strides = [1, 1]} : vector<2x32xf32> to vector<2x16xf32>
    %c0_67 = arith.constant 0 : index
    %c0_68 = arith.constant 0 : index
    %97 = vector.load %arg6[%c0_67, %c0_68] : memref<2x16xf32, #tpu.memory_space<vmem>>, vector<2x16xf32>
    tpu.vector_store %arg6[%c0_67, %c0_68], %95 {strides = array<i32>} : memref<2x16xf32, #tpu.memory_space<vmem>>, vector<2x16xf32>,
    %c0_69 = arith.constant 0 : index
    %c0_70 = arith.constant 0 : index
    %98 = vector.load %arg7[%c0_69, %c0_70] : memref<2x16xf32, #tpu.memory_space<vmem>>, vector<2x16xf32>
    tpu.vector_store %arg7[%c0_69, %c0_70], %96 {strides = array<i32>} : memref<2x16xf32, #tpu.memory_space<vmem>>, vector<2x16xf32>,
    %c0_71 = arith.constant 0 : index
    %c0_72 = arith.constant 0 : index
    %99 = vector.load %arg1[%c0_71, %c0_72] : memref<2x16xf32, #tpu.memory_space<vmem>>, vector<2x16xf32>
    %cst_73 = arith.constant 5.000000e-01 : f32
    %100 = vector.broadcast %cst_73 : f32 to vector<2x16xf32>
    %101 = arith.mulf %100, %96 : vector<2x16xf32>
    %102 = math.exp %101 : vector<2x16xf32>
    %103 = arith.mulf %99, %102 : vector<2x16xf32>
    %104 = arith.addf %95, %103 : vector<2x16xf32>
    %c0_74 = arith.constant 0 : index
    %c0_75 = arith.constant 0 : index
    %105 = vector.load %arg4[%c0_74, %c0_75] : memref<24x512xf32, #tpu.memory_space<vmem>>, vector<16x512xf32>
    %cst_76 = arith.constant dense<0.000000e+00> : vector<2x512xf32>
    %106 = tpu.matmul %104, %105, %cst_76 {dimension_numbers = #tpu.dot_dimension_numbers<[1], [0], [0], [1], [0, 0, 1, 1], [], []>, precision = #tpu.contract_precision<fp32>} : vector<2x16xf32>, vector<16x512xf32>, vector<2x512xf32> -> vector<2x512xf32>
    %c16_77 = arith.constant 16 : index
    %c0_78 = arith.constant 0 : index
    %107 = vector.load %arg4[%c16_77, %c0_78] : memref<24x512xf32, #tpu.memory_space<vmem>>, vector<1x512xf32>
    %108 = vector.broadcast %107 : vector<1x512xf32> to vector<2x512xf32>
    %109 = arith.addf %106, %108 : vector<2x512xf32>
    %c0_79 = arith.constant 0 : index
    %c0_80 = arith.constant 0 : index
    %110 = vector.load %arg8[%c0_79, %c0_80] : memref<2x512xf32, #tpu.memory_space<vmem>>, vector<2x512xf32>
    tpu.vector_store %arg8[%c0_79, %c0_80], %109 {strides = array<i32>} : memref<2x512xf32, #tpu.memory_space<vmem>>, vector<2x512xf32>,
    %c0_81 = arith.constant 0 : index
    %c0_82 = arith.constant 0 : index
    %111 = vector.load %arg8[%c0_81, %c0_82] : memref<2x512xf32, #tpu.memory_space<vmem>>, vector<2x32xf32>
    %c0_83 = arith.constant 0 : index
    %c0_84 = arith.constant 0 : index
    %112 = vector.load %arg9[%c0_83, %c0_84] : memref<32x32xf32, #tpu.memory_space<vmem>>, vector<2x32xf32>
    tpu.vector_store %arg9[%c0_83, %c0_84], %111 {strides = array<i32>} : memref<32x32xf32, #tpu.memory_space<vmem>>, vector<2x32xf32>,
    %c0_85 = arith.constant 0 : index
    %c32_86 = arith.constant 32 : index
    %113 = vector.load %arg8[%c0_85, %c32_86] : memref<2x512xf32, #tpu.memory_space<vmem>>, vector<2x32xf32>
    %c2_87 = arith.constant 2 : index
    %c0_88 = arith.constant 0 : index
    %114 = vector.load %arg9[%c2_87, %c0_88] : memref<32x32xf32, #tpu.memory_space<vmem>>, vector<2x32xf32>
    tpu.vector_store %arg9[%c2_87, %c0_88], %113 {strides = array<i32>} : memref<32x32xf32, #tpu.memory_space<vmem>>, vector<2x32xf32>,
    %c0_89 = arith.constant 0 : index
    %c64_90 = arith.constant 64 : index
    %115 = vector.load %arg8[%c0_89, %c64_90] : memref<2x512xf32, #tpu.memory_space<vmem>>, vector<2x32xf32>
    %c4_91 = arith.constant 4 : index
    %c0_92 = arith.constant 0 : index
    %116 = vector.load %arg9[%c4_91, %c0_92] : memref<32x32xf32, #tpu.memory_space<vmem>>, vector<2x32xf32>
    tpu.vector_store %arg9[%c4_91, %c0_92], %115 {strides = array<i32>} : memref<32x32xf32, #tpu.memory_space<vmem>>, vector<2x32xf32>,
    %c0_93 = arith.constant 0 : index
    %c96_94 = arith.constant 96 : index
    %117 = vector.load %arg8[%c0_93, %c96_94] : memref<2x512xf32, #tpu.memory_space<vmem>>, vector<2x32xf32>
    %c6_95 = arith.constant 6 : index
    %c0_96 = arith.constant 0 : index
    %118 = vector.load %arg9[%c6_95, %c0_96] : memref<32x32xf32, #tpu.memory_space<vmem>>, vector<2x32xf32>
    tpu.vector_store %arg9[%c6_95, %c0_96], %117 {strides = array<i32>} : memref<32x32xf32, #tpu.memory_space<vmem>>, vector<2x32xf32>,
    %c0_97 = arith.constant 0 : index
    %c128_98 = arith.constant 128 : index
    %119 = vector.load %arg8[%c0_97, %c128_98] : memref<2x512xf32, #tpu.memory_space<vmem>>, vector<2x32xf32>
    %c8_99 = arith.constant 8 : index
    %c0_100 = arith.constant 0 : index
    %120 = vector.load %arg9[%c8_99, %c0_100] : memref<32x32xf32, #tpu.memory_space<vmem>>, vector<2x32xf32>
    tpu.vector_store %arg9[%c8_99, %c0_100], %119 {strides = array<i32>} : memref<32x32xf32, #tpu.memory_space<vmem>>, vector<2x32xf32>,
    %c0_101 = arith.constant 0 : index
    %c160_102 = arith.constant 160 : index
    %121 = vector.load %arg8[%c0_101, %c160_102] : memref<2x512xf32, #tpu.memory_space<vmem>>, vector<2x32xf32>
    %c10_103 = arith.constant 10 : index
    %c0_104 = arith.constant 0 : index
    %122 = vector.load %arg9[%c10_103, %c0_104] : memref<32x32xf32, #tpu.memory_space<vmem>>, vector<2x32xf32>
    tpu.vector_store %arg9[%c10_103, %c0_104], %121 {strides = array<i32>} : memref<32x32xf32, #tpu.memory_space<vmem>>, vector<2x32xf32>,
    %c0_105 = arith.constant 0 : index
    %c192_106 = arith.constant 192 : index
    %123 = vector.load %arg8[%c0_105, %c192_106] : memref<2x512xf32, #tpu.memory_space<vmem>>, vector<2x32xf32>
    %c12_107 = arith.constant 12 : index
    %c0_108 = arith.constant 0 : index
    %124 = vector.load %arg9[%c12_107, %c0_108] : memref<32x32xf32, #tpu.memory_space<vmem>>, vector<2x32xf32>
    tpu.vector_store %arg9[%c12_107, %c0_108], %123 {strides = array<i32>} : memref<32x32xf32, #tpu.memory_space<vmem>>, vector<2x32xf32>,
    %c0_109 = arith.constant 0 : index
    %c224_110 = arith.constant 224 : index
    %125 = vector.load %arg8[%c0_109, %c224_110] : memref<2x512xf32, #tpu.memory_space<vmem>>, vector<2x32xf32>
    %c14_111 = arith.constant 14 : index
    %c0_112 = arith.constant 0 : index
    %126 = vector.load %arg9[%c14_111, %c0_112] : memref<32x32xf32, #tpu.memory_space<vmem>>, vector<2x32xf32>
    tpu.vector_store %arg9[%c14_111, %c0_112], %125 {strides = array<i32>} : memref<32x32xf32, #tpu.memory_space<vmem>>, vector<2x32xf32>,
    %c0_113 = arith.constant 0 : index
    %c256_114 = arith.constant 256 : index
    %127 = vector.load %arg8[%c0_113, %c256_114] : memref<2x512xf32, #tpu.memory_space<vmem>>, vector<2x32xf32>
    %c16_115 = arith.constant 16 : index
    %c0_116 = arith.constant 0 : index
    %128 = vector.load %arg9[%c16_115, %c0_116] : memref<32x32xf32, #tpu.memory_space<vmem>>, vector<2x32xf32>
    tpu.vector_store %arg9[%c16_115, %c0_116], %127 {strides = array<i32>} : memref<32x32xf32, #tpu.memory_space<vmem>>, vector<2x32xf32>,
    %c0_117 = arith.constant 0 : index
    %c288_118 = arith.constant 288 : index
    %129 = vector.load %arg8[%c0_117, %c288_118] : memref<2x512xf32, #tpu.memory_space<vmem>>, vector<2x32xf32>
    %c18_119 = arith.constant 18 : index
    %c0_120 = arith.constant 0 : index
    %130 = vector.load %arg9[%c18_119, %c0_120] : memref<32x32xf32, #tpu.memory_space<vmem>>, vector<2x32xf32>
    tpu.vector_store %arg9[%c18_119, %c0_120], %129 {strides = array<i32>} : memref<32x32xf32, #tpu.memory_space<vmem>>, vector<2x32xf32>,
    %c0_121 = arith.constant 0 : index
    %c320_122 = arith.constant 320 : index
    %131 = vector.load %arg8[%c0_121, %c320_122] : memref<2x512xf32, #tpu.memory_space<vmem>>, vector<2x32xf32>
    %c20_123 = arith.constant 20 : index
    %c0_124 = arith.constant 0 : index
    %132 = vector.load %arg9[%c20_123, %c0_124] : memref<32x32xf32, #tpu.memory_space<vmem>>, vector<2x32xf32>
    tpu.vector_store %arg9[%c20_123, %c0_124], %131 {strides = array<i32>} : memref<32x32xf32, #tpu.memory_space<vmem>>, vector<2x32xf32>,
    %c0_125 = arith.constant 0 : index
    %c352_126 = arith.constant 352 : index
    %133 = vector.load %arg8[%c0_125, %c352_126] : memref<2x512xf32, #tpu.memory_space<vmem>>, vector<2x32xf32>
    %c22_127 = arith.constant 22 : index
    %c0_128 = arith.constant 0 : index
    %134 = vector.load %arg9[%c22_127, %c0_128] : memref<32x32xf32, #tpu.memory_space<vmem>>, vector<2x32xf32>
    tpu.vector_store %arg9[%c22_127, %c0_128], %133 {strides = array<i32>} : memref<32x32xf32, #tpu.memory_space<vmem>>, vector<2x32xf32>,
    %c0_129 = arith.constant 0 : index
    %c384_130 = arith.constant 384 : index
    %135 = vector.load %arg8[%c0_129, %c384_130] : memref<2x512xf32, #tpu.memory_space<vmem>>, vector<2x32xf32>
    %c24_131 = arith.constant 24 : index
    %c0_132 = arith.constant 0 : index
    %136 = vector.load %arg9[%c24_131, %c0_132] : memref<32x32xf32, #tpu.memory_space<vmem>>, vector<2x32xf32>
    tpu.vector_store %arg9[%c24_131, %c0_132], %135 {strides = array<i32>} : memref<32x32xf32, #tpu.memory_space<vmem>>, vector<2x32xf32>,
    %c0_133 = arith.constant 0 : index
    %c416_134 = arith.constant 416 : index
    %137 = vector.load %arg8[%c0_133, %c416_134] : memref<2x512xf32, #tpu.memory_space<vmem>>, vector<2x32xf32>
    %c26_135 = arith.constant 26 : index
    %c0_136 = arith.constant 0 : index
    %138 = vector.load %arg9[%c26_135, %c0_136] : memref<32x32xf32, #tpu.memory_space<vmem>>, vector<2x32xf32>
    tpu.vector_store %arg9[%c26_135, %c0_136], %137 {strides = array<i32>} : memref<32x32xf32, #tpu.memory_space<vmem>>, vector<2x32xf32>,
    %c0_137 = arith.constant 0 : index
    %c448_138 = arith.constant 448 : index
    %139 = vector.load %arg8[%c0_137, %c448_138] : memref<2x512xf32, #tpu.memory_space<vmem>>, vector<2x32xf32>
    %c28_139 = arith.constant 28 : index
    %c0_140 = arith.constant 0 : index
    %140 = vector.load %arg9[%c28_139, %c0_140] : memref<32x32xf32, #tpu.memory_space<vmem>>, vector<2x32xf32>
    tpu.vector_store %arg9[%c28_139, %c0_140], %139 {strides = array<i32>} : memref<32x32xf32, #tpu.memory_space<vmem>>, vector<2x32xf32>,
    %c0_141 = arith.constant 0 : index
    %c480_142 = arith.constant 480 : index
    %141 = vector.load %arg8[%c0_141, %c480_142] : memref<2x512xf32, #tpu.memory_space<vmem>>, vector<2x32xf32>
    %c30_143 = arith.constant 30 : index
    %c0_144 = arith.constant 0 : index
    %142 = vector.load %arg9[%c30_143, %c0_144] : memref<32x32xf32, #tpu.memory_space<vmem>>, vector<2x32xf32>
    tpu.vector_store %arg9[%c30_143, %c0_144], %141 {strides = array<i32>} : memref<32x32xf32, #tpu.memory_space<vmem>>, vector<2x32xf32>,
    %c0_145 = arith.constant 0 : index
    %c0_146 = arith.constant 0 : index
    %143 = vector.load %arg9[%c0_145, %c0_146] : memref<32x32xf32, #tpu.memory_space<vmem>>, vector<32x32xf32>
    %c64_147 = arith.constant 64 : index
    %c0_148 = arith.constant 0 : index
    %144 = vector.load %arg2[%c64_147, %c0_148] : memref<296x64xf32, #tpu.memory_space<vmem>>, vector<32x64xf32>
    %cst_149 = arith.constant dense<0.000000e+00> : vector<32x64xf32>
    %145 = tpu.matmul %143, %144, %cst_149 {dimension_numbers = #tpu.dot_dimension_numbers<[1], [0], [0], [1], [0, 0, 1, 1], [], []>, precision = #tpu.contract_precision<fp32>} : vector<32x32xf32>, vector<32x64xf32>, vector<32x64xf32> -> vector<32x64xf32>
    %c160_150 = arith.constant 160 : index
    %c0_151 = arith.constant 0 : index
    %146 = vector.load %arg2[%c160_150, %c0_151] : memref<296x64xf32, #tpu.memory_space<vmem>>, vector<64x64xf32>
    %cst_152 = arith.constant dense<0.000000e+00> : vector<64xf32>
    %147 = vector.multi_reduction <add>, %145, %cst_152 [0] : vector<32x64xf32> to vector<64xf32>
    %148 = vector.shape_cast %147 : vector<64xf32> to vector<1x64xf32>
    %cst_153 = arith.constant dense<0.000000e+00> : vector<1x64xf32>
    %149 = tpu.matmul %148, %146, %cst_153 {dimension_numbers = #tpu.dot_dimension_numbers<[1], [0], [0], [1], [0, 0, 1, 1], [], []>, precision = #tpu.contract_precision<fp32>} : vector<1x64xf32>, vector<64x64xf32>, vector<1x64xf32> -> vector<1x64xf32>
    %150 = arith.mulf %145, %145 : vector<32x64xf32>
    %cst_154 = arith.constant dense<0.000000e+00> : vector<64xf32>
    %151 = vector.multi_reduction <add>, %150, %cst_154 [0] : vector<32x64xf32> to vector<64xf32>
    %152 = vector.shape_cast %151 : vector<64xf32> to vector<1x64xf32>
    %cst_155 = arith.constant dense<0.000000e+00> : vector<1x64xf32>
    %153 = tpu.matmul %152, %146, %cst_155 {dimension_numbers = #tpu.dot_dimension_numbers<[1], [0], [0], [1], [0, 0, 1, 1], [], []>, precision = #tpu.contract_precision<fp32>} : vector<1x64xf32>, vector<64x64xf32>, vector<1x64xf32> -> vector<1x64xf32>
    %154 = arith.mulf %149, %149 : vector<1x64xf32>
    %155 = arith.subf %153, %154 : vector<1x64xf32>
    %c290 = arith.constant 290 : index
    %c0_156 = arith.constant 0 : index
    %156 = vector.load %arg2[%c290, %c0_156] : memref<296x64xf32, #tpu.memory_space<vmem>>, vector<1x64xf32>
    %c291 = arith.constant 291 : index
    %c0_157 = arith.constant 0 : index
    %157 = vector.load %arg2[%c291, %c0_157] : memref<296x64xf32, #tpu.memory_space<vmem>>, vector<1x64xf32>
    %158 = vector.broadcast %149 : vector<1x64xf32> to vector<32x64xf32>
    %159 = arith.subf %145, %158 : vector<32x64xf32>
    %cst_158 = arith.constant 9.99999974E-6 : f32
    %160 = vector.broadcast %cst_158 : f32 to vector<1x64xf32>
    %161 = arith.addf %155, %160 : vector<1x64xf32>
    %162 = math.rsqrt %161 : vector<1x64xf32>
    %163 = vector.broadcast %162 : vector<1x64xf32> to vector<32x64xf32>
    %164 = arith.mulf %159, %163 : vector<32x64xf32>
    %165 = vector.broadcast %156 : vector<1x64xf32> to vector<32x64xf32>
    %166 = arith.mulf %164, %165 : vector<32x64xf32>
    %167 = vector.broadcast %157 : vector<1x64xf32> to vector<32x64xf32>
    %168 = arith.addf %166, %167 : vector<32x64xf32>
    %cst_159 = arith.constant 0.000000e+00 : f32
    %169 = vector.broadcast %cst_159 : f32 to vector<32x64xf32>
    %170 = arith.maximumf %168, %169 : vector<32x64xf32>
    %c96_160 = arith.constant 96 : index
    %c0_161 = arith.constant 0 : index
    %171 = vector.load %arg2[%c96_160, %c0_161] : memref<296x64xf32, #tpu.memory_space<vmem>>, vector<64x64xf32>
    %cst_162 = arith.constant dense<0.000000e+00> : vector<32x64xf32>
    %172 = tpu.matmul %170, %171, %cst_162 {dimension_numbers = #tpu.dot_dimension_numbers<[1], [0], [0], [1], [0, 0, 1, 1], [], []>, precision = #tpu.contract_precision<fp32>} : vector<32x64xf32>, vector<64x64xf32>, vector<32x64xf32> -> vector<32x64xf32>
    %c224_163 = arith.constant 224 : index
    %c0_164 = arith.constant 0 : index
    %173 = vector.load %arg2[%c224_163, %c0_164] : memref<296x64xf32, #tpu.memory_space<vmem>>, vector<64x64xf32>
    %cst_165 = arith.constant dense<0.000000e+00> : vector<64xf32>
    %174 = vector.multi_reduction <add>, %172, %cst_165 [0] : vector<32x64xf32> to vector<64xf32>
    %175 = vector.shape_cast %174 : vector<64xf32> to vector<1x64xf32>
    %cst_166 = arith.constant dense<0.000000e+00> : vector<1x64xf32>
    %176 = tpu.matmul %175, %173, %cst_166 {dimension_numbers = #tpu.dot_dimension_numbers<[1], [0], [0], [1], [0, 0, 1, 1], [], []>, precision = #tpu.contract_precision<fp32>} : vector<1x64xf32>, vector<64x64xf32>, vector<1x64xf32> -> vector<1x64xf32>
    %177 = arith.mulf %172, %172 : vector<32x64xf32>
    %cst_167 = arith.constant dense<0.000000e+00> : vector<64xf32>
    %178 = vector.multi_reduction <add>, %177, %cst_167 [0] : vector<32x64xf32> to vector<64xf32>
    %179 = vector.shape_cast %178 : vector<64xf32> to vector<1x64xf32>
    %cst_168 = arith.constant dense<0.000000e+00> : vector<1x64xf32>
    %180 = tpu.matmul %179, %173, %cst_168 {dimension_numbers = #tpu.dot_dimension_numbers<[1], [0], [0], [1], [0, 0, 1, 1], [], []>, precision = #tpu.contract_precision<fp32>} : vector<1x64xf32>, vector<64x64xf32>, vector<1x64xf32> -> vector<1x64xf32>
    %181 = arith.mulf %176, %176 : vector<1x64xf32>
    %182 = arith.subf %180, %181 : vector<1x64xf32>
    %c292 = arith.constant 292 : index
    %c0_169 = arith.constant 0 : index
    %183 = vector.load %arg2[%c292, %c0_169] : memref<296x64xf32, #tpu.memory_space<vmem>>, vector<1x64xf32>
    %c293 = arith.constant 293 : index
    %c0_170 = arith.constant 0 : index
    %184 = vector.load %arg2[%c293, %c0_170] : memref<296x64xf32, #tpu.memory_space<vmem>>, vector<1x64xf32>
    %185 = vector.broadcast %176 : vector<1x64xf32> to vector<32x64xf32>
    %186 = arith.subf %172, %185 : vector<32x64xf32>
    %cst_171 = arith.constant 9.99999974E-6 : f32
    %187 = vector.broadcast %cst_171 : f32 to vector<1x64xf32>
    %188 = arith.addf %182, %187 : vector<1x64xf32>
    %189 = math.rsqrt %188 : vector<1x64xf32>
    %190 = vector.broadcast %189 : vector<1x64xf32> to vector<32x64xf32>
    %191 = arith.mulf %186, %190 : vector<32x64xf32>
    %192 = vector.broadcast %183 : vector<1x64xf32> to vector<32x64xf32>
    %193 = arith.mulf %191, %192 : vector<32x64xf32>
    %194 = vector.broadcast %184 : vector<1x64xf32> to vector<32x64xf32>
    %195 = arith.addf %193, %194 : vector<32x64xf32>
    %cst_172 = arith.constant 0.000000e+00 : f32
    %196 = vector.broadcast %cst_172 : f32 to vector<32x64xf32>
    %197 = arith.subf %196, %195 : vector<32x64xf32>
    %198 = math.exp %197 : vector<32x64xf32>
    %cst_173 = arith.constant 1.000000e+00 : f32
    %199 = vector.broadcast %cst_173 : f32 to vector<32x64xf32>
    %200 = arith.addf %199, %198 : vector<32x64xf32>
    %201 = tpu.reciprocal %200 {approx = true} : vector<32x64xf32> -> vector<32x64xf32>
    %c0_174 = arith.constant 0 : index
    %c0_175 = arith.constant 0 : index
    %202 = vector.load %arg5[%c0_174, %c0_175] : memref<32x64xf32, #tpu.memory_space<vmem>>, vector<32x64xf32>
    tpu.vector_store %arg5[%c0_174, %c0_175], %201 {strides = array<i32>} : memref<32x64xf32, #tpu.memory_space<vmem>>, vector<32x64xf32>,
    return
  }
}

</mosaic_0001>

<llo_original>
// kernel: vae_forward.1
$region0: #{vae_forward.1}
  #allocation0 [shape = 'u32[]', space=smem, size = 0x4, offset = 0x4, fixed_abs, tag = 'smem constant byte address 0x4 - core index']
  #allocation1 [shape = 'u32[144,128]{1,0:T(1,128)}', space=vmem, size = 0x12000, scoped, tag = 'internal scratch']
  #allocation2 [shape = 'f32[2,512]{1,0:T(2,128)}', space=vmem, size = 0x1000, scoped, tag = 'scratch operand']
  #allocation3 [shape = 'f32[32,32]{1,0:T(8,128)}', space=vmem, size = 0x4000, scoped, tag = 'scratch operand']
  %s0 = inlined_call_operand.vmem [shape: f32[32,64], index: 0, kind: input, shape index: {}]
  %s1 = inlined_call_operand.vmem [shape: f32[2,16], index: 1, kind: input, shape index: {}]
  %s2 = inlined_call_operand.vmem [shape: f32[296,64], index: 2, kind: input, shape index: {}]
  %s3 = inlined_call_operand.vmem [shape: f32[584,32], index: 3, kind: input, shape index: {}]
  %s4 = inlined_call_operand.vmem [shape: f32[24,512], index: 4, kind: input, shape index: {}]
  %s5 = inlined_call_operand.vmem [shape: f32[32,64], index: 5, kind: output, shape index: {0}]
  %s6 = inlined_call_operand.hbm [shape: f32[2,16], index: 6, kind: output, shape index: {1}]
  %s7 = inlined_call_operand.hbm [shape: f32[2,16], index: 7, kind: output, shape index: {2}]
  %8 = xla_tuple %s5, %s6, %s7
  %s9 = sld [smem:[#allocation0]]
  $region46: #{vae_forward.1} parent=0
    _
  %s11 = ssub.s32 1, %s9
  %s12 = scalar_select 0, %s11, %s9
  $region1: #{vae_forward.1} parent=0
    #allocation4 [shape = 'u8[1024]{0}', space=vmem, size = 0x400, scoped, tag = 'output window, operand 1, single buffered']
    #allocation5 [shape = 's32[1]{0}', space=sflag, size = 0x4, scoped, tag = 'scoped memory for vae_forward.1']
    #allocation6 [shape = 'u8[1024]{0}', space=vmem, size = 0x400, scoped, tag = 'output window, operand 2, single buffered']
    #allocation7 [shape = 's32[1]{0}', space=sflag, size = 0x4, scoped, tag = 'scoped memory for vae_forward.1']
    %13 = vsyncpa [#allocation5], 0
    %14 = vsyncpa [#allocation7], 0
    // Predicated region
    $region2: #{vae_forward.1} parent=1 // pred_check
      _
    $region3: #{vae_forward.1} parent=1 // pred_check_branch
      %16 = sbr.rel (0) target = $region5
    $region4: #{vae_forward.1} parent=1 // pred_region
      _
    $region5: #{vae_forward.1} parent=1 // pred_fallthru
      _
    // Predicated region
    $region6: #{vae_forward.1} parent=1 // pred_check
      _
    $region7: #{vae_forward.1} parent=1 // pred_check_branch
      %18 = sbr.rel (0) target = $region9
    $region8: #{vae_forward.1} parent=1 // pred_region
      _
    $region9: #{vae_forward.1} parent=1 // pred_fallthru
      _
    // Predicated region
    $region10: #{vae_forward.1} parent=1 // pred_check
      _
    $region11: #{vae_forward.1} parent=1 // pred_check_branch
      %20 = sbr.rel (0) target = $region13
    $region12: #{vae_forward.1} parent=1 // pred_region
      _
    $region13: #{vae_forward.1} parent=1 // pred_fallthru
      _
    // Predicated region
    $region14: #{vae_forward.1} parent=1 // pred_check
      _
    $region15: #{vae_forward.1} parent=1 // pred_check_branch
      %22 = sbr.rel (0) target = $region17
    $region16: #{vae_forward.1} parent=1 // pred_region
      _
    $region17: #{vae_forward.1} parent=1 // pred_fallthru
      _
    // Predicated region
    $region18: #{vae_forward.1} parent=1 // pred_check
      _
    $region19: #{vae_forward.1} parent=1 // pred_check_branch
      %24 = sbr.rel (0) target = $region21
    $region20: #{vae_forward.1} parent=1 // pred_region
      _
    $region21: #{vae_forward.1} parent=1 // pred_fallthru
      _
    %v25 = vld [vmem:[%s0] sm:$0xff]
    %v26 = vld [vmem:[%s0 + $0x8] sm:$0xff]
    %v27 = vld [vmem:[%s0 + $0x10] sm:$0xff]
    %v28 = vld [vmem:[%s0 + $0x18] sm:$0xff]
    %v29 = vld [vmem:[%s2] sm:$0xff]
    %v30 = vld [vmem:[%s2 + $0x8] sm:$0xff]
    %v31 = vld [vmem:[%s2 + $0x10] sm:$0xff]
    %v32 = vld [vmem:[%s2 + $0x18] sm:$0xff]
    %v33 = vld [vmem:[%s2 + $0x20] sm:$0xff]
    %v34 = vld [vmem:[%s2 + $0x28] sm:$0xff]
    %v35 = vld [vmem:[%s2 + $0x30] sm:$0xff]
    %v36 = vld [vmem:[%s2 + $0x38] sm:$0xff]
    %vm37 = vcmask 523264
    %v39 = vsel %vm37, %v25, 0
    %v42 = vsel %vm37, %v26, 0
    %v45 = vsel %vm37, %v27, 0
    %v48 = vsel %vm37, %v28, 0
    %50 = vmatprep.subr.mxu0 0.0
    %51 = vmatpush1.msra.mxu0 0.0
    %52 = vmatprep.subr.mxu0 0.0
    %53 = vmatpush1.msra.mxu0 0.0
    %54 = vmatprep.subr.mxu0 0.0
    %55 = vmatpush1.msra.mxu0 0.0
    %56 = vmatprep.subr.mxu0 0.0
    %57 = vmatpush1.msra.mxu0 0.0
    %58 = vmatprep.subr.mxu0 0.0
    %59 = vmatpush1.msra.mxu0 0.0
    %60 = vmatprep.subr.mxu0 0.0
    %61 = vmatpush1.msra.mxu0 0.0
    %62 = vmatprep.subr.mxu0 0.0
    %63 = vmatpush1.msra.mxu0 0.0
    %64 = vmatprep.subr.mxu0 0.0
    %65 = vmatpush1.msra.mxu0 0.0
    %66 = vmatprep.subr.mxu0 0.0
    %v67 = vand.u32 %v36, 4294901760
    %68 = vmatpush1.msra.mxu0 %v67
    %69 = vmatprep.subr.mxu0 0.0
    %v70 = vand.u32 %v35, 4294901760
    %71 = vmatpush1.msra.mxu0 %v70
    %72 = vmatprep.subr.mxu0 0.0
    %v73 = vand.u32 %v34, 4294901760
    %74 = vmatpush1.msra.mxu0 %v73
    %75 = vmatprep.subr.mxu0 0.0
    %v76 = vand.u32 %v33, 4294901760
    %77 = vmatpush1.msra.mxu0 %v76
    %78 = vmatprep.subr.mxu0 0.0
    %v79 = vand.u32 %v32, 4294901760
    %80 = vmatpush1.msra.mxu0 %v79
    %81 = vmatprep.subr.mxu0 0.0
    %v82 = vand.u32 %v31, 4294901760
    %83 = vmatpush1.msra.mxu0 %v82
    %84 = vmatprep.subr.mxu0 0.0
    %v85 = vand.u32 %v30, 4294901760
    %86 = vmatpush1.msra.mxu0 %v85
    %87 = vmatprep.subr.mxu0 0.0
    %v88 = vand.u32 %v29, 4294901760
    %89 = vmatpush1.msra.mxu0 %v88
    %90 = vmatprep.subr.mxu0 0.0
    %91 = vmatpush2.msra.mxu0 0.0
    %92 = vmatprep.subr.mxu0 0.0
    %93 = vmatpush2.msra.mxu0 0.0
    %94 = vmatprep.subr.mxu0 0.0
    %95 = vmatpush2.msra.mxu0 0.0
    %96 = vmatprep.subr.mxu0 0.0
    %97 = vmatpush2.msra.mxu0 0.0
    %98 = vmatprep.subr.mxu0 0.0
    %99 = vmatpush2.msra.mxu0 0.0
    %100 = vmatprep.subr.mxu0 0.0
    %101 = vmatpush2.msra.mxu0 0.0
    %102 = vmatprep.subr.mxu0 0.0
    %103 = vmatpush2.msra.mxu0 0.0
    %104 = vmatprep.subr.mxu0 0.0
    %105 = vmatpush2.msra.mxu0 0.0
    %106 = vmatprep.subr.mxu0 0.0
    %107 = vmatpush2.msra.mxu0 0.0
    %108 = vmatprep.subr.mxu0 0.0
    %109 = vmatpush2.msra.mxu0 0.0
    %110 = vmatprep.subr.mxu0 0.0
    %111 = vmatpush2.msra.mxu0 0.0
    %112 = vmatprep.subr.mxu0 0.0
    %113 = vmatpush2.msra.mxu0 0.0
    %114 = vmatprep.subr.mxu0 0.0
    %115 = vmatpush2.msra.mxu0 0.0
    %116 = vmatprep.subr.mxu0 0.0
    %117 = vmatpush2.msra.mxu0 0.0
    %118 = vmatprep.subr.mxu0 0.0
    %119 = vmatpush2.msra.mxu0 0.0
    %120 = vmatprep.subr.mxu0 0.0
    %121 = vmatpush2.msra.mxu0 0.0
    %122 = vmatprep.mubr.f32.mxu0 0.0
    %v123 = vand.u32 %v39, 4294901760
    %v124 = vsub.f32 %v39, %v123
    %v125 = vand.u32 %v124, 4294901760
    %v126 = vsub.f32 %v124, %v125
    %v127 = vand.u32 %v126, 4294901760
    %128 = vmatmul.mubr.f32.gmra.mxu0 %v127
    %v129 = vpop.f32.mrf.mxu0
    %v130 = vadd.f32 0.0, %v129
    %v131 = vpop.f32.mrf.mxu0
    %132 = vmatprep.mubr.f32.mxu0 0.0
    %v133 = vand.u32 %v42, 4294901760
    %v134 = vsub.f32 %v42, %v133
    %v135 = vand.u32 %v134, 4294901760
    %v136 = vsub.f32 %v134, %v135
    %v137 = vand.u32 %v136, 4294901760
    %138 = vmatmul.mubr.f32.gmra.mxu0 %v137
    %v139 = vpop.f32.mrf.mxu0
    %v140 = vadd.f32 0.0, %v139
    %v141 = vpop.f32.mrf.mxu0
    %142 = vmatprep.mubr.f32.mxu0 0.0
    %v143 = vand.u32 %v45, 4294901760
    %v144 = vsub.f32 %v45, %v143
    %v145 = vand.u32 %v144, 4294901760
    %v146 = vsub.f32 %v144, %v145
    %v147 = vand.u32 %v146, 4294901760
    %148 = vmatmul.mubr.f32.gmra.mxu0 %v147
    %v149 = vpop.f32.mrf.mxu0
    %v150 = vadd.f32 0.0, %v149
    %v151 = vpop.f32.mrf.mxu0
    %152 = vmatprep.mubr.f32.mxu0 0.0
    %v153 = vand.u32 %v48, 4294901760
    %v154 = vsub.f32 %v48, %v153
    %v155 = vand.u32 %v154, 4294901760
    %v156 = vsub.f32 %v154, %v155
    %v157 = vand.u32 %v156, 4294901760
    %158 = vmatmul.mubr.f32.gmra.mxu0 %v157
    %v159 = vpop.f32.mrf.mxu0
    %v160 = vadd.f32 0.0, %v159
    %v161 = vpop.f32.mrf.mxu0
    %162 = vdwg.mxu0
    %163 = vmatprep.subr.mxu0 0.0
    %164 = vmatpush1.msra.mxu0 0.0
    %165 = vmatprep.subr.mxu0 0.0
    %166 = vmatpush1.msra.mxu0 0.0
    %167 = vmatprep.subr.mxu0 0.0
    %168 = vmatpush1.msra.mxu0 0.0
    %169 = vmatprep.subr.mxu0 0.0
    %170 = vmatpush1.msra.mxu0 0.0
    %171 = vmatprep.subr.mxu0 0.0
    %172 = vmatpush1.msra.mxu0 0.0
    %173 = vmatprep.subr.mxu0 0.0
    %174 = vmatpush1.msra.mxu0 0.0
    %175 = vmatprep.subr.mxu0 0.0
    %176 = vmatpush1.msra.mxu0 0.0
    %177 = vmatprep.subr.mxu0 0.0
    %178 = vmatpush1.msra.mxu0 0.0
    %179 = vmatprep.subr.mxu0 0.0
    %v180 = vand.u32 %v36, 4294901760
    %v181 = vsub.f32 %v36, %v180
    %v182 = vand.u32 %v181, 4294901760
    %v183 = vsub.f32 %v181, %v182
    %v184 = vand.u32 %v183, 4294901760
    %185 = vmatpush1.msra.mxu0 %v184
    %186 = vmatprep.subr.mxu0 0.0
    %v187 = vand.u32 %v35, 4294901760
    %v188 = vsub.f32 %v35, %v187
    %v189 = vand.u32 %v188, 4294901760
    %v190 = vsub.f32 %v188, %v189
    %v191 = vand.u32 %v190, 4294901760
    %192 = vmatpush1.msra.mxu0 %v191
    %193 = vmatprep.subr.mxu0 0.0
    %v194 = vand.u32 %v34, 4294901760
    %v195 = vsub.f32 %v34, %v194
    %v196 = vand.u32 %v195, 4294901760
    %v197 = vsub.f32 %v195, %v196
    %v198 = vand.u32 %v197, 4294901760
    %199 = vmatpush1.msra.mxu0 %v198
    %200 = vmatprep.subr.mxu0 0.0
    %v201 = vand.u32 %v33, 4294901760
    %v202 = vsub.f32 %v33, %v201
    %v203 = vand.u32 %v202, 4294901760
    %v204 = vsub.f32 %v202, %v203
    %v205 = vand.u32 %v204, 4294901760
    %206 = vmatpush1.msra.mxu0 %v205
    %207 = vmatprep.subr.mxu0 0.0
    %v208 = vand.u32 %v32, 4294901760
    %v209 = vsub.f32 %v32, %v208
    %v210 = vand.u32 %v209, 4294901760
    %v211 = vsub.f32 %v209, %v210
    %v212 = vand.u32 %v211, 4294901760
    %213 = vmatpush1.msra.mxu0 %v212
    %214 = vmatprep.subr.mxu0 0.0
    %v215 = vand.u32 %v31, 4294901760
    %v216 = vsub.f32 %v31, %v215
    %v217 = vand.u32 %v216, 4294901760
    %v218 = vsub.f32 %v216, %v217
    %v219 = vand.u32 %v218, 4294901760
    %220 = vmatpush1.msra.mxu0 %v219
    %221 = vmatprep.subr.mxu0 0.0
    %v222 = vand.u32 %v30, 4294901760
    %v223 = vsub.f32 %v30, %v222
    %v224 = vand.u32 %v223, 4294901760
    %v225 = vsub.f32 %v223, %v224
    %v226 = vand.u32 %v225, 4294901760
    %227 = vmatpush1.msra.mxu0 %v226
    %228 = vmatprep.subr.mxu0 0.0
    %v229 = vand.u32 %v29, 4294901760
    %v230 = vsub.f32 %v29, %v229
    %v231 = vand.u32 %v230, 4294901760
    %v232 = vsub.f32 %v230, %v231
    %v233 = vand.u32 %v232, 4294901760
    %234 = vmatpush1.msra.mxu0 %v233
    %235 = vmatprep.subr.mxu0 0.0
    %236 = vmatpush2.msra.mxu0 0.0
    %237 = vmatprep.subr.mxu0 0.0
    %238 = vmatpush2.msra.mxu0 0.0
    %239 = vmatprep.subr.mxu0 0.0
    %240 = vmatpush2.msra.mxu0 0.0
    %241 = vmatprep.subr.mxu0 0.0
    %242 = vmatpush2.msra.mxu0 0.0
    %243 = vmatprep.subr.mxu0 0.0
    %244 = vmatpush2.msra.mxu0 0.0
    %245 = vmatprep.subr.mxu0 0.0
    %246 = vmatpush2.msra.mxu0 0.0
    %247 = vmatprep.subr.mxu0 0.0
    %248 = vmatpush2.msra.mxu0 0.0
    %249 = vmatprep.subr.mxu0 0.0
    %250 = vmatpush2.msra.mxu0 0.0
    %251 = vmatprep.subr.mxu0 0.0
    %252 = vmatpush2.msra.mxu0 0.0
    %253 = vmatprep.subr.mxu0 0.0
    %254 = vmatpush2.msra.mxu0 0.0
    %255 = vmatprep.subr.mxu0 0.0
    %256 = vmatpush2.msra.mxu0 0.0
    %257 = vmatprep.subr.mxu0 0.0
    %258 = vmatpush2.msra.mxu0 0.0
    %259 = vmatprep.subr.mxu0 0.0
    %260 = vmatpush2.msra.mxu0 0.0
    %261 = vmatprep.subr.mxu0 0.0
    %262 = vmatpush2.msra.mxu0 0.0
    %263 = vmatprep.subr.mxu0 0.0
    %264 = vmatpush2.msra.mxu0 0.0
    %265 = vmatprep.subr.mxu0 0.0
    %266 = vmatpush2.msra.mxu0 0.0
    %267 = vmatprep.mubr.f32.mxu0 0.0
    %v268 = vand.u32 %v39, 4294901760
    %269 = vmatmul.mubr.f32.gmra.mxu0 %v268
    %v270 = vpop.f32.mrf.mxu0
    %v271 = vadd.f32 %v130, %v270
    %v272 = vpop.f32.mrf.mxu0
    %273 = vmatprep.mubr.f32.mxu0 0.0
    %v274 = vand.u32 %v42, 4294901760
    %275 = vmatmul.mubr.f32.gmra.mxu0 %v274
    %v276 = vpop.f32.mrf.mxu0
    %v277 = vadd.f32 %v140, %v276
    %v278 = vpop.f32.mrf.mxu0
    %279 = vmatprep.mubr.f32.mxu0 0.0
    %v280 = vand.u32 %v45, 4294901760
    %281 = vmatmul.mubr.f32.gmra.mxu0 %v280
    %v282 = vpop.f32.mrf.mxu0
    %v283 = vadd.f32 %v150, %v282
    %v284 = vpop.f32.mrf.mxu0
    %285 = vmatprep.mubr.f32.mxu0 0.0
    %v286 = vand.u32 %v48, 4294901760
    %287 = vmatmul.mubr.f32.gmra.mxu0 %v286
    %v288 = vpop.f32.mrf.mxu0
    %v289 = vadd.f32 %v160, %v288
    %v290 = vpop.f32.mrf.mxu0
    %291 = vdwg.mxu0
    %292 = vmatprep.subr.mxu0 0.0
    %293 = vmatpush1.msra.mxu0 0.0
    %294 = vmatprep.subr.mxu0 0.0
    %295 = vmatpush1.msra.mxu0 0.0
    %296 = vmatprep.subr.mxu0 0.0
    %297 = vmatpush1.msra.mxu0 0.0
    %298 = vmatprep.subr.mxu0 0.0
    %299 = vmatpush1.msra.mxu0 0.0
    %300 = vmatprep.subr.mxu0 0.0
    %301 = vmatpush1.msra.mxu0 0.0
    %302 = vmatprep.subr.mxu0 0.0
    %303 = vmatpush1.msra.mxu0 0.0
    %304 = vmatprep.subr.mxu0 0.0
    %305 = vmatpush1.msra.mxu0 0.0
    %306 = vmatprep.subr.mxu0 0.0
    %307 = vmatpush1.msra.mxu0 0.0
    %308 = vmatprep.subr.mxu0 0.0
    %v309 = vand.u32 %v36, 4294901760
    %v310 = vsub.f32 %v36, %v309
    %311 = vmatpush1.msra.mxu0 %v310
    %312 = vmatprep.subr.mxu0 0.0
    %v313 = vand.u32 %v35, 4294901760
    %v314 = vsub.f32 %v35, %v313
    %315 = vmatpush1.msra.mxu0 %v314
    %316 = vmatprep.subr.mxu0 0.0
    %v317 = vand.u32 %v34, 4294901760
    %v318 = vsub.f32 %v34, %v317
    %319 = vmatpush1.msra.mxu0 %v318
    %320 = vmatprep.subr.mxu0 0.0
    %v321 = vand.u32 %v33, 4294901760
    %v322 = vsub.f32 %v33, %v321
    %323 = vmatpush1.msra.mxu0 %v322
    %324 = vmatprep.subr.mxu0 0.0
    %v325 = vand.u32 %v32, 4294901760
    %v326 = vsub.f32 %v32, %v325
    %327 = vmatpush1.msra.mxu0 %v326
    %328 = vmatprep.subr.mxu0 0.0
    %v329 = vand.u32 %v31, 4294901760
    %v330 = vsub.f32 %v31, %v329
    %331 = vmatpush1.msra.mxu0 %v330
    %332 = vmatprep.subr.mxu0 0.0
    %v333 = vand.u32 %v30, 4294901760
    %v334 = vsub.f32 %v30, %v333
    %335 = vmatpush1.msra.mxu0 %v334
    %336 = vmatprep.subr.mxu0 0.0
    %v337 = vand.u32 %v29, 4294901760
    %v338 = vsub.f32 %v29, %v337
    %339 = vmatpush1.msra.mxu0 %v338
    %340 = vmatprep.subr.mxu0 0.0
    %341 = vmatpush2.msra.mxu0 0.0
    %342 = vmatprep.subr.mxu0 0.0
    %343 = vmatpush2.msra.mxu0 0.0
    %344 = vmatprep.subr.mxu0 0.0
    %345 = vmatpush2.msra.mxu0 0.0
    %346 = vmatprep.subr.mxu0 0.0
    %347 = vmatpush2.msra.mxu0 0.0
    %348 = vmatprep.subr.mxu0 0.0
    %349 = vmatpush2.msra.mxu0 0.0
    %350 = vmatprep.subr.mxu0 0.0
    %351 = vmatpush2.msra.mxu0 0.0
    %352 = vmatprep.subr.mxu0 0.0
    %353 = vmatpush2.msra.mxu0 0.0
    %354 = vmatprep.subr.mxu0 0.0
    %355 = vmatpush2.msra.mxu0 0.0
    %356 = vmatprep.subr.mxu0 0.0
    %357 = vmatpush2.msra.mxu0 0.0
    %358 = vmatprep.subr.mxu0 0.0
    %359 = vmatpush2.msra.mxu0 0.0
    %360 = vmatprep.subr.mxu0 0.0
    %361 = vmatpush2.msra.mxu0 0.0
    %362 = vmatprep.subr.mxu0 0.0
    %363 = vmatpush2.msra.mxu0 0.0
    %364 = vmatprep.subr.mxu0 0.0
    %365 = vmatpush2.msra.mxu0 0.0
    %366 = vmatprep.subr.mxu0 0.0
    %367 = vmatpush2.msra.mxu0 0.0
    %368 = vmatprep.subr.mxu0 0.0
    %369 = vmatpush2.msra.mxu0 0.0
    %370 = vmatprep.subr.mxu0 0.0
    %371 = vmatpush2.msra.mxu0 0.0
    %372 = vmatprep.mubr.f32.mxu0 0.0
    %v373 = vand.u32 %v39, 4294901760
    %v374 = vsub.f32 %v39, %v373
    %375 = vmatmul.mubr.f32.gmra.mxu0 %v374
    %v376 = vpop.f32.mrf.mxu0
    %v377 = vadd.f32 %v271, %v376
    %v378 = vpop.f32.mrf.mxu0
    %379 = vmatprep.mubr.f32.mxu0 0.0
    %v380 = vand.u32 %v42, 4294901760
    %v381 = vsub.f32 %v42, %v380
    %382 = vmatmul.mubr.f32.gmra.mxu0 %v381
    %v383 = vpop.f32.mrf.mxu0
    %v384 = vadd.f32 %v277, %v383
    %v385 = vpop.f32.mrf.mxu0
    %386 = vmatprep.mubr.f32.mxu0 0.0
    %v387 = vand.u32 %v45, 4294901760
    %v388 = vsub.f32 %v45, %v387
    %389 = vmatmul.mubr.f32.gmra.mxu0 %v388
    %v390 = vpop.f32.mrf.mxu0
    %v391 = vadd.f32 %v283, %v390
    %v392 = vpop.f32.mrf.mxu0
    %393 = vmatprep.mubr.f32.mxu0 0.0
    %v394 = vand.u32 %v48, 4294901760
    %v395 = vsub.f32 %v48, %v394
    %396 = vmatmul.mubr.f32.gmra.mxu0 %v395
    %v397 = vpop.f32.mrf.mxu0
    %v398 = vadd.f32 %v289, %v397
    %v399 = vpop.f32.mrf.mxu0
    %400 = vdwg.mxu0
    %401 = vmatprep.subr.mxu0 0.0
    %402 = vmatpush1.msra.mxu0 0.0
    %403 = vmatprep.subr.mxu0 0.0
    %404 = vmatpush1.msra.mxu0 0.0
    %405 = vmatprep.subr.mxu0 0.0
    %406 = vmatpush1.msra.mxu0 0.0
    %407 = vmatprep.subr.mxu0 0.0
    %408 = vmatpush1.msra.mxu0 0.0
    %409 = vmatprep.subr.mxu0 0.0
    %410 = vmatpush1.msra.mxu0 0.0
    %411 = vmatprep.subr.mxu0 0.0
    %412 = vmatpush1.msra.mxu0 0.0
    %413 = vmatprep.subr.mxu0 0.0
    %414 = vmatpush1.msra.mxu0 0.0
    %415 = vmatprep.subr.mxu0 0.0
    %416 = vmatpush1.msra.mxu0 0.0
    %417 = vmatprep.subr.mxu0 0.0
    %v418 = vand.u32 %v36, 4294901760
    %419 = vmatpush1.msra.mxu0 %v418
    %420 = vmatprep.subr.mxu0 0.0
    %v421 = vand.u32 %v35, 4294901760
    %422 = vmatpush1.msra.mxu0 %v421
    %423 = vmatprep.subr.mxu0 0.0
    %v424 = vand.u32 %v34, 4294901760
    %425 = vmatpush1.msra.mxu0 %v424
    %426 = vmatprep.subr.mxu0 0.0
    %v427 = vand.u32 %v33, 4294901760
    %428 = vmatpush1.msra.mxu0 %v427
    %429 = vmatprep.subr.mxu0 0.0
    %v430 = vand.u32 %v32, 4294901760
    %431 = vmatpush1.msra.mxu0 %v430
    %432 = vmatprep.subr.mxu0 0.0
    %v433 = vand.u32 %v31, 4294901760
    %434 = vmatpush1.msra.mxu0 %v433
    %435 = vmatprep.subr.mxu0 0.0
    %v436 = vand.u32 %v30, 4294901760
    %437 = vmatpush1.msra.mxu0 %v436
    %438 = vmatprep.subr.mxu0 0.0
    %v439 = vand.u32 %v29, 4294901760
    %440 = vmatpush1.msra.mxu0 %v439
    %441 = vmatprep.subr.mxu0 0.0
    %442 = vmatpush2.msra.mxu0 0.0
    %443 = vmatprep.subr.mxu0 0.0
    %444 = vmatpush2.msra.mxu0 0.0
    %445 = vmatprep.subr.mxu0 0.0
    %446 = vmatpush2.msra.mxu0 0.0
    %447 = vmatprep.subr.mxu0 0.0
    %448 = vmatpush2.msra.mxu0 0.0
    %449 = vmatprep.subr.mxu0 0.0
    %450 = vmatpush2.msra.mxu0 0.0
    %451 = vmatprep.subr.mxu0 0.0
    %452 = vmatpush2.msra.mxu0 0.0
    %453 = vmatprep.subr.mxu0 0.0
    %454 = vmatpush2.msra.mxu0 0.0
    %455 = vmatprep.subr.mxu0 0.0
    %456 = vmatpush2.msra.mxu0 0.0
    %457 = vmatprep.subr.mxu0 0.0
    %458 = vmatpush2.msra.mxu0 0.0
    %459 = vmatprep.subr.mxu0 0.0
    %460 = vmatpush2.msra.mxu0 0.0
    %461 = vmatprep.subr.mxu0 0.0
    %462 = vmatpush2.msra.mxu0 0.0
    %463 = vmatprep.subr.mxu0 0.0
    %464 = vmatpush2.msra.mxu0 0.0
    %465 = vmatprep.subr.mxu0 0.0
    %466 = vmatpush2.msra.mxu0 0.0
    %467 = vmatprep.subr.mxu0 0.0
    %468 = vmatpush2.msra.mxu0 0.0
    %469 = vmatprep.subr.mxu0 0.0
    %470 = vmatpush2.msra.mxu0 0.0
    %471 = vmatprep.subr.mxu0 0.0
    %472 = vmatpush2.msra.mxu0 0.0
    %473 = vmatprep.mubr.f32.mxu0 0.0
    %v474 = vand.u32 %v39, 4294901760
    %v475 = vsub.f32 %v39, %v474
    %v476 = vand.u32 %v475, 4294901760
    %477 = vmatmul.mubr.f32.gmra.mxu0 %v476
    %v478 = vpop.f32.mrf.mxu0
    %v479 = vadd.f32 %v377, %v478
    %v480 = vpop.f32.mrf.mxu0
    %481 = vmatprep.mubr.f32.mxu0 0.0
    %v482 = vand.u32 %v42, 4294901760
    %v483 = vsub.f32 %v42, %v482
    %v484 = vand.u32 %v483, 4294901760
    %485 = vmatmul.mubr.f32.gmra.mxu0 %v484
    %v486 = vpop.f32.mrf.mxu0
    %v487 = vadd.f32 %v384, %v486
    %v488 = vpop.f32.mrf.mxu0
    %489 = vmatprep.mubr.f32.mxu0 0.0
    %v490 = vand.u32 %v45, 4294901760
    %v491 = vsub.f32 %v45, %v490
    %v492 = vand.u32 %v491, 4294901760
    %493 = vmatmul.mubr.f32.gmra.mxu0 %v492
    %v494 = vpop.f32.mrf.mxu0
    %v495 = vadd.f32 %v391, %v494
    %v496 = vpop.f32.mrf.mxu0
    %497 = vmatprep.mubr.f32.mxu0 0.0
    %v498 = vand.u32 %v48, 4294901760
    %v499 = vsub.f32 %v48, %v498
    %v500 = vand.u32 %v499, 4294901760
    %501 = vmatmul.mubr.f32.gmra.mxu0 %v500
    %v502 = vpop.f32.mrf.mxu0
    %v503 = vadd.f32 %v398, %v502
    %v504 = vpop.f32.mrf.mxu0
    %505 = vdwg.mxu0
    %506 = vmatprep.subr.mxu0 0.0
    %507 = vmatpush1.msra.mxu0 0.0
    %508 = vmatprep.subr.mxu0 0.0
    %509 = vmatpush1.msra.mxu0 0.0
    %510 = vmatprep.subr.mxu0 0.0
    %511 = vmatpush1.msra.mxu0 0.0
    %512 = vmatprep.subr.mxu0 0.0
    %513 = vmatpush1.msra.mxu0 0.0
    %514 = vmatprep.subr.mxu0 0.0
    %515 = vmatpush1.msra.mxu0 0.0
    %516 = vmatprep.subr.mxu0 0.0
    %517 = vmatpush1.msra.mxu0 0.0
    %518 = vmatprep.subr.mxu0 0.0
    %519 = vmatpush1.msra.mxu0 0.0
    %520 = vmatprep.subr.mxu0 0.0
    %521 = vmatpush1.msra.mxu0 0.0
    %522 = vmatprep.subr.mxu0 0.0
    %v523 = vand.u32 %v36, 4294901760
    %v524 = vsub.f32 %v36, %v523
    %v525 = vand.u32 %v524, 4294901760
    %526 = vmatpush1.msra.mxu0 %v525
    %527 = vmatprep.subr.mxu0 0.0
    %v528 = vand.u32 %v35, 4294901760
    %v529 = vsub.f32 %v35, %v528
    %v530 = vand.u32 %v529, 4294901760
    %531 = vmatpush1.msra.mxu0 %v530
    %532 = vmatprep.subr.mxu0 0.0
    %v533 = vand.u32 %v34, 4294901760
    %v534 = vsub.f32 %v34, %v533
    %v535 = vand.u32 %v534, 4294901760
    %536 = vmatpush1.msra.mxu0 %v535
    %537 = vmatprep.subr.mxu0 0.0
    %v538 = vand.u32 %v33, 4294901760
    %v539 = vsub.f32 %v33, %v538
    %v540 = vand.u32 %v539, 4294901760
    %541 = vmatpush1.msra.mxu0 %v540
    %542 = vmatprep.subr.mxu0 0.0
    %v543 = vand.u32 %v32, 4294901760
    %v544 = vsub.f32 %v32, %v543
    %v545 = vand.u32 %v544, 4294901760
    %546 = vmatpush1.msra.mxu0 %v545
    %547 = vmatprep.subr.mxu0 0.0
    %v548 = vand.u32 %v31, 4294901760
    %v549 = vsub.f32 %v31, %v548
    %v550 = vand.u32 %v549, 4294901760
    %551 = vmatpush1.msra.mxu0 %v550
    %552 = vmatprep.subr.mxu0 0.0
    %v553 = vand.u32 %v30, 4294901760
    %v554 = vsub.f32 %v30, %v553
    %v555 = vand.u32 %v554, 4294901760
    %556 = vmatpush1.msra.mxu0 %v555
    %557 = vmatprep.subr.mxu0 0.0
    %v558 = vand.u32 %v29, 4294901760
    %v559 = vsub.f32 %v29, %v558
    %v560 = vand.u32 %v559, 4294901760
    %561 = vmatpush1.msra.mxu0 %v560
    %562 = vmatprep.subr.mxu0 0.0
    %563 = vmatpush2.msra.mxu0 0.0
    %564 = vmatprep.subr.mxu0 0.0
    %565 = vmatpush2.msra.mxu0 0.0
    %566 = vmatprep.subr.mxu0 0.0
    %567 = vmatpush2.msra.mxu0 0.0
    %568 = vmatprep.subr.mxu0 0.0
    %569 = vmatpush2.msra.mxu0 0.0
    %570 = vmatprep.subr.mxu0 0.0
    %571 = vmatpush2.msra.mxu0 0.0
    %572 = vmatprep.subr.mxu0 0.0
    %573 = vmatpush2.msra.mxu0 0.0
    %574 = vmatprep.subr.mxu0 0.0
    %575 = vmatpush2.msra.mxu0 0.0
    %576 = vmatprep.subr.mxu0 0.0
    %577 = vmatpush2.msra.mxu0 0.0
    %578 = vmatprep.subr.mxu0 0.0
    %579 = vmatpush2.msra.mxu0 0.0
    %580 = vmatprep.subr.mxu0 0.0
    %581 = vmatpush2.msra.mxu0 0.0
    %582 = vmatprep.subr.mxu0 0.0
    %583 = vmatpush2.msra.mxu0 0.0
    %584 = vmatprep.subr.mxu0 0.0
    %585 = vmatpush2.msra.mxu0 0.0
    %586 = vmatprep.subr.mxu0 0.0
    %587 = vmatpush2.msra.mxu0 0.0
    %588 = vmatprep.subr.mxu0 0.0
    %589 = vmatpush2.msra.mxu0 0.0
    %590 = vmatprep.subr.mxu0 0.0
    %591 = vmatpush2.msra.mxu0 0.0
    %592 = vmatprep.subr.mxu0 0.0
    %593 = vmatpush2.msra.mxu0 0.0
    %594 = vmatprep.mubr.f32.mxu0 0.0
    %v595 = vand.u32 %v39, 4294901760
    %596 = vmatmul.mubr.f32.gmra.mxu0 %v595
    %v597 = vpop.f32.mrf.mxu0
    %v598 = vadd.f32 %v479, %v597
    %v599 = vpop.f32.mrf.mxu0
    %600 = vmatprep.mubr.f32.mxu0 0.0
    %v601 = vand.u32 %v42, 4294901760
    %602 = vmatmul.mubr.f32.gmra.mxu0 %v601
    %v603 = vpop.f32.mrf.mxu0
    %v604 = vadd.f32 %v487, %v603
    %v605 = vpop.f32.mrf.mxu0
    %606 = vmatprep.mubr.f32.mxu0 0.0
    %v607 = vand.u32 %v45, 4294901760
    %608 = vmatmul.mubr.f32.gmra.mxu0 %v607
    %v609 = vpop.f32.mrf.mxu0
    %v610 = vadd.f32 %v495, %v609
    %v611 = vpop.f32.mrf.mxu0
    %612 = vmatprep.mubr.f32.mxu0 0.0
    %v613 = vand.u32 %v48, 4294901760
    %614 = vmatmul.mubr.f32.gmra.mxu0 %v613
    %v615 = vpop.f32.mrf.mxu0
    %v616 = vadd.f32 %v503, %v615
    %v617 = vpop.f32.mrf.mxu0
    %618 = vdwg.mxu0
    %619 = vmatprep.subr.mxu0 0.0
    %620 = vmatpush1.msra.mxu0 0.0
    %621 = vmatprep.subr.mxu0 0.0
    %622 = vmatpush1.msra.mxu0 0.0
    %623 = vmatprep.subr.mxu0 0.0
    %624 = vmatpush1.msra.mxu0 0.0
    %625 = vmatprep.subr.mxu0 0.0
    %626 = vmatpush1.msra.mxu0 0.0
    %627 = vmatprep.subr.mxu0 0.0
    %628 = vmatpush1.msra.mxu0 0.0
    %629 = vmatprep.subr.mxu0 0.0
    %630 = vmatpush1.msra.mxu0 0.0
    %631 = vmatprep.subr.mxu0 0.0
    %632 = vmatpush1.msra.mxu0 0.0
    %633 = vmatprep.subr.mxu0 0.0
    %634 = vmatpush1.msra.mxu0 0.0
    %635 = vmatprep.subr.mxu0 0.0
    %v636 = vand.u32 %v36, 4294901760
    %637 = vmatpush1.msra.mxu0 %v636
    %638 = vmatprep.subr.mxu0 0.0
    %v639 = vand.u32 %v35, 4294901760
    %640 = vmatpush1.msra.mxu0 %v639
    %641 = vmatprep.subr.mxu0 0.0
    %v642 = vand.u32 %v34, 4294901760
    %643 = vmatpush1.msra.mxu0 %v642
    %644 = vmatprep.subr.mxu0 0.0
    %v645 = vand.u32 %v33, 4294901760
    %646 = vmatpush1.msra.mxu0 %v645
    %647 = vmatprep.subr.mxu0 0.0
    %v648 = vand.u32 %v32, 4294901760
    %649 = vmatpush1.msra.mxu0 %v648
    %650 = vmatprep.subr.mxu0 0.0
    %v651 = vand.u32 %v31, 4294901760
    %652 = vmatpush1.msra.mxu0 %v651
    %653 = vmatprep.subr.mxu0 0.0
    %v654 = vand.u32 %v30, 4294901760
    %655 = vmatpush1.msra.mxu0 %v654
    %656 = vmatprep.subr.mxu0 0.0
    %v657 = vand.u32 %v29, 4294901760
    %658 = vmatpush1.msra.mxu0 %v657
    %659 = vmatprep.subr.mxu0 0.0
    %660 = vmatpush2.msra.mxu0 0.0
    %661 = vmatprep.subr.mxu0 0.0
    %662 = vmatpush2.msra.mxu0 0.0
    %663 = vmatprep.subr.mxu0 0.0
    %664 = vmatpush2.msra.mxu0 0.0
    %665 = vmatprep.subr.mxu0 0.0
    %666 = vmatpush2.msra.mxu0 0.0
    %667 = vmatprep.subr.mxu0 0.0
    %668 = vmatpush2.msra.mxu0 0.0
    %669 = vmatprep.subr.mxu0 0.0
    %670 = vmatpush2.msra.mxu0 0.0
    %671 = vmatprep.subr.mxu0 0.0
    %672 = vmatpush2.msra.mxu0 0.0
    %673 = vmatprep.subr.mxu0 0.0
    %674 = vmatpush2.msra.mxu0 0.0
    %675 = vmatprep.subr.mxu0 0.0
    %676 = vmatpush2.msra.mxu0 0.0
    %677 = vmatprep.subr.mxu0 0.0
    %678 = vmatpush2.msra.mxu0 0.0
    %679 = vmatprep.subr.mxu0 0.0
    %680 = vmatpush2.msra.mxu0 0.0
    %681 = vmatprep.subr.mxu0 0.0
    %682 = vmatpush2.msra.mxu0 0.0
    %683 = vmatprep.subr.mxu0 0.0
    %684 = vmatpush2.msra.mxu0 0.0
    %685 = vmatprep.subr.mxu0 0.0
    %686 = vmatpush2.msra.mxu0 0.0
    %687 = vmatprep.subr.mxu0 0.0
    %688 = vmatpush2.msra.mxu0 0.0
    %689 = vmatprep.subr.mxu0 0.0
    %690 = vmatpush2.msra.mxu0 0.0
    %691 = vmatprep.mubr.f32.mxu0 0.0
    %v692 = vand.u32 %v39, 4294901760
    %693 = vmatmul.mubr.f32.gmra.mxu0 %v692
    %v694 = vpop.f32.mrf.mxu0
    %v695 = vadd.f32 %v598, %v694
    %v696 = vpop.f32.mrf.mxu0
    %697 = vmatprep.mubr.f32.mxu0 0.0
    %v698 = vand.u32 %v42, 4294901760
    %699 = vmatmul.mubr.f32.gmra.mxu0 %v698
    %v700 = vpop.f32.mrf.mxu0
    %v701 = vadd.f32 %v604, %v700
    %v702 = vpop.f32.mrf.mxu0
    %703 = vmatprep.mubr.f32.mxu0 0.0
    %v704 = vand.u32 %v45, 4294901760
    %705 = vmatmul.mubr.f32.gmra.mxu0 %v704
    %v706 = vpop.f32.mrf.mxu0
    %v707 = vadd.f32 %v610, %v706
    %v708 = vpop.f32.mrf.mxu0
    %709 = vmatprep.mubr.f32.mxu0 0.0
    %v710 = vand.u32 %v48, 4294901760
    %711 = vmatmul.mubr.f32.gmra.mxu0 %v710
    %v712 = vpop.f32.mrf.mxu0
    %v713 = vadd.f32 %v616, %v712
    %v714 = vpop.f32.mrf.mxu0
    %715 = vdwg.mxu0
    %v716 = vld [vmem:[%s2 + $0xa0] sm:$0xff]
    %v717 = vld [vmem:[%s2 + $0xa8] sm:$0xff]
    %v718 = vld [vmem:[%s2 + $0xb0] sm:$0xff]
    %v719 = vld [vmem:[%s2 + $0xb8] sm:$0xff]
    %v720 = vld [vmem:[%s2 + $0xc0] sm:$0xff]
    %v721 = vld [vmem:[%s2 + $0xc8] sm:$0xff]
    %v722 = vld [vmem:[%s2 + $0xd0] sm:$0xff]
    %v723 = vld [vmem:[%s2 + $0xd8] sm:$0xff]
    %v724 = vsel %vm37, %v695, 0.0
    %v725 = vsel %vm37, %v701, 0.0
    %v726 = vadd.f32 %v724, %v725
    %v727 = vsel %vm37, %v707, 0.0
    %v728 = vadd.f32 %v726, %v727
    %v729 = vsel %vm37, %v713, 0.0
    %v730 = vadd.f32 %v728, %v729
    %v731 = vrot.slane %v730, 4
    %v732 = vadd.f32 %v730, %v731
    %v733 = vrot.slane %v732, 2
    %v734 = vadd.f32 %v732, %v733
    %v735 = vrot.slane %v734, 1
    %v736 = vadd.f32 %v734, %v735
    %v738 = vsel %vm37, %v736, 0
    %740 = vmatprep.subr.mxu0 0.0
    %741 = vmatpush1.msra.mxu0 0.0
    %742 = vmatprep.subr.mxu0 0.0
    %743 = vmatpush1.msra.mxu0 0.0
    %744 = vmatprep.subr.mxu0 0.0
    %745 = vmatpush1.msra.mxu0 0.0
    %746 = vmatprep.subr.mxu0 0.0
    %747 = vmatpush1.msra.mxu0 0.0
    %748 = vmatprep.subr.mxu0 0.0
    %749 = vmatpush1.msra.mxu0 0.0
    %750 = vmatprep.subr.mxu0 0.0
    %751 = vmatpush1.msra.mxu0 0.0
    %752 = vmatprep.subr.mxu0 0.0
    %753 = vmatpush1.msra.mxu0 0.0
    %754 = vmatprep.subr.mxu0 0.0
    %755 = vmatpush1.msra.mxu0 0.0
    %756 = vmatprep.subr.mxu0 0.0
    %v757 = vand.u32 %v723, 4294901760
    %758 = vmatpush1.msra.mxu0 %v757
    %759 = vmatprep.subr.mxu0 0.0
    %v760 = vand.u32 %v722, 4294901760
    %761 = vmatpush1.msra.mxu0 %v760
    %762 = vmatprep.subr.mxu0 0.0
    %v763 = vand.u32 %v721, 4294901760
    %764 = vmatpush1.msra.mxu0 %v763
    %765 = vmatprep.subr.mxu0 0.0
    %v766 = vand.u32 %v720, 4294901760
    %767 = vmatpush1.msra.mxu0 %v766
    %768 = vmatprep.subr.mxu0 0.0
    %v769 = vand.u32 %v719, 4294901760
    %770 = vmatpush1.msra.mxu0 %v769
    %771 = vmatprep.subr.mxu0 0.0
    %v772 = vand.u32 %v718, 4294901760
    %773 = vmatpush1.msra.mxu0 %v772
    %774 = vmatprep.subr.mxu0 0.0
    %v775 = vand.u32 %v717, 4294901760
    %776 = vmatpush1.msra.mxu0 %v775
    %777 = vmatprep.subr.mxu0 0.0
    %v778 = vand.u32 %v716, 4294901760
    %779 = vmatpush1.msra.mxu0 %v778
    %780 = vmatprep.subr.mxu0 0.0
    %781 = vmatpush2.msra.mxu0 0.0
    %782 = vmatprep.subr.mxu0 0.0
    %783 = vmatpush2.msra.mxu0 0.0
    %784 = vmatprep.subr.mxu0 0.0
    %785 = vmatpush2.msra.mxu0 0.0
    %786 = vmatprep.subr.mxu0 0.0
    %787 = vmatpush2.msra.mxu0 0.0
    %788 = vmatprep.subr.mxu0 0.0
    %789 = vmatpush2.msra.mxu0 0.0
    %790 = vmatprep.subr.mxu0 0.0
    %791 = vmatpush2.msra.mxu0 0.0
    %792 = vmatprep.subr.mxu0 0.0
    %793 = vmatpush2.msra.mxu0 0.0
    %794 = vmatprep.subr.mxu0 0.0
    %795 = vmatpush2.msra.mxu0 0.0
    %796 = vmatprep.subr.mxu0 0.0
    %797 = vmatpush2.msra.mxu0 0.0
    %798 = vmatprep.subr.mxu0 0.0
    %799 = vmatpush2.msra.mxu0 0.0
    %800 = vmatprep.subr.mxu0 0.0
    %801 = vmatpush2.msra.mxu0 0.0
    %802 = vmatprep.subr.mxu0 0.0
    %803 = vmatpush2.msra.mxu0 0.0
    %804 = vmatprep.subr.mxu0 0.0
    %805 = vmatpush2.msra.mxu0 0.0
    %806 = vmatprep.subr.mxu0 0.0
    %807 = vmatpush2.msra.mxu0 0.0
    %808 = vmatprep.subr.mxu0 0.0
    %809 = vmatpush2.msra.mxu0 0.0
    %810 = vmatprep.subr.mxu0 0.0
    %811 = vmatpush2.msra.mxu0 0.0
    %812 = vmatprep.mubr.f32.mxu0 0.0
    %v813 = vand.u32 %v738, 4294901760
    %v814 = vsub.f32 %v738, %v813
    %v815 = vand.u32 %v814, 4294901760
    %v816 = vsub.f32 %v814, %v815
    %v817 = vand.u32 %v816, 4294901760
    %818 = vmatmul.mubr.f32.gmra.mxu0 %v817
    %v819 = vpop.f32.mrf.mxu0
    %v820 = vadd.f32 0.0, %v819
    %v821 = vpop.f32.mrf.mxu0
    %822 = vdwg.mxu0
    %823 = vmatprep.subr.mxu0 0.0
    %824 = vmatpush1.msra.mxu0 0.0
    %825 = vmatprep.subr.mxu0 0.0
    %826 = vmatpush1.msra.mxu0 0.0
    %827 = vmatprep.subr.mxu0 0.0
    %828 = vmatpush1.msra.mxu0 0.0
    %829 = vmatprep.subr.mxu0 0.0
    %830 = vmatpush1.msra.mxu0 0.0
    %831 = vmatprep.subr.mxu0 0.0
    %832 = vmatpush1.msra.mxu0 0.0
    %833 = vmatprep.subr.mxu0 0.0
    %834 = vmatpush1.msra.mxu0 0.0
    %835 = vmatprep.subr.mxu0 0.0
    %836 = vmatpush1.msra.mxu0 0.0
    %837 = vmatprep.subr.mxu0 0.0
    %838 = vmatpush1.msra.mxu0 0.0
    %839 = vmatprep.subr.mxu0 0.0
    %v840 = vand.u32 %v723, 4294901760
    %v841 = vsub.f32 %v723, %v840
    %v842 = vand.u32 %v841, 4294901760
    %v843 = vsub.f32 %v841, %v842
    %v844 = vand.u32 %v843, 4294901760
    %845 = vmatpush1.msra.mxu0 %v844
    %846 = vmatprep.subr.mxu0 0.0
    %v847 = vand.u32 %v722, 4294901760
    %v848 = vsub.f32 %v722, %v847
    %v849 = vand.u32 %v848, 4294901760
    %v850 = vsub.f32 %v848, %v849
    %v851 = vand.u32 %v850, 4294901760
    %852 = vmatpush1.msra.mxu0 %v851
    %853 = vmatprep.subr.mxu0 0.0
    %v854 = vand.u32 %v721, 4294901760
    %v855 = vsub.f32 %v721, %v854
    %v856 = vand.u32 %v855, 4294901760
    %v857 = vsub.f32 %v855, %v856
    %v858 = vand.u32 %v857, 4294901760
    %859 = vmatpush1.msra.mxu0 %v858
    %860 = vmatprep.subr.mxu0 0.0
    %v861 = vand.u32 %v720, 4294901760
    %v862 = vsub.f32 %v720, %v861
    %v863 = vand.u32 %v862, 4294901760
    %v864 = vsub.f32 %v862, %v863
    %v865 = vand.u32 %v864, 4294901760
    %866 = vmatpush1.msra.mxu0 %v865
    %867 = vmatprep.subr.mxu0 0.0
    %v868 = vand.u32 %v719, 4294901760
    %v869 = vsub.f32 %v719, %v868
    %v870 = vand.u32 %v869, 4294901760
    %v871 = vsub.f32 %v869, %v870
    %v872 = vand.u32 %v871, 4294901760
    %873 = vmatpush1.msra.mxu0 %v872
    %874 = vmatprep.subr.mxu0 0.0
    %v875 = vand.u32 %v718, 4294901760
    %v876 = vsub.f32 %v718, %v875
    %v877 = vand.u32 %v876, 4294901760
    %v878 = vsub.f32 %v876, %v877
    %v879 = vand.u32 %v878, 4294901760
    %880 = vmatpush1.msra.mxu0 %v879
    %881 = vmatprep.subr.mxu0 0.0
    %v882 = vand.u32 %v717, 4294901760
    %v883 = vsub.f32 %v717, %v882
    %v884 = vand.u32 %v883, 4294901760
    %v885 = vsub.f32 %v883, %v884
    %v886 = vand.u32 %v885, 4294901760
    %887 = vmatpush1.msra.mxu0 %v886
    %888 = vmatprep.subr.mxu0 0.0
    %v889 = vand.u32 %v716, 4294901760
    %v890 = vsub.f32 %v716, %v889
    %v891 = vand.u32 %v890, 4294901760
    %v892 = vsub.f32 %v890, %v891
    %v893 = vand.u32 %v892, 4294901760
    %894 = vmatpush1.msra.mxu0 %v893
    %895 = vmatprep.subr.mxu0 0.0
    %896 = vmatpush2.msra.mxu0 0.0
    %897 = vmatprep.subr.mxu0 0.0
    %898 = vmatpush2.msra.mxu0 0.0
    %899 = vmatprep.subr.mxu0 0.0
    %900 = vmatpush2.msra.mxu0 0.0
    %901 = vmatprep.subr.mxu0 0.0
    %902 = vmatpush2.msra.mxu0 0.0
    %903 = vmatprep.subr.mxu0 0.0
    %904 = vmatpush2.msra.mxu0 0.0
    %905 = vmatprep.subr.mxu0 0.0
    %906 = vmatpush2.msra.mxu0 0.0
    %907 = vmatprep.subr.mxu0 0.0
    %908 = vmatpush2.msra.mxu0 0.0
    %909 = vmatprep.subr.mxu0 0.0
    %910 = vmatpush2.msra.mxu0 0.0
    %911 = vmatprep.subr.mxu0 0.0
    %912 = vmatpush2.msra.mxu0 0.0
    %913 = vmatprep.subr.mxu0 0.0
    %914 = vmatpush2.msra.mxu0 0.0
    %915 = vmatprep.subr.mxu0 0.0
    %916 = vmatpush2.msra.mxu0 0.0
    %917 = vmatprep.subr.mxu0 0.0
    %918 = vmatpush2.msra.mxu0 0.0
    %919 = vmatprep.subr.mxu0 0.0
    %920 = vmatpush2.msra.mxu0 0.0
    %921 = vmatprep.subr.mxu0 0.0
    %922 = vmatpush2.msra.mxu0 0.0
    %923 = vmatprep.subr.mxu0 0.0
    %924 = vmatpush2.msra.mxu0 0.0
    %925 = vmatprep.subr.mxu0 0.0
    %926 = vmatpush2.msra.mxu0 0.0
    %927 = vmatprep.mubr.f32.mxu0 0.0
    %v928 = vand.u32 %v738, 4294901760
    %929 = vmatmul.mubr.f32.gmra.mxu0 %v928
    %v930 = vpop.f32.mrf.mxu0
    %v931 = vadd.f32 %v820, %v930
    %v932 = vpop.f32.mrf.mxu0
    %933 = vdwg.mxu0
    %934 = vmatprep.subr.mxu0 0.0
    %935 = vmatpush1.msra.mxu0 0.0
    %936 = vmatprep.subr.mxu0 0.0
    %937 = vmatpush1.msra.mxu0 0.0
    %938 = vmatprep.subr.mxu0 0.0
    %939 = vmatpush1.msra.mxu0 0.0
    %940 = vmatprep.subr.mxu0 0.0
    %941 = vmatpush1.msra.mxu0 0.0
    %942 = vmatprep.subr.mxu0 0.0
    %943 = vmatpush1.msra.mxu0 0.0
    %944 = vmatprep.subr.mxu0 0.0
    %945 = vmatpush1.msra.mxu0 0.0
    %946 = vmatprep.subr.mxu0 0.0
    %947 = vmatpush1.msra.mxu0 0.0
    %948 = vmatprep.subr.mxu0 0.0
    %949 = vmatpush1.msra.mxu0 0.0
    %950 = vmatprep.subr.mxu0 0.0
    %v951 = vand.u32 %v723, 4294901760
    %v952 = vsub.f32 %v723, %v951
    %953 = vmatpush1.msra.mxu0 %v952
    %954 = vmatprep.subr.mxu0 0.0
    %v955 = vand.u32 %v722, 4294901760
    %v956 = vsub.f32 %v722, %v955
    %957 = vmatpush1.msra.mxu0 %v956
    %958 = vmatprep.subr.mxu0 0.0
    %v959 = vand.u32 %v721, 4294901760
    %v960 = vsub.f32 %v721, %v959
    %961 = vmatpush1.msra.mxu0 %v960
    %962 = vmatprep.subr.mxu0 0.0
    %v963 = vand.u32 %v720, 4294901760
    %v964 = vsub.f32 %v720, %v963
    %965 = vmatpush1.msra.mxu0 %v964
    %966 = vmatprep.subr.mxu0 0.0
    %v967 = vand.u32 %v719, 4294901760
    %v968 = vsub.f32 %v719, %v967
    %969 = vmatpush1.msra.mxu0 %v968
    %970 = vmatprep.subr.mxu0 0.0
    %v971 = vand.u32 %v718, 4294901760
    %v972 = vsub.f32 %v718, %v971
    %973 = vmatpush1.msra.mxu0 %v972
    %974 = vmatprep.subr.mxu0 0.0
    %v975 = vand.u32 %v717, 4294901760
    %v976 = vsub.f32 %v717, %v975
    %977 = vmatpush1.msra.mxu0 %v976
    %978 = vmatprep.subr.mxu0 0.0
    %v979 = vand.u32 %v716, 4294901760
    %v980 = vsub.f32 %v716, %v979
    %981 = vmatpush1.msra.mxu0 %v980
    %982 = vmatprep.subr.mxu0 0.0
    %983 = vmatpush2.msra.mxu0 0.0
    %984 = vmatprep.subr.mxu0 0.0
    %985 = vmatpush2.msra.mxu0 0.0
    %986 = vmatprep.subr.mxu0 0.0
    %987 = vmatpush2.msra.mxu0 0.0
    %988 = vmatprep.subr.mxu0 0.0
    %989 = vmatpush2.msra.mxu0 0.0
    %990 = vmatprep.subr.mxu0 0.0
    %991 = vmatpush2.msra.mxu0 0.0
    %992 = vmatprep.subr.mxu0 0.0
    %993 = vmatpush2.msra.mxu0 0.0
    %994 = vmatprep.subr.mxu0 0.0
    %995 = vmatpush2.msra.mxu0 0.0
    %996 = vmatprep.subr.mxu0 0.0
    %997 = vmatpush2.msra.mxu0 0.0
    %998 = vmatprep.subr.mxu0 0.0
    %999 = vmatpush2.msra.mxu0 0.0
    %1000 = vmatprep.subr.mxu0 0.0
    %1001 = vmatpush2.msra.mxu0 0.0
    %1002 = vmatprep.subr.mxu0 0.0
    %1003 = vmatpush2.msra.mxu0 0.0
    %1004 = vmatprep.subr.mxu0 0.0
    %1005 = vmatpush2.msra.mxu0 0.0
    %1006 = vmatprep.subr.mxu0 0.0
    %1007 = vmatpush2.msra.mxu0 0.0
    %1008 = vmatprep.subr.mxu0 0.0
    %1009 = vmatpush2.msra.mxu0 0.0
    %1010 = vmatprep.subr.mxu0 0.0
    %1011 = vmatpush2.msra.mxu0 0.0
    %1012 = vmatprep.subr.mxu0 0.0
    %1013 = vmatpush2.msra.mxu0 0.0
    %1014 = vmatprep.mubr.f32.mxu0 0.0
    %v1015 = vand.u32 %v738, 4294901760
    %v1016 = vsub.f32 %v738, %v1015
    %1017 = vmatmul.mubr.f32.gmra.mxu0 %v1016
    %v1018 = vpop.f32.mrf.mxu0
    %v1019 = vadd.f32 %v931, %v1018
    %v1020 = vpop.f32.mrf.mxu0
    %1021 = vdwg.mxu0
    %1022 = vmatprep.subr.mxu0 0.0
    %1023 = vmatpush1.msra.mxu0 0.0
    %1024 = vmatprep.subr.mxu0 0.0
    %1025 = vmatpush1.msra.mxu0 0.0
    %1026 = vmatprep.subr.mxu0 0.0
    %1027 = vmatpush1.msra.mxu0 0.0
    %1028 = vmatprep.subr.mxu0 0.0
    %1029 = vmatpush1.msra.mxu0 0.0
    %1030 = vmatprep.subr.mxu0 0.0
    %1031 = vmatpush1.msra.mxu0 0.0
    %1032 = vmatprep.subr.mxu0 0.0
    %1033 = vmatpush1.msra.mxu0 0.0
    %1034 = vmatprep.subr.mxu0 0.0
    %1035 = vmatpush1.msra.mxu0 0.0
    %1036 = vmatprep.subr.mxu0 0.0
    %1037 = vmatpush1.msra.mxu0 0.0
    %1038 = vmatprep.subr.mxu0 0.0
    %v1039 = vand.u32 %v723, 4294901760
    %1040 = vmatpush1.msra.mxu0 %v1039
    %1041 = vmatprep.subr.mxu0 0.0
    %v1042 = vand.u32 %v722, 4294901760
    %1043 = vmatpush1.msra.mxu0 %v1042
    %1044 = vmatprep.subr.mxu0 0.0
    %v1045 = vand.u32 %v721, 4294901760
    %1046 = vmatpush1.msra.mxu0 %v1045
    %1047 = vmatprep.subr.mxu0 0.0
    %v1048 = vand.u32 %v720, 4294901760
    %1049 = vmatpush1.msra.mxu0 %v1048
    %1050 = vmatprep.subr.mxu0 0.0
    %v1051 = vand.u32 %v719, 4294901760
    %1052 = vmatpush1.msra.mxu0 %v1051
    %1053 = vmatprep.subr.mxu0 0.0
    %v1054 = vand.u32 %v718, 4294901760
    %1055 = vmatpush1.msra.mxu0 %v1054
    %1056 = vmatprep.subr.mxu0 0.0
    %v1057 = vand.u32 %v717, 4294901760
    %1058 = vmatpush1.msra.mxu0 %v1057
    %1059 = vmatprep.subr.mxu0 0.0
    %v1060 = vand.u32 %v716, 4294901760
    %1061 = vmatpush1.msra.mxu0 %v1060
    %1062 = vmatprep.subr.mxu0 0.0
    %1063 = vmatpush2.msra.mxu0 0.0
    %1064 = vmatprep.subr.mxu0 0.0
    %1065 = vmatpush2.msra.mxu0 0.0
    %1066 = vmatprep.subr.mxu0 0.0
    %1067 = vmatpush2.msra.mxu0 0.0
    %1068 = vmatprep.subr.mxu0 0.0
    %1069 = vmatpush2.msra.mxu0 0.0
    %1070 = vmatprep.subr.mxu0 0.0
    %1071 = vmatpush2.msra.mxu0 0.0
    %1072 = vmatprep.subr.mxu0 0.0
    %1073 = vmatpush2.msra.mxu0 0.0
    %1074 = vmatprep.subr.mxu0 0.0
    %1075 = vmatpush2.msra.mxu0 0.0
    %1076 = vmatprep.subr.mxu0 0.0
    %1077 = vmatpush2.msra.mxu0 0.0
    %1078 = vmatprep.subr.mxu0 0.0
    %1079 = vmatpush2.msra.mxu0 0.0
    %1080 = vmatprep.subr.mxu0 0.0
    %1081 = vmatpush2.msra.mxu0 0.0
    %1082 = vmatprep.subr.mxu0 0.0
    %1083 = vmatpush2.msra.mxu0 0.0
    %1084 = vmatprep.subr.mxu0 0.0
    %1085 = vmatpush2.msra.mxu0 0.0
    %1086 = vmatprep.subr.mxu0 0.0
    %1087 = vmatpush2.msra.mxu0 0.0
    %1088 = vmatprep.subr.mxu0 0.0
    %1089 = vmatpush2.msra.mxu0 0.0
    %1090 = vmatprep.subr.mxu0 0.0
    %1091 = vmatpush2.msra.mxu0 0.0
    %1092 = vmatprep.subr.mxu0 0.0
    %1093 = vmatpush2.msra.mxu0 0.0
    %1094 = vmatprep.mubr.f32.mxu0 0.0
    %v1095 = vand.u32 %v738, 4294901760
    %v1096 = vsub.f32 %v738, %v1095
    %v1097 = vand.u32 %v1096, 4294901760
    %1098 = vmatmul.mubr.f32.gmra.mxu0 %v1097
    %v1099 = vpop.f32.mrf.mxu0
    %v1100 = vadd.f32 %v1019, %v1099
    %v1101 = vpop.f32.mrf.mxu0
    %1102 = vdwg.mxu0
    %1103 = vmatprep.subr.mxu0 0.0
    %1104 = vmatpush1.msra.mxu0 0.0
    %1105 = vmatprep.subr.mxu0 0.0
    %1106 = vmatpush1.msra.mxu0 0.0
    %1107 = vmatprep.subr.mxu0 0.0
    %1108 = vmatpush1.msra.mxu0 0.0
    %1109 = vmatprep.subr.mxu0 0.0
    %1110 = vmatpush1.msra.mxu0 0.0
    %1111 = vmatprep.subr.mxu0 0.0
    %1112 = vmatpush1.msra.mxu0 0.0
    %1113 = vmatprep.subr.mxu0 0.0
    %1114 = vmatpush1.msra.mxu0 0.0
    %1115 = vmatprep.subr.mxu0 0.0
    %1116 = vmatpush1.msra.mxu0 0.0
    %1117 = vmatprep.subr.mxu0 0.0
    %1118 = vmatpush1.msra.mxu0 0.0
    %1119 = vmatprep.subr.mxu0 0.0
    %v1120 = vand.u32 %v723, 4294901760
    %v1121 = vsub.f32 %v723, %v1120
    %v1122 = vand.u32 %v1121, 4294901760
    %1123 = vmatpush1.msra.mxu0 %v1122
    %1124 = vmatprep.subr.mxu0 0.0
    %v1125 = vand.u32 %v722, 4294901760
    %v1126 = vsub.f32 %v722, %v1125
    %v1127 = vand.u32 %v1126, 4294901760
    %1128 = vmatpush1.msra.mxu0 %v1127
    %1129 = vmatprep.subr.mxu0 0.0
    %v1130 = vand.u32 %v721, 4294901760
    %v1131 = vsub.f32 %v721, %v1130
    %v1132 = vand.u32 %v1131, 4294901760
    %1133 = vmatpush1.msra.mxu0 %v1132
    %1134 = vmatprep.subr.mxu0 0.0
    %v1135 = vand.u32 %v720, 4294901760
    %v1136 = vsub.f32 %v720, %v1135
    %v1137 = vand.u32 %v1136, 4294901760
    %1138 = vmatpush1.msra.mxu0 %v1137
    %1139 = vmatprep.subr.mxu0 0.0
    %v1140 = vand.u32 %v719, 4294901760
    %v1141 = vsub.f32 %v719, %v1140
    %v1142 = vand.u32 %v1141, 4294901760
    %1143 = vmatpush1.msra.mxu0 %v1142
    %1144 = vmatprep.subr.mxu0 0.0
    %v1145 = vand.u32 %v718, 4294901760
    %v1146 = vsub.f32 %v718, %v1145
    %v1147 = vand.u32 %v1146, 4294901760
    %1148 = vmatpush1.msra.mxu0 %v1147
    %1149 = vmatprep.subr.mxu0 0.0
    %v1150 = vand.u32 %v717, 4294901760
    %v1151 = vsub.f32 %v717, %v1150
    %v1152 = vand.u32 %v1151, 4294901760
    %1153 = vmatpush1.msra.mxu0 %v1152
    %1154 = vmatprep.subr.mxu0 0.0
    %v1155 = vand.u32 %v716, 4294901760
    %v1156 = vsub.f32 %v716, %v1155
    %v1157 = vand.u32 %v1156, 4294901760
    %1158 = vmatpush1.msra.mxu0 %v1157
    %1159 = vmatprep.subr.mxu0 0.0
    %1160 = vmatpush2.msra.mxu0 0.0
    %1161 = vmatprep.subr.mxu0 0.0
    %1162 = vmatpush2.msra.mxu0 0.0
    %1163 = vmatprep.subr.mxu0 0.0
    %1164 = vmatpush2.msra.mxu0 0.0
    %1165 = vmatprep.subr.mxu0 0.0
    %1166 = vmatpush2.msra.mxu0 0.0
    %1167 = vmatprep.subr.mxu0 0.0
    %1168 = vmatpush2.msra.mxu0 0.0
    %1169 = vmatprep.subr.mxu0 0.0
    %1170 = vmatpush2.msra.mxu0 0.0
    %1171 = vmatprep.subr.mxu0 0.0
    %1172 = vmatpush2.msra.mxu0 0.0
    %1173 = vmatprep.subr.mxu0 0.0
    %1174 = vmatpush2.msra.mxu0 0.0
    %1175 = vmatprep.subr.mxu0 0.0
    %1176 = vmatpush2.msra.mxu0 0.0
    %1177 = vmatprep.subr.mxu0 0.0
    %1178 = vmatpush2.msra.mxu0 0.0
    %1179 = vmatprep.subr.mxu0 0.0
    %1180 = vmatpush2.msra.mxu0 0.0
    %1181 = vmatprep.subr.mxu0 0.0
    %1182 = vmatpush2.msra.mxu0 0.0
    %1183 = vmatprep.subr.mxu0 0.0
    %1184 = vmatpush2.msra.mxu0 0.0
    %1185 = vmatprep.subr.mxu0 0.0
    %1186 = vmatpush2.msra.mxu0 0.0
    %1187 = vmatprep.subr.mxu0 0.0
    %1188 = vmatpush2.msra.mxu0 0.0
    %1189 = vmatprep.subr.mxu0 0.0
    %1190 = vmatpush2.msra.mxu0 0.0
    %1191 = vmatprep.mubr.f32.mxu0 0.0
    %v1192 = vand.u32 %v738, 4294901760
    %1193 = vmatmul.mubr.f32.gmra.mxu0 %v1192
    %v1194 = vpop.f32.mrf.mxu0
    %v1195 = vadd.f32 %v1100, %v1194
    %v1196 = vpop.f32.mrf.mxu0
    %1197 = vdwg.mxu0
    %1198 = vmatprep.subr.mxu0 0.0
    %1199 = vmatpush1.msra.mxu0 0.0
    %1200 = vmatprep.subr.mxu0 0.0
    %1201 = vmatpush1.msra.mxu0 0.0
    %1202 = vmatprep.subr.mxu0 0.0
    %1203 = vmatpush1.msra.mxu0 0.0
    %1204 = vmatprep.subr.mxu0 0.0
    %1205 = vmatpush1.msra.mxu0 0.0
    %1206 = vmatprep.subr.mxu0 0.0
    %1207 = vmatpush1.msra.mxu0 0.0
    %1208 = vmatprep.subr.mxu0 0.0
    %1209 = vmatpush1.msra.mxu0 0.0
    %1210 = vmatprep.subr.mxu0 0.0
    %1211 = vmatpush1.msra.mxu0 0.0
    %1212 = vmatprep.subr.mxu0 0.0
    %1213 = vmatpush1.msra.mxu0 0.0
    %1214 = vmatprep.subr.mxu0 0.0
    %v1215 = vand.u32 %v723, 4294901760
    %1216 = vmatpush1.msra.mxu0 %v1215
    %1217 = vmatprep.subr.mxu0 0.0
    %v1218 = vand.u32 %v722, 4294901760
    %1219 = vmatpush1.msra.mxu0 %v1218
    %1220 = vmatprep.subr.mxu0 0.0
    %v1221 = vand.u32 %v721, 4294901760
    %1222 = vmatpush1.msra.mxu0 %v1221
    %1223 = vmatprep.subr.mxu0 0.0
    %v1224 = vand.u32 %v720, 4294901760
    %1225 = vmatpush1.msra.mxu0 %v1224
    %1226 = vmatprep.subr.mxu0 0.0
    %v1227 = vand.u32 %v719, 4294901760
    %1228 = vmatpush1.msra.mxu0 %v1227
    %1229 = vmatprep.subr.mxu0 0.0
    %v1230 = vand.u32 %v718, 4294901760
    %1231 = vmatpush1.msra.mxu0 %v1230
    %1232 = vmatprep.subr.mxu0 0.0
    %v1233 = vand.u32 %v717, 4294901760
    %1234 = vmatpush1.msra.mxu0 %v1233
    %1235 = vmatprep.subr.mxu0 0.0
    %v1236 = vand.u32 %v716, 4294901760
    %1237 = vmatpush1.msra.mxu0 %v1236
    %1238 = vmatprep.subr.mxu0 0.0
    %1239 = vmatpush2.msra.mxu0 0.0
    %1240 = vmatprep.subr.mxu0 0.0
    %1241 = vmatpush2.msra.mxu0 0.0
    %1242 = vmatprep.subr.mxu0 0.0
    %1243 = vmatpush2.msra.mxu0 0.0
    %1244 = vmatprep.subr.mxu0 0.0
    %1245 = vmatpush2.msra.mxu0 0.0
    %1246 = vmatprep.subr.mxu0 0.0
    %1247 = vmatpush2.msra.mxu0 0.0
    %1248 = vmatprep.subr.mxu0 0.0
    %1249 = vmatpush2.msra.mxu0 0.0
    %1250 = vmatprep.subr.mxu0 0.0
    %1251 = vmatpush2.msra.mxu0 0.0
    %1252 = vmatprep.subr.mxu0 0.0
    %1253 = vmatpush2.msra.mxu0 0.0
    %1254 = vmatprep.subr.mxu0 0.0
    %1255 = vmatpush2.msra.mxu0 0.0
    %1256 = vmatprep.subr.mxu0 0.0
    %1257 = vmatpush2.msra.mxu0 0.0
    %1258 = vmatprep.subr.mxu0 0.0
    %1259 = vmatpush2.msra.mxu0 0.0
    %1260 = vmatprep.subr.mxu0 0.0
    %1261 = vmatpush2.msra.mxu0 0.0
    %1262 = vmatprep.subr.mxu0 0.0
    %1263 = vmatpush2.msra.mxu0 0.0
    %1264 = vmatprep.subr.mxu0 0.0
    %1265 = vmatpush2.msra.mxu0 0.0
    %1266 = vmatprep.subr.mxu0 0.0
    %1267 = vmatpush2.msra.mxu0 0.0
    %1268 = vmatprep.subr.mxu0 0.0
    %1269 = vmatpush2.msra.mxu0 0.0
    %1270 = vmatprep.mubr.f32.mxu0 0.0
    %v1271 = vand.u32 %v738, 4294901760
    %1272 = vmatmul.mubr.f32.gmra.mxu0 %v1271
    %v1273 = vpop.f32.mrf.mxu0
    %v1274 = vadd.f32 %v1195, %v1273
    %v1275 = vpop.f32.mrf.mxu0
    %1276 = vdwg.mxu0
    %v1277 = vmul.f32 %v695, %v695
    %v1278 = vmul.f32 %v701, %v701
    %v1279 = vmul.f32 %v707, %v707
    %v1280 = vmul.f32 %v713, %v713
    %v1281 = vsel %vm37, %v1277, 0.0
    %v1282 = vsel %vm37, %v1278, 0.0
    %v1283 = vadd.f32 %v1281, %v1282
    %v1284 = vsel %vm37, %v1279, 0.0
    %v1285 = vadd.f32 %v1283, %v1284
    %v1286 = vsel %vm37, %v1280, 0.0
    %v1287 = vadd.f32 %v1285, %v1286
    %v1288 = vrot.slane %v1287, 4
    %v1289 = vadd.f32 %v1287, %v1288
    %v1290 = vrot.slane %v1289, 2
    %v1291 = vadd.f32 %v1289, %v1290
    %v1292 = vrot.slane %v1291, 1
    %v1293 = vadd.f32 %v1291, %v1292
    %v1295 = vsel %vm37, %v1293, 0
    %1297 = vmatprep.subr.mxu0 0.0
    %1298 = vmatpush1.msra.mxu0 0.0
    %1299 = vmatprep.subr.mxu0 0.0
    %1300 = vmatpush1.msra.mxu0 0.0
    %1301 = vmatprep.subr.mxu0 0.0
    %1302 = vmatpush1.msra.mxu0 0.0
    %1303 = vmatprep.subr.mxu0 0.0
    %1304 = vmatpush1.msra.mxu0 0.0
    %1305 = vmatprep.subr.mxu0 0.0
    %1306 = vmatpush1.msra.mxu0 0.0
    %1307 = vmatprep.subr.mxu0 0.0
    %1308 = vmatpush1.msra.mxu0 0.0
    %1309 = vmatprep.subr.mxu0 0.0
    %1310 = vmatpush1.msra.mxu0 0.0
    %1311 = vmatprep.subr.mxu0 0.0
    %1312 = vmatpush1.msra.mxu0 0.0
    %1313 = vmatprep.subr.mxu0 0.0
    %v1314 = vand.u32 %v723, 4294901760
    %1315 = vmatpush1.msra.mxu0 %v1314
    %1316 = vmatprep.subr.mxu0 0.0
    %v1317 = vand.u32 %v722, 4294901760
    %1318 = vmatpush1.msra.mxu0 %v1317
    %1319 = vmatprep.subr.mxu0 0.0
    %v1320 = vand.u32 %v721, 4294901760
    %1321 = vmatpush1.msra.mxu0 %v1320
    %1322 = vmatprep.subr.mxu0 0.0
    %v1323 = vand.u32 %v720, 4294901760
    %1324 = vmatpush1.msra.mxu0 %v1323
    %1325 = vmatprep.subr.mxu0 0.0
    %v1326 = vand.u32 %v719, 4294901760
    %1327 = vmatpush1.msra.mxu0 %v1326
    %1328 = vmatprep.subr.mxu0 0.0
    %v1329 = vand.u32 %v718, 4294901760
    %1330 = vmatpush1.msra.mxu0 %v1329
    %1331 = vmatprep.subr.mxu0 0.0
    %v1332 = vand.u32 %v717, 4294901760
    %1333 = vmatpush1.msra.mxu0 %v1332
    %1334 = vmatprep.subr.mxu0 0.0
    %v1335 = vand.u32 %v716, 4294901760
    %1336 = vmatpush1.msra.mxu0 %v1335
    %1337 = vmatprep.subr.mxu0 0.0
    %1338 = vmatpush2.msra.mxu0 0.0
    %1339 = vmatprep.subr.mxu0 0.0
    %1340 = vmatpush2.msra.mxu0 0.0
    %1341 = vmatprep.subr.mxu0 0.0
    %1342 = vmatpush2.msra.mxu0 0.0
    %1343 = vmatprep.subr.mxu0 0.0
    %1344 = vmatpush2.msra.mxu0 0.0
    %1345 = vmatprep.subr.mxu0 0.0
    %1346 = vmatpush2.msra.mxu0 0.0
    %1347 = vmatprep.subr.mxu0 0.0
    %1348 = vmatpush2.msra.mxu0 0.0
    %1349 = vmatprep.subr.mxu0 0.0
    %1350 = vmatpush2.msra.mxu0 0.0
    %1351 = vmatprep.subr.mxu0 0.0
    %1352 = vmatpush2.msra.mxu0 0.0
    %1353 = vmatprep.subr.mxu0 0.0
    %1354 = vmatpush2.msra.mxu0 0.0
    %1355 = vmatprep.subr.mxu0 0.0
    %1356 = vmatpush2.msra.mxu0 0.0
    %1357 = vmatprep.subr.mxu0 0.0
    %1358 = vmatpush2.msra.mxu0 0.0
    %1359 = vmatprep.subr.mxu0 0.0
    %1360 = vmatpush2.msra.mxu0 0.0
    %1361 = vmatprep.subr.mxu0 0.0
    %1362 = vmatpush2.msra.mxu0 0.0
    %1363 = vmatprep.subr.mxu0 0.0
    %1364 = vmatpush2.msra.mxu0 0.0
    %1365 = vmatprep.subr.mxu0 0.0
    %1366 = vmatpush2.msra.mxu0 0.0
    %1367 = vmatprep.subr.mxu0 0.0
    %1368 = vmatpush2.msra.mxu0 0.0
    %1369 = vmatprep.mubr.f32.mxu0 0.0
    %v1370 = vand.u32 %v1295, 4294901760
    %v1371 = vsub.f32 %v1295, %v1370
    %v1372 = vand.u32 %v1371, 4294901760
    %v1373 = vsub.f32 %v1371, %v1372
    %v1374 = vand.u32 %v1373, 4294901760
    %1375 = vmatmul.mubr.f32.gmra.mxu0 %v1374
    %v1376 = vpop.f32.mrf.mxu0
    %v1377 = vadd.f32 0.0, %v1376
    %v1378 = vpop.f32.mrf.mxu0
    %1379 = vdwg.mxu0
    %1380 = vmatprep.subr.mxu0 0.0
    %1381 = vmatpush1.msra.mxu0 0.0
    %1382 = vmatprep.subr.mxu0 0.0
    %1383 = vmatpush1.msra.mxu0 0.0
    %1384 = vmatprep.subr.mxu0 0.0
    %1385 = vmatpush1.msra.mxu0 0.0
    %1386 = vmatprep.subr.mxu0 0.0
    %1387 = vmatpush1.msra.mxu0 0.0
    %1388 = vmatprep.subr.mxu0 0.0
    %1389 = vmatpush1.msra.mxu0 0.0
    %1390 = vmatprep.subr.mxu0 0.0
    %1391 = vmatpush1.msra.mxu0 0.0
    %1392 = vmatprep.subr.mxu0 0.0
    %1393 = vmatpush1.msra.mxu0 0.0
    %1394 = vmatprep.subr.mxu0 0.0
    %1395 = vmatpush1.msra.mxu0 0.0
    %1396 = vmatprep.subr.mxu0 0.0
    %v1397 = vand.u32 %v723, 4294901760
    %v1398 = vsub.f32 %v723, %v1397
    %v1399 = vand.u32 %v1398, 4294901760
    %v1400 = vsub.f32 %v1398, %v1399
    %v1401 = vand.u32 %v1400, 4294901760
    %1402 = vmatpush1.msra.mxu0 %v1401
    %1403 = vmatprep.subr.mxu0 0.0
    %v1404 = vand.u32 %v722, 4294901760
    %v1405 = vsub.f32 %v722, %v1404
    %v1406 = vand.u32 %v1405, 4294901760
    %v1407 = vsub.f32 %v1405, %v1406
    %v1408 = vand.u32 %v1407, 4294901760
    %1409 = vmatpush1.msra.mxu0 %v1408
    %1410 = vmatprep.subr.mxu0 0.0
    %v1411 = vand.u32 %v721, 4294901760
    %v1412 = vsub.f32 %v721, %v1411
    %v1413 = vand.u32 %v1412, 4294901760
    %v1414 = vsub.f32 %v1412, %v1413
    %v1415 = vand.u32 %v1414, 4294901760
    %1416 = vmatpush1.msra.mxu0 %v1415
    %1417 = vmatprep.subr.mxu0 0.0
    %v1418 = vand.u32 %v720, 4294901760
    %v1419 = vsub.f32 %v720, %v1418
    %v1420 = vand.u32 %v1419, 4294901760
    %v1421 = vsub.f32 %v1419, %v1420
    %v1422 = vand.u32 %v1421, 4294901760
    %1423 = vmatpush1.msra.mxu0 %v1422
    %1424 = vmatprep.subr.mxu0 0.0
    %v1425 = vand.u32 %v719, 4294901760
    %v1426 = vsub.f32 %v719, %v1425
    %v1427 = vand.u32 %v1426, 4294901760
    %v1428 = vsub.f32 %v1426, %v1427
    %v1429 = vand.u32 %v1428, 4294901760
    %1430 = vmatpush1.msra.mxu0 %v1429
    %1431 = vmatprep.subr.mxu0 0.0
    %v1432 = vand.u32 %v718, 4294901760
    %v1433 = vsub.f32 %v718, %v1432
    %v1434 = vand.u32 %v1433, 4294901760
    %v1435 = vsub.f32 %v1433, %v1434
    %v1436 = vand.u32 %v1435, 4294901760
    %1437 = vmatpush1.msra.mxu0 %v1436
    %1438 = vmatprep.subr.mxu0 0.0
    %v1439 = vand.u32 %v717, 4294901760
    %v1440 = vsub.f32 %v717, %v1439
    %v1441 = vand.u32 %v1440, 4294901760
    %v1442 = vsub.f32 %v1440, %v1441
    %v1443 = vand.u32 %v1442, 4294901760
    %1444 = vmatpush1.msra.mxu0 %v1443
    %1445 = vmatprep.subr.mxu0 0.0
    %v1446 = vand.u32 %v716, 4294901760
    %v1447 = vsub.f32 %v716, %v1446
    %v1448 = vand.u32 %v1447, 4294901760
    %v1449 = vsub.f32 %v1447, %v1448
    %v1450 = vand.u32 %v1449, 4294901760
    %1451 = vmatpush1.msra.mxu0 %v1450
    %1452 = vmatprep.subr.mxu0 0.0
    %1453 = vmatpush2.msra.mxu0 0.0
    %1454 = vmatprep.subr.mxu0 0.0
    %1455 = vmatpush2.msra.mxu0 0.0
    %1456 = vmatprep.subr.mxu0 0.0
    %1457 = vmatpush2.msra.mxu0 0.0
    %1458 = vmatprep.subr.mxu0 0.0
    %1459 = vmatpush2.msra.mxu0 0.0
    %1460 = vmatprep.subr.mxu0 0.0
    %1461 = vmatpush2.msra.mxu0 0.0
    %1462 = vmatprep.subr.mxu0 0.0
    %1463 = vmatpush2.msra.mxu0 0.0
    %1464 = vmatprep.subr.mxu0 0.0
    %1465 = vmatpush2.msra.mxu0 0.0
    %1466 = vmatprep.subr.mxu0 0.0
    %1467 = vmatpush2.msra.mxu0 0.0
    %1468 = vmatprep.subr.mxu0 0.0
    %1469 = vmatpush2.msra.mxu0 0.0
    %1470 = vmatprep.subr.mxu0 0.0
    %1471 = vmatpush2.msra.mxu0 0.0
    %1472 = vmatprep.subr.mxu0 0.0
    %1473 = vmatpush2.msra.mxu0 0.0
    %1474 = vmatprep.subr.mxu0 0.0
    %1475 = vmatpush2.msra.mxu0 0.0
    %1476 = vmatprep.subr.mxu0 0.0
    %1477 = vmatpush2.msra.mxu0 0.0
    %1478 = vmatprep.subr.mxu0 0.0
    %1479 = vmatpush2.msra.mxu0 0.0
    %1480 = vmatprep.subr.mxu0 0.0
    %1481 = vmatpush2.msra.mxu0 0.0
    %1482 = vmatprep.subr.mxu0 0.0
    %1483 = vmatpush2.msra.mxu0 0.0
    %1484 = vmatprep.mubr.f32.mxu0 0.0
    %v1485 = vand.u32 %v1295, 4294901760
    %1486 = vmatmul.mubr.f32.gmra.mxu0 %v1485
    %v1487 = vpop.f32.mrf.mxu0
    %v1488 = vadd.f32 %v1377, %v1487
    %v1489 = vpop.f32.mrf.mxu0
    %1490 = vdwg.mxu0
    %1491 = vmatprep.subr.mxu0 0.0
    %1492 = vmatpush1.msra.mxu0 0.0
    %1493 = vmatprep.subr.mxu0 0.0
    %1494 = vmatpush1.msra.mxu0 0.0
    %1495 = vmatprep.subr.mxu0 0.0
    %1496 = vmatpush1.msra.mxu0 0.0
    %1497 = vmatprep.subr.mxu0 0.0
    %1498 = vmatpush1.msra.mxu0 0.0
    %1499 = vmatprep.subr.mxu0 0.0
    %1500 = vmatpush1.msra.mxu0 0.0
    %1501 = vmatprep.subr.mxu0 0.0
    %1502 = vmatpush1.msra.mxu0 0.0
    %1503 = vmatprep.subr.mxu0 0.0
    %1504 = vmatpush1.msra.mxu0 0.0
    %1505 = vmatprep.subr.mxu0 0.0
    %1506 = vmatpush1.msra.mxu0 0.0
    %1507 = vmatprep.subr.mxu0 0.0
    %v1508 = vand.u32 %v723, 4294901760
    %v1509 = vsub.f32 %v723, %v1508
    %1510 = vmatpush1.msra.mxu0 %v1509
    %1511 = vmatprep.subr.mxu0 0.0
    %v1512 = vand.u32 %v722, 4294901760
    %v1513 = vsub.f32 %v722, %v1512
    %1514 = vmatpush1.msra.mxu0 %v1513
    %1515 = vmatprep.subr.mxu0 0.0
    %v1516 = vand.u32 %v721, 4294901760
    %v1517 = vsub.f32 %v721, %v1516
    %1518 = vmatpush1.msra.mxu0 %v1517
    %1519 = vmatprep.subr.mxu0 0.0
    %v1520 = vand.u32 %v720, 4294901760
    %v1521 = vsub.f32 %v720, %v1520
    %1522 = vmatpush1.msra.mxu0 %v1521
    %1523 = vmatprep.subr.mxu0 0.0
    %v1524 = vand.u32 %v719, 4294901760
    %v1525 = vsub.f32 %v719, %v1524
    %1526 = vmatpush1.msra.mxu0 %v1525
    %1527 = vmatprep.subr.mxu0 0.0
    %v1528 = vand.u32 %v718, 4294901760
    %v1529 = vsub.f32 %v718, %v1528
    %1530 = vmatpush1.msra.mxu0 %v1529
    %1531 = vmatprep.subr.mxu0 0.0
    %v1532 = vand.u32 %v717, 4294901760
    %v1533 = vsub.f32 %v717, %v1532
    %1534 = vmatpush1.msra.mxu0 %v1533
    %1535 = vmatprep.subr.mxu0 0.0
    %v1536 = vand.u32 %v716, 4294901760
    %v1537 = vsub.f32 %v716, %v1536
    %1538 = vmatpush1.msra.mxu0 %v1537
    %1539 = vmatprep.subr.mxu0 0.0
    %1540 = vmatpush2.msra.mxu0 0.0
    %1541 = vmatprep.subr.mxu0 0.0
    %1542 = vmatpush2.msra.mxu0 0.0
    %1543 = vmatprep.subr.mxu0 0.0
    %1544 = vmatpush2.msra.mxu0 0.0
    %1545 = vmatprep.subr.mxu0 0.0
    %1546 = vmatpush2.msra.mxu0 0.0
    %1547 = vmatprep.subr.mxu0 0.0
    %1548 = vmatpush2.msra.mxu0 0.0
    %1549 = vmatprep.subr.mxu0 0.0
    %1550 = vmatpush2.msra.mxu0 0.0
    %1551 = vmatprep.subr.mxu0 0.0
    %1552 = vmatpush2.msra.mxu0 0.0
    %1553 = vmatprep.subr.mxu0 0.0
    %1554 = vmatpush2.msra.mxu0 0.0
    %1555 = vmatprep.subr.mxu0 0.0
    %1556 = vmatpush2.msra.mxu0 0.0
    %1557 = vmatprep.subr.mxu0 0.0
    %1558 = vmatpush2.msra.mxu0 0.0
    %1559 = vmatprep.subr.mxu0 0.0
    %1560 = vmatpush2.msra.mxu0 0.0
    %1561 = vmatprep.subr.mxu0 0.0
    %1562 = vmatpush2.msra.mxu0 0.0
    %1563 = vmatprep.subr.mxu0 0.0
    %1564 = vmatpush2.msra.mxu0 0.0
    %1565 = vmatprep.subr.mxu0 0.0
    %1566 = vmatpush2.msra.mxu0 0.0
    %1567 = vmatprep.subr.mxu0 0.0
    %1568 = vmatpush2.msra.mxu0 0.0
    %1569 = vmatprep.subr.mxu0 0.0
    %1570 = vmatpush2.msra.mxu0 0.0
    %1571 = vmatprep.mubr.f32.mxu0 0.0
    %v1572 = vand.u32 %v1295, 4294901760
    %v1573 = vsub.f32 %v1295, %v1572
    %1574 = vmatmul.mubr.f32.gmra.mxu0 %v1573
    %v1575 = vpop.f32.mrf.mxu0
    %v1576 = vadd.f32 %v1488, %v1575
    %v1577 = vpop.f32.mrf.mxu0
    %1578 = vdwg.mxu0
    %1579 = vmatprep.subr.mxu0 0.0
    %1580 = vmatpush1.msra.mxu0 0.0
    %1581 = vmatprep.subr.mxu0 0.0
    %1582 = vmatpush1.msra.mxu0 0.0
    %1583 = vmatprep.subr.mxu0 0.0
    %1584 = vmatpush1.msra.mxu0 0.0
    %1585 = vmatprep.subr.mxu0 0.0
    %1586 = vmatpush1.msra.mxu0 0.0
    %1587 = vmatprep.subr.mxu0 0.0
    %1588 = vmatpush1.msra.mxu0 0.0
    %1589 = vmatprep.subr.mxu0 0.0
    %1590 = vmatpush1.msra.mxu0 0.0
    %1591 = vmatprep.subr.mxu0 0.0
    %1592 = vmatpush1.msra.mxu0 0.0
    %1593 = vmatprep.subr.mxu0 0.0
    %1594 = vmatpush1.msra.mxu0 0.0
    %1595 = vmatprep.subr.mxu0 0.0
    %v1596 = vand.u32 %v723, 4294901760
    %1597 = vmatpush1.msra.mxu0 %v1596
    %1598 = vmatprep.subr.mxu0 0.0
    %v1599 = vand.u32 %v722, 4294901760
    %1600 = vmatpush1.msra.mxu0 %v1599
    %1601 = vmatprep.subr.mxu0 0.0
    %v1602 = vand.u32 %v721, 4294901760
    %1603 = vmatpush1.msra.mxu0 %v1602
    %1604 = vmatprep.subr.mxu0 0.0
    %v1605 = vand.u32 %v720, 4294901760
    %1606 = vmatpush1.msra.mxu0 %v1605
    %1607 = vmatprep.subr.mxu0 0.0
    %v1608 = vand.u32 %v719, 4294901760
    %1609 = vmatpush1.msra.mxu0 %v1608
    %1610 = vmatprep.subr.mxu0 0.0
    %v1611 = vand.u32 %v718, 4294901760
    %1612 = vmatpush1.msra.mxu0 %v1611
    %1613 = vmatprep.subr.mxu0 0.0
    %v1614 = vand.u32 %v717, 4294901760
    %1615 = vmatpush1.msra.mxu0 %v1614
    %1616 = vmatprep.subr.mxu0 0.0
    %v1617 = vand.u32 %v716, 4294901760
    %1618 = vmatpush1.msra.mxu0 %v1617
    %1619 = vmatprep.subr.mxu0 0.0
    %1620 = vmatpush2.msra.mxu0 0.0
    %1621 = vmatprep.subr.mxu0 0.0
    %1622 = vmatpush2.msra.mxu0 0.0
    %1623 = vmatprep.subr.mxu0 0.0
    %1624 = vmatpush2.msra.mxu0 0.0
    %1625 = vmatprep.subr.mxu0 0.0
    %1626 = vmatpush2.msra.mxu0 0.0
    %1627 = vmatprep.subr.mxu0 0.0
    %1628 = vmatpush2.msra.mxu0 0.0
    %1629 = vmatprep.subr.mxu0 0.0
    %1630 = vmatpush2.msra.mxu0 0.0
    %1631 = vmatprep.subr.mxu0 0.0
    %1632 = vmatpush2.msra.mxu0 0.0
    %1633 = vmatprep.subr.mxu0 0.0
    %1634 = vmatpush2.msra.mxu0 0.0
    %1635 = vmatprep.subr.mxu0 0.0
    %1636 = vmatpush2.msra.mxu0 0.0
    %1637 = vmatprep.subr.mxu0 0.0
    %1638 = vmatpush2.msra.mxu0 0.0
    %1639 = vmatprep.subr.mxu0 0.0
    %1640 = vmatpush2.msra.mxu0 0.0
    %1641 = vmatprep.subr.mxu0 0.0
    %1642 = vmatpush2.msra.mxu0 0.0
    %1643 = vmatprep.subr.mxu0 0.0
    %1644 = vmatpush2.msra.mxu0 0.0
    %1645 = vmatprep.subr.mxu0 0.0
    %1646 = vmatpush2.msra.mxu0 0.0
    %1647 = vmatprep.subr.mxu0 0.0
    %1648 = vmatpush2.msra.mxu0 0.0
    %1649 = vmatprep.subr.mxu0 0.0
    %1650 = vmatpush2.msra.mxu0 0.0
    %1651 = vmatprep.mubr.f32.mxu0 0.0
    %v1652 = vand.u32 %v1295, 4294901760
    %v1653 = vsub.f32 %v1295, %v1652
    %v1654 = vand.u32 %v1653, 4294901760
    %1655 = vmatmul.mubr.f32.gmra.mxu0 %v1654
    %v1656 = vpop.f32.mrf.mxu0
    %v1657 = vadd.f32 %v1576, %v1656
    %v1658 = vpop.f32.mrf.mxu0
    %1659 = vdwg.mxu0
    %1660 = vmatprep.subr.mxu0 0.0
    %1661 = vmatpush1.msra.mxu0 0.0
    %1662 = vmatprep.subr.mxu0 0.0
    %1663 = vmatpush1.msra.mxu0 0.0
    %1664 = vmatprep.subr.mxu0 0.0
    %1665 = vmatpush1.msra.mxu0 0.0
    %1666 = vmatprep.subr.mxu0 0.0
    %1667 = vmatpush1.msra.mxu0 0.0
    %1668 = vmatprep.subr.mxu0 0.0
    %1669 = vmatpush1.msra.mxu0 0.0
    %1670 = vmatprep.subr.mxu0 0.0
    %1671 = vmatpush1.msra.mxu0 0.0
    %1672 = vmatprep.subr.mxu0 0.0
    %1673 = vmatpush1.msra.mxu0 0.0
    %1674 = vmatprep.subr.mxu0 0.0
    %1675 = vmatpush1.msra.mxu0 0.0
    %1676 = vmatprep.subr.mxu0 0.0
    %v1677 = vand.u32 %v723, 4294901760
    %v1678 = vsub.f32 %v723, %v1677
    %v1679 = vand.u32 %v1678, 4294901760
    %1680 = vmatpush1.msra.mxu0 %v1679
    %1681 = vmatprep.subr.mxu0 0.0
    %v1682 = vand.u32 %v722, 4294901760
    %v1683 = vsub.f32 %v722, %v1682
    %v1684 = vand.u32 %v1683, 4294901760
    %1685 = vmatpush1.msra.mxu0 %v1684
    %1686 = vmatprep.subr.mxu0 0.0
    %v1687 = vand.u32 %v721, 4294901760
    %v1688 = vsub.f32 %v721, %v1687
    %v1689 = vand.u32 %v1688, 4294901760
    %1690 = vmatpush1.msra.mxu0 %v1689
    %1691 = vmatprep.subr.mxu0 0.0
    %v1692 = vand.u32 %v720, 4294901760
    %v1693 = vsub.f32 %v720, %v1692
    %v1694 = vand.u32 %v1693, 4294901760
    %1695 = vmatpush1.msra.mxu0 %v1694
    %1696 = vmatprep.subr.mxu0 0.0
    %v1697 = vand.u32 %v719, 4294901760
    %v1698 = vsub.f32 %v719, %v1697
    %v1699 = vand.u32 %v1698, 4294901760
    %1700 = vmatpush1.msra.mxu0 %v1699
    %1701 = vmatprep.subr.mxu0 0.0
    %v1702 = vand.u32 %v718, 4294901760
    %v1703 = vsub.f32 %v718, %v1702
    %v1704 = vand.u32 %v1703, 4294901760
    %1705 = vmatpush1.msra.mxu0 %v1704
    %1706 = vmatprep.subr.mxu0 0.0
    %v1707 = vand.u32 %v717, 4294901760
    %v1708 = vsub.f32 %v717, %v1707
    %v1709 = vand.u32 %v1708, 4294901760
    %1710 = vmatpush1.msra.mxu0 %v1709
    %1711 = vmatprep.subr.mxu0 0.0
    %v1712 = vand.u32 %v716, 4294901760
    %v1713 = vsub.f32 %v716, %v1712
    %v1714 = vand.u32 %v1713, 4294901760
    %1715 = vmatpush1.msra.mxu0 %v1714
    %1716 = vmatprep.subr.mxu0 0.0
    %1717 = vmatpush2.msra.mxu0 0.0
    %1718 = vmatprep.subr.mxu0 0.0
    %1719 = vmatpush2.msra.mxu0 0.0
    %1720 = vmatprep.subr.mxu0 0.0
    %1721 = vmatpush2.msra.mxu0 0.0
    %1722 = vmatprep.subr.mxu0 0.0
    %1723 = vmatpush2.msra.mxu0 0.0
    %1724 = vmatprep.subr.mxu0 0.0
    %1725 = vmatpush2.msra.mxu0 0.0
    %1726 = vmatprep.subr.mxu0 0.0
    %1727 = vmatpush2.msra.mxu0 0.0
    %1728 = vmatprep.subr.mxu0 0.0
    %1729 = vmatpush2.msra.mxu0 0.0
    %1730 = vmatprep.subr.mxu0 0.0
    %1731 = vmatpush2.msra.mxu0 0.0
    %1732 = vmatprep.subr.mxu0 0.0
    %1733 = vmatpush2.msra.mxu0 0.0
    %1734 = vmatprep.subr.mxu0 0.0
    %1735 = vmatpush2.msra.mxu0 0.0
    %1736 = vmatprep.subr.mxu0 0.0
    %1737 = vmatpush2.msra.mxu0 0.0
    %1738 = vmatprep.subr.mxu0 0.0
    %1739 = vmatpush2.msra.mxu0 0.0
    %1740 = vmatprep.subr.mxu0 0.0
    %1741 = vmatpush2.msra.mxu0 0.0
    %1742 = vmatprep.subr.mxu0 0.0
    %1743 = vmatpush2.msra.mxu0 0.0
    %1744 = vmatprep.subr.mxu0 0.0
    %1745 = vmatpush2.msra.mxu0 0.0
    %1746 = vmatprep.subr.mxu0 0.0
    %1747 = vmatpush2.msra.mxu0 0.0
    %1748 = vmatprep.mubr.f32.mxu0 0.0
    %v1749 = vand.u32 %v1295, 4294901760
    %1750 = vmatmul.mubr.f32.gmra.mxu0 %v1749
    %v1751 = vpop.f32.mrf.mxu0
    %v1752 = vadd.f32 %v1657, %v1751
    %v1753 = vpop.f32.mrf.mxu0
    %1754 = vdwg.mxu0
    %1755 = vmatprep.subr.mxu0 0.0
    %1756 = vmatpush1.msra.mxu0 0.0
    %1757 = vmatprep.subr.mxu0 0.0
    %1758 = vmatpush1.msra.mxu0 0.0
    %1759 = vmatprep.subr.mxu0 0.0
    %1760 = vmatpush1.msra.mxu0 0.0
    %1761 = vmatprep.subr.mxu0 0.0
    %1762 = vmatpush1.msra.mxu0 0.0
    %1763 = vmatprep.subr.mxu0 0.0
    %1764 = vmatpush1.msra.mxu0 0.0
    %1765 = vmatprep.subr.mxu0 0.0
    %1766 = vmatpush1.msra.mxu0 0.0
    %1767 = vmatprep.subr.mxu0 0.0
    %1768 = vmatpush1.msra.mxu0 0.0
    %1769 = vmatprep.subr.mxu0 0.0
    %1770 = vmatpush1.msra.mxu0 0.0
    %1771 = vmatprep.subr.mxu0 0.0
    %v1772 = vand.u32 %v723, 4294901760
    %1773 = vmatpush1.msra.mxu0 %v1772
    %1774 = vmatprep.subr.mxu0 0.0
    %v1775 = vand.u32 %v722, 4294901760
    %1776 = vmatpush1.msra.mxu0 %v1775
    %1777 = vmatprep.subr.mxu0 0.0
    %v1778 = vand.u32 %v721, 4294901760
    %1779 = vmatpush1.msra.mxu0 %v1778
    %1780 = vmatprep.subr.mxu0 0.0
    %v1781 = vand.u32 %v720, 4294901760
    %1782 = vmatpush1.msra.mxu0 %v1781
    %1783 = vmatprep.subr.mxu0 0.0
    %v1784 = vand.u32 %v719, 4294901760
    %1785 = vmatpush1.msra.mxu0 %v1784
    %1786 = vmatprep.subr.mxu0 0.0
    %v1787 = vand.u32 %v718, 4294901760
    %1788 = vmatpush1.msra.mxu0 %v1787
    %1789 = vmatprep.subr.mxu0 0.0
    %v1790 = vand.u32 %v717, 4294901760
    %1791 = vmatpush1.msra.mxu0 %v1790
    %1792 = vmatprep.subr.mxu0 0.0
    %v1793 = vand.u32 %v716, 4294901760
    %1794 = vmatpush1.msra.mxu0 %v1793
    %1795 = vmatprep.subr.mxu0 0.0
    %1796 = vmatpush2.msra.mxu0 0.0
    %1797 = vmatprep.subr.mxu0 0.0
    %1798 = vmatpush2.msra.mxu0 0.0
    %1799 = vmatprep.subr.mxu0 0.0
    %1800 = vmatpush2.msra.mxu0 0.0
    %1801 = vmatprep.subr.mxu0 0.0
    %1802 = vmatpush2.msra.mxu0 0.0
    %1803 = vmatprep.subr.mxu0 0.0
    %1804 = vmatpush2.msra.mxu0 0.0
    %1805 = vmatprep.subr.mxu0 0.0
    %1806 = vmatpush2.msra.mxu0 0.0
    %1807 = vmatprep.subr.mxu0 0.0
    %1808 = vmatpush2.msra.mxu0 0.0
    %1809 = vmatprep.subr.mxu0 0.0
    %1810 = vmatpush2.msra.mxu0 0.0
    %1811 = vmatprep.subr.mxu0 0.0
    %1812 = vmatpush2.msra.mxu0 0.0
    %1813 = vmatprep.subr.mxu0 0.0
    %1814 = vmatpush2.msra.mxu0 0.0
    %1815 = vmatprep.subr.mxu0 0.0
    %1816 = vmatpush2.msra.mxu0 0.0
    %1817 = vmatprep.subr.mxu0 0.0
    %1818 = vmatpush2.msra.mxu0 0.0
    %1819 = vmatprep.subr.mxu0 0.0
    %1820 = vmatpush2.msra.mxu0 0.0
    %1821 = vmatprep.subr.mxu0 0.0
    %1822 = vmatpush2.msra.mxu0 0.0
    %1823 = vmatprep.subr.mxu0 0.0
    %1824 = vmatpush2.msra.mxu0 0.0
    %1825 = vmatprep.subr.mxu0 0.0
    %1826 = vmatpush2.msra.mxu0 0.0
    %1827 = vmatprep.mubr.f32.mxu0 0.0
    %v1828 = vand.u32 %v1295, 4294901760
    %1829 = vmatmul.mubr.f32.gmra.mxu0 %v1828
    %v1830 = vpop.f32.mrf.mxu0
    %v1831 = vadd.f32 %v1752, %v1830
    %v1832 = vpop.f32.mrf.mxu0
    %1833 = vdwg.mxu0
    %v1834 = vmul.f32 %v1274, %v1274
    %v1835 = vsub.f32 %v1831, %v1834
    %v1836 = vld [vmem:[%s2 + $0x120] sm:$0x1]
    %v1837 = vld [vmem:[%s2 + $0x121] sm:$0x1]
    %v1838 = vlaneseq
    %v1839 = vshrl.u32 %v1838, 7
    %v1840 = vsub.s32 0, %v1839
    %v1841 = vrot.slane %v1274, %v1840
    %v1842 = vsub.f32 %v695, %v1841
    %v1843 = vsub.f32 %v701, %v1841
    %v1844 = vsub.f32 %v707, %v1841
    %v1845 = vsub.f32 %v713, %v1841
    %v1846 = vadd.f32 %v1835, 1e-05
    %v1847 = vrsqrt.pop %v1846
    %v1848 = vlaneseq
    %v1849 = vshrl.u32 %v1848, 7
    %v1850 = vsub.s32 0, %v1849
    %v1851 = vrot.slane %v1847, %v1850
    %v1852 = vmul.f32 %v1842, %v1851
    %v1853 = vmul.f32 %v1843, %v1851
    %v1854 = vmul.f32 %v1844, %v1851
    %v1855 = vmul.f32 %v1845, %v1851
    %v1856 = vlaneseq
    %v1857 = vshrl.u32 %v1856, 7
    %v1858 = vsub.s32 0, %v1857
    %v1859 = vrot.slane %v1836, %v1858
    %v1860 = vmul.f32 %v1852, %v1859
    %v1861 = vmul.f32 %v1853, %v1859
    %v1862 = vmul.f32 %v1854, %v1859
    %v1863 = vmul.f32 %v1855, %v1859
    %v1864 = vlaneseq
    %v1865 = vshrl.u32 %v1864, 7
    %v1866 = vsub.s32 0, %v1865
    %v1867 = vrot.slane %v1837, %v1866
    %v1868 = vadd.f32 %v1860, %v1867
    %v1869 = vadd.f32 %v1861, %v1867
    %v1870 = vadd.f32 %v1862, %v1867
    %v1871 = vadd.f32 %v1863, %v1867
    %v1872 = vmax.f32 %v1868, 0.0
    %v1873 = vmax.f32 %v1869, 0.0
    %v1874 = vmax.f32 %v1870, 0.0
    %v1875 = vmax.f32 %v1871, 0.0
    %v1876 = vld [vmem:[%s3] sm:$0xff]
    %v1877 = vld [vmem:[%s3 + $0x8] sm:$0xff]
    %v1878 = vld [vmem:[%s3 + $0x10] sm:$0xff]
    %v1879 = vld [vmem:[%s3 + $0x18] sm:$0xff]
    %v1880 = vld [vmem:[%s3 + $0x20] sm:$0xff]
    %v1881 = vld [vmem:[%s3 + $0x28] sm:$0xff]
    %v1882 = vld [vmem:[%s3 + $0x30] sm:$0xff]
    %v1883 = vld [vmem:[%s3 + $0x38] sm:$0xff]
    %v1885 = vsel %vm37, %v1872, 0
    %v1888 = vsel %vm37, %v1873, 0
    %v1891 = vsel %vm37, %v1874, 0
    %v1894 = vsel %vm37, %v1875, 0
    %1896 = vmatprep.subr.mxu0 0.0
    %1897 = vmatpush1.msra.mxu0 0.0
    %1898 = vmatprep.subr.mxu0 0.0
    %1899 = vmatpush1.msra.mxu0 0.0
    %1900 = vmatprep.subr.mxu0 0.0
    %1901 = vmatpush1.msra.mxu0 0.0
    %1902 = vmatprep.subr.mxu0 0.0
    %1903 = vmatpush1.msra.mxu0 0.0
    %1904 = vmatprep.subr.mxu0 0.0
    %1905 = vmatpush1.msra.mxu0 0.0
    %1906 = vmatprep.subr.mxu0 0.0
    %1907 = vmatpush1.msra.mxu0 0.0
    %1908 = vmatprep.subr.mxu0 0.0
    %1909 = vmatpush1.msra.mxu0 0.0
    %1910 = vmatprep.subr.mxu0 0.0
    %1911 = vmatpush1.msra.mxu0 0.0
    %1912 = vmatprep.subr.mxu0 0.0
    %v1913 = vand.u32 %v1883, 4294901760
    %1914 = vmatpush1.msra.mxu0 %v1913
    %1915 = vmatprep.subr.mxu0 0.0
    %v1916 = vand.u32 %v1882, 4294901760
    %1917 = vmatpush1.msra.mxu0 %v1916
    %1918 = vmatprep.subr.mxu0 0.0
    %v1919 = vand.u32 %v1881, 4294901760
    %1920 = vmatpush1.msra.mxu0 %v1919
    %1921 = vmatprep.subr.mxu0 0.0
    %v1922 = vand.u32 %v1880, 4294901760
    %1923 = vmatpush1.msra.mxu0 %v1922
    %1924 = vmatprep.subr.mxu0 0.0
    %v1925 = vand.u32 %v1879, 4294901760
    %1926 = vmatpush1.msra.mxu0 %v1925
    %1927 = vmatprep.subr.mxu0 0.0
    %v1928 = vand.u32 %v1878, 4294901760
    %1929 = vmatpush1.msra.mxu0 %v1928
    %1930 = vmatprep.subr.mxu0 0.0
    %v1931 = vand.u32 %v1877, 4294901760
    %1932 = vmatpush1.msra.mxu0 %v1931
    %1933 = vmatprep.subr.mxu0 0.0
    %v1934 = vand.u32 %v1876, 4294901760
    %1935 = vmatpush1.msra.mxu0 %v1934
    %1936 = vmatprep.subr.mxu0 0.0
    %1937 = vmatpush2.msra.mxu0 0.0
    %1938 = vmatprep.subr.mxu0 0.0
    %1939 = vmatpush2.msra.mxu0 0.0
    %1940 = vmatprep.subr.mxu0 0.0
    %1941 = vmatpush2.msra.mxu0 0.0
    %1942 = vmatprep.subr.mxu0 0.0
    %1943 = vmatpush2.msra.mxu0 0.0
    %1944 = vmatprep.subr.mxu0 0.0
    %1945 = vmatpush2.msra.mxu0 0.0
    %1946 = vmatprep.subr.mxu0 0.0
    %1947 = vmatpush2.msra.mxu0 0.0
    %1948 = vmatprep.subr.mxu0 0.0
    %1949 = vmatpush2.msra.mxu0 0.0
    %1950 = vmatprep.subr.mxu0 0.0
    %1951 = vmatpush2.msra.mxu0 0.0
    %1952 = vmatprep.subr.mxu0 0.0
    %1953 = vmatpush2.msra.mxu0 0.0
    %1954 = vmatprep.subr.mxu0 0.0
    %1955 = vmatpush2.msra.mxu0 0.0
    %1956 = vmatprep.subr.mxu0 0.0
    %1957 = vmatpush2.msra.mxu0 0.0
    %1958 = vmatprep.subr.mxu0 0.0
    %1959 = vmatpush2.msra.mxu0 0.0
    %1960 = vmatprep.subr.mxu0 0.0
    %1961 = vmatpush2.msra.mxu0 0.0
    %1962 = vmatprep.subr.mxu0 0.0
    %1963 = vmatpush2.msra.mxu0 0.0
    %1964 = vmatprep.subr.mxu0 0.0
    %1965 = vmatpush2.msra.mxu0 0.0
    %1966 = vmatprep.subr.mxu0 0.0
    %1967 = vmatpush2.msra.mxu0 0.0
    %1968 = vmatprep.mubr.f32.mxu0 0.0
    %v1969 = vand.u32 %v1885, 4294901760
    %v1970 = vsub.f32 %v1885, %v1969
    %v1971 = vand.u32 %v1970, 4294901760
    %v1972 = vsub.f32 %v1970, %v1971
    %v1973 = vand.u32 %v1972, 4294901760
    %1974 = vmatmul.mubr.f32.gmra.mxu0 %v1973
    %v1975 = vpop.f32.mrf.mxu0
    %v1976 = vadd.f32 0.0, %v1975
    %v1977 = vpop.f32.mrf.mxu0
    %1978 = vmatprep.mubr.f32.mxu0 0.0
    %v1979 = vand.u32 %v1888, 4294901760
    %v1980 = vsub.f32 %v1888, %v1979
    %v1981 = vand.u32 %v1980, 4294901760
    %v1982 = vsub.f32 %v1980, %v1981
    %v1983 = vand.u32 %v1982, 4294901760
    %1984 = vmatmul.mubr.f32.gmra.mxu0 %v1983
    %v1985 = vpop.f32.mrf.mxu0
    %v1986 = vadd.f32 0.0, %v1985
    %v1987 = vpop.f32.mrf.mxu0
    %1988 = vmatprep.mubr.f32.mxu0 0.0
    %v1989 = vand.u32 %v1891, 4294901760
    %v1990 = vsub.f32 %v1891, %v1989
    %v1991 = vand.u32 %v1990, 4294901760
    %v1992 = vsub.f32 %v1990, %v1991
    %v1993 = vand.u32 %v1992, 4294901760
    %1994 = vmatmul.mubr.f32.gmra.mxu0 %v1993
    %v1995 = vpop.f32.mrf.mxu0
    %v1996 = vadd.f32 0.0, %v1995
    %v1997 = vpop.f32.mrf.mxu0
    %1998 = vmatprep.mubr.f32.mxu0 0.0
    %v1999 = vand.u32 %v1894, 4294901760
    %v2000 = vsub.f32 %v1894, %v1999
    %v2001 = vand.u32 %v2000, 4294901760
    %v2002 = vsub.f32 %v2000, %v2001
    %v2003 = vand.u32 %v2002, 4294901760
    %2004 = vmatmul.mubr.f32.gmra.mxu0 %v2003
    %v2005 = vpop.f32.mrf.mxu0
    %v2006 = vadd.f32 0.0, %v2005
    %v2007 = vpop.f32.mrf.mxu0
    %2008 = vdwg.mxu0
    %2009 = vmatprep.subr.mxu0 0.0
    %2010 = vmatpush1.msra.mxu0 0.0
    %2011 = vmatprep.subr.mxu0 0.0
    %2012 = vmatpush1.msra.mxu0 0.0
    %2013 = vmatprep.subr.mxu0 0.0
    %2014 = vmatpush1.msra.mxu0 0.0
    %2015 = vmatprep.subr.mxu0 0.0
    %2016 = vmatpush1.msra.mxu0 0.0
    %2017 = vmatprep.subr.mxu0 0.0
    %2018 = vmatpush1.msra.mxu0 0.0
    %2019 = vmatprep.subr.mxu0 0.0
    %2020 = vmatpush1.msra.mxu0 0.0
    %2021 = vmatprep.subr.mxu0 0.0
    %2022 = vmatpush1.msra.mxu0 0.0
    %2023 = vmatprep.subr.mxu0 0.0
    %2024 = vmatpush1.msra.mxu0 0.0
    %2025 = vmatprep.subr.mxu0 0.0
    %v2026 = vand.u32 %v1883, 4294901760
    %v2027 = vsub.f32 %v1883, %v2026
    %v2028 = vand.u32 %v2027, 4294901760
    %v2029 = vsub.f32 %v2027, %v2028
    %v2030 = vand.u32 %v2029, 4294901760
    %2031 = vmatpush1.msra.mxu0 %v2030
    %2032 = vmatprep.subr.mxu0 0.0
    %v2033 = vand.u32 %v1882, 4294901760
    %v2034 = vsub.f32 %v1882, %v2033
    %v2035 = vand.u32 %v2034, 4294901760
    %v2036 = vsub.f32 %v2034, %v2035
    %v2037 = vand.u32 %v2036, 4294901760
    %2038 = vmatpush1.msra.mxu0 %v2037
    %2039 = vmatprep.subr.mxu0 0.0
    %v2040 = vand.u32 %v1881, 4294901760
    %v2041 = vsub.f32 %v1881, %v2040
    %v2042 = vand.u32 %v2041, 4294901760
    %v2043 = vsub.f32 %v2041, %v2042
    %v2044 = vand.u32 %v2043, 4294901760
    %2045 = vmatpush1.msra.mxu0 %v2044
    %2046 = vmatprep.subr.mxu0 0.0
    %v2047 = vand.u32 %v1880, 4294901760
    %v2048 = vsub.f32 %v1880, %v2047
    %v2049 = vand.u32 %v2048, 4294901760
    %v2050 = vsub.f32 %v2048, %v2049
    %v2051 = vand.u32 %v2050, 4294901760
    %2052 = vmatpush1.msra.mxu0 %v2051
    %2053 = vmatprep.subr.mxu0 0.0
    %v2054 = vand.u32 %v1879, 4294901760
    %v2055 = vsub.f32 %v1879, %v2054
    %v2056 = vand.u32 %v2055, 4294901760
    %v2057 = vsub.f32 %v2055, %v2056
    %v2058 = vand.u32 %v2057, 4294901760
    %2059 = vmatpush1.msra.mxu0 %v2058
    %2060 = vmatprep.subr.mxu0 0.0
    %v2061 = vand.u32 %v1878, 4294901760
    %v2062 = vsub.f32 %v1878, %v2061
    %v2063 = vand.u32 %v2062, 4294901760
    %v2064 = vsub.f32 %v2062, %v2063
    %v2065 = vand.u32 %v2064, 4294901760
    %2066 = vmatpush1.msra.mxu0 %v2065
    %2067 = vmatprep.subr.mxu0 0.0
    %v2068 = vand.u32 %v1877, 4294901760
    %v2069 = vsub.f32 %v1877, %v2068
    %v2070 = vand.u32 %v2069, 4294901760
    %v2071 = vsub.f32 %v2069, %v2070
    %v2072 = vand.u32 %v2071, 4294901760
    %2073 = vmatpush1.msra.mxu0 %v2072
    %2074 = vmatprep.subr.mxu0 0.0
    %v2075 = vand.u32 %v1876, 4294901760
    %v2076 = vsub.f32 %v1876, %v2075
    %v2077 = vand.u32 %v2076, 4294901760
    %v2078 = vsub.f32 %v2076, %v2077
    %v2079 = vand.u32 %v2078, 4294901760
    %2080 = vmatpush1.msra.mxu0 %v2079
    %2081 = vmatprep.subr.mxu0 0.0
    %2082 = vmatpush2.msra.mxu0 0.0
    %2083 = vmatprep.subr.mxu0 0.0
    %2084 = vmatpush2.msra.mxu0 0.0
    %2085 = vmatprep.subr.mxu0 0.0
    %2086 = vmatpush2.msra.mxu0 0.0
    %2087 = vmatprep.subr.mxu0 0.0
    %2088 = vmatpush2.msra.mxu0 0.0
    %2089 = vmatprep.subr.mxu0 0.0
    %2090 = vmatpush2.msra.mxu0 0.0
    %2091 = vmatprep.subr.mxu0 0.0
    %2092 = vmatpush2.msra.mxu0 0.0
    %2093 = vmatprep.subr.mxu0 0.0
    %2094 = vmatpush2.msra.mxu0 0.0
    %2095 = vmatprep.subr.mxu0 0.0
    %2096 = vmatpush2.msra.mxu0 0.0
    %2097 = vmatprep.subr.mxu0 0.0
    %2098 = vmatpush2.msra.mxu0 0.0
    %2099 = vmatprep.subr.mxu0 0.0
    %2100 = vmatpush2.msra.mxu0 0.0
    %2101 = vmatprep.subr.mxu0 0.0
    %2102 = vmatpush2.msra.mxu0 0.0
    %2103 = vmatprep.subr.mxu0 0.0
    %2104 = vmatpush2.msra.mxu0 0.0
    %2105 = vmatprep.subr.mxu0 0.0
    %2106 = vmatpush2.msra.mxu0 0.0
    %2107 = vmatprep.subr.mxu0 0.0
    %2108 = vmatpush2.msra.mxu0 0.0
    %2109 = vmatprep.subr.mxu0 0.0
    %2110 = vmatpush2.msra.mxu0 0.0
    %2111 = vmatprep.subr.mxu0 0.0
    %2112 = vmatpush2.msra.mxu0 0.0
    %2113 = vmatprep.mubr.f32.mxu0 0.0
    %v2114 = vand.u32 %v1885, 4294901760
    %2115 = vmatmul.mubr.f32.gmra.mxu0 %v2114
    %v2116 = vpop.f32.mrf.mxu0
    %v2117 = vadd.f32 %v1976, %v2116
    %v2118 = vpop.f32.mrf.mxu0
    %2119 = vmatprep.mubr.f32.mxu0 0.0
    %v2120 = vand.u32 %v1888, 4294901760
    %2121 = vmatmul.mubr.f32.gmra.mxu0 %v2120
    %v2122 = vpop.f32.mrf.mxu0
    %v2123 = vadd.f32 %v1986, %v2122
    %v2124 = vpop.f32.mrf.mxu0
    %2125 = vmatprep.mubr.f32.mxu0 0.0
    %v2126 = vand.u32 %v1891, 4294901760
    %2127 = vmatmul.mubr.f32.gmra.mxu0 %v2126
    %v2128 = vpop.f32.mrf.mxu0
    %v2129 = vadd.f32 %v1996, %v2128
    %v2130 = vpop.f32.mrf.mxu0
    %2131 = vmatprep.mubr.f32.mxu0 0.0
    %v2132 = vand.u32 %v1894, 4294901760
    %2133 = vmatmul.mubr.f32.gmra.mxu0 %v2132
    %v2134 = vpop.f32.mrf.mxu0
    %v2135 = vadd.f32 %v2006, %v2134
    %v2136 = vpop.f32.mrf.mxu0
    %2137 = vdwg.mxu0
    %2138 = vmatprep.subr.mxu0 0.0
    %2139 = vmatpush1.msra.mxu0 0.0
    %2140 = vmatprep.subr.mxu0 0.0
    %2141 = vmatpush1.msra.mxu0 0.0
    %2142 = vmatprep.subr.mxu0 0.0
    %2143 = vmatpush1.msra.mxu0 0.0
    %2144 = vmatprep.subr.mxu0 0.0
    %2145 = vmatpush1.msra.mxu0 0.0
    %2146 = vmatprep.subr.mxu0 0.0
    %2147 = vmatpush1.msra.mxu0 0.0
    %2148 = vmatprep.subr.mxu0 0.0
    %2149 = vmatpush1.msra.mxu0 0.0
    %2150 = vmatprep.subr.mxu0 0.0
    %2151 = vmatpush1.msra.mxu0 0.0
    %2152 = vmatprep.subr.mxu0 0.0
    %2153 = vmatpush1.msra.mxu0 0.0
    %2154 = vmatprep.subr.mxu0 0.0
    %v2155 = vand.u32 %v1883, 4294901760
    %v2156 = vsub.f32 %v1883, %v2155
    %2157 = vmatpush1.msra.mxu0 %v2156
    %2158 = vmatprep.subr.mxu0 0.0
    %v2159 = vand.u32 %v1882, 4294901760
    %v2160 = vsub.f32 %v1882, %v2159
    %2161 = vmatpush1.msra.mxu0 %v2160
    %2162 = vmatprep.subr.mxu0 0.0
    %v2163 = vand.u32 %v1881, 4294901760
    %v2164 = vsub.f32 %v1881, %v2163
    %2165 = vmatpush1.msra.mxu0 %v2164
    %2166 = vmatprep.subr.mxu0 0.0
    %v2167 = vand.u32 %v1880, 4294901760
    %v2168 = vsub.f32 %v1880, %v2167
    %2169 = vmatpush1.msra.mxu0 %v2168
    %2170 = vmatprep.subr.mxu0 0.0
    %v2171 = vand.u32 %v1879, 4294901760
    %v2172 = vsub.f32 %v1879, %v2171
    %2173 = vmatpush1.msra.mxu0 %v2172
    %2174 = vmatprep.subr.mxu0 0.0
    %v2175 = vand.u32 %v1878, 4294901760
    %v2176 = vsub.f32 %v1878, %v2175
    %2177 = vmatpush1.msra.mxu0 %v2176
    %2178 = vmatprep.subr.mxu0 0.0
    %v2179 = vand.u32 %v1877, 4294901760
    %v2180 = vsub.f32 %v1877, %v2179
    %2181 = vmatpush1.msra.mxu0 %v2180
    %2182 = vmatprep.subr.mxu0 0.0
    %v2183 = vand.u32 %v1876, 4294901760
    %v2184 = vsub.f32 %v1876, %v2183
    %2185 = vmatpush1.msra.mxu0 %v2184
    %2186 = vmatprep.subr.mxu0 0.0
    %2187 = vmatpush2.msra.mxu0 0.0
    %2188 = vmatprep.subr.mxu0 0.0
    %2189 = vmatpush2.msra.mxu0 0.0
    %2190 = vmatprep.subr.mxu0 0.0
    %2191 = vmatpush2.msra.mxu0 0.0
    %2192 = vmatprep.subr.mxu0 0.0
    %2193 = vmatpush2.msra.mxu0 0.0
    %2194 = vmatprep.subr.mxu0 0.0
    %2195 = vmatpush2.msra.mxu0 0.0
    %2196 = vmatprep.subr.mxu0 0.0
    %2197 = vmatpush2.msra.mxu0 0.0
    %2198 = vmatprep.subr.mxu0 0.0
    %2199 = vmatpush2.msra.mxu0 0.0
    %2200 = vmatprep.subr.mxu0 0.0
    %2201 = vmatpush2.msra.mxu0 0.0
    %2202 = vmatprep.subr.mxu0 0.0
    %2203 = vmatpush2.msra.mxu0 0.0
    %2204 = vmatprep.subr.mxu0 0.0
    %2205 = vmatpush2.msra.mxu0 0.0
    %2206 = vmatprep.subr.mxu0 0.0
    %2207 = vmatpush2.msra.mxu0 0.0
    %2208 = vmatprep.subr.mxu0 0.0
    %2209 = vmatpush2.msra.mxu0 0.0
    %2210 = vmatprep.subr.mxu0 0.0
    %2211 = vmatpush2.msra.mxu0 0.0
    %2212 = vmatprep.subr.mxu0 0.0
    %2213 = vmatpush2.msra.mxu0 0.0
    %2214 = vmatprep.subr.mxu0 0.0
    %2215 = vmatpush2.msra.mxu0 0.0
    %2216 = vmatprep.subr.mxu0 0.0
    %2217 = vmatpush2.msra.mxu0 0.0
    %2218 = vmatprep.mubr.f32.mxu0 0.0
    %v2219 = vand.u32 %v1885, 4294901760
    %v2220 = vsub.f32 %v1885, %v2219
    %2221 = vmatmul.mubr.f32.gmra.mxu0 %v2220
    %v2222 = vpop.f32.mrf.mxu0
    %v2223 = vadd.f32 %v2117, %v2222
    %v2224 = vpop.f32.mrf.mxu0
    %2225 = vmatprep.mubr.f32.mxu0 0.0
    %v2226 = vand.u32 %v1888, 4294901760
    %v2227 = vsub.f32 %v1888, %v2226
    %2228 = vmatmul.mubr.f32.gmra.mxu0 %v2227
    %v2229 = vpop.f32.mrf.mxu0
    %v2230 = vadd.f32 %v2123, %v2229
    %v2231 = vpop.f32.mrf.mxu0
    %2232 = vmatprep.mubr.f32.mxu0 0.0
    %v2233 = vand.u32 %v1891, 4294901760
    %v2234 = vsub.f32 %v1891, %v2233
    %2235 = vmatmul.mubr.f32.gmra.mxu0 %v2234
    %v2236 = vpop.f32.mrf.mxu0
    %v2237 = vadd.f32 %v2129, %v2236
    %v2238 = vpop.f32.mrf.mxu0
    %2239 = vmatprep.mubr.f32.mxu0 0.0
    %v2240 = vand.u32 %v1894, 4294901760
    %v2241 = vsub.f32 %v1894, %v2240
    %2242 = vmatmul.mubr.f32.gmra.mxu0 %v2241
    %v2243 = vpop.f32.mrf.mxu0
    %v2244 = vadd.f32 %v2135, %v2243
    %v2245 = vpop.f32.mrf.mxu0
    %2246 = vdwg.mxu0
    %2247 = vmatprep.subr.mxu0 0.0
    %2248 = vmatpush1.msra.mxu0 0.0
    %2249 = vmatprep.subr.mxu0 0.0
    %2250 = vmatpush1.msra.mxu0 0.0
    %2251 = vmatprep.subr.mxu0 0.0
    %2252 = vmatpush1.msra.mxu0 0.0
    %2253 = vmatprep.subr.mxu0 0.0
    %2254 = vmatpush1.msra.mxu0 0.0
    %2255 = vmatprep.subr.mxu0 0.0
    %2256 = vmatpush1.msra.mxu0 0.0
    %2257 = vmatprep.subr.mxu0 0.0
    %2258 = vmatpush1.msra.mxu0 0.0
    %2259 = vmatprep.subr.mxu0 0.0
    %2260 = vmatpush1.msra.mxu0 0.0
    %2261 = vmatprep.subr.mxu0 0.0
    %2262 = vmatpush1.msra.mxu0 0.0
    %2263 = vmatprep.subr.mxu0 0.0
    %v2264 = vand.u32 %v1883, 4294901760
    %2265 = vmatpush1.msra.mxu0 %v2264
    %2266 = vmatprep.subr.mxu0 0.0
    %v2267 = vand.u32 %v1882, 4294901760
    %2268 = vmatpush1.msra.mxu0 %v2267
    %2269 = vmatprep.subr.mxu0 0.0
    %v2270 = vand.u32 %v1881, 4294901760
    %2271 = vmatpush1.msra.mxu0 %v2270
    %2272 = vmatprep.subr.mxu0 0.0
    %v2273 = vand.u32 %v1880, 4294901760
    %2274 = vmatpush1.msra.mxu0 %v2273
    %2275 = vmatprep.subr.mxu0 0.0
    %v2276 = vand.u32 %v1879, 4294901760
    %2277 = vmatpush1.msra.mxu0 %v2276
    %2278 = vmatprep.subr.mxu0 0.0
    %v2279 = vand.u32 %v1878, 4294901760
    %2280 = vmatpush1.msra.mxu0 %v2279
    %2281 = vmatprep.subr.mxu0 0.0
    %v2282 = vand.u32 %v1877, 4294901760
    %2283 = vmatpush1.msra.mxu0 %v2282
    %2284 = vmatprep.subr.mxu0 0.0
    %v2285 = vand.u32 %v1876, 4294901760
    %2286 = vmatpush1.msra.mxu0 %v2285
    %2287 = vmatprep.subr.mxu0 0.0
    %2288 = vmatpush2.msra.mxu0 0.0
    %2289 = vmatprep.subr.mxu0 0.0
    %2290 = vmatpush2.msra.mxu0 0.0
    %2291 = vmatprep.subr.mxu0 0.0
    %2292 = vmatpush2.msra.mxu0 0.0
    %2293 = vmatprep.subr.mxu0 0.0
    %2294 = vmatpush2.msra.mxu0 0.0
    %2295 = vmatprep.subr.mxu0 0.0
    %2296 = vmatpush2.msra.mxu0 0.0
    %2297 = vmatprep.subr.mxu0 0.0
    %2298 = vmatpush2.msra.mxu0 0.0
    %2299 = vmatprep.subr.mxu0 0.0
    %2300 = vmatpush2.msra.mxu0 0.0
    %2301 = vmatprep.subr.mxu0 0.0
    %2302 = vmatpush2.msra.mxu0 0.0
    %2303 = vmatprep.subr.mxu0 0.0
    %2304 = vmatpush2.msra.mxu0 0.0
    %2305 = vmatprep.subr.mxu0 0.0
    %2306 = vmatpush2.msra.mxu0 0.0
    %2307 = vmatprep.subr.mxu0 0.0
    %2308 = vmatpush2.msra.mxu0 0.0
    %2309 = vmatprep.subr.mxu0 0.0
    %2310 = vmatpush2.msra.mxu0 0.0
    %2311 = vmatprep.subr.mxu0 0.0
    %2312 = vmatpush2.msra.mxu0 0.0
    %2313 = vmatprep.subr.mxu0 0.0
    %2314 = vmatpush2.msra.mxu0 0.0
    %2315 = vmatprep.subr.mxu0 0.0
    %2316 = vmatpush2.msra.mxu0 0.0
    %2317 = vmatprep.subr.mxu0 0.0
    %2318 = vmatpush2.msra.mxu0 0.0
    %2319 = vmatprep.mubr.f32.mxu0 0.0
    %v2320 = vand.u32 %v1885, 4294901760
    %v2321 = vsub.f32 %v1885, %v2320
    %v2322 = vand.u32 %v2321, 4294901760
    %2323 = vmatmul.mubr.f32.gmra.mxu0 %v2322
    %v2324 = vpop.f32.mrf.mxu0
    %v2325 = vadd.f32 %v2223, %v2324
    %v2326 = vpop.f32.mrf.mxu0
    %2327 = vmatprep.mubr.f32.mxu0 0.0
    %v2328 = vand.u32 %v1888, 4294901760
    %v2329 = vsub.f32 %v1888, %v2328
    %v2330 = vand.u32 %v2329, 4294901760
    %2331 = vmatmul.mubr.f32.gmra.mxu0 %v2330
    %v2332 = vpop.f32.mrf.mxu0
    %v2333 = vadd.f32 %v2230, %v2332
    %v2334 = vpop.f32.mrf.mxu0
    %2335 = vmatprep.mubr.f32.mxu0 0.0
    %v2336 = vand.u32 %v1891, 4294901760
    %v2337 = vsub.f32 %v1891, %v2336
    %v2338 = vand.u32 %v2337, 4294901760
    %2339 = vmatmul.mubr.f32.gmra.mxu0 %v2338
    %v2340 = vpop.f32.mrf.mxu0
    %v2341 = vadd.f32 %v2237, %v2340
    %v2342 = vpop.f32.mrf.mxu0
    %2343 = vmatprep.mubr.f32.mxu0 0.0
    %v2344 = vand.u32 %v1894, 4294901760
    %v2345 = vsub.f32 %v1894, %v2344
    %v2346 = vand.u32 %v2345, 4294901760
    %2347 = vmatmul.mubr.f32.gmra.mxu0 %v2346
    %v2348 = vpop.f32.mrf.mxu0
    %v2349 = vadd.f32 %v2244, %v2348
    %v2350 = vpop.f32.mrf.mxu0
    %2351 = vdwg.mxu0
    %2352 = vmatprep.subr.mxu0 0.0
    %2353 = vmatpush1.msra.mxu0 0.0
    %2354 = vmatprep.subr.mxu0 0.0
    %2355 = vmatpush1.msra.mxu0 0.0
    %2356 = vmatprep.subr.mxu0 0.0
    %2357 = vmatpush1.msra.mxu0 0.0
    %2358 = vmatprep.subr.mxu0 0.0
    %2359 = vmatpush1.msra.mxu0 0.0
    %2360 = vmatprep.subr.mxu0 0.0
    %2361 = vmatpush1.msra.mxu0 0.0
    %2362 = vmatprep.subr.mxu0 0.0
    %2363 = vmatpush1.msra.mxu0 0.0
    %2364 = vmatprep.subr.mxu0 0.0
    %2365 = vmatpush1.msra.mxu0 0.0
    %2366 = vmatprep.subr.mxu0 0.0
    %2367 = vmatpush1.msra.mxu0 0.0
    %2368 = vmatprep.subr.mxu0 0.0
    %v2369 = vand.u32 %v1883, 4294901760
    %v2370 = vsub.f32 %v1883, %v2369
    %v2371 = vand.u32 %v2370, 4294901760
    %2372 = vmatpush1.msra.mxu0 %v2371
    %2373 = vmatprep.subr.mxu0 0.0
    %v2374 = vand.u32 %v1882, 4294901760
    %v2375 = vsub.f32 %v1882, %v2374
    %v2376 = vand.u32 %v2375, 4294901760
    %2377 = vmatpush1.msra.mxu0 %v2376
    %2378 = vmatprep.subr.mxu0 0.0
    %v2379 = vand.u32 %v1881, 4294901760
    %v2380 = vsub.f32 %v1881, %v2379
    %v2381 = vand.u32 %v2380, 4294901760
    %2382 = vmatpush1.msra.mxu0 %v2381
    %2383 = vmatprep.subr.mxu0 0.0
    %v2384 = vand.u32 %v1880, 4294901760
    %v2385 = vsub.f32 %v1880, %v2384
    %v2386 = vand.u32 %v2385, 4294901760
    %2387 = vmatpush1.msra.mxu0 %v2386
    %2388 = vmatprep.subr.mxu0 0.0
    %v2389 = vand.u32 %v1879, 4294901760
    %v2390 = vsub.f32 %v1879, %v2389
    %v2391 = vand.u32 %v2390, 4294901760
    %2392 = vmatpush1.msra.mxu0 %v2391
    %2393 = vmatprep.subr.mxu0 0.0
    %v2394 = vand.u32 %v1878, 4294901760
    %v2395 = vsub.f32 %v1878, %v2394
    %v2396 = vand.u32 %v2395, 4294901760
    %2397 = vmatpush1.msra.mxu0 %v2396
    %2398 = vmatprep.subr.mxu0 0.0
    %v2399 = vand.u32 %v1877, 4294901760
    %v2400 = vsub.f32 %v1877, %v2399
    %v2401 = vand.u32 %v2400, 4294901760
    %2402 = vmatpush1.msra.mxu0 %v2401
    %2403 = vmatprep.subr.mxu0 0.0
    %v2404 = vand.u32 %v1876, 4294901760
    %v2405 = vsub.f32 %v1876, %v2404
    %v2406 = vand.u32 %v2405, 4294901760
    %2407 = vmatpush1.msra.mxu0 %v2406
    %2408 = vmatprep.subr.mxu0 0.0
    %2409 = vmatpush2.msra.mxu0 0.0
    %2410 = vmatprep.subr.mxu0 0.0
    %2411 = vmatpush2.msra.mxu0 0.0
    %2412 = vmatprep.subr.mxu0 0.0
    %2413 = vmatpush2.msra.mxu0 0.0
    %2414 = vmatprep.subr.mxu0 0.0
    %2415 = vmatpush2.msra.mxu0 0.0
    %2416 = vmatprep.subr.mxu0 0.0
    %2417 = vmatpush2.msra.mxu0 0.0
    %2418 = vmatprep.subr.mxu0 0.0
    %2419 = vmatpush2.msra.mxu0 0.0
    %2420 = vmatprep.subr.mxu0 0.0
    %2421 = vmatpush2.msra.mxu0 0.0
    %2422 = vmatprep.subr.mxu0 0.0
    %2423 = vmatpush2.msra.mxu0 0.0
    %2424 = vmatprep.subr.mxu0 0.0
    %2425 = vmatpush2.msra.mxu0 0.0
    %2426 = vmatprep.subr.mxu0 0.0
    %2427 = vmatpush2.msra.mxu0 0.0
    %2428 = vmatprep.subr.mxu0 0.0
    %2429 = vmatpush2.msra.mxu0 0.0
    %2430 = vmatprep.subr.mxu0 0.0
    %2431 = vmatpush2.msra.mxu0 0.0
    %2432 = vmatprep.subr.mxu0 0.0
    %2433 = vmatpush2.msra.mxu0 0.0
    %2434 = vmatprep.subr.mxu0 0.0
    %2435 = vmatpush2.msra.mxu0 0.0
    %2436 = vmatprep.subr.mxu0 0.0
    %2437 = vmatpush2.msra.mxu0 0.0
    %2438 = vmatprep.subr.mxu0 0.0
    %2439 = vmatpush2.msra.mxu0 0.0
    %2440 = vmatprep.mubr.f32.mxu0 0.0
    %v2441 = vand.u32 %v1885, 4294901760
    %2442 = vmatmul.mubr.f32.gmra.mxu0 %v2441
    %v2443 = vpop.f32.mrf.mxu0
    %v2444 = vadd.f32 %v2325, %v2443
    %v2445 = vpop.f32.mrf.mxu0
    %2446 = vmatprep.mubr.f32.mxu0 0.0
    %v2447 = vand.u32 %v1888, 4294901760
    %2448 = vmatmul.mubr.f32.gmra.mxu0 %v2447
    %v2449 = vpop.f32.mrf.mxu0
    %v2450 = vadd.f32 %v2333, %v2449
    %v2451 = vpop.f32.mrf.mxu0
    %2452 = vmatprep.mubr.f32.mxu0 0.0
    %v2453 = vand.u32 %v1891, 4294901760
    %2454 = vmatmul.mubr.f32.gmra.mxu0 %v2453
    %v2455 = vpop.f32.mrf.mxu0
    %v2456 = vadd.f32 %v2341, %v2455
    %v2457 = vpop.f32.mrf.mxu0
    %2458 = vmatprep.mubr.f32.mxu0 0.0
    %v2459 = vand.u32 %v1894, 4294901760
    %2460 = vmatmul.mubr.f32.gmra.mxu0 %v2459
    %v2461 = vpop.f32.mrf.mxu0
    %v2462 = vadd.f32 %v2349, %v2461
    %v2463 = vpop.f32.mrf.mxu0
    %2464 = vdwg.mxu0
    %2465 = vmatprep.subr.mxu0 0.0
    %2466 = vmatpush1.msra.mxu0 0.0
    %2467 = vmatprep.subr.mxu0 0.0
    %2468 = vmatpush1.msra.mxu0 0.0
    %2469 = vmatprep.subr.mxu0 0.0
    %2470 = vmatpush1.msra.mxu0 0.0
    %2471 = vmatprep.subr.mxu0 0.0
    %2472 = vmatpush1.msra.mxu0 0.0
    %2473 = vmatprep.subr.mxu0 0.0
    %2474 = vmatpush1.msra.mxu0 0.0
    %2475 = vmatprep.subr.mxu0 0.0
    %2476 = vmatpush1.msra.mxu0 0.0
    %2477 = vmatprep.subr.mxu0 0.0
    %2478 = vmatpush1.msra.mxu0 0.0
    %2479 = vmatprep.subr.mxu0 0.0
    %2480 = vmatpush1.msra.mxu0 0.0
    %2481 = vmatprep.subr.mxu0 0.0
    %v2482 = vand.u32 %v1883, 4294901760
    %2483 = vmatpush1.msra.mxu0 %v2482
    %2484 = vmatprep.subr.mxu0 0.0
    %v2485 = vand.u32 %v1882, 4294901760
    %2486 = vmatpush1.msra.mxu0 %v2485
    %2487 = vmatprep.subr.mxu0 0.0
    %v2488 = vand.u32 %v1881, 4294901760
    %2489 = vmatpush1.msra.mxu0 %v2488
    %2490 = vmatprep.subr.mxu0 0.0
    %v2491 = vand.u32 %v1880, 4294901760
    %2492 = vmatpush1.msra.mxu0 %v2491
    %2493 = vmatprep.subr.mxu0 0.0
    %v2494 = vand.u32 %v1879, 4294901760
    %2495 = vmatpush1.msra.mxu0 %v2494
    %2496 = vmatprep.subr.mxu0 0.0
    %v2497 = vand.u32 %v1878, 4294901760
    %2498 = vmatpush1.msra.mxu0 %v2497
    %2499 = vmatprep.subr.mxu0 0.0
    %v2500 = vand.u32 %v1877, 4294901760
    %2501 = vmatpush1.msra.mxu0 %v2500
    %2502 = vmatprep.subr.mxu0 0.0
    %v2503 = vand.u32 %v1876, 4294901760
    %2504 = vmatpush1.msra.mxu0 %v2503
    %2505 = vmatprep.subr.mxu0 0.0
    %2506 = vmatpush2.msra.mxu0 0.0
    %2507 = vmatprep.subr.mxu0 0.0
    %2508 = vmatpush2.msra.mxu0 0.0
    %2509 = vmatprep.subr.mxu0 0.0
    %2510 = vmatpush2.msra.mxu0 0.0
    %2511 = vmatprep.subr.mxu0 0.0
    %2512 = vmatpush2.msra.mxu0 0.0
    %2513 = vmatprep.subr.mxu0 0.0
    %2514 = vmatpush2.msra.mxu0 0.0
    %2515 = vmatprep.subr.mxu0 0.0
    %2516 = vmatpush2.msra.mxu0 0.0
    %2517 = vmatprep.subr.mxu0 0.0
    %2518 = vmatpush2.msra.mxu0 0.0
    %2519 = vmatprep.subr.mxu0 0.0
    %2520 = vmatpush2.msra.mxu0 0.0
    %2521 = vmatprep.subr.mxu0 0.0
    %2522 = vmatpush2.msra.mxu0 0.0
    %2523 = vmatprep.subr.mxu0 0.0
    %2524 = vmatpush2.msra.mxu0 0.0
    %2525 = vmatprep.subr.mxu0 0.0
    %2526 = vmatpush2.msra.mxu0 0.0
    %2527 = vmatprep.subr.mxu0 0.0
    %2528 = vmatpush2.msra.mxu0 0.0
    %2529 = vmatprep.subr.mxu0 0.0
    %2530 = vmatpush2.msra.mxu0 0.0
    %2531 = vmatprep.subr.mxu0 0.0
    %2532 = vmatpush2.msra.mxu0 0.0
    %2533 = vmatprep.subr.mxu0 0.0
    %2534 = vmatpush2.msra.mxu0 0.0
    %2535 = vmatprep.subr.mxu0 0.0
    %2536 = vmatpush2.msra.mxu0 0.0
    %2537 = vmatprep.mubr.f32.mxu0 0.0
    %v2538 = vand.u32 %v1885, 4294901760
    %2539 = vmatmul.mubr.f32.gmra.mxu0 %v2538
    %v2540 = vpop.f32.mrf.mxu0
    %v2541 = vadd.f32 %v2444, %v2540
    %v2542 = vpop.f32.mrf.mxu0
    %2543 = vmatprep.mubr.f32.mxu0 0.0
    %v2544 = vand.u32 %v1888, 4294901760
    %2545 = vmatmul.mubr.f32.gmra.mxu0 %v2544
    %v2546 = vpop.f32.mrf.mxu0
    %v2547 = vadd.f32 %v2450, %v2546
    %v2548 = vpop.f32.mrf.mxu0
    %2549 = vmatprep.mubr.f32.mxu0 0.0
    %v2550 = vand.u32 %v1891, 4294901760
    %2551 = vmatmul.mubr.f32.gmra.mxu0 %v2550
    %v2552 = vpop.f32.mrf.mxu0
    %v2553 = vadd.f32 %v2456, %v2552
    %v2554 = vpop.f32.mrf.mxu0
    %2555 = vmatprep.mubr.f32.mxu0 0.0
    %v2556 = vand.u32 %v1894, 4294901760
    %2557 = vmatmul.mubr.f32.gmra.mxu0 %v2556
    %v2558 = vpop.f32.mrf.mxu0
    %v2559 = vadd.f32 %v2462, %v2558
    %v2560 = vpop.f32.mrf.mxu0
    %2561 = vdwg.mxu0
    %vm2562 = vcmask 261120
    %v2563 = vsel %vm2562, %v2541, 0.0
    %v2564 = vsel %vm2562, %v2547, 0.0
    %v2565 = vadd.f32 %v2563, %v2564
    %v2566 = vsel %vm2562, %v2553, 0.0
    %v2567 = vadd.f32 %v2565, %v2566
    %v2568 = vsel %vm2562, %v2559, 0.0
    %v2569 = vadd.f32 %v2567, %v2568
    %v2570 = vrot.slane %v2569, 4
    %v2571 = vadd.f32 %v2569, %v2570
    %v2572 = vrot.slane %v2571, 2
    %v2573 = vadd.f32 %v2571, %v2572
    %v2574 = vrot.slane %v2573, 1
    %v2575 = vadd.f32 %v2573, %v2574
    %v2576 = vmul.f32 %v2575, 0.03125
    %v2577 = vmul.f32 %v2541, %v2541
    %v2578 = vmul.f32 %v2547, %v2547
    %v2579 = vmul.f32 %v2553, %v2553
    %v2580 = vmul.f32 %v2559, %v2559
    %v2581 = vsel %vm2562, %v2577, 0.0
    %v2582 = vsel %vm2562, %v2578, 0.0
    %v2583 = vadd.f32 %v2581, %v2582
    %v2584 = vsel %vm2562, %v2579, 0.0
    %v2585 = vadd.f32 %v2583, %v2584
    %v2586 = vsel %vm2562, %v2580, 0.0
    %v2587 = vadd.f32 %v2585, %v2586
    %v2588 = vrot.slane %v2587, 4
    %v2589 = vadd.f32 %v2587, %v2588
    %v2590 = vrot.slane %v2589, 2
    %v2591 = vadd.f32 %v2589, %v2590
    %v2592 = vrot.slane %v2591, 1
    %v2593 = vadd.f32 %v2591, %v2592
    %v2594 = vmul.f32 %v2593, 0.03125
    %v2595 = vmul.f32 %v2576, %v2576
    %v2596 = vsub.f32 %v2594, %v2595
    %v2597 = vsub.f32 %v2541, %v2576
    %v2598 = vsub.f32 %v2547, %v2576
    %v2599 = vsub.f32 %v2553, %v2576
    %v2600 = vsub.f32 %v2559, %v2576
    %v2601 = vadd.f32 %v2596, 1e-05
    %v2602 = vrsqrt.pop %v2601
    %v2603 = vmul.f32 %v2597, %v2602
    %v2604 = vmul.f32 %v2598, %v2602
    %v2605 = vmul.f32 %v2599, %v2602
    %v2606 = vmul.f32 %v2600, %v2602
    %v2607 = vld [vmem:[%s3 + $0x240] sm:$0x1]
    %v2608 = vlaneseq
    %v2609 = vshrl.u32 %v2608, 7
    %v2610 = vsub.s32 0, %v2609
    %v2611 = vrot.slane %v2607, %v2610
    %v2612 = vmul.f32 %v2603, %v2611
    %v2613 = vmul.f32 %v2604, %v2611
    %v2614 = vmul.f32 %v2605, %v2611
    %v2615 = vmul.f32 %v2606, %v2611
    %v2616 = vld [vmem:[%s3 + $0x241] sm:$0x1]
    %v2617 = vlaneseq
    %v2618 = vshrl.u32 %v2617, 7
    %v2619 = vsub.s32 0, %v2618
    %v2620 = vrot.slane %v2616, %v2619
    %v2621 = vadd.f32 %v2612, %v2620
    %v2622 = vadd.f32 %v2613, %v2620
    %v2623 = vadd.f32 %v2614, %v2620
    %v2624 = vadd.f32 %v2615, %v2620
    %v2625 = vmax.f32 %v2621, 0.0
    %v2626 = vmax.f32 %v2622, 0.0
    %v2627 = vmax.f32 %v2623, 0.0
    %v2628 = vmax.f32 %v2624, 0.0
    %2629 = vst.msk [vmem:[#allocation3] sm:$0xff] %vm2562, %v2625
    %2630 = vst.msk [vmem:[#allocation3 + $0x8] sm:$0xff] %vm2562, %v2626
    %2631 = vst.msk [vmem:[#allocation3 + $0x10] sm:$0xff] %vm2562, %v2627
    %2632 = vst.msk [vmem:[#allocation3 + $0x18] sm:$0xff] %vm2562, %v2628
    %v2633 = vld [vmem:[#allocation3] sm:$0x3]
    %vm2634 = vcmask 254976
    %2635 = vst.msk [vmem:[#allocation2] sm:$0x3] %vm2634, %v2633
    %v2636 = vld [vmem:[#allocation3 + $0x2] sm:$0x3]
    %v2639 = vunpack.c.l.s4 1983009808
    %v2640 = vunpack.c.0.s8 %v2639
    %v2641 = vlaneseq
    %v2642 = vshrl.u32 %v2641, 7
    %v2643 = vsub.s32 %v2640, %v2642
    %v2644 = vrot.slane %v2636, %v2643
    %2645 = vrot.lane.b32.xlu0 %v2644, 32
    %v2646 = vpop.permute.xlu0 %2645
    %vm2648 = vcmask 517376
    %2649 = vst.msk [vmem:[#allocation2] sm:$0x3] %vm2648, %v2646
    %v2650 = vld [vmem:[#allocation3 + $0x4] sm:$0x3]
    %v2653 = vunpack.c.l.s4 1983009808
    %v2654 = vunpack.c.0.s8 %v2653
    %v2655 = vlaneseq
    %v2656 = vshrl.u32 %v2655, 7
    %v2657 = vsub.s32 %v2654, %v2656
    %v2658 = vrot.slane %v2650, %v2657
    %2659 = vrot.lane.b32.xlu0 %v2658, 64
    %v2660 = vpop.permute.xlu0 %2659
    %vm2662 = vcmask 779776
    %2663 = vst.msk [vmem:[#allocation2] sm:$0x3] %vm2662, %v2660
    %v2664 = vld [vmem:[#allocation3 + $0x6] sm:$0x3]
    %v2667 = vunpack.c.l.s4 1983009808
    %v2668 = vunpack.c.0.s8 %v2667
    %v2669 = vlaneseq
    %v2670 = vshrl.u32 %v2669, 7
    %v2671 = vsub.s32 %v2668, %v2670
    %v2672 = vrot.slane %v2664, %v2671
    %2673 = vrot.lane.b32.xlu0 %v2672, 96
    %v2674 = vpop.permute.xlu0 %2673
    %vm2676 = vcmask 1042176
    %2677 = vst.msk [vmem:[#allocation2] sm:$0x3] %vm2676, %v2674
    %v2678 = vld [vmem:[#allocation3 + $0x8] sm:$0x3]
    %2679 = vst.msk [vmem:[#allocation2 + $0x2] sm:$0x3] %vm2634, %v2678
    %v2680 = vld [vmem:[#allocation3 + $0xa] sm:$0x3]
    %v2683 = vunpack.c.l.s4 1983009808
    %v2684 = vunpack.c.0.s8 %v2683
    %v2685 = vlaneseq
    %v2686 = vshrl.u32 %v2685, 7
    %v2687 = vsub.s32 %v2684, %v2686
    %v2688 = vrot.slane %v2680, %v2687
    %2689 = vrot.lane.b32.xlu0 %v2688, 32
    %v2690 = vpop.permute.xlu0 %2689
    %2692 = vst.msk [vmem:[#allocation2 + $0x2] sm:$0x3] %vm2648, %v2690
    %v2693 = vld [vmem:[#allocation3 + $0xc] sm:$0x3]
    %v2696 = vunpack.c.l.s4 1983009808
    %v2697 = vunpack.c.0.s8 %v2696
    %v2698 = vlaneseq
    %v2699 = vshrl.u32 %v2698, 7
    %v2700 = vsub.s32 %v2697, %v2699
    %v2701 = vrot.slane %v2693, %v2700
    %2702 = vrot.lane.b32.xlu0 %v2701, 64
    %v2703 = vpop.permute.xlu0 %2702
    %2705 = vst.msk [vmem:[#allocation2 + $0x2] sm:$0x3] %vm2662, %v2703
    %v2706 = vld [vmem:[#allocation3 + $0xe] sm:$0x3]
    %v2709 = vunpack.c.l.s4 1983009808
    %v2710 = vunpack.c.0.s8 %v2709
    %v2711 = vlaneseq
    %v2712 = vshrl.u32 %v2711, 7
    %v2713 = vsub.s32 %v2710, %v2712
    %v2714 = vrot.slane %v2706, %v2713
    %2715 = vrot.lane.b32.xlu0 %v2714, 96
    %v2716 = vpop.permute.xlu0 %2715
    %2718 = vst.msk [vmem:[#allocation2 + $0x2] sm:$0x3] %vm2676, %v2716
    %v2719 = vld [vmem:[#allocation3 + $0x10] sm:$0x3]
    %2720 = vst.msk [vmem:[#allocation2 + $0x4] sm:$0x3] %vm2634, %v2719
    %v2721 = vld [vmem:[#allocation3 + $0x12] sm:$0x3]
    %v2724 = vunpack.c.l.s4 1983009808
    %v2725 = vunpack.c.0.s8 %v2724
    %v2726 = vlaneseq
    %v2727 = vshrl.u32 %v2726, 7
    %v2728 = vsub.s32 %v2725, %v2727
    %v2729 = vrot.slane %v2721, %v2728
    %2730 = vrot.lane.b32.xlu0 %v2729, 32
    %v2731 = vpop.permute.xlu0 %2730
    %2733 = vst.msk [vmem:[#allocation2 + $0x4] sm:$0x3] %vm2648, %v2731
    %v2734 = vld [vmem:[#allocation3 + $0x14] sm:$0x3]
    %v2737 = vunpack.c.l.s4 1983009808
    %v2738 = vunpack.c.0.s8 %v2737
    %v2739 = vlaneseq
    %v2740 = vshrl.u32 %v2739, 7
    %v2741 = vsub.s32 %v2738, %v2740
    %v2742 = vrot.slane %v2734, %v2741
    %2743 = vrot.lane.b32.xlu0 %v2742, 64
    %v2744 = vpop.permute.xlu0 %2743
    %2746 = vst.msk [vmem:[#allocation2 + $0x4] sm:$0x3] %vm2662, %v2744
    %v2747 = vld [vmem:[#allocation3 + $0x16] sm:$0x3]
    %v2750 = vunpack.c.l.s4 1983009808
    %v2751 = vunpack.c.0.s8 %v2750
    %v2752 = vlaneseq
    %v2753 = vshrl.u32 %v2752, 7
    %v2754 = vsub.s32 %v2751, %v2753
    %v2755 = vrot.slane %v2747, %v2754
    %2756 = vrot.lane.b32.xlu0 %v2755, 96
    %v2757 = vpop.permute.xlu0 %2756
    %2759 = vst.msk [vmem:[#allocation2 + $0x4] sm:$0x3] %vm2676, %v2757
    %v2760 = vld [vmem:[#allocation3 + $0x18] sm:$0x3]
    %2761 = vst.msk [vmem:[#allocation2 + $0x6] sm:$0x3] %vm2634, %v2760
    %v2762 = vld [vmem:[#allocation3 + $0x1a] sm:$0x3]
    %v2765 = vunpack.c.l.s4 1983009808
    %v2766 = vunpack.c.0.s8 %v2765
    %v2767 = vlaneseq
    %v2768 = vshrl.u32 %v2767, 7
    %v2769 = vsub.s32 %v2766, %v2768
    %v2770 = vrot.slane %v2762, %v2769
    %2771 = vrot.lane.b32.xlu0 %v2770, 32
    %v2772 = vpop.permute.xlu0 %2771
    %2774 = vst.msk [vmem:[#allocation2 + $0x6] sm:$0x3] %vm2648, %v2772
    %v2775 = vld [vmem:[#allocation3 + $0x1c] sm:$0x3]
    %v2778 = vunpack.c.l.s4 1983009808
    %v2779 = vunpack.c.0.s8 %v2778
    %v2780 = vlaneseq
    %v2781 = vshrl.u32 %v2780, 7
    %v2782 = vsub.s32 %v2779, %v2781
    %v2783 = vrot.slane %v2775, %v2782
    %2784 = vrot.lane.b32.xlu0 %v2783, 64
    %v2785 = vpop.permute.xlu0 %2784
    %2787 = vst.msk [vmem:[#allocation2 + $0x6] sm:$0x3] %vm2662, %v2785
    %v2788 = vld [vmem:[#allocation3 + $0x1e] sm:$0x3]
    %v2791 = vunpack.c.l.s4 1983009808
    %v2792 = vunpack.c.0.s8 %v2791
    %v2793 = vlaneseq
    %v2794 = vshrl.u32 %v2793, 7
    %v2795 = vsub.s32 %v2792, %v2794
    %v2796 = vrot.slane %v2788, %v2795
    %2797 = vrot.lane.b32.xlu0 %v2796, 96
    %v2798 = vpop.permute.xlu0 %2797
    %2800 = vst.msk [vmem:[#allocation2 + $0x6] sm:$0x3] %vm2676, %v2798
    %v2801 = vld [vmem:[#allocation2] sm:$0xff]
    %v2802 = vld [vmem:[%s3 + $0x40] sm:$0xff]
    %v2803 = vld [vmem:[%s3 + $0x48] sm:$0xff]
    %v2804 = vld [vmem:[%s3 + $0x50] sm:$0xff]
    %v2805 = vld [vmem:[%s3 + $0x58] sm:$0xff]
    %v2806 = vld [vmem:[%s3 + $0x60] sm:$0xff]
    %v2807 = vld [vmem:[%s3 + $0x68] sm:$0xff]
    %v2808 = vld [vmem:[%s3 + $0x70] sm:$0xff]
    %v2809 = vld [vmem:[%s3 + $0x78] sm:$0xff]
    %v2810 = vld [vmem:[%s3 + $0x80] sm:$0xff]
    %v2811 = vld [vmem:[%s3 + $0x88] sm:$0xff]
    %v2812 = vld [vmem:[%s3 + $0x90] sm:$0xff]
    %v2813 = vld [vmem:[%s3 + $0x98] sm:$0xff]
    %v2814 = vld [vmem:[%s3 + $0xa0] sm:$0xff]
    %v2815 = vld [vmem:[%s3 + $0xa8] sm:$0xff]
    %v2816 = vld [vmem:[%s3 + $0xb0] sm:$0xff]
    %v2817 = vld [vmem:[%s3 + $0xb8] sm:$0xff]
    %v2818 = vld [vmem:[%s3 + $0xc0] sm:$0xff]
    %v2819 = vld [vmem:[%s3 + $0xc8] sm:$0xff]
    %v2820 = vld [vmem:[%s3 + $0xd0] sm:$0xff]
    %v2821 = vld [vmem:[%s3 + $0xd8] sm:$0xff]
    %v2822 = vld [vmem:[%s3 + $0xe0] sm:$0xff]
    %v2823 = vld [vmem:[%s3 + $0xe8] sm:$0xff]
    %v2824 = vld [vmem:[%s3 + $0xf0] sm:$0xff]
    %v2825 = vld [vmem:[%s3 + $0xf8] sm:$0xff]
    %v2826 = vld [vmem:[%s3 + $0x100] sm:$0xff]
    %v2827 = vld [vmem:[%s3 + $0x108] sm:$0xff]
    %v2828 = vld [vmem:[%s3 + $0x110] sm:$0xff]
    %v2829 = vld [vmem:[%s3 + $0x118] sm:$0xff]
    %v2830 = vld [vmem:[%s3 + $0x120] sm:$0xff]
    %v2831 = vld [vmem:[%s3 + $0x128] sm:$0xff]
    %v2832 = vld [vmem:[%s3 + $0x130] sm:$0xff]
    %v2833 = vld [vmem:[%s3 + $0x138] sm:$0xff]
    %v2834 = vld [vmem:[%s3 + $0x140] sm:$0xff]
    %v2835 = vld [vmem:[%s3 + $0x148] sm:$0xff]
    %v2836 = vld [vmem:[%s3 + $0x150] sm:$0xff]
    %v2837 = vld [vmem:[%s3 + $0x158] sm:$0xff]
    %v2838 = vld [vmem:[%s3 + $0x160] sm:$0xff]
    %v2839 = vld [vmem:[%s3 + $0x168] sm:$0xff]
    %v2840 = vld [vmem:[%s3 + $0x170] sm:$0xff]
    %v2841 = vld [vmem:[%s3 + $0x178] sm:$0xff]
    %v2842 = vld [vmem:[%s3 + $0x180] sm:$0xff]
    %v2843 = vld [vmem:[%s3 + $0x188] sm:$0xff]
    %v2844 = vld [vmem:[%s3 + $0x190] sm:$0xff]
    %v2845 = vld [vmem:[%s3 + $0x198] sm:$0xff]
    %v2846 = vld [vmem:[%s3 + $0x1a0] sm:$0xff]
    %v2847 = vld [vmem:[%s3 + $0x1a8] sm:$0xff]
    %v2848 = vld [vmem:[%s3 + $0x1b0] sm:$0xff]
    %v2849 = vld [vmem:[%s3 + $0x1b8] sm:$0xff]
    %v2850 = vld [vmem:[%s3 + $0x1c0] sm:$0xff]
    %v2851 = vld [vmem:[%s3 + $0x1c8] sm:$0xff]
    %v2852 = vld [vmem:[%s3 + $0x1d0] sm:$0xff]
    %v2853 = vld [vmem:[%s3 + $0x1d8] sm:$0xff]
    %v2854 = vld [vmem:[%s3 + $0x1e0] sm:$0xff]
    %v2855 = vld [vmem:[%s3 + $0x1e8] sm:$0xff]
    %v2856 = vld [vmem:[%s3 + $0x1f0] sm:$0xff]
    %v2857 = vld [vmem:[%s3 + $0x1f8] sm:$0xff]
    %v2858 = vld [vmem:[%s3 + $0x200] sm:$0xff]
    %v2859 = vld [vmem:[%s3 + $0x208] sm:$0xff]
    %v2860 = vld [vmem:[%s3 + $0x210] sm:$0xff]
    %v2861 = vld [vmem:[%s3 + $0x218] sm:$0xff]
    %v2862 = vld [vmem:[%s3 + $0x220] sm:$0xff]
    %v2863 = vld [vmem:[%s3 + $0x228] sm:$0xff]
    %v2864 = vld [vmem:[%s3 + $0x230] sm:$0xff]
    %v2865 = vld [vmem:[%s3 + $0x238] sm:$0xff]
    %v2866 = vld [vmem:[%s3 + $0x242] sm:$0x1]
    %v2867 = vlaneseq
    %v2868 = vshrl.u32 %v2867, 7
    %v2869 = vsub.s32 0, %v2868
    %v2870 = vrot.slane %v2866, %v2869
    %v2872 = vcombine.high %v2801, %v2801
    %v2874 = vunpack.c.l.s4 1983009808
    %v2875 = vunpack.c.0.s8 %v2874
    %v2876 = vlaneseq
    %v2877 = vshrl.u32 %v2876, 7
    %v2878 = vsub.s32 %v2875, %v2877
    %v2879 = vrot.slane %v2801, %v2878
    %v2881 = vunpack.c.l.s4 1983009808
    %v2882 = vunpack.c.0.s8 %v2881
    %v2883 = vlaneseq
    %v2884 = vshrl.u32 %v2883, 7
    %v2885 = vsub.s32 %v2882, %v2884
    %v2886 = vrot.slane %v2872, %v2885
    %v2887 = vcombine.high %v2879, %v2879
    %v2888 = vcombine.high %v2886, %v2886
    %2893 = vmatprep.subr.mxu0 0.0
    %v2894 = vand.u32 %v2817, 4294901760
    %2895 = vmatpush1.msra.mxu0 %v2894
    %2896 = vmatprep.subr.mxu0 0.0
    %v2897 = vand.u32 %v2816, 4294901760
    %2898 = vmatpush1.msra.mxu0 %v2897
    %2899 = vmatprep.subr.mxu0 0.0
    %v2900 = vand.u32 %v2815, 4294901760
    %2901 = vmatpush1.msra.mxu0 %v2900
    %2902 = vmatprep.subr.mxu0 0.0
    %v2903 = vand.u32 %v2814, 4294901760
    %2904 = vmatpush1.msra.mxu0 %v2903
    %2905 = vmatprep.subr.mxu0 0.0
    %v2906 = vand.u32 %v2813, 4294901760
    %2907 = vmatpush1.msra.mxu0 %v2906
    %2908 = vmatprep.subr.mxu0 0.0
    %v2909 = vand.u32 %v2812, 4294901760
    %2910 = vmatpush1.msra.mxu0 %v2909
    %2911 = vmatprep.subr.mxu0 0.0
    %v2912 = vand.u32 %v2811, 4294901760
    %2913 = vmatpush1.msra.mxu0 %v2912
    %2914 = vmatprep.subr.mxu0 0.0
    %v2915 = vand.u32 %v2810, 4294901760
    %2916 = vmatpush1.msra.mxu0 %v2915
    %2917 = vmatprep.subr.mxu0 0.0
    %v2918 = vand.u32 %v2809, 4294901760
    %2919 = vmatpush1.msra.mxu0 %v2918
    %2920 = vmatprep.subr.mxu0 0.0
    %v2921 = vand.u32 %v2808, 4294901760
    %2922 = vmatpush1.msra.mxu0 %v2921
    %2923 = vmatprep.subr.mxu0 0.0
    %v2924 = vand.u32 %v2807, 4294901760
    %2925 = vmatpush1.msra.mxu0 %v2924
    %2926 = vmatprep.subr.mxu0 0.0
    %v2927 = vand.u32 %v2806, 4294901760
    %2928 = vmatpush1.msra.mxu0 %v2927
    %2929 = vmatprep.subr.mxu0 0.0
    %v2930 = vand.u32 %v2805, 4294901760
    %2931 = vmatpush1.msra.mxu0 %v2930
    %2932 = vmatprep.subr.mxu0 0.0
    %v2933 = vand.u32 %v2804, 4294901760
    %2934 = vmatpush1.msra.mxu0 %v2933
    %2935 = vmatprep.subr.mxu0 0.0
    %v2936 = vand.u32 %v2803, 4294901760
    %2937 = vmatpush1.msra.mxu0 %v2936
    %2938 = vmatprep.subr.mxu0 0.0
    %v2939 = vand.u32 %v2802, 4294901760
    %2940 = vmatpush1.msra.mxu0 %v2939
    %2941 = vmatprep.subr.mxu0 0.0
    %v2942 = vand.u32 %v2833, 4294901760
    %2943 = vmatpush2.msra.mxu0 %v2942
    %2944 = vmatprep.subr.mxu0 0.0
    %v2945 = vand.u32 %v2832, 4294901760
    %2946 = vmatpush2.msra.mxu0 %v2945
    %2947 = vmatprep.subr.mxu0 0.0
    %v2948 = vand.u32 %v2831, 4294901760
    %2949 = vmatpush2.msra.mxu0 %v2948
    %2950 = vmatprep.subr.mxu0 0.0
    %v2951 = vand.u32 %v2830, 4294901760
    %2952 = vmatpush2.msra.mxu0 %v2951
    %2953 = vmatprep.subr.mxu0 0.0
    %v2954 = vand.u32 %v2829, 4294901760
    %2955 = vmatpush2.msra.mxu0 %v2954
    %2956 = vmatprep.subr.mxu0 0.0
    %v2957 = vand.u32 %v2828, 4294901760
    %2958 = vmatpush2.msra.mxu0 %v2957
    %2959 = vmatprep.subr.mxu0 0.0
    %v2960 = vand.u32 %v2827, 4294901760
    %2961 = vmatpush2.msra.mxu0 %v2960
    %2962 = vmatprep.subr.mxu0 0.0
    %v2963 = vand.u32 %v2826, 4294901760
    %2964 = vmatpush2.msra.mxu0 %v2963
    %2965 = vmatprep.subr.mxu0 0.0
    %v2966 = vand.u32 %v2825, 4294901760
    %2967 = vmatpush2.msra.mxu0 %v2966
    %2968 = vmatprep.subr.mxu0 0.0
    %v2969 = vand.u32 %v2824, 4294901760
    %2970 = vmatpush2.msra.mxu0 %v2969
    %2971 = vmatprep.subr.mxu0 0.0
    %v2972 = vand.u32 %v2823, 4294901760
    %2973 = vmatpush2.msra.mxu0 %v2972
    %2974 = vmatprep.subr.mxu0 0.0
    %v2975 = vand.u32 %v2822, 4294901760
    %2976 = vmatpush2.msra.mxu0 %v2975
    %2977 = vmatprep.subr.mxu0 0.0
    %v2978 = vand.u32 %v2821, 4294901760
    %2979 = vmatpush2.msra.mxu0 %v2978
    %2980 = vmatprep.subr.mxu0 0.0
    %v2981 = vand.u32 %v2820, 4294901760
    %2982 = vmatpush2.msra.mxu0 %v2981
    %2983 = vmatprep.subr.mxu0 0.0
    %v2984 = vand.u32 %v2819, 4294901760
    %2985 = vmatpush2.msra.mxu0 %v2984
    %2986 = vmatprep.subr.mxu0 0.0
    %v2987 = vand.u32 %v2818, 4294901760
    %2988 = vmatpush2.msra.mxu0 %v2987
    %v2989 = vand.u32 %v2887, 4294901760
    %v2990 = vsub.f32 %v2887, %v2989
    %v2991 = vand.u32 %v2990, 4294901760
    %v2992 = vsub.f32 %v2990, %v2991
    %v2993 = vand.u32 %v2992, 4294901760
    %2994 = vmatprep.mubr.f32.mxu0 %v2993
    %v2995 = vand.u32 %v2879, 4294901760
    %v2996 = vsub.f32 %v2879, %v2995
    %v2997 = vand.u32 %v2996, 4294901760
    %v2998 = vsub.f32 %v2996, %v2997
    %v2999 = vand.u32 %v2998, 4294901760
    %3000 = vmatmul.mubr.f32.gmra.mxu0 %v2999
    %v3001 = vpop.f32.mrf.mxu0
    %v3002 = vadd.f32 %v2870, %v3001
    %v3003 = vpop.f32.mrf.mxu0
    %3004 = vdwg.mxu0
    %3005 = vmatprep.subr.mxu0 0.0
    %v3006 = vand.u32 %v2817, 4294901760
    %v3007 = vsub.f32 %v2817, %v3006
    %v3008 = vand.u32 %v3007, 4294901760
    %v3009 = vsub.f32 %v3007, %v3008
    %v3010 = vand.u32 %v3009, 4294901760
    %3011 = vmatpush1.msra.mxu0 %v3010
    %3012 = vmatprep.subr.mxu0 0.0
    %v3013 = vand.u32 %v2816, 4294901760
    %v3014 = vsub.f32 %v2816, %v3013
    %v3015 = vand.u32 %v3014, 4294901760
    %v3016 = vsub.f32 %v3014, %v3015
    %v3017 = vand.u32 %v3016, 4294901760
    %3018 = vmatpush1.msra.mxu0 %v3017
    %3019 = vmatprep.subr.mxu0 0.0
    %v3020 = vand.u32 %v2815, 4294901760
    %v3021 = vsub.f32 %v2815, %v3020
    %v3022 = vand.u32 %v3021, 4294901760
    %v3023 = vsub.f32 %v3021, %v3022
    %v3024 = vand.u32 %v3023, 4294901760
    %3025 = vmatpush1.msra.mxu0 %v3024
    %3026 = vmatprep.subr.mxu0 0.0
    %v3027 = vand.u32 %v2814, 4294901760
    %v3028 = vsub.f32 %v2814, %v3027
    %v3029 = vand.u32 %v3028, 4294901760
    %v3030 = vsub.f32 %v3028, %v3029
    %v3031 = vand.u32 %v3030, 4294901760
    %3032 = vmatpush1.msra.mxu0 %v3031
    %3033 = vmatprep.subr.mxu0 0.0
    %v3034 = vand.u32 %v2813, 4294901760
    %v3035 = vsub.f32 %v2813, %v3034
    %v3036 = vand.u32 %v3035, 4294901760
    %v3037 = vsub.f32 %v3035, %v3036
    %v3038 = vand.u32 %v3037, 4294901760
    %3039 = vmatpush1.msra.mxu0 %v3038
    %3040 = vmatprep.subr.mxu0 0.0
    %v3041 = vand.u32 %v2812, 4294901760
    %v3042 = vsub.f32 %v2812, %v3041
    %v3043 = vand.u32 %v3042, 4294901760
    %v3044 = vsub.f32 %v3042, %v3043
    %v3045 = vand.u32 %v3044, 4294901760
    %3046 = vmatpush1.msra.mxu0 %v3045
    %3047 = vmatprep.subr.mxu0 0.0
    %v3048 = vand.u32 %v2811, 4294901760
    %v3049 = vsub.f32 %v2811, %v3048
    %v3050 = vand.u32 %v3049, 4294901760
    %v3051 = vsub.f32 %v3049, %v3050
    %v3052 = vand.u32 %v3051, 4294901760
    %3053 = vmatpush1.msra.mxu0 %v3052
    %3054 = vmatprep.subr.mxu0 0.0
    %v3055 = vand.u32 %v2810, 4294901760
    %v3056 = vsub.f32 %v2810, %v3055
    %v3057 = vand.u32 %v3056, 4294901760
    %v3058 = vsub.f32 %v3056, %v3057
    %v3059 = vand.u32 %v3058, 4294901760
    %3060 = vmatpush1.msra.mxu0 %v3059
    %3061 = vmatprep.subr.mxu0 0.0
    %v3062 = vand.u32 %v2809, 4294901760
    %v3063 = vsub.f32 %v2809, %v3062
    %v3064 = vand.u32 %v3063, 4294901760
    %v3065 = vsub.f32 %v3063, %v3064
    %v3066 = vand.u32 %v3065, 4294901760
    %3067 = vmatpush1.msra.mxu0 %v3066
    %3068 = vmatprep.subr.mxu0 0.0
    %v3069 = vand.u32 %v2808, 4294901760
    %v3070 = vsub.f32 %v2808, %v3069
    %v3071 = vand.u32 %v3070, 4294901760
    %v3072 = vsub.f32 %v3070, %v3071
    %v3073 = vand.u32 %v3072, 4294901760
    %3074 = vmatpush1.msra.mxu0 %v3073
    %3075 = vmatprep.subr.mxu0 0.0
    %v3076 = vand.u32 %v2807, 4294901760
    %v3077 = vsub.f32 %v2807, %v3076
    %v3078 = vand.u32 %v3077, 4294901760
    %v3079 = vsub.f32 %v3077, %v3078
    %v3080 = vand.u32 %v3079, 4294901760
    %3081 = vmatpush1.msra.mxu0 %v3080
    %3082 = vmatprep.subr.mxu0 0.0
    %v3083 = vand.u32 %v2806, 4294901760
    %v3084 = vsub.f32 %v2806, %v3083
    %v3085 = vand.u32 %v3084, 4294901760
    %v3086 = vsub.f32 %v3084, %v3085
    %v3087 = vand.u32 %v3086, 4294901760
    %3088 = vmatpush1.msra.mxu0 %v3087
    %3089 = vmatprep.subr.mxu0 0.0
    %v3090 = vand.u32 %v2805, 4294901760
    %v3091 = vsub.f32 %v2805, %v3090
    %v3092 = vand.u32 %v3091, 4294901760
    %v3093 = vsub.f32 %v3091, %v3092
    %v3094 = vand.u32 %v3093, 4294901760
    %3095 = vmatpush1.msra.mxu0 %v3094
    %3096 = vmatprep.subr.mxu0 0.0
    %v3097 = vand.u32 %v2804, 4294901760
    %v3098 = vsub.f32 %v2804, %v3097
    %v3099 = vand.u32 %v3098, 4294901760
    %v3100 = vsub.f32 %v3098, %v3099
    %v3101 = vand.u32 %v3100, 4294901760
    %3102 = vmatpush1.msra.mxu0 %v3101
    %3103 = vmatprep.subr.mxu0 0.0
    %v3104 = vand.u32 %v2803, 4294901760
    %v3105 = vsub.f32 %v2803, %v3104
    %v3106 = vand.u32 %v3105, 4294901760
    %v3107 = vsub.f32 %v3105, %v3106
    %v3108 = vand.u32 %v3107, 4294901760
    %3109 = vmatpush1.msra.mxu0 %v3108
    %3110 = vmatprep.subr.mxu0 0.0
    %v3111 = vand.u32 %v2802, 4294901760
    %v3112 = vsub.f32 %v2802, %v3111
    %v3113 = vand.u32 %v3112, 4294901760
    %v3114 = vsub.f32 %v3112, %v3113
    %v3115 = vand.u32 %v3114, 4294901760
    %3116 = vmatpush1.msra.mxu0 %v3115
    %3117 = vmatprep.subr.mxu0 0.0
    %v3118 = vand.u32 %v2833, 4294901760
    %v3119 = vsub.f32 %v2833, %v3118
    %v3120 = vand.u32 %v3119, 4294901760
    %v3121 = vsub.f32 %v3119, %v3120
    %v3122 = vand.u32 %v3121, 4294901760
    %3123 = vmatpush2.msra.mxu0 %v3122
    %3124 = vmatprep.subr.mxu0 0.0
    %v3125 = vand.u32 %v2832, 4294901760
    %v3126 = vsub.f32 %v2832, %v3125
    %v3127 = vand.u32 %v3126, 4294901760
    %v3128 = vsub.f32 %v3126, %v3127
    %v3129 = vand.u32 %v3128, 4294901760
    %3130 = vmatpush2.msra.mxu0 %v3129
    %3131 = vmatprep.subr.mxu0 0.0
    %v3132 = vand.u32 %v2831, 4294901760
    %v3133 = vsub.f32 %v2831, %v3132
    %v3134 = vand.u32 %v3133, 4294901760
    %v3135 = vsub.f32 %v3133, %v3134
    %v3136 = vand.u32 %v3135, 4294901760
    %3137 = vmatpush2.msra.mxu0 %v3136
    %3138 = vmatprep.subr.mxu0 0.0
    %v3139 = vand.u32 %v2830, 4294901760
    %v3140 = vsub.f32 %v2830, %v3139
    %v3141 = vand.u32 %v3140, 4294901760
    %v3142 = vsub.f32 %v3140, %v3141
    %v3143 = vand.u32 %v3142, 4294901760
    %3144 = vmatpush2.msra.mxu0 %v3143
    %3145 = vmatprep.subr.mxu0 0.0
    %v3146 = vand.u32 %v2829, 4294901760
    %v3147 = vsub.f32 %v2829, %v3146
    %v3148 = vand.u32 %v3147, 4294901760
    %v3149 = vsub.f32 %v3147, %v3148
    %v3150 = vand.u32 %v3149, 4294901760
    %3151 = vmatpush2.msra.mxu0 %v3150
    %3152 = vmatprep.subr.mxu0 0.0
    %v3153 = vand.u32 %v2828, 4294901760
    %v3154 = vsub.f32 %v2828, %v3153
    %v3155 = vand.u32 %v3154, 4294901760
    %v3156 = vsub.f32 %v3154, %v3155
    %v3157 = vand.u32 %v3156, 4294901760
    %3158 = vmatpush2.msra.mxu0 %v3157
    %3159 = vmatprep.subr.mxu0 0.0
    %v3160 = vand.u32 %v2827, 4294901760
    %v3161 = vsub.f32 %v2827, %v3160
    %v3162 = vand.u32 %v3161, 4294901760
    %v3163 = vsub.f32 %v3161, %v3162
    %v3164 = vand.u32 %v3163, 4294901760
    %3165 = vmatpush2.msra.mxu0 %v3164
    %3166 = vmatprep.subr.mxu0 0.0
    %v3167 = vand.u32 %v2826, 4294901760
    %v3168 = vsub.f32 %v2826, %v3167
    %v3169 = vand.u32 %v3168, 4294901760
    %v3170 = vsub.f32 %v3168, %v3169
    %v3171 = vand.u32 %v3170, 4294901760
    %3172 = vmatpush2.msra.mxu0 %v3171
    %3173 = vmatprep.subr.mxu0 0.0
    %v3174 = vand.u32 %v2825, 4294901760
    %v3175 = vsub.f32 %v2825, %v3174
    %v3176 = vand.u32 %v3175, 4294901760
    %v3177 = vsub.f32 %v3175, %v3176
    %v3178 = vand.u32 %v3177, 4294901760
    %3179 = vmatpush2.msra.mxu0 %v3178
    %3180 = vmatprep.subr.mxu0 0.0
    %v3181 = vand.u32 %v2824, 4294901760
    %v3182 = vsub.f32 %v2824, %v3181
    %v3183 = vand.u32 %v3182, 4294901760
    %v3184 = vsub.f32 %v3182, %v3183
    %v3185 = vand.u32 %v3184, 4294901760
    %3186 = vmatpush2.msra.mxu0 %v3185
    %3187 = vmatprep.subr.mxu0 0.0
    %v3188 = vand.u32 %v2823, 4294901760
    %v3189 = vsub.f32 %v2823, %v3188
    %v3190 = vand.u32 %v3189, 4294901760
    %v3191 = vsub.f32 %v3189, %v3190
    %v3192 = vand.u32 %v3191, 4294901760
    %3193 = vmatpush2.msra.mxu0 %v3192
    %3194 = vmatprep.subr.mxu0 0.0
    %v3195 = vand.u32 %v2822, 4294901760
    %v3196 = vsub.f32 %v2822, %v3195
    %v3197 = vand.u32 %v3196, 4294901760
    %v3198 = vsub.f32 %v3196, %v3197
    %v3199 = vand.u32 %v3198, 4294901760
    %3200 = vmatpush2.msra.mxu0 %v3199
    %3201 = vmatprep.subr.mxu0 0.0
    %v3202 = vand.u32 %v2821, 4294901760
    %v3203 = vsub.f32 %v2821, %v3202
    %v3204 = vand.u32 %v3203, 4294901760
    %v3205 = vsub.f32 %v3203, %v3204
    %v3206 = vand.u32 %v3205, 4294901760
    %3207 = vmatpush2.msra.mxu0 %v3206
    %3208 = vmatprep.subr.mxu0 0.0
    %v3209 = vand.u32 %v2820, 4294901760
    %v3210 = vsub.f32 %v2820, %v3209
    %v3211 = vand.u32 %v3210, 4294901760
    %v3212 = vsub.f32 %v3210, %v3211
    %v3213 = vand.u32 %v3212, 4294901760
    %3214 = vmatpush2.msra.mxu0 %v3213
    %3215 = vmatprep.subr.mxu0 0.0
    %v3216 = vand.u32 %v2819, 4294901760
    %v3217 = vsub.f32 %v2819, %v3216
    %v3218 = vand.u32 %v3217, 4294901760
    %v3219 = vsub.f32 %v3217, %v3218
    %v3220 = vand.u32 %v3219, 4294901760
    %3221 = vmatpush2.msra.mxu0 %v3220
    %3222 = vmatprep.subr.mxu0 0.0
    %v3223 = vand.u32 %v2818, 4294901760
    %v3224 = vsub.f32 %v2818, %v3223
    %v3225 = vand.u32 %v3224, 4294901760
    %v3226 = vsub.f32 %v3224, %v3225
    %v3227 = vand.u32 %v3226, 4294901760
    %3228 = vmatpush2.msra.mxu0 %v3227
    %v3229 = vand.u32 %v2887, 4294901760
    %3230 = vmatprep.mubr.f32.mxu0 %v3229
    %v3231 = vand.u32 %v2879, 4294901760
    %3232 = vmatmul.mubr.f32.gmra.mxu0 %v3231
    %v3233 = vpop.f32.mrf.mxu0
    %v3234 = vadd.f32 %v3002, %v3233
    %v3235 = vpop.f32.mrf.mxu0
    %3236 = vdwg.mxu0
    %3237 = vmatprep.subr.mxu0 0.0
    %v3238 = vand.u32 %v2817, 4294901760
    %v3239 = vsub.f32 %v2817, %v3238
    %3240 = vmatpush1.msra.mxu0 %v3239
    %3241 = vmatprep.subr.mxu0 0.0
    %v3242 = vand.u32 %v2816, 4294901760
    %v3243 = vsub.f32 %v2816, %v3242
    %3244 = vmatpush1.msra.mxu0 %v3243
    %3245 = vmatprep.subr.mxu0 0.0
    %v3246 = vand.u32 %v2815, 4294901760
    %v3247 = vsub.f32 %v2815, %v3246
    %3248 = vmatpush1.msra.mxu0 %v3247
    %3249 = vmatprep.subr.mxu0 0.0
    %v3250 = vand.u32 %v2814, 4294901760
    %v3251 = vsub.f32 %v2814, %v3250
    %3252 = vmatpush1.msra.mxu0 %v3251
    %3253 = vmatprep.subr.mxu0 0.0
    %v3254 = vand.u32 %v2813, 4294901760
    %v3255 = vsub.f32 %v2813, %v3254
    %3256 = vmatpush1.msra.mxu0 %v3255
    %3257 = vmatprep.subr.mxu0 0.0
    %v3258 = vand.u32 %v2812, 4294901760
    %v3259 = vsub.f32 %v2812, %v3258
    %3260 = vmatpush1.msra.mxu0 %v3259
    %3261 = vmatprep.subr.mxu0 0.0
    %v3262 = vand.u32 %v2811, 4294901760
    %v3263 = vsub.f32 %v2811, %v3262
    %3264 = vmatpush1.msra.mxu0 %v3263
    %3265 = vmatprep.subr.mxu0 0.0
    %v3266 = vand.u32 %v2810, 4294901760
    %v3267 = vsub.f32 %v2810, %v3266
    %3268 = vmatpush1.msra.mxu0 %v3267
    %3269 = vmatprep.subr.mxu0 0.0
    %v3270 = vand.u32 %v2809, 4294901760
    %v3271 = vsub.f32 %v2809, %v3270
    %3272 = vmatpush1.msra.mxu0 %v3271
    %3273 = vmatprep.subr.mxu0 0.0
    %v3274 = vand.u32 %v2808, 4294901760
    %v3275 = vsub.f32 %v2808, %v3274
    %3276 = vmatpush1.msra.mxu0 %v3275
    %3277 = vmatprep.subr.mxu0 0.0
    %v3278 = vand.u32 %v2807, 4294901760
    %v3279 = vsub.f32 %v2807, %v3278
    %3280 = vmatpush1.msra.mxu0 %v3279
    %3281 = vmatprep.subr.mxu0 0.0
    %v3282 = vand.u32 %v2806, 4294901760
    %v3283 = vsub.f32 %v2806, %v3282
    %3284 = vmatpush1.msra.mxu0 %v3283
    %3285 = vmatprep.subr.mxu0 0.0
    %v3286 = vand.u32 %v2805, 4294901760
    %v3287 = vsub.f32 %v2805, %v3286
    %3288 = vmatpush1.msra.mxu0 %v3287
    %3289 = vmatprep.subr.mxu0 0.0
    %v3290 = vand.u32 %v2804, 4294901760
    %v3291 = vsub.f32 %v2804, %v3290
    %3292 = vmatpush1.msra.mxu0 %v3291
    %3293 = vmatprep.subr.mxu0 0.0
    %v3294 = vand.u32 %v2803, 4294901760
    %v3295 = vsub.f32 %v2803, %v3294
    %3296 = vmatpush1.msra.mxu0 %v3295
    %3297 = vmatprep.subr.mxu0 0.0
    %v3298 = vand.u32 %v2802, 4294901760
    %v3299 = vsub.f32 %v2802, %v3298
    %3300 = vmatpush1.msra.mxu0 %v3299
    %3301 = vmatprep.subr.mxu0 0.0
    %v3302 = vand.u32 %v2833, 4294901760
    %v3303 = vsub.f32 %v2833, %v3302
    %3304 = vmatpush2.msra.mxu0 %v3303
    %3305 = vmatprep.subr.mxu0 0.0
    %v3306 = vand.u32 %v2832, 4294901760
    %v3307 = vsub.f32 %v2832, %v3306
    %3308 = vmatpush2.msra.mxu0 %v3307
    %3309 = vmatprep.subr.mxu0 0.0
    %v3310 = vand.u32 %v2831, 4294901760
    %v3311 = vsub.f32 %v2831, %v3310
    %3312 = vmatpush2.msra.mxu0 %v3311
    %3313 = vmatprep.subr.mxu0 0.0
    %v3314 = vand.u32 %v2830, 4294901760
    %v3315 = vsub.f32 %v2830, %v3314
    %3316 = vmatpush2.msra.mxu0 %v3315
    %3317 = vmatprep.subr.mxu0 0.0
    %v3318 = vand.u32 %v2829, 4294901760
    %v3319 = vsub.f32 %v2829, %v3318
    %3320 = vmatpush2.msra.mxu0 %v3319
    %3321 = vmatprep.subr.mxu0 0.0
    %v3322 = vand.u32 %v2828, 4294901760
    %v3323 = vsub.f32 %v2828, %v3322
    %3324 = vmatpush2.msra.mxu0 %v3323
    %3325 = vmatprep.subr.mxu0 0.0
    %v3326 = vand.u32 %v2827, 4294901760
    %v3327 = vsub.f32 %v2827, %v3326
    %3328 = vmatpush2.msra.mxu0 %v3327
    %3329 = vmatprep.subr.mxu0 0.0
    %v3330 = vand.u32 %v2826, 4294901760
    %v3331 = vsub.f32 %v2826, %v3330
    %3332 = vmatpush2.msra.mxu0 %v3331
    %3333 = vmatprep.subr.mxu0 0.0
    %v3334 = vand.u32 %v2825, 4294901760
    %v3335 = vsub.f32 %v2825, %v3334
    %3336 = vmatpush2.msra.mxu0 %v3335
    %3337 = vmatprep.subr.mxu0 0.0
    %v3338 = vand.u32 %v2824, 4294901760
    %v3339 = vsub.f32 %v2824, %v3338
    %3340 = vmatpush2.msra.mxu0 %v3339
    %3341 = vmatprep.subr.mxu0 0.0
    %v3342 = vand.u32 %v2823, 4294901760
    %v3343 = vsub.f32 %v2823, %v3342
    %3344 = vmatpush2.msra.mxu0 %v3343
    %3345 = vmatprep.subr.mxu0 0.0
    %v3346 = vand.u32 %v2822, 4294901760
    %v3347 = vsub.f32 %v2822, %v3346
    %3348 = vmatpush2.msra.mxu0 %v3347
    %3349 = vmatprep.subr.mxu0 0.0
    %v3350 = vand.u32 %v2821, 4294901760
    %v3351 = vsub.f32 %v2821, %v3350
    %3352 = vmatpush2.msra.mxu0 %v3351
    %3353 = vmatprep.subr.mxu0 0.0
    %v3354 = vand.u32 %v2820, 4294901760
    %v3355 = vsub.f32 %v2820, %v3354
    %3356 = vmatpush2.msra.mxu0 %v3355
    %3357 = vmatprep.subr.mxu0 0.0
    %v3358 = vand.u32 %v2819, 4294901760
    %v3359 = vsub.f32 %v2819, %v3358
    %3360 = vmatpush2.msra.mxu0 %v3359
    %3361 = vmatprep.subr.mxu0 0.0
    %v3362 = vand.u32 %v2818, 4294901760
    %v3363 = vsub.f32 %v2818, %v3362
    %3364 = vmatpush2.msra.mxu0 %v3363
    %v3365 = vand.u32 %v2887, 4294901760
    %v3366 = vsub.f32 %v2887, %v3365
    %3367 = vmatprep.mubr.f32.mxu0 %v3366
    %v3368 = vand.u32 %v2879, 4294901760
    %v3369 = vsub.f32 %v2879, %v3368
    %3370 = vmatmul.mubr.f32.gmra.mxu0 %v3369
    %v3371 = vpop.f32.mrf.mxu0
    %v3372 = vadd.f32 %v3234, %v3371
    %v3373 = vpop.f32.mrf.mxu0
    %3374 = vdwg.mxu0
    %3375 = vmatprep.subr.mxu0 0.0
    %v3376 = vand.u32 %v2817, 4294901760
    %3377 = vmatpush1.msra.mxu0 %v3376
    %3378 = vmatprep.subr.mxu0 0.0
    %v3379 = vand.u32 %v2816, 4294901760
    %3380 = vmatpush1.msra.mxu0 %v3379
    %3381 = vmatprep.subr.mxu0 0.0
    %v3382 = vand.u32 %v2815, 4294901760
    %3383 = vmatpush1.msra.mxu0 %v3382
    %3384 = vmatprep.subr.mxu0 0.0
    %v3385 = vand.u32 %v2814, 4294901760
    %3386 = vmatpush1.msra.mxu0 %v3385
    %3387 = vmatprep.subr.mxu0 0.0
    %v3388 = vand.u32 %v2813, 4294901760
    %3389 = vmatpush1.msra.mxu0 %v3388
    %3390 = vmatprep.subr.mxu0 0.0
    %v3391 = vand.u32 %v2812, 4294901760
    %3392 = vmatpush1.msra.mxu0 %v3391
    %3393 = vmatprep.subr.mxu0 0.0
    %v3394 = vand.u32 %v2811, 4294901760
    %3395 = vmatpush1.msra.mxu0 %v3394
    %3396 = vmatprep.subr.mxu0 0.0
    %v3397 = vand.u32 %v2810, 4294901760
    %3398 = vmatpush1.msra.mxu0 %v3397
    %3399 = vmatprep.subr.mxu0 0.0
    %v3400 = vand.u32 %v2809, 4294901760
    %3401 = vmatpush1.msra.mxu0 %v3400
    %3402 = vmatprep.subr.mxu0 0.0
    %v3403 = vand.u32 %v2808, 4294901760
    %3404 = vmatpush1.msra.mxu0 %v3403
    %3405 = vmatprep.subr.mxu0 0.0
    %v3406 = vand.u32 %v2807, 4294901760
    %3407 = vmatpush1.msra.mxu0 %v3406
    %3408 = vmatprep.subr.mxu0 0.0
    %v3409 = vand.u32 %v2806, 4294901760
    %3410 = vmatpush1.msra.mxu0 %v3409
    %3411 = vmatprep.subr.mxu0 0.0
    %v3412 = vand.u32 %v2805, 4294901760
    %3413 = vmatpush1.msra.mxu0 %v3412
    %3414 = vmatprep.subr.mxu0 0.0
    %v3415 = vand.u32 %v2804, 4294901760
    %3416 = vmatpush1.msra.mxu0 %v3415
    %3417 = vmatprep.subr.mxu0 0.0
    %v3418 = vand.u32 %v2803, 4294901760
    %3419 = vmatpush1.msra.mxu0 %v3418
    %3420 = vmatprep.subr.mxu0 0.0
    %v3421 = vand.u32 %v2802, 4294901760
    %3422 = vmatpush1.msra.mxu0 %v3421
    %3423 = vmatprep.subr.mxu0 0.0
    %v3424 = vand.u32 %v2833, 4294901760
    %3425 = vmatpush2.msra.mxu0 %v3424
    %3426 = vmatprep.subr.mxu0 0.0
    %v3427 = vand.u32 %v2832, 4294901760
    %3428 = vmatpush2.msra.mxu0 %v3427
    %3429 = vmatprep.subr.mxu0 0.0
    %v3430 = vand.u32 %v2831, 4294901760
    %3431 = vmatpush2.msra.mxu0 %v3430
    %3432 = vmatprep.subr.mxu0 0.0
    %v3433 = vand.u32 %v2830, 4294901760
    %3434 = vmatpush2.msra.mxu0 %v3433
    %3435 = vmatprep.subr.mxu0 0.0
    %v3436 = vand.u32 %v2829, 4294901760
    %3437 = vmatpush2.msra.mxu0 %v3436
    %3438 = vmatprep.subr.mxu0 0.0
    %v3439 = vand.u32 %v2828, 4294901760
    %3440 = vmatpush2.msra.mxu0 %v3439
    %3441 = vmatprep.subr.mxu0 0.0
    %v3442 = vand.u32 %v2827, 4294901760
    %3443 = vmatpush2.msra.mxu0 %v3442
    %3444 = vmatprep.subr.mxu0 0.0
    %v3445 = vand.u32 %v2826, 4294901760
    %3446 = vmatpush2.msra.mxu0 %v3445
    %3447 = vmatprep.subr.mxu0 0.0
    %v3448 = vand.u32 %v2825, 4294901760
    %3449 = vmatpush2.msra.mxu0 %v3448
    %3450 = vmatprep.subr.mxu0 0.0
    %v3451 = vand.u32 %v2824, 4294901760
    %3452 = vmatpush2.msra.mxu0 %v3451
    %3453 = vmatprep.subr.mxu0 0.0
    %v3454 = vand.u32 %v2823, 4294901760
    %3455 = vmatpush2.msra.mxu0 %v3454
    %3456 = vmatprep.subr.mxu0 0.0
    %v3457 = vand.u32 %v2822, 4294901760
    %3458 = vmatpush2.msra.mxu0 %v3457
    %3459 = vmatprep.subr.mxu0 0.0
    %v3460 = vand.u32 %v2821, 4294901760
    %3461 = vmatpush2.msra.mxu0 %v3460
    %3462 = vmatprep.subr.mxu0 0.0
    %v3463 = vand.u32 %v2820, 4294901760
    %3464 = vmatpush2.msra.mxu0 %v3463
    %3465 = vmatprep.subr.mxu0 0.0
    %v3466 = vand.u32 %v2819, 4294901760
    %3467 = vmatpush2.msra.mxu0 %v3466
    %3468 = vmatprep.subr.mxu0 0.0
    %v3469 = vand.u32 %v2818, 4294901760
    %3470 = vmatpush2.msra.mxu0 %v3469
    %v3471 = vand.u32 %v2887, 4294901760
    %v3472 = vsub.f32 %v2887, %v3471
    %v3473 = vand.u32 %v3472, 4294901760
    %3474 = vmatprep.mubr.f32.mxu0 %v3473
    %v3475 = vand.u32 %v2879, 4294901760
    %v3476 = vsub.f32 %v2879, %v3475
    %v3477 = vand.u32 %v3476, 4294901760
    %3478 = vmatmul.mubr.f32.gmra.mxu0 %v3477
    %v3479 = vpop.f32.mrf.mxu0
    %v3480 = vadd.f32 %v3372, %v3479
    %v3481 = vpop.f32.mrf.mxu0
    %3482 = vdwg.mxu0
    %3483 = vmatprep.subr.mxu0 0.0
    %v3484 = vand.u32 %v2817, 4294901760
    %v3485 = vsub.f32 %v2817, %v3484
    %v3486 = vand.u32 %v3485, 4294901760
    %3487 = vmatpush1.msra.mxu0 %v3486
    %3488 = vmatprep.subr.mxu0 0.0
    %v3489 = vand.u32 %v2816, 4294901760
    %v3490 = vsub.f32 %v2816, %v3489
    %v3491 = vand.u32 %v3490, 4294901760
    %3492 = vmatpush1.msra.mxu0 %v3491
    %3493 = vmatprep.subr.mxu0 0.0
    %v3494 = vand.u32 %v2815, 4294901760
    %v3495 = vsub.f32 %v2815, %v3494
    %v3496 = vand.u32 %v3495, 4294901760
    %3497 = vmatpush1.msra.mxu0 %v3496
    %3498 = vmatprep.subr.mxu0 0.0
    %v3499 = vand.u32 %v2814, 4294901760
    %v3500 = vsub.f32 %v2814, %v3499
    %v3501 = vand.u32 %v3500, 4294901760
    %3502 = vmatpush1.msra.mxu0 %v3501
    %3503 = vmatprep.subr.mxu0 0.0
    %v3504 = vand.u32 %v2813, 4294901760
    %v3505 = vsub.f32 %v2813, %v3504
    %v3506 = vand.u32 %v3505, 4294901760
    %3507 = vmatpush1.msra.mxu0 %v3506
    %3508 = vmatprep.subr.mxu0 0.0
    %v3509 = vand.u32 %v2812, 4294901760
    %v3510 = vsub.f32 %v2812, %v3509
    %v3511 = vand.u32 %v3510, 4294901760
    %3512 = vmatpush1.msra.mxu0 %v3511
    %3513 = vmatprep.subr.mxu0 0.0
    %v3514 = vand.u32 %v2811, 4294901760
    %v3515 = vsub.f32 %v2811, %v3514
    %v3516 = vand.u32 %v3515, 4294901760
    %3517 = vmatpush1.msra.mxu0 %v3516
    %3518 = vmatprep.subr.mxu0 0.0
    %v3519 = vand.u32 %v2810, 4294901760
    %v3520 = vsub.f32 %v2810, %v3519
    %v3521 = vand.u32 %v3520, 4294901760
    %3522 = vmatpush1.msra.mxu0 %v3521
    %3523 = vmatprep.subr.mxu0 0.0
    %v3524 = vand.u32 %v2809, 4294901760
    %v3525 = vsub.f32 %v2809, %v3524
    %v3526 = vand.u32 %v3525, 4294901760
    %3527 = vmatpush1.msra.mxu0 %v3526
    %3528 = vmatprep.subr.mxu0 0.0
    %v3529 = vand.u32 %v2808, 4294901760
    %v3530 = vsub.f32 %v2808, %v3529
    %v3531 = vand.u32 %v3530, 4294901760
    %3532 = vmatpush1.msra.mxu0 %v3531
    %3533 = vmatprep.subr.mxu0 0.0
    %v3534 = vand.u32 %v2807, 4294901760
    %v3535 = vsub.f32 %v2807, %v3534
    %v3536 = vand.u32 %v3535, 4294901760
    %3537 = vmatpush1.msra.mxu0 %v3536
    %3538 = vmatprep.subr.mxu0 0.0
    %v3539 = vand.u32 %v2806, 4294901760
    %v3540 = vsub.f32 %v2806, %v3539
    %v3541 = vand.u32 %v3540, 4294901760
    %3542 = vmatpush1.msra.mxu0 %v3541
    %3543 = vmatprep.subr.mxu0 0.0
    %v3544 = vand.u32 %v2805, 4294901760
    %v3545 = vsub.f32 %v2805, %v3544
    %v3546 = vand.u32 %v3545, 4294901760
    %3547 = vmatpush1.msra.mxu0 %v3546
    %3548 = vmatprep.subr.mxu0 0.0
    %v3549 = vand.u32 %v2804, 4294901760
    %v3550 = vsub.f32 %v2804, %v3549
    %v3551 = vand.u32 %v3550, 4294901760
    %3552 = vmatpush1.msra.mxu0 %v3551
    %3553 = vmatprep.subr.mxu0 0.0
    %v3554 = vand.u32 %v2803, 4294901760
    %v3555 = vsub.f32 %v2803, %v3554
    %v3556 = vand.u32 %v3555, 4294901760
    %3557 = vmatpush1.msra.mxu0 %v3556
    %3558 = vmatprep.subr.mxu0 0.0
    %v3559 = vand.u32 %v2802, 4294901760
    %v3560 = vsub.f32 %v2802, %v3559
    %v3561 = vand.u32 %v3560, 4294901760
    %3562 = vmatpush1.msra.mxu0 %v3561
    %3563 = vmatprep.subr.mxu0 0.0
    %v3564 = vand.u32 %v2833, 4294901760
    %v3565 = vsub.f32 %v2833, %v3564
    %v3566 = vand.u32 %v3565, 4294901760
    %3567 = vmatpush2.msra.mxu0 %v3566
    %3568 = vmatprep.subr.mxu0 0.0
    %v3569 = vand.u32 %v2832, 4294901760
    %v3570 = vsub.f32 %v2832, %v3569
    %v3571 = vand.u32 %v3570, 4294901760
    %3572 = vmatpush2.msra.mxu0 %v3571
    %3573 = vmatprep.subr.mxu0 0.0
    %v3574 = vand.u32 %v2831, 4294901760
    %v3575 = vsub.f32 %v2831, %v3574
    %v3576 = vand.u32 %v3575, 4294901760
    %3577 = vmatpush2.msra.mxu0 %v3576
    %3578 = vmatprep.subr.mxu0 0.0
    %v3579 = vand.u32 %v2830, 4294901760
    %v3580 = vsub.f32 %v2830, %v3579
    %v3581 = vand.u32 %v3580, 4294901760
    %3582 = vmatpush2.msra.mxu0 %v3581
    %3583 = vmatprep.subr.mxu0 0.0
    %v3584 = vand.u32 %v2829, 4294901760
    %v3585 = vsub.f32 %v2829, %v3584
    %v3586 = vand.u32 %v3585, 4294901760
    %3587 = vmatpush2.msra.mxu0 %v3586
    %3588 = vmatprep.subr.mxu0 0.0
    %v3589 = vand.u32 %v2828, 4294901760
    %v3590 = vsub.f32 %v2828, %v3589
    %v3591 = vand.u32 %v3590, 4294901760
    %3592 = vmatpush2.msra.mxu0 %v3591
    %3593 = vmatprep.subr.mxu0 0.0
    %v3594 = vand.u32 %v2827, 4294901760
    %v3595 = vsub.f32 %v2827, %v3594
    %v3596 = vand.u32 %v3595, 4294901760
    %3597 = vmatpush2.msra.mxu0 %v3596
    %3598 = vmatprep.subr.mxu0 0.0
    %v3599 = vand.u32 %v2826, 4294901760
    %v3600 = vsub.f32 %v2826, %v3599
    %v3601 = vand.u32 %v3600, 4294901760
    %3602 = vmatpush2.msra.mxu0 %v3601
    %3603 = vmatprep.subr.mxu0 0.0
    %v3604 = vand.u32 %v2825, 4294901760
    %v3605 = vsub.f32 %v2825, %v3604
    %v3606 = vand.u32 %v3605, 4294901760
    %3607 = vmatpush2.msra.mxu0 %v3606
    %3608 = vmatprep.subr.mxu0 0.0
    %v3609 = vand.u32 %v2824, 4294901760
    %v3610 = vsub.f32 %v2824, %v3609
    %v3611 = vand.u32 %v3610, 4294901760
    %3612 = vmatpush2.msra.mxu0 %v3611
    %3613 = vmatprep.subr.mxu0 0.0
    %v3614 = vand.u32 %v2823, 4294901760
    %v3615 = vsub.f32 %v2823, %v3614
    %v3616 = vand.u32 %v3615, 4294901760
    %3617 = vmatpush2.msra.mxu0 %v3616
    %3618 = vmatprep.subr.mxu0 0.0
    %v3619 = vand.u32 %v2822, 4294901760
    %v3620 = vsub.f32 %v2822, %v3619
    %v3621 = vand.u32 %v3620, 4294901760
    %3622 = vmatpush2.msra.mxu0 %v3621
    %3623 = vmatprep.subr.mxu0 0.0
    %v3624 = vand.u32 %v2821, 4294901760
    %v3625 = vsub.f32 %v2821, %v3624
    %v3626 = vand.u32 %v3625, 4294901760
    %3627 = vmatpush2.msra.mxu0 %v3626
    %3628 = vmatprep.subr.mxu0 0.0
    %v3629 = vand.u32 %v2820, 4294901760
    %v3630 = vsub.f32 %v2820, %v3629
    %v3631 = vand.u32 %v3630, 4294901760
    %3632 = vmatpush2.msra.mxu0 %v3631
    %3633 = vmatprep.subr.mxu0 0.0
    %v3634 = vand.u32 %v2819, 4294901760
    %v3635 = vsub.f32 %v2819, %v3634
    %v3636 = vand.u32 %v3635, 4294901760
    %3637 = vmatpush2.msra.mxu0 %v3636
    %3638 = vmatprep.subr.mxu0 0.0
    %v3639 = vand.u32 %v2818, 4294901760
    %v3640 = vsub.f32 %v2818, %v3639
    %v3641 = vand.u32 %v3640, 4294901760
    %3642 = vmatpush2.msra.mxu0 %v3641
    %v3643 = vand.u32 %v2887, 4294901760
    %3644 = vmatprep.mubr.f32.mxu0 %v3643
    %v3645 = vand.u32 %v2879, 4294901760
    %3646 = vmatmul.mubr.f32.gmra.mxu0 %v3645
    %v3647 = vpop.f32.mrf.mxu0
    %v3648 = vadd.f32 %v3480, %v3647
    %v3649 = vpop.f32.mrf.mxu0
    %3650 = vdwg.mxu0
    %3651 = vmatprep.subr.mxu0 0.0
    %v3652 = vand.u32 %v2817, 4294901760
    %3653 = vmatpush1.msra.mxu0 %v3652
    %3654 = vmatprep.subr.mxu0 0.0
    %v3655 = vand.u32 %v2816, 4294901760
    %3656 = vmatpush1.msra.mxu0 %v3655
    %3657 = vmatprep.subr.mxu0 0.0
    %v3658 = vand.u32 %v2815, 4294901760
    %3659 = vmatpush1.msra.mxu0 %v3658
    %3660 = vmatprep.subr.mxu0 0.0
    %v3661 = vand.u32 %v2814, 4294901760
    %3662 = vmatpush1.msra.mxu0 %v3661
    %3663 = vmatprep.subr.mxu0 0.0
    %v3664 = vand.u32 %v2813, 4294901760
    %3665 = vmatpush1.msra.mxu0 %v3664
    %3666 = vmatprep.subr.mxu0 0.0
    %v3667 = vand.u32 %v2812, 4294901760
    %3668 = vmatpush1.msra.mxu0 %v3667
    %3669 = vmatprep.subr.mxu0 0.0
    %v3670 = vand.u32 %v2811, 4294901760
    %3671 = vmatpush1.msra.mxu0 %v3670
    %3672 = vmatprep.subr.mxu0 0.0
    %v3673 = vand.u32 %v2810, 4294901760
    %3674 = vmatpush1.msra.mxu0 %v3673
    %3675 = vmatprep.subr.mxu0 0.0
    %v3676 = vand.u32 %v2809, 4294901760
    %3677 = vmatpush1.msra.mxu0 %v3676
    %3678 = vmatprep.subr.mxu0 0.0
    %v3679 = vand.u32 %v2808, 4294901760
    %3680 = vmatpush1.msra.mxu0 %v3679
    %3681 = vmatprep.subr.mxu0 0.0
    %v3682 = vand.u32 %v2807, 4294901760
    %3683 = vmatpush1.msra.mxu0 %v3682
    %3684 = vmatprep.subr.mxu0 0.0
    %v3685 = vand.u32 %v2806, 4294901760
    %3686 = vmatpush1.msra.mxu0 %v3685
    %3687 = vmatprep.subr.mxu0 0.0
    %v3688 = vand.u32 %v2805, 4294901760
    %3689 = vmatpush1.msra.mxu0 %v3688
    %3690 = vmatprep.subr.mxu0 0.0
    %v3691 = vand.u32 %v2804, 4294901760
    %3692 = vmatpush1.msra.mxu0 %v3691
    %3693 = vmatprep.subr.mxu0 0.0
    %v3694 = vand.u32 %v2803, 4294901760
    %3695 = vmatpush1.msra.mxu0 %v3694
    %3696 = vmatprep.subr.mxu0 0.0
    %v3697 = vand.u32 %v2802, 4294901760
    %3698 = vmatpush1.msra.mxu0 %v3697
    %3699 = vmatprep.subr.mxu0 0.0
    %v3700 = vand.u32 %v2833, 4294901760
    %3701 = vmatpush2.msra.mxu0 %v3700
    %3702 = vmatprep.subr.mxu0 0.0
    %v3703 = vand.u32 %v2832, 4294901760
    %3704 = vmatpush2.msra.mxu0 %v3703
    %3705 = vmatprep.subr.mxu0 0.0
    %v3706 = vand.u32 %v2831, 4294901760
    %3707 = vmatpush2.msra.mxu0 %v3706
    %3708 = vmatprep.subr.mxu0 0.0
    %v3709 = vand.u32 %v2830, 4294901760
    %3710 = vmatpush2.msra.mxu0 %v3709
    %3711 = vmatprep.subr.mxu0 0.0
    %v3712 = vand.u32 %v2829, 4294901760
    %3713 = vmatpush2.msra.mxu0 %v3712
    %3714 = vmatprep.subr.mxu0 0.0
    %v3715 = vand.u32 %v2828, 4294901760
    %3716 = vmatpush2.msra.mxu0 %v3715
    %3717 = vmatprep.subr.mxu0 0.0
    %v3718 = vand.u32 %v2827, 4294901760
    %3719 = vmatpush2.msra.mxu0 %v3718
    %3720 = vmatprep.subr.mxu0 0.0
    %v3721 = vand.u32 %v2826, 4294901760
    %3722 = vmatpush2.msra.mxu0 %v3721
    %3723 = vmatprep.subr.mxu0 0.0
    %v3724 = vand.u32 %v2825, 4294901760
    %3725 = vmatpush2.msra.mxu0 %v3724
    %3726 = vmatprep.subr.mxu0 0.0
    %v3727 = vand.u32 %v2824, 4294901760
    %3728 = vmatpush2.msra.mxu0 %v3727
    %3729 = vmatprep.subr.mxu0 0.0
    %v3730 = vand.u32 %v2823, 4294901760
    %3731 = vmatpush2.msra.mxu0 %v3730
    %3732 = vmatprep.subr.mxu0 0.0
    %v3733 = vand.u32 %v2822, 4294901760
    %3734 = vmatpush2.msra.mxu0 %v3733
    %3735 = vmatprep.subr.mxu0 0.0
    %v3736 = vand.u32 %v2821, 4294901760
    %3737 = vmatpush2.msra.mxu0 %v3736
    %3738 = vmatprep.subr.mxu0 0.0
    %v3739 = vand.u32 %v2820, 4294901760
    %3740 = vmatpush2.msra.mxu0 %v3739
    %3741 = vmatprep.subr.mxu0 0.0
    %v3742 = vand.u32 %v2819, 4294901760
    %3743 = vmatpush2.msra.mxu0 %v3742
    %3744 = vmatprep.subr.mxu0 0.0
    %v3745 = vand.u32 %v2818, 4294901760
    %3746 = vmatpush2.msra.mxu0 %v3745
    %v3747 = vand.u32 %v2887, 4294901760
    %3748 = vmatprep.mubr.f32.mxu0 %v3747
    %v3749 = vand.u32 %v2879, 4294901760
    %3750 = vmatmul.mubr.f32.gmra.mxu0 %v3749
    %v3751 = vpop.f32.mrf.mxu0
    %v3752 = vadd.f32 %v3648, %v3751
    %v3753 = vpop.f32.mrf.mxu0
    %3754 = vdwg.mxu0
    %3755 = vmatprep.subr.mxu0 0.0
    %v3756 = vand.u32 %v2849, 4294901760
    %3757 = vmatpush1.msra.mxu0 %v3756
    %3758 = vmatprep.subr.mxu0 0.0
    %v3759 = vand.u32 %v2848, 4294901760
    %3760 = vmatpush1.msra.mxu0 %v3759
    %3761 = vmatprep.subr.mxu0 0.0
    %v3762 = vand.u32 %v2847, 4294901760
    %3763 = vmatpush1.msra.mxu0 %v3762
    %3764 = vmatprep.subr.mxu0 0.0
    %v3765 = vand.u32 %v2846, 4294901760
    %3766 = vmatpush1.msra.mxu0 %v3765
    %3767 = vmatprep.subr.mxu0 0.0
    %v3768 = vand.u32 %v2845, 4294901760
    %3769 = vmatpush1.msra.mxu0 %v3768
    %3770 = vmatprep.subr.mxu0 0.0
    %v3771 = vand.u32 %v2844, 4294901760
    %3772 = vmatpush1.msra.mxu0 %v3771
    %3773 = vmatprep.subr.mxu0 0.0
    %v3774 = vand.u32 %v2843, 4294901760
    %3775 = vmatpush1.msra.mxu0 %v3774
    %3776 = vmatprep.subr.mxu0 0.0
    %v3777 = vand.u32 %v2842, 4294901760
    %3778 = vmatpush1.msra.mxu0 %v3777
    %3779 = vmatprep.subr.mxu0 0.0
    %v3780 = vand.u32 %v2841, 4294901760
    %3781 = vmatpush1.msra.mxu0 %v3780
    %3782 = vmatprep.subr.mxu0 0.0
    %v3783 = vand.u32 %v2840, 4294901760
    %3784 = vmatpush1.msra.mxu0 %v3783
    %3785 = vmatprep.subr.mxu0 0.0
    %v3786 = vand.u32 %v2839, 4294901760
    %3787 = vmatpush1.msra.mxu0 %v3786
    %3788 = vmatprep.subr.mxu0 0.0
    %v3789 = vand.u32 %v2838, 4294901760
    %3790 = vmatpush1.msra.mxu0 %v3789
    %3791 = vmatprep.subr.mxu0 0.0
    %v3792 = vand.u32 %v2837, 4294901760
    %3793 = vmatpush1.msra.mxu0 %v3792
    %3794 = vmatprep.subr.mxu0 0.0
    %v3795 = vand.u32 %v2836, 4294901760
    %3796 = vmatpush1.msra.mxu0 %v3795
    %3797 = vmatprep.subr.mxu0 0.0
    %v3798 = vand.u32 %v2835, 4294901760
    %3799 = vmatpush1.msra.mxu0 %v3798
    %3800 = vmatprep.subr.mxu0 0.0
    %v3801 = vand.u32 %v2834, 4294901760
    %3802 = vmatpush1.msra.mxu0 %v3801
    %3803 = vmatprep.subr.mxu0 0.0
    %v3804 = vand.u32 %v2865, 4294901760
    %3805 = vmatpush2.msra.mxu0 %v3804
    %3806 = vmatprep.subr.mxu0 0.0
    %v3807 = vand.u32 %v2864, 4294901760
    %3808 = vmatpush2.msra.mxu0 %v3807
    %3809 = vmatprep.subr.mxu0 0.0
    %v3810 = vand.u32 %v2863, 4294901760
    %3811 = vmatpush2.msra.mxu0 %v3810
    %3812 = vmatprep.subr.mxu0 0.0
    %v3813 = vand.u32 %v2862, 4294901760
    %3814 = vmatpush2.msra.mxu0 %v3813
    %3815 = vmatprep.subr.mxu0 0.0
    %v3816 = vand.u32 %v2861, 4294901760
    %3817 = vmatpush2.msra.mxu0 %v3816
    %3818 = vmatprep.subr.mxu0 0.0
    %v3819 = vand.u32 %v2860, 4294901760
    %3820 = vmatpush2.msra.mxu0 %v3819
    %3821 = vmatprep.subr.mxu0 0.0
    %v3822 = vand.u32 %v2859, 4294901760
    %3823 = vmatpush2.msra.mxu0 %v3822
    %3824 = vmatprep.subr.mxu0 0.0
    %v3825 = vand.u32 %v2858, 4294901760
    %3826 = vmatpush2.msra.mxu0 %v3825
    %3827 = vmatprep.subr.mxu0 0.0
    %v3828 = vand.u32 %v2857, 4294901760
    %3829 = vmatpush2.msra.mxu0 %v3828
    %3830 = vmatprep.subr.mxu0 0.0
    %v3831 = vand.u32 %v2856, 4294901760
    %3832 = vmatpush2.msra.mxu0 %v3831
    %3833 = vmatprep.subr.mxu0 0.0
    %v3834 = vand.u32 %v2855, 4294901760
    %3835 = vmatpush2.msra.mxu0 %v3834
    %3836 = vmatprep.subr.mxu0 0.0
    %v3837 = vand.u32 %v2854, 4294901760
    %3838 = vmatpush2.msra.mxu0 %v3837
    %3839 = vmatprep.subr.mxu0 0.0
    %v3840 = vand.u32 %v2853, 4294901760
    %3841 = vmatpush2.msra.mxu0 %v3840
    %3842 = vmatprep.subr.mxu0 0.0
    %v3843 = vand.u32 %v2852, 4294901760
    %3844 = vmatpush2.msra.mxu0 %v3843
    %3845 = vmatprep.subr.mxu0 0.0
    %v3846 = vand.u32 %v2851, 4294901760
    %3847 = vmatpush2.msra.mxu0 %v3846
    %3848 = vmatprep.subr.mxu0 0.0
    %v3849 = vand.u32 %v2850, 4294901760
    %3850 = vmatpush2.msra.mxu0 %v3849
    %v3851 = vand.u32 %v2888, 4294901760
    %v3852 = vsub.f32 %v2888, %v3851
    %v3853 = vand.u32 %v3852, 4294901760
    %v3854 = vsub.f32 %v3852, %v3853
    %v3855 = vand.u32 %v3854, 4294901760
    %3856 = vmatprep.mubr.f32.mxu0 %v3855
    %v3857 = vand.u32 %v2886, 4294901760
    %v3858 = vsub.f32 %v2886, %v3857
    %v3859 = vand.u32 %v3858, 4294901760
    %v3860 = vsub.f32 %v3858, %v3859
    %v3861 = vand.u32 %v3860, 4294901760
    %3862 = vmatmul.mubr.f32.gmra.mxu0 %v3861
    %v3863 = vpop.f32.mrf.mxu0
    %v3864 = vadd.f32 %v3752, %v3863
    %v3865 = vpop.f32.mrf.mxu0
    %3866 = vdwg.mxu0
    %3867 = vmatprep.subr.mxu0 0.0
    %v3868 = vand.u32 %v2849, 4294901760
    %v3869 = vsub.f32 %v2849, %v3868
    %v3870 = vand.u32 %v3869, 4294901760
    %v3871 = vsub.f32 %v3869, %v3870
    %v3872 = vand.u32 %v3871, 4294901760
    %3873 = vmatpush1.msra.mxu0 %v3872
    %3874 = vmatprep.subr.mxu0 0.0
    %v3875 = vand.u32 %v2848, 4294901760
    %v3876 = vsub.f32 %v2848, %v3875
    %v3877 = vand.u32 %v3876, 4294901760
    %v3878 = vsub.f32 %v3876, %v3877
    %v3879 = vand.u32 %v3878, 4294901760
    %3880 = vmatpush1.msra.mxu0 %v3879
    %3881 = vmatprep.subr.mxu0 0.0
    %v3882 = vand.u32 %v2847, 4294901760
    %v3883 = vsub.f32 %v2847, %v3882
    %v3884 = vand.u32 %v3883, 4294901760
    %v3885 = vsub.f32 %v3883, %v3884
    %v3886 = vand.u32 %v3885, 4294901760
    %3887 = vmatpush1.msra.mxu0 %v3886
    %3888 = vmatprep.subr.mxu0 0.0
    %v3889 = vand.u32 %v2846, 4294901760
    %v3890 = vsub.f32 %v2846, %v3889
    %v3891 = vand.u32 %v3890, 4294901760
    %v3892 = vsub.f32 %v3890, %v3891
    %v3893 = vand.u32 %v3892, 4294901760
    %3894 = vmatpush1.msra.mxu0 %v3893
    %3895 = vmatprep.subr.mxu0 0.0
    %v3896 = vand.u32 %v2845, 4294901760
    %v3897 = vsub.f32 %v2845, %v3896
    %v3898 = vand.u32 %v3897, 4294901760
    %v3899 = vsub.f32 %v3897, %v3898
    %v3900 = vand.u32 %v3899, 4294901760
    %3901 = vmatpush1.msra.mxu0 %v3900
    %3902 = vmatprep.subr.mxu0 0.0
    %v3903 = vand.u32 %v2844, 4294901760
    %v3904 = vsub.f32 %v2844, %v3903
    %v3905 = vand.u32 %v3904, 4294901760
    %v3906 = vsub.f32 %v3904, %v3905
    %v3907 = vand.u32 %v3906, 4294901760
    %3908 = vmatpush1.msra.mxu0 %v3907
    %3909 = vmatprep.subr.mxu0 0.0
    %v3910 = vand.u32 %v2843, 4294901760
    %v3911 = vsub.f32 %v2843, %v3910
    %v3912 = vand.u32 %v3911, 4294901760
    %v3913 = vsub.f32 %v3911, %v3912
    %v3914 = vand.u32 %v3913, 4294901760
    %3915 = vmatpush1.msra.mxu0 %v3914
    %3916 = vmatprep.subr.mxu0 0.0
    %v3917 = vand.u32 %v2842, 4294901760
    %v3918 = vsub.f32 %v2842, %v3917
    %v3919 = vand.u32 %v3918, 4294901760
    %v3920 = vsub.f32 %v3918, %v3919
    %v3921 = vand.u32 %v3920, 4294901760
    %3922 = vmatpush1.msra.mxu0 %v3921
    %3923 = vmatprep.subr.mxu0 0.0
    %v3924 = vand.u32 %v2841, 4294901760
    %v3925 = vsub.f32 %v2841, %v3924
    %v3926 = vand.u32 %v3925, 4294901760
    %v3927 = vsub.f32 %v3925, %v3926
    %v3928 = vand.u32 %v3927, 4294901760
    %3929 = vmatpush1.msra.mxu0 %v3928
    %3930 = vmatprep.subr.mxu0 0.0
    %v3931 = vand.u32 %v2840, 4294901760
    %v3932 = vsub.f32 %v2840, %v3931
    %v3933 = vand.u32 %v3932, 4294901760
    %v3934 = vsub.f32 %v3932, %v3933
    %v3935 = vand.u32 %v3934, 4294901760
    %3936 = vmatpush1.msra.mxu0 %v3935
    %3937 = vmatprep.subr.mxu0 0.0
    %v3938 = vand.u32 %v2839, 4294901760
    %v3939 = vsub.f32 %v2839, %v3938
    %v3940 = vand.u32 %v3939, 4294901760
    %v3941 = vsub.f32 %v3939, %v3940
    %v3942 = vand.u32 %v3941, 4294901760
    %3943 = vmatpush1.msra.mxu0 %v3942
    %3944 = vmatprep.subr.mxu0 0.0
    %v3945 = vand.u32 %v2838, 4294901760
    %v3946 = vsub.f32 %v2838, %v3945
    %v3947 = vand.u32 %v3946, 4294901760
    %v3948 = vsub.f32 %v3946, %v3947
    %v3949 = vand.u32 %v3948, 4294901760
    %3950 = vmatpush1.msra.mxu0 %v3949
    %3951 = vmatprep.subr.mxu0 0.0
    %v3952 = vand.u32 %v2837, 4294901760
    %v3953 = vsub.f32 %v2837, %v3952
    %v3954 = vand.u32 %v3953, 4294901760
    %v3955 = vsub.f32 %v3953, %v3954
    %v3956 = vand.u32 %v3955, 4294901760
    %3957 = vmatpush1.msra.mxu0 %v3956
    %3958 = vmatprep.subr.mxu0 0.0
    %v3959 = vand.u32 %v2836, 4294901760
    %v3960 = vsub.f32 %v2836, %v3959
    %v3961 = vand.u32 %v3960, 4294901760
    %v3962 = vsub.f32 %v3960, %v3961
    %v3963 = vand.u32 %v3962, 4294901760
    %3964 = vmatpush1.msra.mxu0 %v3963
    %3965 = vmatprep.subr.mxu0 0.0
    %v3966 = vand.u32 %v2835, 4294901760
    %v3967 = vsub.f32 %v2835, %v3966
    %v3968 = vand.u32 %v3967, 4294901760
    %v3969 = vsub.f32 %v3967, %v3968
    %v3970 = vand.u32 %v3969, 4294901760
    %3971 = vmatpush1.msra.mxu0 %v3970
    %3972 = vmatprep.subr.mxu0 0.0
    %v3973 = vand.u32 %v2834, 4294901760
    %v3974 = vsub.f32 %v2834, %v3973
    %v3975 = vand.u32 %v3974, 4294901760
    %v3976 = vsub.f32 %v3974, %v3975
    %v3977 = vand.u32 %v3976, 4294901760
    %3978 = vmatpush1.msra.mxu0 %v3977
    %3979 = vmatprep.subr.mxu0 0.0
    %v3980 = vand.u32 %v2865, 4294901760
    %v3981 = vsub.f32 %v2865, %v3980
    %v3982 = vand.u32 %v3981, 4294901760
    %v3983 = vsub.f32 %v3981, %v3982
    %v3984 = vand.u32 %v3983, 4294901760
    %3985 = vmatpush2.msra.mxu0 %v3984
    %3986 = vmatprep.subr.mxu0 0.0
    %v3987 = vand.u32 %v2864, 4294901760
    %v3988 = vsub.f32 %v2864, %v3987
    %v3989 = vand.u32 %v3988, 4294901760
    %v3990 = vsub.f32 %v3988, %v3989
    %v3991 = vand.u32 %v3990, 4294901760
    %3992 = vmatpush2.msra.mxu0 %v3991
    %3993 = vmatprep.subr.mxu0 0.0
    %v3994 = vand.u32 %v2863, 4294901760
    %v3995 = vsub.f32 %v2863, %v3994
    %v3996 = vand.u32 %v3995, 4294901760
    %v3997 = vsub.f32 %v3995, %v3996
    %v3998 = vand.u32 %v3997, 4294901760
    %3999 = vmatpush2.msra.mxu0 %v3998
    %4000 = vmatprep.subr.mxu0 0.0
    %v4001 = vand.u32 %v2862, 4294901760
    %v4002 = vsub.f32 %v2862, %v4001
    %v4003 = vand.u32 %v4002, 4294901760
    %v4004 = vsub.f32 %v4002, %v4003
    %v4005 = vand.u32 %v4004, 4294901760
    %4006 = vmatpush2.msra.mxu0 %v4005
    %4007 = vmatprep.subr.mxu0 0.0
    %v4008 = vand.u32 %v2861, 4294901760
    %v4009 = vsub.f32 %v2861, %v4008
    %v4010 = vand.u32 %v4009, 4294901760
    %v4011 = vsub.f32 %v4009, %v4010
    %v4012 = vand.u32 %v4011, 4294901760
    %4013 = vmatpush2.msra.mxu0 %v4012
    %4014 = vmatprep.subr.mxu0 0.0
    %v4015 = vand.u32 %v2860, 4294901760
    %v4016 = vsub.f32 %v2860, %v4015
    %v4017 = vand.u32 %v4016, 4294901760
    %v4018 = vsub.f32 %v4016, %v4017
    %v4019 = vand.u32 %v4018, 4294901760
    %4020 = vmatpush2.msra.mxu0 %v4019
    %4021 = vmatprep.subr.mxu0 0.0
    %v4022 = vand.u32 %v2859, 4294901760
    %v4023 = vsub.f32 %v2859, %v4022
    %v4024 = vand.u32 %v4023, 4294901760
    %v4025 = vsub.f32 %v4023, %v4024
    %v4026 = vand.u32 %v4025, 4294901760
    %4027 = vmatpush2.msra.mxu0 %v4026
    %4028 = vmatprep.subr.mxu0 0.0
    %v4029 = vand.u32 %v2858, 4294901760
    %v4030 = vsub.f32 %v2858, %v4029
    %v4031 = vand.u32 %v4030, 4294901760
    %v4032 = vsub.f32 %v4030, %v4031
    %v4033 = vand.u32 %v4032, 4294901760
    %4034 = vmatpush2.msra.mxu0 %v4033
    %4035 = vmatprep.subr.mxu0 0.0
    %v4036 = vand.u32 %v2857, 4294901760
    %v4037 = vsub.f32 %v2857, %v4036
    %v4038 = vand.u32 %v4037, 4294901760
    %v4039 = vsub.f32 %v4037, %v4038
    %v4040 = vand.u32 %v4039, 4294901760
    %4041 = vmatpush2.msra.mxu0 %v4040
    %4042 = vmatprep.subr.mxu0 0.0
    %v4043 = vand.u32 %v2856, 4294901760
    %v4044 = vsub.f32 %v2856, %v4043
    %v4045 = vand.u32 %v4044, 4294901760
    %v4046 = vsub.f32 %v4044, %v4045
    %v4047 = vand.u32 %v4046, 4294901760
    %4048 = vmatpush2.msra.mxu0 %v4047
    %4049 = vmatprep.subr.mxu0 0.0
    %v4050 = vand.u32 %v2855, 4294901760
    %v4051 = vsub.f32 %v2855, %v4050
    %v4052 = vand.u32 %v4051, 4294901760
    %v4053 = vsub.f32 %v4051, %v4052
    %v4054 = vand.u32 %v4053, 4294901760
    %4055 = vmatpush2.msra.mxu0 %v4054
    %4056 = vmatprep.subr.mxu0 0.0
    %v4057 = vand.u32 %v2854, 4294901760
    %v4058 = vsub.f32 %v2854, %v4057
    %v4059 = vand.u32 %v4058, 4294901760
    %v4060 = vsub.f32 %v4058, %v4059
    %v4061 = vand.u32 %v4060, 4294901760
    %4062 = vmatpush2.msra.mxu0 %v4061
    %4063 = vmatprep.subr.mxu0 0.0
    %v4064 = vand.u32 %v2853, 4294901760
    %v4065 = vsub.f32 %v2853, %v4064
    %v4066 = vand.u32 %v4065, 4294901760
    %v4067 = vsub.f32 %v4065, %v4066
    %v4068 = vand.u32 %v4067, 4294901760
    %4069 = vmatpush2.msra.mxu0 %v4068
    %4070 = vmatprep.subr.mxu0 0.0
    %v4071 = vand.u32 %v2852, 4294901760
    %v4072 = vsub.f32 %v2852, %v4071
    %v4073 = vand.u32 %v4072, 4294901760
    %v4074 = vsub.f32 %v4072, %v4073
    %v4075 = vand.u32 %v4074, 4294901760
    %4076 = vmatpush2.msra.mxu0 %v4075
    %4077 = vmatprep.subr.mxu0 0.0
    %v4078 = vand.u32 %v2851, 4294901760
    %v4079 = vsub.f32 %v2851, %v4078
    %v4080 = vand.u32 %v4079, 4294901760
    %v4081 = vsub.f32 %v4079, %v4080
    %v4082 = vand.u32 %v4081, 4294901760
    %4083 = vmatpush2.msra.mxu0 %v4082
    %4084 = vmatprep.subr.mxu0 0.0
    %v4085 = vand.u32 %v2850, 4294901760
    %v4086 = vsub.f32 %v2850, %v4085
    %v4087 = vand.u32 %v4086, 4294901760
    %v4088 = vsub.f32 %v4086, %v4087
    %v4089 = vand.u32 %v4088, 4294901760
    %4090 = vmatpush2.msra.mxu0 %v4089
    %v4091 = vand.u32 %v2888, 4294901760
    %4092 = vmatprep.mubr.f32.mxu0 %v4091
    %v4093 = vand.u32 %v2886, 4294901760
    %4094 = vmatmul.mubr.f32.gmra.mxu0 %v4093
    %v4095 = vpop.f32.mrf.mxu0
    %v4096 = vadd.f32 %v3864, %v4095
    %v4097 = vpop.f32.mrf.mxu0
    %4098 = vdwg.mxu0
    %4099 = vmatprep.subr.mxu0 0.0
    %v4100 = vand.u32 %v2849, 4294901760
    %v4101 = vsub.f32 %v2849, %v4100
    %4102 = vmatpush1.msra.mxu0 %v4101
    %4103 = vmatprep.subr.mxu0 0.0
    %v4104 = vand.u32 %v2848, 4294901760
    %v4105 = vsub.f32 %v2848, %v4104
    %4106 = vmatpush1.msra.mxu0 %v4105
    %4107 = vmatprep.subr.mxu0 0.0
    %v4108 = vand.u32 %v2847, 4294901760
    %v4109 = vsub.f32 %v2847, %v4108
    %4110 = vmatpush1.msra.mxu0 %v4109
    %4111 = vmatprep.subr.mxu0 0.0
    %v4112 = vand.u32 %v2846, 4294901760
    %v4113 = vsub.f32 %v2846, %v4112
    %4114 = vmatpush1.msra.mxu0 %v4113
    %4115 = vmatprep.subr.mxu0 0.0
    %v4116 = vand.u32 %v2845, 4294901760
    %v4117 = vsub.f32 %v2845, %v4116
    %4118 = vmatpush1.msra.mxu0 %v4117
    %4119 = vmatprep.subr.mxu0 0.0
    %v4120 = vand.u32 %v2844, 4294901760
    %v4121 = vsub.f32 %v2844, %v4120
    %4122 = vmatpush1.msra.mxu0 %v4121
    %4123 = vmatprep.subr.mxu0 0.0
    %v4124 = vand.u32 %v2843, 4294901760
    %v4125 = vsub.f32 %v2843, %v4124
    %4126 = vmatpush1.msra.mxu0 %v4125
    %4127 = vmatprep.subr.mxu0 0.0
    %v4128 = vand.u32 %v2842, 4294901760
    %v4129 = vsub.f32 %v2842, %v4128
    %4130 = vmatpush1.msra.mxu0 %v4129
    %4131 = vmatprep.subr.mxu0 0.0
    %v4132 = vand.u32 %v2841, 4294901760
    %v4133 = vsub.f32 %v2841, %v4132
    %4134 = vmatpush1.msra.mxu0 %v4133
    %4135 = vmatprep.subr.mxu0 0.0
    %v4136 = vand.u32 %v2840, 4294901760
    %v4137 = vsub.f32 %v2840, %v4136
    %4138 = vmatpush1.msra.mxu0 %v4137
    %4139 = vmatprep.subr.mxu0 0.0
    %v4140 = vand.u32 %v2839, 4294901760
    %v4141 = vsub.f32 %v2839, %v4140
    %4142 = vmatpush1.msra.mxu0 %v4141
    %4143 = vmatprep.subr.mxu0 0.0
    %v4144 = vand.u32 %v2838, 4294901760
    %v4145 = vsub.f32 %v2838, %v4144
    %4146 = vmatpush1.msra.mxu0 %v4145
    %4147 = vmatprep.subr.mxu0 0.0
    %v4148 = vand.u32 %v2837, 4294901760
    %v4149 = vsub.f32 %v2837, %v4148
    %4150 = vmatpush1.msra.mxu0 %v4149
    %4151 = vmatprep.subr.mxu0 0.0
    %v4152 = vand.u32 %v2836, 4294901760
    %v4153 = vsub.f32 %v2836, %v4152
    %4154 = vmatpush1.msra.mxu0 %v4153
    %4155 = vmatprep.subr.mxu0 0.0
    %v4156 = vand.u32 %v2835, 4294901760
    %v4157 = vsub.f32 %v2835, %v4156
    %4158 = vmatpush1.msra.mxu0 %v4157
    %4159 = vmatprep.subr.mxu0 0.0
    %v4160 = vand.u32 %v2834, 4294901760
    %v4161 = vsub.f32 %v2834, %v4160
    %4162 = vmatpush1.msra.mxu0 %v4161
    %4163 = vmatprep.subr.mxu0 0.0
    %v4164 = vand.u32 %v2865, 4294901760
    %v4165 = vsub.f32 %v2865, %v4164
    %4166 = vmatpush2.msra.mxu0 %v4165
    %4167 = vmatprep.subr.mxu0 0.0
    %v4168 = vand.u32 %v2864, 4294901760
    %v4169 = vsub.f32 %v2864, %v4168
    %4170 = vmatpush2.msra.mxu0 %v4169
    %4171 = vmatprep.subr.mxu0 0.0
    %v4172 = vand.u32 %v2863, 4294901760
    %v4173 = vsub.f32 %v2863, %v4172
    %4174 = vmatpush2.msra.mxu0 %v4173
    %4175 = vmatprep.subr.mxu0 0.0
    %v4176 = vand.u32 %v2862, 4294901760
    %v4177 = vsub.f32 %v2862, %v4176
    %4178 = vmatpush2.msra.mxu0 %v4177
    %4179 = vmatprep.subr.mxu0 0.0
    %v4180 = vand.u32 %v2861, 4294901760
    %v4181 = vsub.f32 %v2861, %v4180
    %4182 = vmatpush2.msra.mxu0 %v4181
    %4183 = vmatprep.subr.mxu0 0.0
    %v4184 = vand.u32 %v2860, 4294901760
    %v4185 = vsub.f32 %v2860, %v4184
    %4186 = vmatpush2.msra.mxu0 %v4185
    %4187 = vmatprep.subr.mxu0 0.0
    %v4188 = vand.u32 %v2859, 4294901760
    %v4189 = vsub.f32 %v2859, %v4188
    %4190 = vmatpush2.msra.mxu0 %v4189
    %4191 = vmatprep.subr.mxu0 0.0
    %v4192 = vand.u32 %v2858, 4294901760
    %v4193 = vsub.f32 %v2858, %v4192
    %4194 = vmatpush2.msra.mxu0 %v4193
    %4195 = vmatprep.subr.mxu0 0.0
    %v4196 = vand.u32 %v2857, 4294901760
    %v4197 = vsub.f32 %v2857, %v4196
    %4198 = vmatpush2.msra.mxu0 %v4197
    %4199 = vmatprep.subr.mxu0 0.0
    %v4200 = vand.u32 %v2856, 4294901760
    %v4201 = vsub.f32 %v2856, %v4200
    %4202 = vmatpush2.msra.mxu0 %v4201
    %4203 = vmatprep.subr.mxu0 0.0
    %v4204 = vand.u32 %v2855, 4294901760
    %v4205 = vsub.f32 %v2855, %v4204
    %4206 = vmatpush2.msra.mxu0 %v4205
    %4207 = vmatprep.subr.mxu0 0.0
    %v4208 = vand.u32 %v2854, 4294901760
    %v4209 = vsub.f32 %v2854, %v4208
    %4210 = vmatpush2.msra.mxu0 %v4209
    %4211 = vmatprep.subr.mxu0 0.0
    %v4212 = vand.u32 %v2853, 4294901760
    %v4213 = vsub.f32 %v2853, %v4212
    %4214 = vmatpush2.msra.mxu0 %v4213
    %4215 = vmatprep.subr.mxu0 0.0
    %v4216 = vand.u32 %v2852, 4294901760
    %v4217 = vsub.f32 %v2852, %v4216
    %4218 = vmatpush2.msra.mxu0 %v4217
    %4219 = vmatprep.subr.mxu0 0.0
    %v4220 = vand.u32 %v2851, 4294901760
    %v4221 = vsub.f32 %v2851, %v4220
    %4222 = vmatpush2.msra.mxu0 %v4221
    %4223 = vmatprep.subr.mxu0 0.0
    %v4224 = vand.u32 %v2850, 4294901760
    %v4225 = vsub.f32 %v2850, %v4224
    %4226 = vmatpush2.msra.mxu0 %v4225
    %v4227 = vand.u32 %v2888, 4294901760
    %v4228 = vsub.f32 %v2888, %v4227
    %4229 = vmatprep.mubr.f32.mxu0 %v4228
    %v4230 = vand.u32 %v2886, 4294901760
    %v4231 = vsub.f32 %v2886, %v4230
    %4232 = vmatmul.mubr.f32.gmra.mxu0 %v4231
    %v4233 = vpop.f32.mrf.mxu0
    %v4234 = vadd.f32 %v4096, %v4233
    %v4235 = vpop.f32.mrf.mxu0
    %4236 = vdwg.mxu0
    %4237 = vmatprep.subr.mxu0 0.0
    %v4238 = vand.u32 %v2849, 4294901760
    %4239 = vmatpush1.msra.mxu0 %v4238
    %4240 = vmatprep.subr.mxu0 0.0
    %v4241 = vand.u32 %v2848, 4294901760
    %4242 = vmatpush1.msra.mxu0 %v4241
    %4243 = vmatprep.subr.mxu0 0.0
    %v4244 = vand.u32 %v2847, 4294901760
    %4245 = vmatpush1.msra.mxu0 %v4244
    %4246 = vmatprep.subr.mxu0 0.0
    %v4247 = vand.u32 %v2846, 4294901760
    %4248 = vmatpush1.msra.mxu0 %v4247
    %4249 = vmatprep.subr.mxu0 0.0
    %v4250 = vand.u32 %v2845, 4294901760
    %4251 = vmatpush1.msra.mxu0 %v4250
    %4252 = vmatprep.subr.mxu0 0.0
    %v4253 = vand.u32 %v2844, 4294901760
    %4254 = vmatpush1.msra.mxu0 %v4253
    %4255 = vmatprep.subr.mxu0 0.0
    %v4256 = vand.u32 %v2843, 4294901760
    %4257 = vmatpush1.msra.mxu0 %v4256
    %4258 = vmatprep.subr.mxu0 0.0
    %v4259 = vand.u32 %v2842, 4294901760
    %4260 = vmatpush1.msra.mxu0 %v4259
    %4261 = vmatprep.subr.mxu0 0.0
    %v4262 = vand.u32 %v2841, 4294901760
    %4263 = vmatpush1.msra.mxu0 %v4262
    %4264 = vmatprep.subr.mxu0 0.0
    %v4265 = vand.u32 %v2840, 4294901760
    %4266 = vmatpush1.msra.mxu0 %v4265
    %4267 = vmatprep.subr.mxu0 0.0
    %v4268 = vand.u32 %v2839, 4294901760
    %4269 = vmatpush1.msra.mxu0 %v4268
    %4270 = vmatprep.subr.mxu0 0.0
    %v4271 = vand.u32 %v2838, 4294901760
    %4272 = vmatpush1.msra.mxu0 %v4271
    %4273 = vmatprep.subr.mxu0 0.0
    %v4274 = vand.u32 %v2837, 4294901760
    %4275 = vmatpush1.msra.mxu0 %v4274
    %4276 = vmatprep.subr.mxu0 0.0
    %v4277 = vand.u32 %v2836, 4294901760
    %4278 = vmatpush1.msra.mxu0 %v4277
    %4279 = vmatprep.subr.mxu0 0.0
    %v4280 = vand.u32 %v2835, 4294901760
    %4281 = vmatpush1.msra.mxu0 %v4280
    %4282 = vmatprep.subr.mxu0 0.0
    %v4283 = vand.u32 %v2834, 4294901760
    %4284 = vmatpush1.msra.mxu0 %v4283
    %4285 = vmatprep.subr.mxu0 0.0
    %v4286 = vand.u32 %v2865, 4294901760
    %4287 = vmatpush2.msra.mxu0 %v4286
    %4288 = vmatprep.subr.mxu0 0.0
    %v4289 = vand.u32 %v2864, 4294901760
    %4290 = vmatpush2.msra.mxu0 %v4289
    %4291 = vmatprep.subr.mxu0 0.0
    %v4292 = vand.u32 %v2863, 4294901760
    %4293 = vmatpush2.msra.mxu0 %v4292
    %4294 = vmatprep.subr.mxu0 0.0
    %v4295 = vand.u32 %v2862, 4294901760
    %4296 = vmatpush2.msra.mxu0 %v4295
    %4297 = vmatprep.subr.mxu0 0.0
    %v4298 = vand.u32 %v2861, 4294901760
    %4299 = vmatpush2.msra.mxu0 %v4298
    %4300 = vmatprep.subr.mxu0 0.0
    %v4301 = vand.u32 %v2860, 4294901760
    %4302 = vmatpush2.msra.mxu0 %v4301
    %4303 = vmatprep.subr.mxu0 0.0
    %v4304 = vand.u32 %v2859, 4294901760
    %4305 = vmatpush2.msra.mxu0 %v4304
    %4306 = vmatprep.subr.mxu0 0.0
    %v4307 = vand.u32 %v2858, 4294901760
    %4308 = vmatpush2.msra.mxu0 %v4307
    %4309 = vmatprep.subr.mxu0 0.0
    %v4310 = vand.u32 %v2857, 4294901760
    %4311 = vmatpush2.msra.mxu0 %v4310
    %4312 = vmatprep.subr.mxu0 0.0
    %v4313 = vand.u32 %v2856, 4294901760
    %4314 = vmatpush2.msra.mxu0 %v4313
    %4315 = vmatprep.subr.mxu0 0.0
    %v4316 = vand.u32 %v2855, 4294901760
    %4317 = vmatpush2.msra.mxu0 %v4316
    %4318 = vmatprep.subr.mxu0 0.0
    %v4319 = vand.u32 %v2854, 4294901760
    %4320 = vmatpush2.msra.mxu0 %v4319
    %4321 = vmatprep.subr.mxu0 0.0
    %v4322 = vand.u32 %v2853, 4294901760
    %4323 = vmatpush2.msra.mxu0 %v4322
    %4324 = vmatprep.subr.mxu0 0.0
    %v4325 = vand.u32 %v2852, 4294901760
    %4326 = vmatpush2.msra.mxu0 %v4325
    %4327 = vmatprep.subr.mxu0 0.0
    %v4328 = vand.u32 %v2851, 4294901760
    %4329 = vmatpush2.msra.mxu0 %v4328
    %4330 = vmatprep.subr.mxu0 0.0
    %v4331 = vand.u32 %v2850, 4294901760
    %4332 = vmatpush2.msra.mxu0 %v4331
    %v4333 = vand.u32 %v2888, 4294901760
    %v4334 = vsub.f32 %v2888, %v4333
    %v4335 = vand.u32 %v4334, 4294901760
    %4336 = vmatprep.mubr.f32.mxu0 %v4335
    %v4337 = vand.u32 %v2886, 4294901760
    %v4338 = vsub.f32 %v2886, %v4337
    %v4339 = vand.u32 %v4338, 4294901760
    %4340 = vmatmul.mubr.f32.gmra.mxu0 %v4339
    %v4341 = vpop.f32.mrf.mxu0
    %v4342 = vadd.f32 %v4234, %v4341
    %v4343 = vpop.f32.mrf.mxu0
    %4344 = vdwg.mxu0
    %4345 = vmatprep.subr.mxu0 0.0
    %v4346 = vand.u32 %v2849, 4294901760
    %v4347 = vsub.f32 %v2849, %v4346
    %v4348 = vand.u32 %v4347, 4294901760
    %4349 = vmatpush1.msra.mxu0 %v4348
    %4350 = vmatprep.subr.mxu0 0.0
    %v4351 = vand.u32 %v2848, 4294901760
    %v4352 = vsub.f32 %v2848, %v4351
    %v4353 = vand.u32 %v4352, 4294901760
    %4354 = vmatpush1.msra.mxu0 %v4353
    %4355 = vmatprep.subr.mxu0 0.0
    %v4356 = vand.u32 %v2847, 4294901760
    %v4357 = vsub.f32 %v2847, %v4356
    %v4358 = vand.u32 %v4357, 4294901760
    %4359 = vmatpush1.msra.mxu0 %v4358
    %4360 = vmatprep.subr.mxu0 0.0
    %v4361 = vand.u32 %v2846, 4294901760
    %v4362 = vsub.f32 %v2846, %v4361
    %v4363 = vand.u32 %v4362, 4294901760
    %4364 = vmatpush1.msra.mxu0 %v4363
    %4365 = vmatprep.subr.mxu0 0.0
    %v4366 = vand.u32 %v2845, 4294901760
    %v4367 = vsub.f32 %v2845, %v4366
    %v4368 = vand.u32 %v4367, 4294901760
    %4369 = vmatpush1.msra.mxu0 %v4368
    %4370 = vmatprep.subr.mxu0 0.0
    %v4371 = vand.u32 %v2844, 4294901760
    %v4372 = vsub.f32 %v2844, %v4371
    %v4373 = vand.u32 %v4372, 4294901760
    %4374 = vmatpush1.msra.mxu0 %v4373
    %4375 = vmatprep.subr.mxu0 0.0
    %v4376 = vand.u32 %v2843, 4294901760
    %v4377 = vsub.f32 %v2843, %v4376
    %v4378 = vand.u32 %v4377, 4294901760
    %4379 = vmatpush1.msra.mxu0 %v4378
    %4380 = vmatprep.subr.mxu0 0.0
    %v4381 = vand.u32 %v2842, 4294901760
    %v4382 = vsub.f32 %v2842, %v4381
    %v4383 = vand.u32 %v4382, 4294901760
    %4384 = vmatpush1.msra.mxu0 %v4383
    %4385 = vmatprep.subr.mxu0 0.0
    %v4386 = vand.u32 %v2841, 4294901760
    %v4387 = vsub.f32 %v2841, %v4386
    %v4388 = vand.u32 %v4387, 4294901760
    %4389 = vmatpush1.msra.mxu0 %v4388
    %4390 = vmatprep.subr.mxu0 0.0
    %v4391 = vand.u32 %v2840, 4294901760
    %v4392 = vsub.f32 %v2840, %v4391
    %v4393 = vand.u32 %v4392, 4294901760
    %4394 = vmatpush1.msra.mxu0 %v4393
    %4395 = vmatprep.subr.mxu0 0.0
    %v4396 = vand.u32 %v2839, 4294901760
    %v4397 = vsub.f32 %v2839, %v4396
    %v4398 = vand.u32 %v4397, 4294901760
    %4399 = vmatpush1.msra.mxu0 %v4398
    %4400 = vmatprep.subr.mxu0 0.0
    %v4401 = vand.u32 %v2838, 4294901760
    %v4402 = vsub.f32 %v2838, %v4401
    %v4403 = vand.u32 %v4402, 4294901760
    %4404 = vmatpush1.msra.mxu0 %v4403
    %4405 = vmatprep.subr.mxu0 0.0
    %v4406 = vand.u32 %v2837, 4294901760
    %v4407 = vsub.f32 %v2837, %v4406
    %v4408 = vand.u32 %v4407, 4294901760
    %4409 = vmatpush1.msra.mxu0 %v4408
    %4410 = vmatprep.subr.mxu0 0.0
    %v4411 = vand.u32 %v2836, 4294901760
    %v4412 = vsub.f32 %v2836, %v4411
    %v4413 = vand.u32 %v4412, 4294901760
    %4414 = vmatpush1.msra.mxu0 %v4413
    %4415 = vmatprep.subr.mxu0 0.0
    %v4416 = vand.u32 %v2835, 4294901760
    %v4417 = vsub.f32 %v2835, %v4416
    %v4418 = vand.u32 %v4417, 4294901760
    %4419 = vmatpush1.msra.mxu0 %v4418
    %4420 = vmatprep.subr.mxu0 0.0
    %v4421 = vand.u32 %v2834, 4294901760
    %v4422 = vsub.f32 %v2834, %v4421
    %v4423 = vand.u32 %v4422, 4294901760
    %4424 = vmatpush1.msra.mxu0 %v4423
    %4425 = vmatprep.subr.mxu0 0.0
    %v4426 = vand.u32 %v2865, 4294901760
    %v4427 = vsub.f32 %v2865, %v4426
    %v4428 = vand.u32 %v4427, 4294901760
    %4429 = vmatpush2.msra.mxu0 %v4428
    %4430 = vmatprep.subr.mxu0 0.0
    %v4431 = vand.u32 %v2864, 4294901760
    %v4432 = vsub.f32 %v2864, %v4431
    %v4433 = vand.u32 %v4432, 4294901760
    %4434 = vmatpush2.msra.mxu0 %v4433
    %4435 = vmatprep.subr.mxu0 0.0
    %v4436 = vand.u32 %v2863, 4294901760
    %v4437 = vsub.f32 %v2863, %v4436
    %v4438 = vand.u32 %v4437, 4294901760
    %4439 = vmatpush2.msra.mxu0 %v4438
    %4440 = vmatprep.subr.mxu0 0.0
    %v4441 = vand.u32 %v2862, 4294901760
    %v4442 = vsub.f32 %v2862, %v4441
    %v4443 = vand.u32 %v4442, 4294901760
    %4444 = vmatpush2.msra.mxu0 %v4443
    %4445 = vmatprep.subr.mxu0 0.0
    %v4446 = vand.u32 %v2861, 4294901760
    %v4447 = vsub.f32 %v2861, %v4446
    %v4448 = vand.u32 %v4447, 4294901760
    %4449 = vmatpush2.msra.mxu0 %v4448
    %4450 = vmatprep.subr.mxu0 0.0
    %v4451 = vand.u32 %v2860, 4294901760
    %v4452 = vsub.f32 %v2860, %v4451
    %v4453 = vand.u32 %v4452, 4294901760
    %4454 = vmatpush2.msra.mxu0 %v4453
    %4455 = vmatprep.subr.mxu0 0.0
    %v4456 = vand.u32 %v2859, 4294901760
    %v4457 = vsub.f32 %v2859, %v4456
    %v4458 = vand.u32 %v4457, 4294901760
    %4459 = vmatpush2.msra.mxu0 %v4458
    %4460 = vmatprep.subr.mxu0 0.0
    %v4461 = vand.u32 %v2858, 4294901760
    %v4462 = vsub.f32 %v2858, %v4461
    %v4463 = vand.u32 %v4462, 4294901760
    %4464 = vmatpush2.msra.mxu0 %v4463
    %4465 = vmatprep.subr.mxu0 0.0
    %v4466 = vand.u32 %v2857, 4294901760
    %v4467 = vsub.f32 %v2857, %v4466
    %v4468 = vand.u32 %v4467, 4294901760
    %4469 = vmatpush2.msra.mxu0 %v4468
    %4470 = vmatprep.subr.mxu0 0.0
    %v4471 = vand.u32 %v2856, 4294901760
    %v4472 = vsub.f32 %v2856, %v4471
    %v4473 = vand.u32 %v4472, 4294901760
    %4474 = vmatpush2.msra.mxu0 %v4473
    %4475 = vmatprep.subr.mxu0 0.0
    %v4476 = vand.u32 %v2855, 4294901760
    %v4477 = vsub.f32 %v2855, %v4476
    %v4478 = vand.u32 %v4477, 4294901760
    %4479 = vmatpush2.msra.mxu0 %v4478
    %4480 = vmatprep.subr.mxu0 0.0
    %v4481 = vand.u32 %v2854, 4294901760
    %v4482 = vsub.f32 %v2854, %v4481
    %v4483 = vand.u32 %v4482, 4294901760
    %4484 = vmatpush2.msra.mxu0 %v4483
    %4485 = vmatprep.subr.mxu0 0.0
    %v4486 = vand.u32 %v2853, 4294901760
    %v4487 = vsub.f32 %v2853, %v4486
    %v4488 = vand.u32 %v4487, 4294901760
    %4489 = vmatpush2.msra.mxu0 %v4488
    %4490 = vmatprep.subr.mxu0 0.0
    %v4491 = vand.u32 %v2852, 4294901760
    %v4492 = vsub.f32 %v2852, %v4491
    %v4493 = vand.u32 %v4492, 4294901760
    %4494 = vmatpush2.msra.mxu0 %v4493
    %4495 = vmatprep.subr.mxu0 0.0
    %v4496 = vand.u32 %v2851, 4294901760
    %v4497 = vsub.f32 %v2851, %v4496
    %v4498 = vand.u32 %v4497, 4294901760
    %4499 = vmatpush2.msra.mxu0 %v4498
    %4500 = vmatprep.subr.mxu0 0.0
    %v4501 = vand.u32 %v2850, 4294901760
    %v4502 = vsub.f32 %v2850, %v4501
    %v4503 = vand.u32 %v4502, 4294901760
    %4504 = vmatpush2.msra.mxu0 %v4503
    %v4505 = vand.u32 %v2888, 4294901760
    %4506 = vmatprep.mubr.f32.mxu0 %v4505
    %v4507 = vand.u32 %v2886, 4294901760
    %4508 = vmatmul.mubr.f32.gmra.mxu0 %v4507
    %v4509 = vpop.f32.mrf.mxu0
    %v4510 = vadd.f32 %v4342, %v4509
    %v4511 = vpop.f32.mrf.mxu0
    %4512 = vdwg.mxu0
    %4513 = vmatprep.subr.mxu0 0.0
    %v4514 = vand.u32 %v2849, 4294901760
    %4515 = vmatpush1.msra.mxu0 %v4514
    %4516 = vmatprep.subr.mxu0 0.0
    %v4517 = vand.u32 %v2848, 4294901760
    %4518 = vmatpush1.msra.mxu0 %v4517
    %4519 = vmatprep.subr.mxu0 0.0
    %v4520 = vand.u32 %v2847, 4294901760
    %4521 = vmatpush1.msra.mxu0 %v4520
    %4522 = vmatprep.subr.mxu0 0.0
    %v4523 = vand.u32 %v2846, 4294901760
    %4524 = vmatpush1.msra.mxu0 %v4523
    %4525 = vmatprep.subr.mxu0 0.0
    %v4526 = vand.u32 %v2845, 4294901760
    %4527 = vmatpush1.msra.mxu0 %v4526
    %4528 = vmatprep.subr.mxu0 0.0
    %v4529 = vand.u32 %v2844, 4294901760
    %4530 = vmatpush1.msra.mxu0 %v4529
    %4531 = vmatprep.subr.mxu0 0.0
    %v4532 = vand.u32 %v2843, 4294901760
    %4533 = vmatpush1.msra.mxu0 %v4532
    %4534 = vmatprep.subr.mxu0 0.0
    %v4535 = vand.u32 %v2842, 4294901760
    %4536 = vmatpush1.msra.mxu0 %v4535
    %4537 = vmatprep.subr.mxu0 0.0
    %v4538 = vand.u32 %v2841, 4294901760
    %4539 = vmatpush1.msra.mxu0 %v4538
    %4540 = vmatprep.subr.mxu0 0.0
    %v4541 = vand.u32 %v2840, 4294901760
    %4542 = vmatpush1.msra.mxu0 %v4541
    %4543 = vmatprep.subr.mxu0 0.0
    %v4544 = vand.u32 %v2839, 4294901760
    %4545 = vmatpush1.msra.mxu0 %v4544
    %4546 = vmatprep.subr.mxu0 0.0
    %v4547 = vand.u32 %v2838, 4294901760
    %4548 = vmatpush1.msra.mxu0 %v4547
    %4549 = vmatprep.subr.mxu0 0.0
    %v4550 = vand.u32 %v2837, 4294901760
    %4551 = vmatpush1.msra.mxu0 %v4550
    %4552 = vmatprep.subr.mxu0 0.0
    %v4553 = vand.u32 %v2836, 4294901760
    %4554 = vmatpush1.msra.mxu0 %v4553
    %4555 = vmatprep.subr.mxu0 0.0
    %v4556 = vand.u32 %v2835, 4294901760
    %4557 = vmatpush1.msra.mxu0 %v4556
    %4558 = vmatprep.subr.mxu0 0.0
    %v4559 = vand.u32 %v2834, 4294901760
    %4560 = vmatpush1.msra.mxu0 %v4559
    %4561 = vmatprep.subr.mxu0 0.0
    %v4562 = vand.u32 %v2865, 4294901760
    %4563 = vmatpush2.msra.mxu0 %v4562
    %4564 = vmatprep.subr.mxu0 0.0
    %v4565 = vand.u32 %v2864, 4294901760
    %4566 = vmatpush2.msra.mxu0 %v4565
    %4567 = vmatprep.subr.mxu0 0.0
    %v4568 = vand.u32 %v2863, 4294901760
    %4569 = vmatpush2.msra.mxu0 %v4568
    %4570 = vmatprep.subr.mxu0 0.0
    %v4571 = vand.u32 %v2862, 4294901760
    %4572 = vmatpush2.msra.mxu0 %v4571
    %4573 = vmatprep.subr.mxu0 0.0
    %v4574 = vand.u32 %v2861, 4294901760
    %4575 = vmatpush2.msra.mxu0 %v4574
    %4576 = vmatprep.subr.mxu0 0.0
    %v4577 = vand.u32 %v2860, 4294901760
    %4578 = vmatpush2.msra.mxu0 %v4577
    %4579 = vmatprep.subr.mxu0 0.0
    %v4580 = vand.u32 %v2859, 4294901760
    %4581 = vmatpush2.msra.mxu0 %v4580
    %4582 = vmatprep.subr.mxu0 0.0
    %v4583 = vand.u32 %v2858, 4294901760
    %4584 = vmatpush2.msra.mxu0 %v4583
    %4585 = vmatprep.subr.mxu0 0.0
    %v4586 = vand.u32 %v2857, 4294901760
    %4587 = vmatpush2.msra.mxu0 %v4586
    %4588 = vmatprep.subr.mxu0 0.0
    %v4589 = vand.u32 %v2856, 4294901760
    %4590 = vmatpush2.msra.mxu0 %v4589
    %4591 = vmatprep.subr.mxu0 0.0
    %v4592 = vand.u32 %v2855, 4294901760
    %4593 = vmatpush2.msra.mxu0 %v4592
    %4594 = vmatprep.subr.mxu0 0.0
    %v4595 = vand.u32 %v2854, 4294901760
    %4596 = vmatpush2.msra.mxu0 %v4595
    %4597 = vmatprep.subr.mxu0 0.0
    %v4598 = vand.u32 %v2853, 4294901760
    %4599 = vmatpush2.msra.mxu0 %v4598
    %4600 = vmatprep.subr.mxu0 0.0
    %v4601 = vand.u32 %v2852, 4294901760
    %4602 = vmatpush2.msra.mxu0 %v4601
    %4603 = vmatprep.subr.mxu0 0.0
    %v4604 = vand.u32 %v2851, 4294901760
    %4605 = vmatpush2.msra.mxu0 %v4604
    %4606 = vmatprep.subr.mxu0 0.0
    %v4607 = vand.u32 %v2850, 4294901760
    %4608 = vmatpush2.msra.mxu0 %v4607
    %v4609 = vand.u32 %v2888, 4294901760
    %4610 = vmatprep.mubr.f32.mxu0 %v4609
    %v4611 = vand.u32 %v2886, 4294901760
    %4612 = vmatmul.mubr.f32.gmra.mxu0 %v4611
    %v4613 = vpop.f32.mrf.mxu0
    %v4614 = vadd.f32 %v4510, %v4613
    %v4615 = vpop.f32.mrf.mxu0
    %4616 = vdwg.mxu0
    %vm4617 = vcmask 123904
    %4618 = vst.msk [vmem:[#allocation4] sm:$0x3] %vm4617, %v4614
    %4620 = vrot.lane.b32.xlu0 %v4614, 112
    %v4621 = vpop.permute.xlu0 %4620
    %4623 = vst.msk [vmem:[#allocation6] sm:$0x3] %vm4617, %v4621
    %v4624 = vld [vmem:[%s1] sm:$0x3]
    %v4625 = vmul.f32 %v4614, 0.5
    %v4626 = vmul.f32 %v4625, 1.442695
    %v4627 = vpow.pop %v4626
    %4629 = vrot.lane.b32.xlu0 %v4627, 112
    %v4630 = vpop.permute.xlu0 %4629
    %v4632 = vmul.f32 %v4624, %v4630
    %v4633 = vadd.f32 %v4614, %v4632
    %v4634 = vld [vmem:[%s4] sm:$0xff]
    %v4635 = vld [vmem:[%s4 + $0x8] sm:$0xff]
    %v4636 = vld [vmem:[%s4 + $0x10] sm:$0xff]
    %v4637 = vld [vmem:[%s4 + $0x18] sm:$0xff]
    %v4638 = vld [vmem:[%s4 + $0x20] sm:$0xff]
    %v4639 = vld [vmem:[%s4 + $0x28] sm:$0xff]
    %v4640 = vld [vmem:[%s4 + $0x30] sm:$0xff]
    %v4641 = vld [vmem:[%s4 + $0x38] sm:$0xff]
    %s4642 = scalar_lea.vmem %s4, 64
    %v4643 = vld [vmem:[%s4642] ss:$8 sm:$0xf]
    %v4645 = vlaneseq
    %v4646 = vshrl.u32 %v4645, 7
    %v4647 = vsub.s32 0, %v4646
    %v4648 = vrot.slane %v4643, %v4647
    %v4649 = vlaneseq
    %v4650 = vshrl.u32 %v4649, 7
    %v4651 = vsub.s32 1, %v4650
    %v4652 = vrot.slane %v4643, %v4651
    %v4653 = vlaneseq
    %v4654 = vshrl.u32 %v4653, 7
    %v4655 = vsub.s32 2, %v4654
    %v4656 = vrot.slane %v4643, %v4655
    %v4657 = vlaneseq
    %v4658 = vshrl.u32 %v4657, 7
    %v4659 = vsub.s32 3, %v4658
    %v4660 = vrot.slane %v4643, %v4659
    %vm4665 = vcmask 130048
    %v4667 = vsel %vm4665, %v4633, 0
    %4669 = vmatprep.subr.mxu0 0.0
    %4670 = vmatpush1.msra.mxu0 0.0
    %4671 = vmatprep.subr.mxu0 0.0
    %4672 = vmatpush1.msra.mxu0 0.0
    %4673 = vmatprep.subr.mxu0 0.0
    %4674 = vmatpush1.msra.mxu0 0.0
    %4675 = vmatprep.subr.mxu0 0.0
    %4676 = vmatpush1.msra.mxu0 0.0
    %4677 = vmatprep.subr.mxu0 0.0
    %4678 = vmatpush1.msra.mxu0 0.0
    %4679 = vmatprep.subr.mxu0 0.0
    %4680 = vmatpush1.msra.mxu0 0.0
    %4681 = vmatprep.subr.mxu0 0.0
    %4682 = vmatpush1.msra.mxu0 0.0
    %4683 = vmatprep.subr.mxu0 0.0
    %4684 = vmatpush1.msra.mxu0 0.0
    %4685 = vmatprep.subr.mxu0 0.0
    %4686 = vmatpush1.msra.mxu0 0.0
    %4687 = vmatprep.subr.mxu0 0.0
    %4688 = vmatpush1.msra.mxu0 0.0
    %4689 = vmatprep.subr.mxu0 0.0
    %4690 = vmatpush1.msra.mxu0 0.0
    %4691 = vmatprep.subr.mxu0 0.0
    %4692 = vmatpush1.msra.mxu0 0.0
    %4693 = vmatprep.subr.mxu0 0.0
    %4694 = vmatpush1.msra.mxu0 0.0
    %4695 = vmatprep.subr.mxu0 0.0
    %4696 = vmatpush1.msra.mxu0 0.0
    %v4697 = vand.u32 %v4639, 4294901760
    %4698 = vmatprep.subr.mxu0 %v4697
    %v4699 = vand.u32 %v4638, 4294901760
    %4700 = vmatpush1.msra.mxu0 %v4699
    %v4701 = vand.u32 %v4635, 4294901760
    %4702 = vmatprep.subr.mxu0 %v4701
    %v4703 = vand.u32 %v4634, 4294901760
    %4704 = vmatpush1.msra.mxu0 %v4703
    %4705 = vmatprep.subr.mxu0 0.0
    %4706 = vmatpush2.msra.mxu0 0.0
    %4707 = vmatprep.subr.mxu0 0.0
    %4708 = vmatpush2.msra.mxu0 0.0
    %4709 = vmatprep.subr.mxu0 0.0
    %4710 = vmatpush2.msra.mxu0 0.0
    %4711 = vmatprep.subr.mxu0 0.0
    %4712 = vmatpush2.msra.mxu0 0.0
    %4713 = vmatprep.subr.mxu0 0.0
    %4714 = vmatpush2.msra.mxu0 0.0
    %4715 = vmatprep.subr.mxu0 0.0
    %4716 = vmatpush2.msra.mxu0 0.0
    %4717 = vmatprep.subr.mxu0 0.0
    %4718 = vmatpush2.msra.mxu0 0.0
    %4719 = vmatprep.subr.mxu0 0.0
    %4720 = vmatpush2.msra.mxu0 0.0
    %4721 = vmatprep.subr.mxu0 0.0
    %4722 = vmatpush2.msra.mxu0 0.0
    %4723 = vmatprep.subr.mxu0 0.0
    %4724 = vmatpush2.msra.mxu0 0.0
    %4725 = vmatprep.subr.mxu0 0.0
    %4726 = vmatpush2.msra.mxu0 0.0
    %4727 = vmatprep.subr.mxu0 0.0
    %4728 = vmatpush2.msra.mxu0 0.0
    %4729 = vmatprep.subr.mxu0 0.0
    %4730 = vmatpush2.msra.mxu0 0.0
    %4731 = vmatprep.subr.mxu0 0.0
    %4732 = vmatpush2.msra.mxu0 0.0
    %4733 = vmatprep.subr.mxu0 0.0
    %4734 = vmatpush2.msra.mxu0 0.0
    %4735 = vmatprep.subr.mxu0 0.0
    %4736 = vmatpush2.msra.mxu0 0.0
    %4737 = vmatprep.mubr.f32.mxu0 0.0
    %v4738 = vand.u32 %v4667, 4294901760
    %v4739 = vsub.f32 %v4667, %v4738
    %v4740 = vand.u32 %v4739, 4294901760
    %v4741 = vsub.f32 %v4739, %v4740
    %v4742 = vand.u32 %v4741, 4294901760
    %4743 = vmatmul.mubr.f32.gmra.mxu0 %v4742
    %v4744 = vpop.f32.mrf.mxu0
    %v4745 = vadd.f32 %v4648, %v4744
    %v4746 = vpop.f32.mrf.mxu0
    %v4747 = vadd.f32 %v4652, %v4746
    %4748 = vdwg.mxu0
    %4749 = vmatprep.subr.mxu0 0.0
    %4750 = vmatpush1.msra.mxu0 0.0
    %4751 = vmatprep.subr.mxu0 0.0
    %4752 = vmatpush1.msra.mxu0 0.0
    %4753 = vmatprep.subr.mxu0 0.0
    %4754 = vmatpush1.msra.mxu0 0.0
    %4755 = vmatprep.subr.mxu0 0.0
    %4756 = vmatpush1.msra.mxu0 0.0
    %4757 = vmatprep.subr.mxu0 0.0
    %4758 = vmatpush1.msra.mxu0 0.0
    %4759 = vmatprep.subr.mxu0 0.0
    %4760 = vmatpush1.msra.mxu0 0.0
    %4761 = vmatprep.subr.mxu0 0.0
    %4762 = vmatpush1.msra.mxu0 0.0
    %4763 = vmatprep.subr.mxu0 0.0
    %4764 = vmatpush1.msra.mxu0 0.0
    %4765 = vmatprep.subr.mxu0 0.0
    %4766 = vmatpush1.msra.mxu0 0.0
    %4767 = vmatprep.subr.mxu0 0.0
    %4768 = vmatpush1.msra.mxu0 0.0
    %4769 = vmatprep.subr.mxu0 0.0
    %4770 = vmatpush1.msra.mxu0 0.0
    %4771 = vmatprep.subr.mxu0 0.0
    %4772 = vmatpush1.msra.mxu0 0.0
    %4773 = vmatprep.subr.mxu0 0.0
    %4774 = vmatpush1.msra.mxu0 0.0
    %4775 = vmatprep.subr.mxu0 0.0
    %4776 = vmatpush1.msra.mxu0 0.0
    %v4777 = vand.u32 %v4639, 4294901760
    %v4778 = vsub.f32 %v4639, %v4777
    %v4779 = vand.u32 %v4778, 4294901760
    %v4780 = vsub.f32 %v4778, %v4779
    %v4781 = vand.u32 %v4780, 4294901760
    %4782 = vmatprep.subr.mxu0 %v4781
    %v4783 = vand.u32 %v4638, 4294901760
    %v4784 = vsub.f32 %v4638, %v4783
    %v4785 = vand.u32 %v4784, 4294901760
    %v4786 = vsub.f32 %v4784, %v4785
    %v4787 = vand.u32 %v4786, 4294901760
    %4788 = vmatpush1.msra.mxu0 %v4787
    %v4789 = vand.u32 %v4635, 4294901760
    %v4790 = vsub.f32 %v4635, %v4789
    %v4791 = vand.u32 %v4790, 4294901760
    %v4792 = vsub.f32 %v4790, %v4791
    %v4793 = vand.u32 %v4792, 4294901760
    %4794 = vmatprep.subr.mxu0 %v4793
    %v4795 = vand.u32 %v4634, 4294901760
    %v4796 = vsub.f32 %v4634, %v4795
    %v4797 = vand.u32 %v4796, 4294901760
    %v4798 = vsub.f32 %v4796, %v4797
    %v4799 = vand.u32 %v4798, 4294901760
    %4800 = vmatpush1.msra.mxu0 %v4799
    %4801 = vmatprep.subr.mxu0 0.0
    %4802 = vmatpush2.msra.mxu0 0.0
    %4803 = vmatprep.subr.mxu0 0.0
    %4804 = vmatpush2.msra.mxu0 0.0
    %4805 = vmatprep.subr.mxu0 0.0
    %4806 = vmatpush2.msra.mxu0 0.0
    %4807 = vmatprep.subr.mxu0 0.0
    %4808 = vmatpush2.msra.mxu0 0.0
    %4809 = vmatprep.subr.mxu0 0.0
    %4810 = vmatpush2.msra.mxu0 0.0
    %4811 = vmatprep.subr.mxu0 0.0
    %4812 = vmatpush2.msra.mxu0 0.0
    %4813 = vmatprep.subr.mxu0 0.0
    %4814 = vmatpush2.msra.mxu0 0.0
    %4815 = vmatprep.subr.mxu0 0.0
    %4816 = vmatpush2.msra.mxu0 0.0
    %4817 = vmatprep.subr.mxu0 0.0
    %4818 = vmatpush2.msra.mxu0 0.0
    %4819 = vmatprep.subr.mxu0 0.0
    %4820 = vmatpush2.msra.mxu0 0.0
    %4821 = vmatprep.subr.mxu0 0.0
    %4822 = vmatpush2.msra.mxu0 0.0
    %4823 = vmatprep.subr.mxu0 0.0
    %4824 = vmatpush2.msra.mxu0 0.0
    %4825 = vmatprep.subr.mxu0 0.0
    %4826 = vmatpush2.msra.mxu0 0.0
    %4827 = vmatprep.subr.mxu0 0.0
    %4828 = vmatpush2.msra.mxu0 0.0
    %4829 = vmatprep.subr.mxu0 0.0
    %4830 = vmatpush2.msra.mxu0 0.0
    %4831 = vmatprep.subr.mxu0 0.0
    %4832 = vmatpush2.msra.mxu0 0.0
    %4833 = vmatprep.mubr.f32.mxu0 0.0
    %v4834 = vand.u32 %v4667, 4294901760
    %4835 = vmatmul.mubr.f32.gmra.mxu0 %v4834
    %v4836 = vpop.f32.mrf.mxu0
    %v4837 = vadd.f32 %v4745, %v4836
    %v4838 = vpop.f32.mrf.mxu0
    %v4839 = vadd.f32 %v4747, %v4838
    %4840 = vdwg.mxu0
    %4841 = vmatprep.subr.mxu0 0.0
    %4842 = vmatpush1.msra.mxu0 0.0
    %4843 = vmatprep.subr.mxu0 0.0
    %4844 = vmatpush1.msra.mxu0 0.0
    %4845 = vmatprep.subr.mxu0 0.0
    %4846 = vmatpush1.msra.mxu0 0.0
    %4847 = vmatprep.subr.mxu0 0.0
    %4848 = vmatpush1.msra.mxu0 0.0
    %4849 = vmatprep.subr.mxu0 0.0
    %4850 = vmatpush1.msra.mxu0 0.0
    %4851 = vmatprep.subr.mxu0 0.0
    %4852 = vmatpush1.msra.mxu0 0.0
    %4853 = vmatprep.subr.mxu0 0.0
    %4854 = vmatpush1.msra.mxu0 0.0
    %4855 = vmatprep.subr.mxu0 0.0
    %4856 = vmatpush1.msra.mxu0 0.0
    %4857 = vmatprep.subr.mxu0 0.0
    %4858 = vmatpush1.msra.mxu0 0.0
    %4859 = vmatprep.subr.mxu0 0.0
    %4860 = vmatpush1.msra.mxu0 0.0
    %4861 = vmatprep.subr.mxu0 0.0
    %4862 = vmatpush1.msra.mxu0 0.0
    %4863 = vmatprep.subr.mxu0 0.0
    %4864 = vmatpush1.msra.mxu0 0.0
    %4865 = vmatprep.subr.mxu0 0.0
    %4866 = vmatpush1.msra.mxu0 0.0
    %4867 = vmatprep.subr.mxu0 0.0
    %4868 = vmatpush1.msra.mxu0 0.0
    %v4869 = vand.u32 %v4639, 4294901760
    %v4870 = vsub.f32 %v4639, %v4869
    %4871 = vmatprep.subr.mxu0 %v4870
    %v4872 = vand.u32 %v4638, 4294901760
    %v4873 = vsub.f32 %v4638, %v4872
    %4874 = vmatpush1.msra.mxu0 %v4873
    %v4875 = vand.u32 %v4635, 4294901760
    %v4876 = vsub.f32 %v4635, %v4875
    %4877 = vmatprep.subr.mxu0 %v4876
    %v4878 = vand.u32 %v4634, 4294901760
    %v4879 = vsub.f32 %v4634, %v4878
    %4880 = vmatpush1.msra.mxu0 %v4879
    %4881 = vmatprep.subr.mxu0 0.0
    %4882 = vmatpush2.msra.mxu0 0.0
    %4883 = vmatprep.subr.mxu0 0.0
    %4884 = vmatpush2.msra.mxu0 0.0
    %4885 = vmatprep.subr.mxu0 0.0
    %4886 = vmatpush2.msra.mxu0 0.0
    %4887 = vmatprep.subr.mxu0 0.0
    %4888 = vmatpush2.msra.mxu0 0.0
    %4889 = vmatprep.subr.mxu0 0.0
    %4890 = vmatpush2.msra.mxu0 0.0
    %4891 = vmatprep.subr.mxu0 0.0
    %4892 = vmatpush2.msra.mxu0 0.0
    %4893 = vmatprep.subr.mxu0 0.0
    %4894 = vmatpush2.msra.mxu0 0.0
    %4895 = vmatprep.subr.mxu0 0.0
    %4896 = vmatpush2.msra.mxu0 0.0
    %4897 = vmatprep.subr.mxu0 0.0
    %4898 = vmatpush2.msra.mxu0 0.0
    %4899 = vmatprep.subr.mxu0 0.0
    %4900 = vmatpush2.msra.mxu0 0.0
    %4901 = vmatprep.subr.mxu0 0.0
    %4902 = vmatpush2.msra.mxu0 0.0
    %4903 = vmatprep.subr.mxu0 0.0
    %4904 = vmatpush2.msra.mxu0 0.0
    %4905 = vmatprep.subr.mxu0 0.0
    %4906 = vmatpush2.msra.mxu0 0.0
    %4907 = vmatprep.subr.mxu0 0.0
    %4908 = vmatpush2.msra.mxu0 0.0
    %4909 = vmatprep.subr.mxu0 0.0
    %4910 = vmatpush2.msra.mxu0 0.0
    %4911 = vmatprep.subr.mxu0 0.0
    %4912 = vmatpush2.msra.mxu0 0.0
    %4913 = vmatprep.mubr.f32.mxu0 0.0
    %v4914 = vand.u32 %v4667, 4294901760
    %v4915 = vsub.f32 %v4667, %v4914
    %4916 = vmatmul.mubr.f32.gmra.mxu0 %v4915
    %v4917 = vpop.f32.mrf.mxu0
    %v4918 = vadd.f32 %v4837, %v4917
    %v4919 = vpop.f32.mrf.mxu0
    %v4920 = vadd.f32 %v4839, %v4919
    %4921 = vdwg.mxu0
    %4922 = vmatprep.subr.mxu0 0.0
    %4923 = vmatpush1.msra.mxu0 0.0
    %4924 = vmatprep.subr.mxu0 0.0
    %4925 = vmatpush1.msra.mxu0 0.0
    %4926 = vmatprep.subr.mxu0 0.0
    %4927 = vmatpush1.msra.mxu0 0.0
    %4928 = vmatprep.subr.mxu0 0.0
    %4929 = vmatpush1.msra.mxu0 0.0
    %4930 = vmatprep.subr.mxu0 0.0
    %4931 = vmatpush1.msra.mxu0 0.0
    %4932 = vmatprep.subr.mxu0 0.0
    %4933 = vmatpush1.msra.mxu0 0.0
    %4934 = vmatprep.subr.mxu0 0.0
    %4935 = vmatpush1.msra.mxu0 0.0
    %4936 = vmatprep.subr.mxu0 0.0
    %4937 = vmatpush1.msra.mxu0 0.0
    %4938 = vmatprep.subr.mxu0 0.0
    %4939 = vmatpush1.msra.mxu0 0.0
    %4940 = vmatprep.subr.mxu0 0.0
    %4941 = vmatpush1.msra.mxu0 0.0
    %4942 = vmatprep.subr.mxu0 0.0
    %4943 = vmatpush1.msra.mxu0 0.0
    %4944 = vmatprep.subr.mxu0 0.0
    %4945 = vmatpush1.msra.mxu0 0.0
    %4946 = vmatprep.subr.mxu0 0.0
    %4947 = vmatpush1.msra.mxu0 0.0
    %4948 = vmatprep.subr.mxu0 0.0
    %4949 = vmatpush1.msra.mxu0 0.0
    %v4950 = vand.u32 %v4639, 4294901760
    %4951 = vmatprep.subr.mxu0 %v4950
    %v4952 = vand.u32 %v4638, 4294901760
    %4953 = vmatpush1.msra.mxu0 %v4952
    %v4954 = vand.u32 %v4635, 4294901760
    %4955 = vmatprep.subr.mxu0 %v4954
    %v4956 = vand.u32 %v4634, 4294901760
    %4957 = vmatpush1.msra.mxu0 %v4956
    %4958 = vmatprep.subr.mxu0 0.0
    %4959 = vmatpush2.msra.mxu0 0.0
    %4960 = vmatprep.subr.mxu0 0.0
    %4961 = vmatpush2.msra.mxu0 0.0
    %4962 = vmatprep.subr.mxu0 0.0
    %4963 = vmatpush2.msra.mxu0 0.0
    %4964 = vmatprep.subr.mxu0 0.0
    %4965 = vmatpush2.msra.mxu0 0.0
    %4966 = vmatprep.subr.mxu0 0.0
    %4967 = vmatpush2.msra.mxu0 0.0
    %4968 = vmatprep.subr.mxu0 0.0
    %4969 = vmatpush2.msra.mxu0 0.0
    %4970 = vmatprep.subr.mxu0 0.0
    %4971 = vmatpush2.msra.mxu0 0.0
    %4972 = vmatprep.subr.mxu0 0.0
    %4973 = vmatpush2.msra.mxu0 0.0
    %4974 = vmatprep.subr.mxu0 0.0
    %4975 = vmatpush2.msra.mxu0 0.0
    %4976 = vmatprep.subr.mxu0 0.0
    %4977 = vmatpush2.msra.mxu0 0.0
    %4978 = vmatprep.subr.mxu0 0.0
    %4979 = vmatpush2.msra.mxu0 0.0
    %4980 = vmatprep.subr.mxu0 0.0
    %4981 = vmatpush2.msra.mxu0 0.0
    %4982 = vmatprep.subr.mxu0 0.0
    %4983 = vmatpush2.msra.mxu0 0.0
    %4984 = vmatprep.subr.mxu0 0.0
    %4985 = vmatpush2.msra.mxu0 0.0
    %4986 = vmatprep.subr.mxu0 0.0
    %4987 = vmatpush2.msra.mxu0 0.0
    %4988 = vmatprep.subr.mxu0 0.0
    %4989 = vmatpush2.msra.mxu0 0.0
    %4990 = vmatprep.mubr.f32.mxu0 0.0
    %v4991 = vand.u32 %v4667, 4294901760
    %v4992 = vsub.f32 %v4667, %v4991
    %v4993 = vand.u32 %v4992, 4294901760
    %4994 = vmatmul.mubr.f32.gmra.mxu0 %v4993
    %v4995 = vpop.f32.mrf.mxu0
    %v4996 = vadd.f32 %v4918, %v4995
    %v4997 = vpop.f32.mrf.mxu0
    %v4998 = vadd.f32 %v4920, %v4997
    %4999 = vdwg.mxu0
    %5000 = vmatprep.subr.mxu0 0.0
    %5001 = vmatpush1.msra.mxu0 0.0
    %5002 = vmatprep.subr.mxu0 0.0
    %5003 = vmatpush1.msra.mxu0 0.0
    %5004 = vmatprep.subr.mxu0 0.0
    %5005 = vmatpush1.msra.mxu0 0.0
    %5006 = vmatprep.subr.mxu0 0.0
    %5007 = vmatpush1.msra.mxu0 0.0
    %5008 = vmatprep.subr.mxu0 0.0
    %5009 = vmatpush1.msra.mxu0 0.0
    %5010 = vmatprep.subr.mxu0 0.0
    %5011 = vmatpush1.msra.mxu0 0.0
    %5012 = vmatprep.subr.mxu0 0.0
    %5013 = vmatpush1.msra.mxu0 0.0
    %5014 = vmatprep.subr.mxu0 0.0
    %5015 = vmatpush1.msra.mxu0 0.0
    %5016 = vmatprep.subr.mxu0 0.0
    %5017 = vmatpush1.msra.mxu0 0.0
    %5018 = vmatprep.subr.mxu0 0.0
    %5019 = vmatpush1.msra.mxu0 0.0
    %5020 = vmatprep.subr.mxu0 0.0
    %5021 = vmatpush1.msra.mxu0 0.0
    %5022 = vmatprep.subr.mxu0 0.0
    %5023 = vmatpush1.msra.mxu0 0.0
    %5024 = vmatprep.subr.mxu0 0.0
    %5025 = vmatpush1.msra.mxu0 0.0
    %5026 = vmatprep.subr.mxu0 0.0
    %5027 = vmatpush1.msra.mxu0 0.0
    %v5028 = vand.u32 %v4639, 4294901760
    %v5029 = vsub.f32 %v4639, %v5028
    %v5030 = vand.u32 %v5029, 4294901760
    %5031 = vmatprep.subr.mxu0 %v5030
    %v5032 = vand.u32 %v4638, 4294901760
    %v5033 = vsub.f32 %v4638, %v5032
    %v5034 = vand.u32 %v5033, 4294901760
    %5035 = vmatpush1.msra.mxu0 %v5034
    %v5036 = vand.u32 %v4635, 4294901760
    %v5037 = vsub.f32 %v4635, %v5036
    %v5038 = vand.u32 %v5037, 4294901760
    %5039 = vmatprep.subr.mxu0 %v5038
    %v5040 = vand.u32 %v4634, 4294901760
    %v5041 = vsub.f32 %v4634, %v5040
    %v5042 = vand.u32 %v5041, 4294901760
    %5043 = vmatpush1.msra.mxu0 %v5042
    %5044 = vmatprep.subr.mxu0 0.0
    %5045 = vmatpush2.msra.mxu0 0.0
    %5046 = vmatprep.subr.mxu0 0.0
    %5047 = vmatpush2.msra.mxu0 0.0
    %5048 = vmatprep.subr.mxu0 0.0
    %5049 = vmatpush2.msra.mxu0 0.0
    %5050 = vmatprep.subr.mxu0 0.0
    %5051 = vmatpush2.msra.mxu0 0.0
    %5052 = vmatprep.subr.mxu0 0.0
    %5053 = vmatpush2.msra.mxu0 0.0
    %5054 = vmatprep.subr.mxu0 0.0
    %5055 = vmatpush2.msra.mxu0 0.0
    %5056 = vmatprep.subr.mxu0 0.0
    %5057 = vmatpush2.msra.mxu0 0.0
    %5058 = vmatprep.subr.mxu0 0.0
    %5059 = vmatpush2.msra.mxu0 0.0
    %5060 = vmatprep.subr.mxu0 0.0
    %5061 = vmatpush2.msra.mxu0 0.0
    %5062 = vmatprep.subr.mxu0 0.0
    %5063 = vmatpush2.msra.mxu0 0.0
    %5064 = vmatprep.subr.mxu0 0.0
    %5065 = vmatpush2.msra.mxu0 0.0
    %5066 = vmatprep.subr.mxu0 0.0
    %5067 = vmatpush2.msra.mxu0 0.0
    %5068 = vmatprep.subr.mxu0 0.0
    %5069 = vmatpush2.msra.mxu0 0.0
    %5070 = vmatprep.subr.mxu0 0.0
    %5071 = vmatpush2.msra.mxu0 0.0
    %5072 = vmatprep.subr.mxu0 0.0
    %5073 = vmatpush2.msra.mxu0 0.0
    %5074 = vmatprep.subr.mxu0 0.0
    %5075 = vmatpush2.msra.mxu0 0.0
    %5076 = vmatprep.mubr.f32.mxu0 0.0
    %v5077 = vand.u32 %v4667, 4294901760
    %5078 = vmatmul.mubr.f32.gmra.mxu0 %v5077
    %v5079 = vpop.f32.mrf.mxu0
    %v5080 = vadd.f32 %v4996, %v5079
    %v5081 = vpop.f32.mrf.mxu0
    %v5082 = vadd.f32 %v4998, %v5081
    %5083 = vdwg.mxu0
    %5084 = vmatprep.subr.mxu0 0.0
    %5085 = vmatpush1.msra.mxu0 0.0
    %5086 = vmatprep.subr.mxu0 0.0
    %5087 = vmatpush1.msra.mxu0 0.0
    %5088 = vmatprep.subr.mxu0 0.0
    %5089 = vmatpush1.msra.mxu0 0.0
    %5090 = vmatprep.subr.mxu0 0.0
    %5091 = vmatpush1.msra.mxu0 0.0
    %5092 = vmatprep.subr.mxu0 0.0
    %5093 = vmatpush1.msra.mxu0 0.0
    %5094 = vmatprep.subr.mxu0 0.0
    %5095 = vmatpush1.msra.mxu0 0.0
    %5096 = vmatprep.subr.mxu0 0.0
    %5097 = vmatpush1.msra.mxu0 0.0
    %5098 = vmatprep.subr.mxu0 0.0
    %5099 = vmatpush1.msra.mxu0 0.0
    %5100 = vmatprep.subr.mxu0 0.0
    %5101 = vmatpush1.msra.mxu0 0.0
    %5102 = vmatprep.subr.mxu0 0.0
    %5103 = vmatpush1.msra.mxu0 0.0
    %5104 = vmatprep.subr.mxu0 0.0
    %5105 = vmatpush1.msra.mxu0 0.0
    %5106 = vmatprep.subr.mxu0 0.0
    %5107 = vmatpush1.msra.mxu0 0.0
    %5108 = vmatprep.subr.mxu0 0.0
    %5109 = vmatpush1.msra.mxu0 0.0
    %5110 = vmatprep.subr.mxu0 0.0
    %5111 = vmatpush1.msra.mxu0 0.0
    %v5112 = vand.u32 %v4639, 4294901760
    %5113 = vmatprep.subr.mxu0 %v5112
    %v5114 = vand.u32 %v4638, 4294901760
    %5115 = vmatpush1.msra.mxu0 %v5114
    %v5116 = vand.u32 %v4635, 4294901760
    %5117 = vmatprep.subr.mxu0 %v5116
    %v5118 = vand.u32 %v4634, 4294901760
    %5119 = vmatpush1.msra.mxu0 %v5118
    %5120 = vmatprep.subr.mxu0 0.0
    %5121 = vmatpush2.msra.mxu0 0.0
    %5122 = vmatprep.subr.mxu0 0.0
    %5123 = vmatpush2.msra.mxu0 0.0
    %5124 = vmatprep.subr.mxu0 0.0
    %5125 = vmatpush2.msra.mxu0 0.0
    %5126 = vmatprep.subr.mxu0 0.0
    %5127 = vmatpush2.msra.mxu0 0.0
    %5128 = vmatprep.subr.mxu0 0.0
    %5129 = vmatpush2.msra.mxu0 0.0
    %5130 = vmatprep.subr.mxu0 0.0
    %5131 = vmatpush2.msra.mxu0 0.0
    %5132 = vmatprep.subr.mxu0 0.0
    %5133 = vmatpush2.msra.mxu0 0.0
    %5134 = vmatprep.subr.mxu0 0.0
    %5135 = vmatpush2.msra.mxu0 0.0
    %5136 = vmatprep.subr.mxu0 0.0
    %5137 = vmatpush2.msra.mxu0 0.0
    %5138 = vmatprep.subr.mxu0 0.0
    %5139 = vmatpush2.msra.mxu0 0.0
    %5140 = vmatprep.subr.mxu0 0.0
    %5141 = vmatpush2.msra.mxu0 0.0
    %5142 = vmatprep.subr.mxu0 0.0
    %5143 = vmatpush2.msra.mxu0 0.0
    %5144 = vmatprep.subr.mxu0 0.0
    %5145 = vmatpush2.msra.mxu0 0.0
    %5146 = vmatprep.subr.mxu0 0.0
    %5147 = vmatpush2.msra.mxu0 0.0
    %5148 = vmatprep.subr.mxu0 0.0
    %5149 = vmatpush2.msra.mxu0 0.0
    %5150 = vmatprep.subr.mxu0 0.0
    %5151 = vmatpush2.msra.mxu0 0.0
    %5152 = vmatprep.mubr.f32.mxu0 0.0
    %v5153 = vand.u32 %v4667, 4294901760
    %5154 = vmatmul.mubr.f32.gmra.mxu0 %v5153
    %v5155 = vpop.f32.mrf.mxu0
    %v5156 = vadd.f32 %v5080, %v5155
    %v5157 = vpop.f32.mrf.mxu0
    %v5158 = vadd.f32 %v5082, %v5157
    %5159 = vdwg.mxu0
    %5160 = vmatprep.subr.mxu0 0.0
    %5161 = vmatpush1.msra.mxu0 0.0
    %5162 = vmatprep.subr.mxu0 0.0
    %5163 = vmatpush1.msra.mxu0 0.0
    %5164 = vmatprep.subr.mxu0 0.0
    %5165 = vmatpush1.msra.mxu0 0.0
    %5166 = vmatprep.subr.mxu0 0.0
    %5167 = vmatpush1.msra.mxu0 0.0
    %5168 = vmatprep.subr.mxu0 0.0
    %5169 = vmatpush1.msra.mxu0 0.0
    %5170 = vmatprep.subr.mxu0 0.0
    %5171 = vmatpush1.msra.mxu0 0.0
    %5172 = vmatprep.subr.mxu0 0.0
    %5173 = vmatpush1.msra.mxu0 0.0
    %5174 = vmatprep.subr.mxu0 0.0
    %5175 = vmatpush1.msra.mxu0 0.0
    %5176 = vmatprep.subr.mxu0 0.0
    %5177 = vmatpush1.msra.mxu0 0.0
    %5178 = vmatprep.subr.mxu0 0.0
    %5179 = vmatpush1.msra.mxu0 0.0
    %5180 = vmatprep.subr.mxu0 0.0
    %5181 = vmatpush1.msra.mxu0 0.0
    %5182 = vmatprep.subr.mxu0 0.0
    %5183 = vmatpush1.msra.mxu0 0.0
    %5184 = vmatprep.subr.mxu0 0.0
    %5185 = vmatpush1.msra.mxu0 0.0
    %5186 = vmatprep.subr.mxu0 0.0
    %5187 = vmatpush1.msra.mxu0 0.0
    %v5188 = vand.u32 %v4641, 4294901760
    %5189 = vmatprep.subr.mxu0 %v5188
    %v5190 = vand.u32 %v4640, 4294901760
    %5191 = vmatpush1.msra.mxu0 %v5190
    %v5192 = vand.u32 %v4637, 4294901760
    %5193 = vmatprep.subr.mxu0 %v5192
    %v5194 = vand.u32 %v4636, 4294901760
    %5195 = vmatpush1.msra.mxu0 %v5194
    %5196 = vmatprep.subr.mxu0 0.0
    %5197 = vmatpush2.msra.mxu0 0.0
    %5198 = vmatprep.subr.mxu0 0.0
    %5199 = vmatpush2.msra.mxu0 0.0
    %5200 = vmatprep.subr.mxu0 0.0
    %5201 = vmatpush2.msra.mxu0 0.0
    %5202 = vmatprep.subr.mxu0 0.0
    %5203 = vmatpush2.msra.mxu0 0.0
    %5204 = vmatprep.subr.mxu0 0.0
    %5205 = vmatpush2.msra.mxu0 0.0
    %5206 = vmatprep.subr.mxu0 0.0
    %5207 = vmatpush2.msra.mxu0 0.0
    %5208 = vmatprep.subr.mxu0 0.0
    %5209 = vmatpush2.msra.mxu0 0.0
    %5210 = vmatprep.subr.mxu0 0.0
    %5211 = vmatpush2.msra.mxu0 0.0
    %5212 = vmatprep.subr.mxu0 0.0
    %5213 = vmatpush2.msra.mxu0 0.0
    %5214 = vmatprep.subr.mxu0 0.0
    %5215 = vmatpush2.msra.mxu0 0.0
    %5216 = vmatprep.subr.mxu0 0.0
    %5217 = vmatpush2.msra.mxu0 0.0
    %5218 = vmatprep.subr.mxu0 0.0
    %5219 = vmatpush2.msra.mxu0 0.0
    %5220 = vmatprep.subr.mxu0 0.0
    %5221 = vmatpush2.msra.mxu0 0.0
    %5222 = vmatprep.subr.mxu0 0.0
    %5223 = vmatpush2.msra.mxu0 0.0
    %5224 = vmatprep.subr.mxu0 0.0
    %5225 = vmatpush2.msra.mxu0 0.0
    %5226 = vmatprep.subr.mxu0 0.0
    %5227 = vmatpush2.msra.mxu0 0.0
    %5228 = vmatprep.mubr.f32.mxu0 0.0
    %v5229 = vand.u32 %v4667, 4294901760
    %v5230 = vsub.f32 %v4667, %v5229
    %v5231 = vand.u32 %v5230, 4294901760
    %v5232 = vsub.f32 %v5230, %v5231
    %v5233 = vand.u32 %v5232, 4294901760
    %5234 = vmatmul.mubr.f32.gmra.mxu0 %v5233
    %v5235 = vpop.f32.mrf.mxu0
    %v5236 = vadd.f32 %v4656, %v5235
    %v5237 = vpop.f32.mrf.mxu0
    %v5238 = vadd.f32 %v4660, %v5237
    %5239 = vdwg.mxu0
    %5240 = vmatprep.subr.mxu0 0.0
    %5241 = vmatpush1.msra.mxu0 0.0
    %5242 = vmatprep.subr.mxu0 0.0
    %5243 = vmatpush1.msra.mxu0 0.0
    %5244 = vmatprep.subr.mxu0 0.0
    %5245 = vmatpush1.msra.mxu0 0.0
    %5246 = vmatprep.subr.mxu0 0.0
    %5247 = vmatpush1.msra.mxu0 0.0
    %5248 = vmatprep.subr.mxu0 0.0
    %5249 = vmatpush1.msra.mxu0 0.0
    %5250 = vmatprep.subr.mxu0 0.0
    %5251 = vmatpush1.msra.mxu0 0.0
    %5252 = vmatprep.subr.mxu0 0.0
    %5253 = vmatpush1.msra.mxu0 0.0
    %5254 = vmatprep.subr.mxu0 0.0
    %5255 = vmatpush1.msra.mxu0 0.0
    %5256 = vmatprep.subr.mxu0 0.0
    %5257 = vmatpush1.msra.mxu0 0.0
    %5258 = vmatprep.subr.mxu0 0.0
    %5259 = vmatpush1.msra.mxu0 0.0
    %5260 = vmatprep.subr.mxu0 0.0
    %5261 = vmatpush1.msra.mxu0 0.0
    %5262 = vmatprep.subr.mxu0 0.0
    %5263 = vmatpush1.msra.mxu0 0.0
    %5264 = vmatprep.subr.mxu0 0.0
    %5265 = vmatpush1.msra.mxu0 0.0
    %5266 = vmatprep.subr.mxu0 0.0
    %5267 = vmatpush1.msra.mxu0 0.0
    %v5268 = vand.u32 %v4641, 4294901760
    %v5269 = vsub.f32 %v4641, %v5268
    %v5270 = vand.u32 %v5269, 4294901760
    %v5271 = vsub.f32 %v5269, %v5270
    %v5272 = vand.u32 %v5271, 4294901760
    %5273 = vmatprep.subr.mxu0 %v5272
    %v5274 = vand.u32 %v4640, 4294901760
    %v5275 = vsub.f32 %v4640, %v5274
    %v5276 = vand.u32 %v5275, 4294901760
    %v5277 = vsub.f32 %v5275, %v5276
    %v5278 = vand.u32 %v5277, 4294901760
    %5279 = vmatpush1.msra.mxu0 %v5278
    %v5280 = vand.u32 %v4637, 4294901760
    %v5281 = vsub.f32 %v4637, %v5280
    %v5282 = vand.u32 %v5281, 4294901760
    %v5283 = vsub.f32 %v5281, %v5282
    %v5284 = vand.u32 %v5283, 4294901760
    %5285 = vmatprep.subr.mxu0 %v5284
    %v5286 = vand.u32 %v4636, 4294901760
    %v5287 = vsub.f32 %v4636, %v5286
    %v5288 = vand.u32 %v5287, 4294901760
    %v5289 = vsub.f32 %v5287, %v5288
    %v5290 = vand.u32 %v5289, 4294901760
    %5291 = vmatpush1.msra.mxu0 %v5290
    %5292 = vmatprep.subr.mxu0 0.0
    %5293 = vmatpush2.msra.mxu0 0.0
    %5294 = vmatprep.subr.mxu0 0.0
    %5295 = vmatpush2.msra.mxu0 0.0
    %5296 = vmatprep.subr.mxu0 0.0
    %5297 = vmatpush2.msra.mxu0 0.0
    %5298 = vmatprep.subr.mxu0 0.0
    %5299 = vmatpush2.msra.mxu0 0.0
    %5300 = vmatprep.subr.mxu0 0.0
    %5301 = vmatpush2.msra.mxu0 0.0
    %5302 = vmatprep.subr.mxu0 0.0
    %5303 = vmatpush2.msra.mxu0 0.0
    %5304 = vmatprep.subr.mxu0 0.0
    %5305 = vmatpush2.msra.mxu0 0.0
    %5306 = vmatprep.subr.mxu0 0.0
    %5307 = vmatpush2.msra.mxu0 0.0
    %5308 = vmatprep.subr.mxu0 0.0
    %5309 = vmatpush2.msra.mxu0 0.0
    %5310 = vmatprep.subr.mxu0 0.0
    %5311 = vmatpush2.msra.mxu0 0.0
    %5312 = vmatprep.subr.mxu0 0.0
    %5313 = vmatpush2.msra.mxu0 0.0
    %5314 = vmatprep.subr.mxu0 0.0
    %5315 = vmatpush2.msra.mxu0 0.0
    %5316 = vmatprep.subr.mxu0 0.0
    %5317 = vmatpush2.msra.mxu0 0.0
    %5318 = vmatprep.subr.mxu0 0.0
    %5319 = vmatpush2.msra.mxu0 0.0
    %5320 = vmatprep.subr.mxu0 0.0
    %5321 = vmatpush2.msra.mxu0 0.0
    %5322 = vmatprep.subr.mxu0 0.0
    %5323 = vmatpush2.msra.mxu0 0.0
    %5324 = vmatprep.mubr.f32.mxu0 0.0
    %v5325 = vand.u32 %v4667, 4294901760
    %5326 = vmatmul.mubr.f32.gmra.mxu0 %v5325
    %v5327 = vpop.f32.mrf.mxu0
    %v5328 = vadd.f32 %v5236, %v5327
    %v5329 = vpop.f32.mrf.mxu0
    %v5330 = vadd.f32 %v5238, %v5329
    %5331 = vdwg.mxu0
    %5332 = vmatprep.subr.mxu0 0.0
    %5333 = vmatpush1.msra.mxu0 0.0
    %5334 = vmatprep.subr.mxu0 0.0
    %5335 = vmatpush1.msra.mxu0 0.0
    %5336 = vmatprep.subr.mxu0 0.0
    %5337 = vmatpush1.msra.mxu0 0.0
    %5338 = vmatprep.subr.mxu0 0.0
    %5339 = vmatpush1.msra.mxu0 0.0
    %5340 = vmatprep.subr.mxu0 0.0
    %5341 = vmatpush1.msra.mxu0 0.0
    %5342 = vmatprep.subr.mxu0 0.0
    %5343 = vmatpush1.msra.mxu0 0.0
    %5344 = vmatprep.subr.mxu0 0.0
    %5345 = vmatpush1.msra.mxu0 0.0
    %5346 = vmatprep.subr.mxu0 0.0
    %5347 = vmatpush1.msra.mxu0 0.0
    %5348 = vmatprep.subr.mxu0 0.0
    %5349 = vmatpush1.msra.mxu0 0.0
    %5350 = vmatprep.subr.mxu0 0.0
    %5351 = vmatpush1.msra.mxu0 0.0
    %5352 = vmatprep.subr.mxu0 0.0
    %5353 = vmatpush1.msra.mxu0 0.0
    %5354 = vmatprep.subr.mxu0 0.0
    %5355 = vmatpush1.msra.mxu0 0.0
    %5356 = vmatprep.subr.mxu0 0.0
    %5357 = vmatpush1.msra.mxu0 0.0
    %5358 = vmatprep.subr.mxu0 0.0
    %5359 = vmatpush1.msra.mxu0 0.0
    %v5360 = vand.u32 %v4641, 4294901760
    %v5361 = vsub.f32 %v4641, %v5360
    %5362 = vmatprep.subr.mxu0 %v5361
    %v5363 = vand.u32 %v4640, 4294901760
    %v5364 = vsub.f32 %v4640, %v5363
    %5365 = vmatpush1.msra.mxu0 %v5364
    %v5366 = vand.u32 %v4637, 4294901760
    %v5367 = vsub.f32 %v4637, %v5366
    %5368 = vmatprep.subr.mxu0 %v5367
    %v5369 = vand.u32 %v4636, 4294901760
    %v5370 = vsub.f32 %v4636, %v5369
    %5371 = vmatpush1.msra.mxu0 %v5370
    %5372 = vmatprep.subr.mxu0 0.0
    %5373 = vmatpush2.msra.mxu0 0.0
    %5374 = vmatprep.subr.mxu0 0.0
    %5375 = vmatpush2.msra.mxu0 0.0
    %5376 = vmatprep.subr.mxu0 0.0
    %5377 = vmatpush2.msra.mxu0 0.0
    %5378 = vmatprep.subr.mxu0 0.0
    %5379 = vmatpush2.msra.mxu0 0.0
    %5380 = vmatprep.subr.mxu0 0.0
    %5381 = vmatpush2.msra.mxu0 0.0
    %5382 = vmatprep.subr.mxu0 0.0
    %5383 = vmatpush2.msra.mxu0 0.0
    %5384 = vmatprep.subr.mxu0 0.0
    %5385 = vmatpush2.msra.mxu0 0.0
    %5386 = vmatprep.subr.mxu0 0.0
    %5387 = vmatpush2.msra.mxu0 0.0
    %5388 = vmatprep.subr.mxu0 0.0
    %5389 = vmatpush2.msra.mxu0 0.0
    %5390 = vmatprep.subr.mxu0 0.0
    %5391 = vmatpush2.msra.mxu0 0.0
    %5392 = vmatprep.subr.mxu0 0.0
    %5393 = vmatpush2.msra.mxu0 0.0
    %5394 = vmatprep.subr.mxu0 0.0
    %5395 = vmatpush2.msra.mxu0 0.0
    %5396 = vmatprep.subr.mxu0 0.0
    %5397 = vmatpush2.msra.mxu0 0.0
    %5398 = vmatprep.subr.mxu0 0.0
    %5399 = vmatpush2.msra.mxu0 0.0
    %5400 = vmatprep.subr.mxu0 0.0
    %5401 = vmatpush2.msra.mxu0 0.0
    %5402 = vmatprep.subr.mxu0 0.0
    %5403 = vmatpush2.msra.mxu0 0.0
    %5404 = vmatprep.mubr.f32.mxu0 0.0
    %v5405 = vand.u32 %v4667, 4294901760
    %v5406 = vsub.f32 %v4667, %v5405
    %5407 = vmatmul.mubr.f32.gmra.mxu0 %v5406
    %v5408 = vpop.f32.mrf.mxu0
    %v5409 = vadd.f32 %v5328, %v5408
    %v5410 = vpop.f32.mrf.mxu0
    %v5411 = vadd.f32 %v5330, %v5410
    %5412 = vdwg.mxu0
    %5413 = vmatprep.subr.mxu0 0.0
    %5414 = vmatpush1.msra.mxu0 0.0
    %5415 = vmatprep.subr.mxu0 0.0
    %5416 = vmatpush1.msra.mxu0 0.0
    %5417 = vmatprep.subr.mxu0 0.0
    %5418 = vmatpush1.msra.mxu0 0.0
    %5419 = vmatprep.subr.mxu0 0.0
    %5420 = vmatpush1.msra.mxu0 0.0
    %5421 = vmatprep.subr.mxu0 0.0
    %5422 = vmatpush1.msra.mxu0 0.0
    %5423 = vmatprep.subr.mxu0 0.0
    %5424 = vmatpush1.msra.mxu0 0.0
    %5425 = vmatprep.subr.mxu0 0.0
    %5426 = vmatpush1.msra.mxu0 0.0
    %5427 = vmatprep.subr.mxu0 0.0
    %5428 = vmatpush1.msra.mxu0 0.0
    %5429 = vmatprep.subr.mxu0 0.0
    %5430 = vmatpush1.msra.mxu0 0.0
    %5431 = vmatprep.subr.mxu0 0.0
    %5432 = vmatpush1.msra.mxu0 0.0
    %5433 = vmatprep.subr.mxu0 0.0
    %5434 = vmatpush1.msra.mxu0 0.0
    %5435 = vmatprep.subr.mxu0 0.0
    %5436 = vmatpush1.msra.mxu0 0.0
    %5437 = vmatprep.subr.mxu0 0.0
    %5438 = vmatpush1.msra.mxu0 0.0
    %5439 = vmatprep.subr.mxu0 0.0
    %5440 = vmatpush1.msra.mxu0 0.0
    %v5441 = vand.u32 %v4641, 4294901760
    %5442 = vmatprep.subr.mxu0 %v5441
    %v5443 = vand.u32 %v4640, 4294901760
    %5444 = vmatpush1.msra.mxu0 %v5443
    %v5445 = vand.u32 %v4637, 4294901760
    %5446 = vmatprep.subr.mxu0 %v5445
    %v5447 = vand.u32 %v4636, 4294901760
    %5448 = vmatpush1.msra.mxu0 %v5447
    %5449 = vmatprep.subr.mxu0 0.0
    %5450 = vmatpush2.msra.mxu0 0.0
    %5451 = vmatprep.subr.mxu0 0.0
    %5452 = vmatpush2.msra.mxu0 0.0
    %5453 = vmatprep.subr.mxu0 0.0
    %5454 = vmatpush2.msra.mxu0 0.0
    %5455 = vmatprep.subr.mxu0 0.0
    %5456 = vmatpush2.msra.mxu0 0.0
    %5457 = vmatprep.subr.mxu0 0.0
    %5458 = vmatpush2.msra.mxu0 0.0
    %5459 = vmatprep.subr.mxu0 0.0
    %5460 = vmatpush2.msra.mxu0 0.0
    %5461 = vmatprep.subr.mxu0 0.0
    %5462 = vmatpush2.msra.mxu0 0.0
    %5463 = vmatprep.subr.mxu0 0.0
    %5464 = vmatpush2.msra.mxu0 0.0
    %5465 = vmatprep.subr.mxu0 0.0
    %5466 = vmatpush2.msra.mxu0 0.0
    %5467 = vmatprep.subr.mxu0 0.0
    %5468 = vmatpush2.msra.mxu0 0.0
    %5469 = vmatprep.subr.mxu0 0.0
    %5470 = vmatpush2.msra.mxu0 0.0
    %5471 = vmatprep.subr.mxu0 0.0
    %5472 = vmatpush2.msra.mxu0 0.0
    %5473 = vmatprep.subr.mxu0 0.0
    %5474 = vmatpush2.msra.mxu0 0.0
    %5475 = vmatprep.subr.mxu0 0.0
    %5476 = vmatpush2.msra.mxu0 0.0
    %5477 = vmatprep.subr.mxu0 0.0
    %5478 = vmatpush2.msra.mxu0 0.0
    %5479 = vmatprep.subr.mxu0 0.0
    %5480 = vmatpush2.msra.mxu0 0.0
    %5481 = vmatprep.mubr.f32.mxu0 0.0
    %v5482 = vand.u32 %v4667, 4294901760
    %v5483 = vsub.f32 %v4667, %v5482
    %v5484 = vand.u32 %v5483, 4294901760
    %5485 = vmatmul.mubr.f32.gmra.mxu0 %v5484
    %v5486 = vpop.f32.mrf.mxu0
    %v5487 = vadd.f32 %v5409, %v5486
    %v5488 = vpop.f32.mrf.mxu0
    %v5489 = vadd.f32 %v5411, %v5488
    %5490 = vdwg.mxu0
    %5491 = vmatprep.subr.mxu0 0.0
    %5492 = vmatpush1.msra.mxu0 0.0
    %5493 = vmatprep.subr.mxu0 0.0
    %5494 = vmatpush1.msra.mxu0 0.0
    %5495 = vmatprep.subr.mxu0 0.0
    %5496 = vmatpush1.msra.mxu0 0.0
    %5497 = vmatprep.subr.mxu0 0.0
    %5498 = vmatpush1.msra.mxu0 0.0
    %5499 = vmatprep.subr.mxu0 0.0
    %5500 = vmatpush1.msra.mxu0 0.0
    %5501 = vmatprep.subr.mxu0 0.0
    %5502 = vmatpush1.msra.mxu0 0.0
    %5503 = vmatprep.subr.mxu0 0.0
    %5504 = vmatpush1.msra.mxu0 0.0
    %5505 = vmatprep.subr.mxu0 0.0
    %5506 = vmatpush1.msra.mxu0 0.0
    %5507 = vmatprep.subr.mxu0 0.0
    %5508 = vmatpush1.msra.mxu0 0.0
    %5509 = vmatprep.subr.mxu0 0.0
    %5510 = vmatpush1.msra.mxu0 0.0
    %5511 = vmatprep.subr.mxu0 0.0
    %5512 = vmatpush1.msra.mxu0 0.0
    %5513 = vmatprep.subr.mxu0 0.0
    %5514 = vmatpush1.msra.mxu0 0.0
    %5515 = vmatprep.subr.mxu0 0.0
    %5516 = vmatpush1.msra.mxu0 0.0
    %5517 = vmatprep.subr.mxu0 0.0
    %5518 = vmatpush1.msra.mxu0 0.0
    %v5519 = vand.u32 %v4641, 4294901760
    %v5520 = vsub.f32 %v4641, %v5519
    %v5521 = vand.u32 %v5520, 4294901760
    %5522 = vmatprep.subr.mxu0 %v5521
    %v5523 = vand.u32 %v4640, 4294901760
    %v5524 = vsub.f32 %v4640, %v5523
    %v5525 = vand.u32 %v5524, 4294901760
    %5526 = vmatpush1.msra.mxu0 %v5525
    %v5527 = vand.u32 %v4637, 4294901760
    %v5528 = vsub.f32 %v4637, %v5527
    %v5529 = vand.u32 %v5528, 4294901760
    %5530 = vmatprep.subr.mxu0 %v5529
    %v5531 = vand.u32 %v4636, 4294901760
    %v5532 = vsub.f32 %v4636, %v5531
    %v5533 = vand.u32 %v5532, 4294901760
    %5534 = vmatpush1.msra.mxu0 %v5533
    %5535 = vmatprep.subr.mxu0 0.0
    %5536 = vmatpush2.msra.mxu0 0.0
    %5537 = vmatprep.subr.mxu0 0.0
    %5538 = vmatpush2.msra.mxu0 0.0
    %5539 = vmatprep.subr.mxu0 0.0
    %5540 = vmatpush2.msra.mxu0 0.0
    %5541 = vmatprep.subr.mxu0 0.0
    %5542 = vmatpush2.msra.mxu0 0.0
    %5543 = vmatprep.subr.mxu0 0.0
    %5544 = vmatpush2.msra.mxu0 0.0
    %5545 = vmatprep.subr.mxu0 0.0
    %5546 = vmatpush2.msra.mxu0 0.0
    %5547 = vmatprep.subr.mxu0 0.0
    %5548 = vmatpush2.msra.mxu0 0.0
    %5549 = vmatprep.subr.mxu0 0.0
    %5550 = vmatpush2.msra.mxu0 0.0
    %5551 = vmatprep.subr.mxu0 0.0
    %5552 = vmatpush2.msra.mxu0 0.0
    %5553 = vmatprep.subr.mxu0 0.0
    %5554 = vmatpush2.msra.mxu0 0.0
    %5555 = vmatprep.subr.mxu0 0.0
    %5556 = vmatpush2.msra.mxu0 0.0
    %5557 = vmatprep.subr.mxu0 0.0
    %5558 = vmatpush2.msra.mxu0 0.0
    %5559 = vmatprep.subr.mxu0 0.0
    %5560 = vmatpush2.msra.mxu0 0.0
    %5561 = vmatprep.subr.mxu0 0.0
    %5562 = vmatpush2.msra.mxu0 0.0
    %5563 = vmatprep.subr.mxu0 0.0
    %5564 = vmatpush2.msra.mxu0 0.0
    %5565 = vmatprep.subr.mxu0 0.0
    %5566 = vmatpush2.msra.mxu0 0.0
    %5567 = vmatprep.mubr.f32.mxu0 0.0
    %v5568 = vand.u32 %v4667, 4294901760
    %5569 = vmatmul.mubr.f32.gmra.mxu0 %v5568
    %v5570 = vpop.f32.mrf.mxu0
    %v5571 = vadd.f32 %v5487, %v5570
    %v5572 = vpop.f32.mrf.mxu0
    %v5573 = vadd.f32 %v5489, %v5572
    %5574 = vdwg.mxu0
    %5575 = vmatprep.subr.mxu0 0.0
    %5576 = vmatpush1.msra.mxu0 0.0
    %5577 = vmatprep.subr.mxu0 0.0
    %5578 = vmatpush1.msra.mxu0 0.0
    %5579 = vmatprep.subr.mxu0 0.0
    %5580 = vmatpush1.msra.mxu0 0.0
    %5581 = vmatprep.subr.mxu0 0.0
    %5582 = vmatpush1.msra.mxu0 0.0
    %5583 = vmatprep.subr.mxu0 0.0
    %5584 = vmatpush1.msra.mxu0 0.0
    %5585 = vmatprep.subr.mxu0 0.0
    %5586 = vmatpush1.msra.mxu0 0.0
    %5587 = vmatprep.subr.mxu0 0.0
    %5588 = vmatpush1.msra.mxu0 0.0
    %5589 = vmatprep.subr.mxu0 0.0
    %5590 = vmatpush1.msra.mxu0 0.0
    %5591 = vmatprep.subr.mxu0 0.0
    %5592 = vmatpush1.msra.mxu0 0.0
    %5593 = vmatprep.subr.mxu0 0.0
    %5594 = vmatpush1.msra.mxu0 0.0
    %5595 = vmatprep.subr.mxu0 0.0
    %5596 = vmatpush1.msra.mxu0 0.0
    %5597 = vmatprep.subr.mxu0 0.0
    %5598 = vmatpush1.msra.mxu0 0.0
    %5599 = vmatprep.subr.mxu0 0.0
    %5600 = vmatpush1.msra.mxu0 0.0
    %5601 = vmatprep.subr.mxu0 0.0
    %5602 = vmatpush1.msra.mxu0 0.0
    %v5603 = vand.u32 %v4641, 4294901760
    %5604 = vmatprep.subr.mxu0 %v5603
    %v5605 = vand.u32 %v4640, 4294901760
    %5606 = vmatpush1.msra.mxu0 %v5605
    %v5607 = vand.u32 %v4637, 4294901760
    %5608 = vmatprep.subr.mxu0 %v5607
    %v5609 = vand.u32 %v4636, 4294901760
    %5610 = vmatpush1.msra.mxu0 %v5609
    %5611 = vmatprep.subr.mxu0 0.0
    %5612 = vmatpush2.msra.mxu0 0.0
    %5613 = vmatprep.subr.mxu0 0.0
    %5614 = vmatpush2.msra.mxu0 0.0
    %5615 = vmatprep.subr.mxu0 0.0
    %5616 = vmatpush2.msra.mxu0 0.0
    %5617 = vmatprep.subr.mxu0 0.0
    %5618 = vmatpush2.msra.mxu0 0.0
    %5619 = vmatprep.subr.mxu0 0.0
    %5620 = vmatpush2.msra.mxu0 0.0
    %5621 = vmatprep.subr.mxu0 0.0
    %5622 = vmatpush2.msra.mxu0 0.0
    %5623 = vmatprep.subr.mxu0 0.0
    %5624 = vmatpush2.msra.mxu0 0.0
    %5625 = vmatprep.subr.mxu0 0.0
    %5626 = vmatpush2.msra.mxu0 0.0
    %5627 = vmatprep.subr.mxu0 0.0
    %5628 = vmatpush2.msra.mxu0 0.0
    %5629 = vmatprep.subr.mxu0 0.0
    %5630 = vmatpush2.msra.mxu0 0.0
    %5631 = vmatprep.subr.mxu0 0.0
    %5632 = vmatpush2.msra.mxu0 0.0
    %5633 = vmatprep.subr.mxu0 0.0
    %5634 = vmatpush2.msra.mxu0 0.0
    %5635 = vmatprep.subr.mxu0 0.0
    %5636 = vmatpush2.msra.mxu0 0.0
    %5637 = vmatprep.subr.mxu0 0.0
    %5638 = vmatpush2.msra.mxu0 0.0
    %5639 = vmatprep.subr.mxu0 0.0
    %5640 = vmatpush2.msra.mxu0 0.0
    %5641 = vmatprep.subr.mxu0 0.0
    %5642 = vmatpush2.msra.mxu0 0.0
    %5643 = vmatprep.mubr.f32.mxu0 0.0
    %v5644 = vand.u32 %v4667, 4294901760
    %5645 = vmatmul.mubr.f32.gmra.mxu0 %v5644
    %v5646 = vpop.f32.mrf.mxu0
    %v5647 = vadd.f32 %v5571, %v5646
    %v5648 = vpop.f32.mrf.mxu0
    %v5649 = vadd.f32 %v5573, %v5648
    %5650 = vdwg.mxu0
    %v5655 = vcombine.low %v5156, %v5158
    %v5656 = vcombine.low %v5647, %v5649
    %v5658 = vunpack.c.l.s4 1983009808
    %v5659 = vunpack.c.0.s8 %v5658
    %v5660 = vlaneseq
    %v5661 = vshrl.u32 %v5660, 7
    %v5662 = vsub.s32 %v5659, %v5661
    %v5663 = vrot.slane %v5655, %v5662
    %v5665 = vunpack.c.l.s4 1983009808
    %v5666 = vunpack.c.0.s8 %v5665
    %v5667 = vlaneseq
    %v5668 = vshrl.u32 %v5667, 7
    %v5669 = vsub.s32 %v5666, %v5668
    %v5670 = vrot.slane %v5656, %v5669
    %v5671 = vcombine.low %v5663, %v5670
    %5673 = vst [vmem:[#allocation2] sm:$0xff] %v5671
    %v5674 = vld [vmem:[#allocation2] sm:$0x3]
    %5675 = vst.msk [vmem:[#allocation3] sm:$0x3] %vm2634, %v5674
    %v5676 = vld [vmem:[#allocation2] sm:$0x3]
    %v5679 = vunpack.c.l.s4 1983009808
    %v5680 = vunpack.c.0.s8 %v5679
    %v5681 = vlaneseq
    %v5682 = vshrl.u32 %v5681, 7
    %v5683 = vsub.s32 %v5680, %v5682
    %v5684 = vrot.slane %v5676, %v5683
    %5685 = vrot.lane.b32.xlu0 %v5684, 96
    %v5686 = vpop.permute.xlu0 %5685
    %5688 = vst.msk [vmem:[#allocation3 + $0x2] sm:$0x3] %vm2634, %v5686
    %v5689 = vld [vmem:[#allocation2] sm:$0x3]
    %v5692 = vunpack.c.l.s4 1983009808
    %v5693 = vunpack.c.0.s8 %v5692
    %v5694 = vlaneseq
    %v5695 = vshrl.u32 %v5694, 7
    %v5696 = vsub.s32 %v5693, %v5695
    %v5697 = vrot.slane %v5689, %v5696
    %5698 = vrot.lane.b32.xlu0 %v5697, 64
    %v5699 = vpop.permute.xlu0 %5698
    %5701 = vst.msk [vmem:[#allocation3 + $0x4] sm:$0x3] %vm2634, %v5699
    %v5702 = vld [vmem:[#allocation2] sm:$0x3]
    %v5705 = vunpack.c.l.s4 1983009808
    %v5706 = vunpack.c.0.s8 %v5705
    %v5707 = vlaneseq
    %v5708 = vshrl.u32 %v5707, 7
    %v5709 = vsub.s32 %v5706, %v5708
    %v5710 = vrot.slane %v5702, %v5709
    %5711 = vrot.lane.b32.xlu0 %v5710, 32
    %v5712 = vpop.permute.xlu0 %5711
    %5714 = vst.msk [vmem:[#allocation3 + $0x6] sm:$0x3] %vm2634, %v5712
    %v5715 = vld [vmem:[#allocation2 + $0x2] sm:$0x3]
    %5716 = vst.msk [vmem:[#allocation3 + $0x8] sm:$0x3] %vm2634, %v5715
    %v5717 = vld [vmem:[#allocation2 + $0x2] sm:$0x3]
    %v5720 = vunpack.c.l.s4 1983009808
    %v5721 = vunpack.c.0.s8 %v5720
    %v5722 = vlaneseq
    %v5723 = vshrl.u32 %v5722, 7
    %v5724 = vsub.s32 %v5721, %v5723
    %v5725 = vrot.slane %v5717, %v5724
    %5726 = vrot.lane.b32.xlu0 %v5725, 96
    %v5727 = vpop.permute.xlu0 %5726
    %5729 = vst.msk [vmem:[#allocation3 + $0xa] sm:$0x3] %vm2634, %v5727
    %v5730 = vld [vmem:[#allocation2 + $0x2] sm:$0x3]
    %v5733 = vunpack.c.l.s4 1983009808
    %v5734 = vunpack.c.0.s8 %v5733
    %v5735 = vlaneseq
    %v5736 = vshrl.u32 %v5735, 7
    %v5737 = vsub.s32 %v5734, %v5736
    %v5738 = vrot.slane %v5730, %v5737
    %5739 = vrot.lane.b32.xlu0 %v5738, 64
    %v5740 = vpop.permute.xlu0 %5739
    %5742 = vst.msk [vmem:[#allocation3 + $0xc] sm:$0x3] %vm2634, %v5740
    %v5743 = vld [vmem:[#allocation2 + $0x2] sm:$0x3]
    %v5746 = vunpack.c.l.s4 1983009808
    %v5747 = vunpack.c.0.s8 %v5746
    %v5748 = vlaneseq
    %v5749 = vshrl.u32 %v5748, 7
    %v5750 = vsub.s32 %v5747, %v5749
    %v5751 = vrot.slane %v5743, %v5750
    %5752 = vrot.lane.b32.xlu0 %v5751, 32
    %v5753 = vpop.permute.xlu0 %5752
    %5755 = vst.msk [vmem:[#allocation3 + $0xe] sm:$0x3] %vm2634, %v5753
    %v5756 = vld [vmem:[#allocation2 + $0x4] sm:$0x3]
    %5757 = vst.msk [vmem:[#allocation3 + $0x10] sm:$0x3] %vm2634, %v5756
    %v5758 = vld [vmem:[#allocation2 + $0x4] sm:$0x3]
    %v5761 = vunpack.c.l.s4 1983009808
    %v5762 = vunpack.c.0.s8 %v5761
    %v5763 = vlaneseq
    %v5764 = vshrl.u32 %v5763, 7
    %v5765 = vsub.s32 %v5762, %v5764
    %v5766 = vrot.slane %v5758, %v5765
    %5767 = vrot.lane.b32.xlu0 %v5766, 96
    %v5768 = vpop.permute.xlu0 %5767
    %5770 = vst.msk [vmem:[#allocation3 + $0x12] sm:$0x3] %vm2634, %v5768
    %v5771 = vld [vmem:[#allocation2 + $0x4] sm:$0x3]
    %v5774 = vunpack.c.l.s4 1983009808
    %v5775 = vunpack.c.0.s8 %v5774
    %v5776 = vlaneseq
    %v5777 = vshrl.u32 %v5776, 7
    %v5778 = vsub.s32 %v5775, %v5777
    %v5779 = vrot.slane %v5771, %v5778
    %5780 = vrot.lane.b32.xlu0 %v5779, 64
    %v5781 = vpop.permute.xlu0 %5780
    %5783 = vst.msk [vmem:[#allocation3 + $0x14] sm:$0x3] %vm2634, %v5781
    %v5784 = vld [vmem:[#allocation2 + $0x4] sm:$0x3]
    %v5787 = vunpack.c.l.s4 1983009808
    %v5788 = vunpack.c.0.s8 %v5787
    %v5789 = vlaneseq
    %v5790 = vshrl.u32 %v5789, 7
    %v5791 = vsub.s32 %v5788, %v5790
    %v5792 = vrot.slane %v5784, %v5791
    %5793 = vrot.lane.b32.xlu0 %v5792, 32
    %v5794 = vpop.permute.xlu0 %5793
    %5796 = vst.msk [vmem:[#allocation3 + $0x16] sm:$0x3] %vm2634, %v5794
    %v5797 = vld [vmem:[#allocation2 + $0x6] sm:$0x3]
    %5798 = vst.msk [vmem:[#allocation3 + $0x18] sm:$0x3] %vm2634, %v5797
    %v5799 = vld [vmem:[#allocation2 + $0x6] sm:$0x3]
    %v5802 = vunpack.c.l.s4 1983009808
    %v5803 = vunpack.c.0.s8 %v5802
    %v5804 = vlaneseq
    %v5805 = vshrl.u32 %v5804, 7
    %v5806 = vsub.s32 %v5803, %v5805
    %v5807 = vrot.slane %v5799, %v5806
    %5808 = vrot.lane.b32.xlu0 %v5807, 96
    %v5809 = vpop.permute.xlu0 %5808
    %5811 = vst.msk [vmem:[#allocation3 + $0x1a] sm:$0x3] %vm2634, %v5809
    %v5812 = vld [vmem:[#allocation2 + $0x6] sm:$0x3]
    %v5815 = vunpack.c.l.s4 1983009808
    %v5816 = vunpack.c.0.s8 %v5815
    %v5817 = vlaneseq
    %v5818 = vshrl.u32 %v5817, 7
    %v5819 = vsub.s32 %v5816, %v5818
    %v5820 = vrot.slane %v5812, %v5819
    %5821 = vrot.lane.b32.xlu0 %v5820, 64
    %v5822 = vpop.permute.xlu0 %5821
    %5824 = vst.msk [vmem:[#allocation3 + $0x1c] sm:$0x3] %vm2634, %v5822
    %v5825 = vld [vmem:[#allocation2 + $0x6] sm:$0x3]
    %v5828 = vunpack.c.l.s4 1983009808
    %v5829 = vunpack.c.0.s8 %v5828
    %v5830 = vlaneseq
    %v5831 = vshrl.u32 %v5830, 7
    %v5832 = vsub.s32 %v5829, %v5831
    %v5833 = vrot.slane %v5825, %v5832
    %5834 = vrot.lane.b32.xlu0 %v5833, 32
    %v5835 = vpop.permute.xlu0 %5834
    %5837 = vst.msk [vmem:[#allocation3 + $0x1e] sm:$0x3] %vm2634, %v5835
    %v5838 = vld [vmem:[#allocation3] sm:$0xff]
    %v5839 = vld [vmem:[#allocation3 + $0x8] sm:$0xff]
    %v5840 = vld [vmem:[#allocation3 + $0x10] sm:$0xff]
    %v5841 = vld [vmem:[#allocation3 + $0x18] sm:$0xff]
    %v5842 = vld [vmem:[%s2 + $0x40] sm:$0xff]
    %v5843 = vld [vmem:[%s2 + $0x48] sm:$0xff]
    %v5844 = vld [vmem:[%s2 + $0x50] sm:$0xff]
    %v5845 = vld [vmem:[%s2 + $0x58] sm:$0xff]
    %v5847 = vsel %vm2562, %v5838, 0
    %v5850 = vsel %vm2562, %v5839, 0
    %v5853 = vsel %vm2562, %v5840, 0
    %v5856 = vsel %vm2562, %v5841, 0
    %5858 = vmatprep.subr.mxu0 0.0
    %5859 = vmatpush1.msra.mxu0 0.0
    %5860 = vmatprep.subr.mxu0 0.0
    %5861 = vmatpush1.msra.mxu0 0.0
    %5862 = vmatprep.subr.mxu0 0.0
    %5863 = vmatpush1.msra.mxu0 0.0
    %5864 = vmatprep.subr.mxu0 0.0
    %5865 = vmatpush1.msra.mxu0 0.0
    %5866 = vmatprep.subr.mxu0 0.0
    %5867 = vmatpush1.msra.mxu0 0.0
    %5868 = vmatprep.subr.mxu0 0.0
    %5869 = vmatpush1.msra.mxu0 0.0
    %5870 = vmatprep.subr.mxu0 0.0
    %5871 = vmatpush1.msra.mxu0 0.0
    %5872 = vmatprep.subr.mxu0 0.0
    %5873 = vmatpush1.msra.mxu0 0.0
    %5874 = vmatprep.subr.mxu0 0.0
    %5875 = vmatpush1.msra.mxu0 0.0
    %5876 = vmatprep.subr.mxu0 0.0
    %5877 = vmatpush1.msra.mxu0 0.0
    %5878 = vmatprep.subr.mxu0 0.0
    %5879 = vmatpush1.msra.mxu0 0.0
    %5880 = vmatprep.subr.mxu0 0.0
    %5881 = vmatpush1.msra.mxu0 0.0
    %5882 = vmatprep.subr.mxu0 0.0
    %v5883 = vand.u32 %v5845, 4294901760
    %5884 = vmatpush1.msra.mxu0 %v5883
    %5885 = vmatprep.subr.mxu0 0.0
    %v5886 = vand.u32 %v5844, 4294901760
    %5887 = vmatpush1.msra.mxu0 %v5886
    %5888 = vmatprep.subr.mxu0 0.0
    %v5889 = vand.u32 %v5843, 4294901760
    %5890 = vmatpush1.msra.mxu0 %v5889
    %5891 = vmatprep.subr.mxu0 0.0
    %v5892 = vand.u32 %v5842, 4294901760
    %5893 = vmatpush1.msra.mxu0 %v5892
    %5894 = vmatprep.subr.mxu0 0.0
    %5895 = vmatpush2.msra.mxu0 0.0
    %5896 = vmatprep.subr.mxu0 0.0
    %5897 = vmatpush2.msra.mxu0 0.0
    %5898 = vmatprep.subr.mxu0 0.0
    %5899 = vmatpush2.msra.mxu0 0.0
    %5900 = vmatprep.subr.mxu0 0.0
    %5901 = vmatpush2.msra.mxu0 0.0
    %5902 = vmatprep.subr.mxu0 0.0
    %5903 = vmatpush2.msra.mxu0 0.0
    %5904 = vmatprep.subr.mxu0 0.0
    %5905 = vmatpush2.msra.mxu0 0.0
    %5906 = vmatprep.subr.mxu0 0.0
    %5907 = vmatpush2.msra.mxu0 0.0
    %5908 = vmatprep.subr.mxu0 0.0
    %5909 = vmatpush2.msra.mxu0 0.0
    %5910 = vmatprep.subr.mxu0 0.0
    %5911 = vmatpush2.msra.mxu0 0.0
    %5912 = vmatprep.subr.mxu0 0.0
    %5913 = vmatpush2.msra.mxu0 0.0
    %5914 = vmatprep.subr.mxu0 0.0
    %5915 = vmatpush2.msra.mxu0 0.0
    %5916 = vmatprep.subr.mxu0 0.0
    %5917 = vmatpush2.msra.mxu0 0.0
    %5918 = vmatprep.subr.mxu0 0.0
    %5919 = vmatpush2.msra.mxu0 0.0
    %5920 = vmatprep.subr.mxu0 0.0
    %5921 = vmatpush2.msra.mxu0 0.0
    %5922 = vmatprep.subr.mxu0 0.0
    %5923 = vmatpush2.msra.mxu0 0.0
    %5924 = vmatprep.subr.mxu0 0.0
    %5925 = vmatpush2.msra.mxu0 0.0
    %5926 = vmatprep.mubr.f32.mxu0 0.0
    %v5927 = vand.u32 %v5847, 4294901760
    %v5928 = vsub.f32 %v5847, %v5927
    %v5929 = vand.u32 %v5928, 4294901760
    %v5930 = vsub.f32 %v5928, %v5929
    %v5931 = vand.u32 %v5930, 4294901760
    %5932 = vmatmul.mubr.f32.gmra.mxu0 %v5931
    %v5933 = vpop.f32.mrf.mxu0
    %v5934 = vadd.f32 0.0, %v5933
    %v5935 = vpop.f32.mrf.mxu0
    %5936 = vmatprep.mubr.f32.mxu0 0.0
    %v5937 = vand.u32 %v5850, 4294901760
    %v5938 = vsub.f32 %v5850, %v5937
    %v5939 = vand.u32 %v5938, 4294901760
    %v5940 = vsub.f32 %v5938, %v5939
    %v5941 = vand.u32 %v5940, 4294901760
    %5942 = vmatmul.mubr.f32.gmra.mxu0 %v5941
    %v5943 = vpop.f32.mrf.mxu0
    %v5944 = vadd.f32 0.0, %v5943
    %v5945 = vpop.f32.mrf.mxu0
    %5946 = vmatprep.mubr.f32.mxu0 0.0
    %v5947 = vand.u32 %v5853, 4294901760
    %v5948 = vsub.f32 %v5853, %v5947
    %v5949 = vand.u32 %v5948, 4294901760
    %v5950 = vsub.f32 %v5948, %v5949
    %v5951 = vand.u32 %v5950, 4294901760
    %5952 = vmatmul.mubr.f32.gmra.mxu0 %v5951
    %v5953 = vpop.f32.mrf.mxu0
    %v5954 = vadd.f32 0.0, %v5953
    %v5955 = vpop.f32.mrf.mxu0
    %5956 = vmatprep.mubr.f32.mxu0 0.0
    %v5957 = vand.u32 %v5856, 4294901760
    %v5958 = vsub.f32 %v5856, %v5957
    %v5959 = vand.u32 %v5958, 4294901760
    %v5960 = vsub.f32 %v5958, %v5959
    %v5961 = vand.u32 %v5960, 4294901760
    %5962 = vmatmul.mubr.f32.gmra.mxu0 %v5961
    %v5963 = vpop.f32.mrf.mxu0
    %v5964 = vadd.f32 0.0, %v5963
    %v5965 = vpop.f32.mrf.mxu0
    %5966 = vdwg.mxu0
    %5967 = vmatprep.subr.mxu0 0.0
    %5968 = vmatpush1.msra.mxu0 0.0
    %5969 = vmatprep.subr.mxu0 0.0
    %5970 = vmatpush1.msra.mxu0 0.0
    %5971 = vmatprep.subr.mxu0 0.0
    %5972 = vmatpush1.msra.mxu0 0.0
    %5973 = vmatprep.subr.mxu0 0.0
    %5974 = vmatpush1.msra.mxu0 0.0
    %5975 = vmatprep.subr.mxu0 0.0
    %5976 = vmatpush1.msra.mxu0 0.0
    %5977 = vmatprep.subr.mxu0 0.0
    %5978 = vmatpush1.msra.mxu0 0.0
    %5979 = vmatprep.subr.mxu0 0.0
    %5980 = vmatpush1.msra.mxu0 0.0
    %5981 = vmatprep.subr.mxu0 0.0
    %5982 = vmatpush1.msra.mxu0 0.0
    %5983 = vmatprep.subr.mxu0 0.0
    %5984 = vmatpush1.msra.mxu0 0.0
    %5985 = vmatprep.subr.mxu0 0.0
    %5986 = vmatpush1.msra.mxu0 0.0
    %5987 = vmatprep.subr.mxu0 0.0
    %5988 = vmatpush1.msra.mxu0 0.0
    %5989 = vmatprep.subr.mxu0 0.0
    %5990 = vmatpush1.msra.mxu0 0.0
    %5991 = vmatprep.subr.mxu0 0.0
    %v5992 = vand.u32 %v5845, 4294901760
    %v5993 = vsub.f32 %v5845, %v5992
    %v5994 = vand.u32 %v5993, 4294901760
    %v5995 = vsub.f32 %v5993, %v5994
    %v5996 = vand.u32 %v5995, 4294901760
    %5997 = vmatpush1.msra.mxu0 %v5996
    %5998 = vmatprep.subr.mxu0 0.0
    %v5999 = vand.u32 %v5844, 4294901760
    %v6000 = vsub.f32 %v5844, %v5999
    %v6001 = vand.u32 %v6000, 4294901760
    %v6002 = vsub.f32 %v6000, %v6001
    %v6003 = vand.u32 %v6002, 4294901760
    %6004 = vmatpush1.msra.mxu0 %v6003
    %6005 = vmatprep.subr.mxu0 0.0
    %v6006 = vand.u32 %v5843, 4294901760
    %v6007 = vsub.f32 %v5843, %v6006
    %v6008 = vand.u32 %v6007, 4294901760
    %v6009 = vsub.f32 %v6007, %v6008
    %v6010 = vand.u32 %v6009, 4294901760
    %6011 = vmatpush1.msra.mxu0 %v6010
    %6012 = vmatprep.subr.mxu0 0.0
    %v6013 = vand.u32 %v5842, 4294901760
    %v6014 = vsub.f32 %v5842, %v6013
    %v6015 = vand.u32 %v6014, 4294901760
    %v6016 = vsub.f32 %v6014, %v6015
    %v6017 = vand.u32 %v6016, 4294901760
    %6018 = vmatpush1.msra.mxu0 %v6017
    %6019 = vmatprep.subr.mxu0 0.0
    %6020 = vmatpush2.msra.mxu0 0.0
    %6021 = vmatprep.subr.mxu0 0.0
    %6022 = vmatpush2.msra.mxu0 0.0
    %6023 = vmatprep.subr.mxu0 0.0
    %6024 = vmatpush2.msra.mxu0 0.0
    %6025 = vmatprep.subr.mxu0 0.0
    %6026 = vmatpush2.msra.mxu0 0.0
    %6027 = vmatprep.subr.mxu0 0.0
    %6028 = vmatpush2.msra.mxu0 0.0
    %6029 = vmatprep.subr.mxu0 0.0
    %6030 = vmatpush2.msra.mxu0 0.0
    %6031 = vmatprep.subr.mxu0 0.0
    %6032 = vmatpush2.msra.mxu0 0.0
    %6033 = vmatprep.subr.mxu0 0.0
    %6034 = vmatpush2.msra.mxu0 0.0
    %6035 = vmatprep.subr.mxu0 0.0
    %6036 = vmatpush2.msra.mxu0 0.0
    %6037 = vmatprep.subr.mxu0 0.0
    %6038 = vmatpush2.msra.mxu0 0.0
    %6039 = vmatprep.subr.mxu0 0.0
    %6040 = vmatpush2.msra.mxu0 0.0
    %6041 = vmatprep.subr.mxu0 0.0
    %6042 = vmatpush2.msra.mxu0 0.0
    %6043 = vmatprep.subr.mxu0 0.0
    %6044 = vmatpush2.msra.mxu0 0.0
    %6045 = vmatprep.subr.mxu0 0.0
    %6046 = vmatpush2.msra.mxu0 0.0
    %6047 = vmatprep.subr.mxu0 0.0
    %6048 = vmatpush2.msra.mxu0 0.0
    %6049 = vmatprep.subr.mxu0 0.0
    %6050 = vmatpush2.msra.mxu0 0.0
    %6051 = vmatprep.mubr.f32.mxu0 0.0
    %v6052 = vand.u32 %v5847, 4294901760
    %6053 = vmatmul.mubr.f32.gmra.mxu0 %v6052
    %v6054 = vpop.f32.mrf.mxu0
    %v6055 = vadd.f32 %v5934, %v6054
    %v6056 = vpop.f32.mrf.mxu0
    %6057 = vmatprep.mubr.f32.mxu0 0.0
    %v6058 = vand.u32 %v5850, 4294901760
    %6059 = vmatmul.mubr.f32.gmra.mxu0 %v6058
    %v6060 = vpop.f32.mrf.mxu0
    %v6061 = vadd.f32 %v5944, %v6060
    %v6062 = vpop.f32.mrf.mxu0
    %6063 = vmatprep.mubr.f32.mxu0 0.0
    %v6064 = vand.u32 %v5853, 4294901760
    %6065 = vmatmul.mubr.f32.gmra.mxu0 %v6064
    %v6066 = vpop.f32.mrf.mxu0
    %v6067 = vadd.f32 %v5954, %v6066
    %v6068 = vpop.f32.mrf.mxu0
    %6069 = vmatprep.mubr.f32.mxu0 0.0
    %v6070 = vand.u32 %v5856, 4294901760
    %6071 = vmatmul.mubr.f32.gmra.mxu0 %v6070
    %v6072 = vpop.f32.mrf.mxu0
    %v6073 = vadd.f32 %v5964, %v6072
    %v6074 = vpop.f32.mrf.mxu0
    %6075 = vdwg.mxu0
    %6076 = vmatprep.subr.mxu0 0.0
    %6077 = vmatpush1.msra.mxu0 0.0
    %6078 = vmatprep.subr.mxu0 0.0
    %6079 = vmatpush1.msra.mxu0 0.0
    %6080 = vmatprep.subr.mxu0 0.0
    %6081 = vmatpush1.msra.mxu0 0.0
    %6082 = vmatprep.subr.mxu0 0.0
    %6083 = vmatpush1.msra.mxu0 0.0
    %6084 = vmatprep.subr.mxu0 0.0
    %6085 = vmatpush1.msra.mxu0 0.0
    %6086 = vmatprep.subr.mxu0 0.0
    %6087 = vmatpush1.msra.mxu0 0.0
    %6088 = vmatprep.subr.mxu0 0.0
    %6089 = vmatpush1.msra.mxu0 0.0
    %6090 = vmatprep.subr.mxu0 0.0
    %6091 = vmatpush1.msra.mxu0 0.0
    %6092 = vmatprep.subr.mxu0 0.0
    %6093 = vmatpush1.msra.mxu0 0.0
    %6094 = vmatprep.subr.mxu0 0.0
    %6095 = vmatpush1.msra.mxu0 0.0
    %6096 = vmatprep.subr.mxu0 0.0
    %6097 = vmatpush1.msra.mxu0 0.0
    %6098 = vmatprep.subr.mxu0 0.0
    %6099 = vmatpush1.msra.mxu0 0.0
    %6100 = vmatprep.subr.mxu0 0.0
    %v6101 = vand.u32 %v5845, 4294901760
    %v6102 = vsub.f32 %v5845, %v6101
    %6103 = vmatpush1.msra.mxu0 %v6102
    %6104 = vmatprep.subr.mxu0 0.0
    %v6105 = vand.u32 %v5844, 4294901760
    %v6106 = vsub.f32 %v5844, %v6105
    %6107 = vmatpush1.msra.mxu0 %v6106
    %6108 = vmatprep.subr.mxu0 0.0
    %v6109 = vand.u32 %v5843, 4294901760
    %v6110 = vsub.f32 %v5843, %v6109
    %6111 = vmatpush1.msra.mxu0 %v6110
    %6112 = vmatprep.subr.mxu0 0.0
    %v6113 = vand.u32 %v5842, 4294901760
    %v6114 = vsub.f32 %v5842, %v6113
    %6115 = vmatpush1.msra.mxu0 %v6114
    %6116 = vmatprep.subr.mxu0 0.0
    %6117 = vmatpush2.msra.mxu0 0.0
    %6118 = vmatprep.subr.mxu0 0.0
    %6119 = vmatpush2.msra.mxu0 0.0
    %6120 = vmatprep.subr.mxu0 0.0
    %6121 = vmatpush2.msra.mxu0 0.0
    %6122 = vmatprep.subr.mxu0 0.0
    %6123 = vmatpush2.msra.mxu0 0.0
    %6124 = vmatprep.subr.mxu0 0.0
    %6125 = vmatpush2.msra.mxu0 0.0
    %6126 = vmatprep.subr.mxu0 0.0
    %6127 = vmatpush2.msra.mxu0 0.0
    %6128 = vmatprep.subr.mxu0 0.0
    %6129 = vmatpush2.msra.mxu0 0.0
    %6130 = vmatprep.subr.mxu0 0.0
    %6131 = vmatpush2.msra.mxu0 0.0
    %6132 = vmatprep.subr.mxu0 0.0
    %6133 = vmatpush2.msra.mxu0 0.0
    %6134 = vmatprep.subr.mxu0 0.0
    %6135 = vmatpush2.msra.mxu0 0.0
    %6136 = vmatprep.subr.mxu0 0.0
    %6137 = vmatpush2.msra.mxu0 0.0
    %6138 = vmatprep.subr.mxu0 0.0
    %6139 = vmatpush2.msra.mxu0 0.0
    %6140 = vmatprep.subr.mxu0 0.0
    %6141 = vmatpush2.msra.mxu0 0.0
    %6142 = vmatprep.subr.mxu0 0.0
    %6143 = vmatpush2.msra.mxu0 0.0
    %6144 = vmatprep.subr.mxu0 0.0
    %6145 = vmatpush2.msra.mxu0 0.0
    %6146 = vmatprep.subr.mxu0 0.0
    %6147 = vmatpush2.msra.mxu0 0.0
    %6148 = vmatprep.mubr.f32.mxu0 0.0
    %v6149 = vand.u32 %v5847, 4294901760
    %v6150 = vsub.f32 %v5847, %v6149
    %6151 = vmatmul.mubr.f32.gmra.mxu0 %v6150
    %v6152 = vpop.f32.mrf.mxu0
    %v6153 = vadd.f32 %v6055, %v6152
    %v6154 = vpop.f32.mrf.mxu0
    %6155 = vmatprep.mubr.f32.mxu0 0.0
    %v6156 = vand.u32 %v5850, 4294901760
    %v6157 = vsub.f32 %v5850, %v6156
    %6158 = vmatmul.mubr.f32.gmra.mxu0 %v6157
    %v6159 = vpop.f32.mrf.mxu0
    %v6160 = vadd.f32 %v6061, %v6159
    %v6161 = vpop.f32.mrf.mxu0
    %6162 = vmatprep.mubr.f32.mxu0 0.0
    %v6163 = vand.u32 %v5853, 4294901760
    %v6164 = vsub.f32 %v5853, %v6163
    %6165 = vmatmul.mubr.f32.gmra.mxu0 %v6164
    %v6166 = vpop.f32.mrf.mxu0
    %v6167 = vadd.f32 %v6067, %v6166
    %v6168 = vpop.f32.mrf.mxu0
    %6169 = vmatprep.mubr.f32.mxu0 0.0
    %v6170 = vand.u32 %v5856, 4294901760
    %v6171 = vsub.f32 %v5856, %v6170
    %6172 = vmatmul.mubr.f32.gmra.mxu0 %v6171
    %v6173 = vpop.f32.mrf.mxu0
    %v6174 = vadd.f32 %v6073, %v6173
    %v6175 = vpop.f32.mrf.mxu0
    %6176 = vdwg.mxu0
    %6177 = vmatprep.subr.mxu0 0.0
    %6178 = vmatpush1.msra.mxu0 0.0
    %6179 = vmatprep.subr.mxu0 0.0
    %6180 = vmatpush1.msra.mxu0 0.0
    %6181 = vmatprep.subr.mxu0 0.0
    %6182 = vmatpush1.msra.mxu0 0.0
    %6183 = vmatprep.subr.mxu0 0.0
    %6184 = vmatpush1.msra.mxu0 0.0
    %6185 = vmatprep.subr.mxu0 0.0
    %6186 = vmatpush1.msra.mxu0 0.0
    %6187 = vmatprep.subr.mxu0 0.0
    %6188 = vmatpush1.msra.mxu0 0.0
    %6189 = vmatprep.subr.mxu0 0.0
    %6190 = vmatpush1.msra.mxu0 0.0
    %6191 = vmatprep.subr.mxu0 0.0
    %6192 = vmatpush1.msra.mxu0 0.0
    %6193 = vmatprep.subr.mxu0 0.0
    %6194 = vmatpush1.msra.mxu0 0.0
    %6195 = vmatprep.subr.mxu0 0.0
    %6196 = vmatpush1.msra.mxu0 0.0
    %6197 = vmatprep.subr.mxu0 0.0
    %6198 = vmatpush1.msra.mxu0 0.0
    %6199 = vmatprep.subr.mxu0 0.0
    %6200 = vmatpush1.msra.mxu0 0.0
    %6201 = vmatprep.subr.mxu0 0.0
    %v6202 = vand.u32 %v5845, 4294901760
    %6203 = vmatpush1.msra.mxu0 %v6202
    %6204 = vmatprep.subr.mxu0 0.0
    %v6205 = vand.u32 %v5844, 4294901760
    %6206 = vmatpush1.msra.mxu0 %v6205
    %6207 = vmatprep.subr.mxu0 0.0
    %v6208 = vand.u32 %v5843, 4294901760
    %6209 = vmatpush1.msra.mxu0 %v6208
    %6210 = vmatprep.subr.mxu0 0.0
    %v6211 = vand.u32 %v5842, 4294901760
    %6212 = vmatpush1.msra.mxu0 %v6211
    %6213 = vmatprep.subr.mxu0 0.0
    %6214 = vmatpush2.msra.mxu0 0.0
    %6215 = vmatprep.subr.mxu0 0.0
    %6216 = vmatpush2.msra.mxu0 0.0
    %6217 = vmatprep.subr.mxu0 0.0
    %6218 = vmatpush2.msra.mxu0 0.0
    %6219 = vmatprep.subr.mxu0 0.0
    %6220 = vmatpush2.msra.mxu0 0.0
    %6221 = vmatprep.subr.mxu0 0.0
    %6222 = vmatpush2.msra.mxu0 0.0
    %6223 = vmatprep.subr.mxu0 0.0
    %6224 = vmatpush2.msra.mxu0 0.0
    %6225 = vmatprep.subr.mxu0 0.0
    %6226 = vmatpush2.msra.mxu0 0.0
    %6227 = vmatprep.subr.mxu0 0.0
    %6228 = vmatpush2.msra.mxu0 0.0
    %6229 = vmatprep.subr.mxu0 0.0
    %6230 = vmatpush2.msra.mxu0 0.0
    %6231 = vmatprep.subr.mxu0 0.0
    %6232 = vmatpush2.msra.mxu0 0.0
    %6233 = vmatprep.subr.mxu0 0.0
    %6234 = vmatpush2.msra.mxu0 0.0
    %6235 = vmatprep.subr.mxu0 0.0
    %6236 = vmatpush2.msra.mxu0 0.0
    %6237 = vmatprep.subr.mxu0 0.0
    %6238 = vmatpush2.msra.mxu0 0.0
    %6239 = vmatprep.subr.mxu0 0.0
    %6240 = vmatpush2.msra.mxu0 0.0
    %6241 = vmatprep.subr.mxu0 0.0
    %6242 = vmatpush2.msra.mxu0 0.0
    %6243 = vmatprep.subr.mxu0 0.0
    %6244 = vmatpush2.msra.mxu0 0.0
    %6245 = vmatprep.mubr.f32.mxu0 0.0
    %v6246 = vand.u32 %v5847, 4294901760
    %v6247 = vsub.f32 %v5847, %v6246
    %v6248 = vand.u32 %v6247, 4294901760
    %6249 = vmatmul.mubr.f32.gmra.mxu0 %v6248
    %v6250 = vpop.f32.mrf.mxu0
    %v6251 = vadd.f32 %v6153, %v6250
    %v6252 = vpop.f32.mrf.mxu0
    %6253 = vmatprep.mubr.f32.mxu0 0.0
    %v6254 = vand.u32 %v5850, 4294901760
    %v6255 = vsub.f32 %v5850, %v6254
    %v6256 = vand.u32 %v6255, 4294901760
    %6257 = vmatmul.mubr.f32.gmra.mxu0 %v6256
    %v6258 = vpop.f32.mrf.mxu0
    %v6259 = vadd.f32 %v6160, %v6258
    %v6260 = vpop.f32.mrf.mxu0
    %6261 = vmatprep.mubr.f32.mxu0 0.0
    %v6262 = vand.u32 %v5853, 4294901760
    %v6263 = vsub.f32 %v5853, %v6262
    %v6264 = vand.u32 %v6263, 4294901760
    %6265 = vmatmul.mubr.f32.gmra.mxu0 %v6264
    %v6266 = vpop.f32.mrf.mxu0
    %v6267 = vadd.f32 %v6167, %v6266
    %v6268 = vpop.f32.mrf.mxu0
    %6269 = vmatprep.mubr.f32.mxu0 0.0
    %v6270 = vand.u32 %v5856, 4294901760
    %v6271 = vsub.f32 %v5856, %v6270
    %v6272 = vand.u32 %v6271, 4294901760
    %6273 = vmatmul.mubr.f32.gmra.mxu0 %v6272
    %v6274 = vpop.f32.mrf.mxu0
    %v6275 = vadd.f32 %v6174, %v6274
    %v6276 = vpop.f32.mrf.mxu0
    %6277 = vdwg.mxu0
    %6278 = vmatprep.subr.mxu0 0.0
    %6279 = vmatpush1.msra.mxu0 0.0
    %6280 = vmatprep.subr.mxu0 0.0
    %6281 = vmatpush1.msra.mxu0 0.0
    %6282 = vmatprep.subr.mxu0 0.0
    %6283 = vmatpush1.msra.mxu0 0.0
    %6284 = vmatprep.subr.mxu0 0.0
    %6285 = vmatpush1.msra.mxu0 0.0
    %6286 = vmatprep.subr.mxu0 0.0
    %6287 = vmatpush1.msra.mxu0 0.0
    %6288 = vmatprep.subr.mxu0 0.0
    %6289 = vmatpush1.msra.mxu0 0.0
    %6290 = vmatprep.subr.mxu0 0.0
    %6291 = vmatpush1.msra.mxu0 0.0
    %6292 = vmatprep.subr.mxu0 0.0
    %6293 = vmatpush1.msra.mxu0 0.0
    %6294 = vmatprep.subr.mxu0 0.0
    %6295 = vmatpush1.msra.mxu0 0.0
    %6296 = vmatprep.subr.mxu0 0.0
    %6297 = vmatpush1.msra.mxu0 0.0
    %6298 = vmatprep.subr.mxu0 0.0
    %6299 = vmatpush1.msra.mxu0 0.0
    %6300 = vmatprep.subr.mxu0 0.0
    %6301 = vmatpush1.msra.mxu0 0.0
    %6302 = vmatprep.subr.mxu0 0.0
    %v6303 = vand.u32 %v5845, 4294901760
    %v6304 = vsub.f32 %v5845, %v6303
    %v6305 = vand.u32 %v6304, 4294901760
    %6306 = vmatpush1.msra.mxu0 %v6305
    %6307 = vmatprep.subr.mxu0 0.0
    %v6308 = vand.u32 %v5844, 4294901760
    %v6309 = vsub.f32 %v5844, %v6308
    %v6310 = vand.u32 %v6309, 4294901760
    %6311 = vmatpush1.msra.mxu0 %v6310
    %6312 = vmatprep.subr.mxu0 0.0
    %v6313 = vand.u32 %v5843, 4294901760
    %v6314 = vsub.f32 %v5843, %v6313
    %v6315 = vand.u32 %v6314, 4294901760
    %6316 = vmatpush1.msra.mxu0 %v6315
    %6317 = vmatprep.subr.mxu0 0.0
    %v6318 = vand.u32 %v5842, 4294901760
    %v6319 = vsub.f32 %v5842, %v6318
    %v6320 = vand.u32 %v6319, 4294901760
    %6321 = vmatpush1.msra.mxu0 %v6320
    %6322 = vmatprep.subr.mxu0 0.0
    %6323 = vmatpush2.msra.mxu0 0.0
    %6324 = vmatprep.subr.mxu0 0.0
    %6325 = vmatpush2.msra.mxu0 0.0
    %6326 = vmatprep.subr.mxu0 0.0
    %6327 = vmatpush2.msra.mxu0 0.0
    %6328 = vmatprep.subr.mxu0 0.0
    %6329 = vmatpush2.msra.mxu0 0.0
    %6330 = vmatprep.subr.mxu0 0.0
    %6331 = vmatpush2.msra.mxu0 0.0
    %6332 = vmatprep.subr.mxu0 0.0
    %6333 = vmatpush2.msra.mxu0 0.0
    %6334 = vmatprep.subr.mxu0 0.0
    %6335 = vmatpush2.msra.mxu0 0.0
    %6336 = vmatprep.subr.mxu0 0.0
    %6337 = vmatpush2.msra.mxu0 0.0
    %6338 = vmatprep.subr.mxu0 0.0
    %6339 = vmatpush2.msra.mxu0 0.0
    %6340 = vmatprep.subr.mxu0 0.0
    %6341 = vmatpush2.msra.mxu0 0.0
    %6342 = vmatprep.subr.mxu0 0.0
    %6343 = vmatpush2.msra.mxu0 0.0
    %6344 = vmatprep.subr.mxu0 0.0
    %6345 = vmatpush2.msra.mxu0 0.0
    %6346 = vmatprep.subr.mxu0 0.0
    %6347 = vmatpush2.msra.mxu0 0.0
    %6348 = vmatprep.subr.mxu0 0.0
    %6349 = vmatpush2.msra.mxu0 0.0
    %6350 = vmatprep.subr.mxu0 0.0
    %6351 = vmatpush2.msra.mxu0 0.0
    %6352 = vmatprep.subr.mxu0 0.0
    %6353 = vmatpush2.msra.mxu0 0.0
    %6354 = vmatprep.mubr.f32.mxu0 0.0
    %v6355 = vand.u32 %v5847, 4294901760
    %6356 = vmatmul.mubr.f32.gmra.mxu0 %v6355
    %v6357 = vpop.f32.mrf.mxu0
    %v6358 = vadd.f32 %v6251, %v6357
    %v6359 = vpop.f32.mrf.mxu0
    %6360 = vmatprep.mubr.f32.mxu0 0.0
    %v6361 = vand.u32 %v5850, 4294901760
    %6362 = vmatmul.mubr.f32.gmra.mxu0 %v6361
    %v6363 = vpop.f32.mrf.mxu0
    %v6364 = vadd.f32 %v6259, %v6363
    %v6365 = vpop.f32.mrf.mxu0
    %6366 = vmatprep.mubr.f32.mxu0 0.0
    %v6367 = vand.u32 %v5853, 4294901760
    %6368 = vmatmul.mubr.f32.gmra.mxu0 %v6367
    %v6369 = vpop.f32.mrf.mxu0
    %v6370 = vadd.f32 %v6267, %v6369
    %v6371 = vpop.f32.mrf.mxu0
    %6372 = vmatprep.mubr.f32.mxu0 0.0
    %v6373 = vand.u32 %v5856, 4294901760
    %6374 = vmatmul.mubr.f32.gmra.mxu0 %v6373
    %v6375 = vpop.f32.mrf.mxu0
    %v6376 = vadd.f32 %v6275, %v6375
    %v6377 = vpop.f32.mrf.mxu0
    %6378 = vdwg.mxu0
    %6379 = vmatprep.subr.mxu0 0.0
    %6380 = vmatpush1.msra.mxu0 0.0
    %6381 = vmatprep.subr.mxu0 0.0
    %6382 = vmatpush1.msra.mxu0 0.0
    %6383 = vmatprep.subr.mxu0 0.0
    %6384 = vmatpush1.msra.mxu0 0.0
    %6385 = vmatprep.subr.mxu0 0.0
    %6386 = vmatpush1.msra.mxu0 0.0
    %6387 = vmatprep.subr.mxu0 0.0
    %6388 = vmatpush1.msra.mxu0 0.0
    %6389 = vmatprep.subr.mxu0 0.0
    %6390 = vmatpush1.msra.mxu0 0.0
    %6391 = vmatprep.subr.mxu0 0.0
    %6392 = vmatpush1.msra.mxu0 0.0
    %6393 = vmatprep.subr.mxu0 0.0
    %6394 = vmatpush1.msra.mxu0 0.0
    %6395 = vmatprep.subr.mxu0 0.0
    %6396 = vmatpush1.msra.mxu0 0.0
    %6397 = vmatprep.subr.mxu0 0.0
    %6398 = vmatpush1.msra.mxu0 0.0
    %6399 = vmatprep.subr.mxu0 0.0
    %6400 = vmatpush1.msra.mxu0 0.0
    %6401 = vmatprep.subr.mxu0 0.0
    %6402 = vmatpush1.msra.mxu0 0.0
    %6403 = vmatprep.subr.mxu0 0.0
    %v6404 = vand.u32 %v5845, 4294901760
    %6405 = vmatpush1.msra.mxu0 %v6404
    %6406 = vmatprep.subr.mxu0 0.0
    %v6407 = vand.u32 %v5844, 4294901760
    %6408 = vmatpush1.msra.mxu0 %v6407
    %6409 = vmatprep.subr.mxu0 0.0
    %v6410 = vand.u32 %v5843, 4294901760
    %6411 = vmatpush1.msra.mxu0 %v6410
    %6412 = vmatprep.subr.mxu0 0.0
    %v6413 = vand.u32 %v5842, 4294901760
    %6414 = vmatpush1.msra.mxu0 %v6413
    %6415 = vmatprep.subr.mxu0 0.0
    %6416 = vmatpush2.msra.mxu0 0.0
    %6417 = vmatprep.subr.mxu0 0.0
    %6418 = vmatpush2.msra.mxu0 0.0
    %6419 = vmatprep.subr.mxu0 0.0
    %6420 = vmatpush2.msra.mxu0 0.0
    %6421 = vmatprep.subr.mxu0 0.0
    %6422 = vmatpush2.msra.mxu0 0.0
    %6423 = vmatprep.subr.mxu0 0.0
    %6424 = vmatpush2.msra.mxu0 0.0
    %6425 = vmatprep.subr.mxu0 0.0
    %6426 = vmatpush2.msra.mxu0 0.0
    %6427 = vmatprep.subr.mxu0 0.0
    %6428 = vmatpush2.msra.mxu0 0.0
    %6429 = vmatprep.subr.mxu0 0.0
    %6430 = vmatpush2.msra.mxu0 0.0
    %6431 = vmatprep.subr.mxu0 0.0
    %6432 = vmatpush2.msra.mxu0 0.0
    %6433 = vmatprep.subr.mxu0 0.0
    %6434 = vmatpush2.msra.mxu0 0.0
    %6435 = vmatprep.subr.mxu0 0.0
    %6436 = vmatpush2.msra.mxu0 0.0
    %6437 = vmatprep.subr.mxu0 0.0
    %6438 = vmatpush2.msra.mxu0 0.0
    %6439 = vmatprep.subr.mxu0 0.0
    %6440 = vmatpush2.msra.mxu0 0.0
    %6441 = vmatprep.subr.mxu0 0.0
    %6442 = vmatpush2.msra.mxu0 0.0
    %6443 = vmatprep.subr.mxu0 0.0
    %6444 = vmatpush2.msra.mxu0 0.0
    %6445 = vmatprep.subr.mxu0 0.0
    %6446 = vmatpush2.msra.mxu0 0.0
    %6447 = vmatprep.mubr.f32.mxu0 0.0
    %v6448 = vand.u32 %v5847, 4294901760
    %6449 = vmatmul.mubr.f32.gmra.mxu0 %v6448
    %v6450 = vpop.f32.mrf.mxu0
    %v6451 = vadd.f32 %v6358, %v6450
    %v6452 = vpop.f32.mrf.mxu0
    %6453 = vmatprep.mubr.f32.mxu0 0.0
    %v6454 = vand.u32 %v5850, 4294901760
    %6455 = vmatmul.mubr.f32.gmra.mxu0 %v6454
    %v6456 = vpop.f32.mrf.mxu0
    %v6457 = vadd.f32 %v6364, %v6456
    %v6458 = vpop.f32.mrf.mxu0
    %6459 = vmatprep.mubr.f32.mxu0 0.0
    %v6460 = vand.u32 %v5853, 4294901760
    %6461 = vmatmul.mubr.f32.gmra.mxu0 %v6460
    %v6462 = vpop.f32.mrf.mxu0
    %v6463 = vadd.f32 %v6370, %v6462
    %v6464 = vpop.f32.mrf.mxu0
    %6465 = vmatprep.mubr.f32.mxu0 0.0
    %v6466 = vand.u32 %v5856, 4294901760
    %6467 = vmatmul.mubr.f32.gmra.mxu0 %v6466
    %v6468 = vpop.f32.mrf.mxu0
    %v6469 = vadd.f32 %v6376, %v6468
    %v6470 = vpop.f32.mrf.mxu0
    %6471 = vdwg.mxu0
    %v6472 = vld [vmem:[%s2 + $0xa0] sm:$0xff]
    %v6473 = vld [vmem:[%s2 + $0xa8] sm:$0xff]
    %v6474 = vld [vmem:[%s2 + $0xb0] sm:$0xff]
    %v6475 = vld [vmem:[%s2 + $0xb8] sm:$0xff]
    %v6476 = vld [vmem:[%s2 + $0xc0] sm:$0xff]
    %v6477 = vld [vmem:[%s2 + $0xc8] sm:$0xff]
    %v6478 = vld [vmem:[%s2 + $0xd0] sm:$0xff]
    %v6479 = vld [vmem:[%s2 + $0xd8] sm:$0xff]
    %v6480 = vsel %vm37, %v6451, 0.0
    %v6481 = vsel %vm37, %v6457, 0.0
    %v6482 = vadd.f32 %v6480, %v6481
    %v6483 = vsel %vm37, %v6463, 0.0
    %v6484 = vadd.f32 %v6482, %v6483
    %v6485 = vsel %vm37, %v6469, 0.0
    %v6486 = vadd.f32 %v6484, %v6485
    %v6487 = vrot.slane %v6486, 4
    %v6488 = vadd.f32 %v6486, %v6487
    %v6489 = vrot.slane %v6488, 2
    %v6490 = vadd.f32 %v6488, %v6489
    %v6491 = vrot.slane %v6490, 1
    %v6492 = vadd.f32 %v6490, %v6491
    %v6494 = vsel %vm37, %v6492, 0
    %6496 = vmatprep.subr.mxu0 0.0
    %6497 = vmatpush1.msra.mxu0 0.0
    %6498 = vmatprep.subr.mxu0 0.0
    %6499 = vmatpush1.msra.mxu0 0.0
    %6500 = vmatprep.subr.mxu0 0.0
    %6501 = vmatpush1.msra.mxu0 0.0
    %6502 = vmatprep.subr.mxu0 0.0
    %6503 = vmatpush1.msra.mxu0 0.0
    %6504 = vmatprep.subr.mxu0 0.0
    %6505 = vmatpush1.msra.mxu0 0.0
    %6506 = vmatprep.subr.mxu0 0.0
    %6507 = vmatpush1.msra.mxu0 0.0
    %6508 = vmatprep.subr.mxu0 0.0
    %6509 = vmatpush1.msra.mxu0 0.0
    %6510 = vmatprep.subr.mxu0 0.0
    %6511 = vmatpush1.msra.mxu0 0.0
    %6512 = vmatprep.subr.mxu0 0.0
    %v6513 = vand.u32 %v6479, 4294901760
    %6514 = vmatpush1.msra.mxu0 %v6513
    %6515 = vmatprep.subr.mxu0 0.0
    %v6516 = vand.u32 %v6478, 4294901760
    %6517 = vmatpush1.msra.mxu0 %v6516
    %6518 = vmatprep.subr.mxu0 0.0
    %v6519 = vand.u32 %v6477, 4294901760
    %6520 = vmatpush1.msra.mxu0 %v6519
    %6521 = vmatprep.subr.mxu0 0.0
    %v6522 = vand.u32 %v6476, 4294901760
    %6523 = vmatpush1.msra.mxu0 %v6522
    %6524 = vmatprep.subr.mxu0 0.0
    %v6525 = vand.u32 %v6475, 4294901760
    %6526 = vmatpush1.msra.mxu0 %v6525
    %6527 = vmatprep.subr.mxu0 0.0
    %v6528 = vand.u32 %v6474, 4294901760
    %6529 = vmatpush1.msra.mxu0 %v6528
    %6530 = vmatprep.subr.mxu0 0.0
    %v6531 = vand.u32 %v6473, 4294901760
    %6532 = vmatpush1.msra.mxu0 %v6531
    %6533 = vmatprep.subr.mxu0 0.0
    %v6534 = vand.u32 %v6472, 4294901760
    %6535 = vmatpush1.msra.mxu0 %v6534
    %6536 = vmatprep.subr.mxu0 0.0
    %6537 = vmatpush2.msra.mxu0 0.0
    %6538 = vmatprep.subr.mxu0 0.0
    %6539 = vmatpush2.msra.mxu0 0.0
    %6540 = vmatprep.subr.mxu0 0.0
    %6541 = vmatpush2.msra.mxu0 0.0
    %6542 = vmatprep.subr.mxu0 0.0
    %6543 = vmatpush2.msra.mxu0 0.0
    %6544 = vmatprep.subr.mxu0 0.0
    %6545 = vmatpush2.msra.mxu0 0.0
    %6546 = vmatprep.subr.mxu0 0.0
    %6547 = vmatpush2.msra.mxu0 0.0
    %6548 = vmatprep.subr.mxu0 0.0
    %6549 = vmatpush2.msra.mxu0 0.0
    %6550 = vmatprep.subr.mxu0 0.0
    %6551 = vmatpush2.msra.mxu0 0.0
    %6552 = vmatprep.subr.mxu0 0.0
    %6553 = vmatpush2.msra.mxu0 0.0
    %6554 = vmatprep.subr.mxu0 0.0
    %6555 = vmatpush2.msra.mxu0 0.0
    %6556 = vmatprep.subr.mxu0 0.0
    %6557 = vmatpush2.msra.mxu0 0.0
    %6558 = vmatprep.subr.mxu0 0.0
    %6559 = vmatpush2.msra.mxu0 0.0
    %6560 = vmatprep.subr.mxu0 0.0
    %6561 = vmatpush2.msra.mxu0 0.0
    %6562 = vmatprep.subr.mxu0 0.0
    %6563 = vmatpush2.msra.mxu0 0.0
    %6564 = vmatprep.subr.mxu0 0.0
    %6565 = vmatpush2.msra.mxu0 0.0
    %6566 = vmatprep.subr.mxu0 0.0
    %6567 = vmatpush2.msra.mxu0 0.0
    %6568 = vmatprep.mubr.f32.mxu0 0.0
    %v6569 = vand.u32 %v6494, 4294901760
    %v6570 = vsub.f32 %v6494, %v6569
    %v6571 = vand.u32 %v6570, 4294901760
    %v6572 = vsub.f32 %v6570, %v6571
    %v6573 = vand.u32 %v6572, 4294901760
    %6574 = vmatmul.mubr.f32.gmra.mxu0 %v6573
    %v6575 = vpop.f32.mrf.mxu0
    %v6576 = vadd.f32 0.0, %v6575
    %v6577 = vpop.f32.mrf.mxu0
    %6578 = vdwg.mxu0
    %6579 = vmatprep.subr.mxu0 0.0
    %6580 = vmatpush1.msra.mxu0 0.0
    %6581 = vmatprep.subr.mxu0 0.0
    %6582 = vmatpush1.msra.mxu0 0.0
    %6583 = vmatprep.subr.mxu0 0.0
    %6584 = vmatpush1.msra.mxu0 0.0
    %6585 = vmatprep.subr.mxu0 0.0
    %6586 = vmatpush1.msra.mxu0 0.0
    %6587 = vmatprep.subr.mxu0 0.0
    %6588 = vmatpush1.msra.mxu0 0.0
    %6589 = vmatprep.subr.mxu0 0.0
    %6590 = vmatpush1.msra.mxu0 0.0
    %6591 = vmatprep.subr.mxu0 0.0
    %6592 = vmatpush1.msra.mxu0 0.0
    %6593 = vmatprep.subr.mxu0 0.0
    %6594 = vmatpush1.msra.mxu0 0.0
    %6595 = vmatprep.subr.mxu0 0.0
    %v6596 = vand.u32 %v6479, 4294901760
    %v6597 = vsub.f32 %v6479, %v6596
    %v6598 = vand.u32 %v6597, 4294901760
    %v6599 = vsub.f32 %v6597, %v6598
    %v6600 = vand.u32 %v6599, 4294901760
    %6601 = vmatpush1.msra.mxu0 %v6600
    %6602 = vmatprep.subr.mxu0 0.0
    %v6603 = vand.u32 %v6478, 4294901760
    %v6604 = vsub.f32 %v6478, %v6603
    %v6605 = vand.u32 %v6604, 4294901760
    %v6606 = vsub.f32 %v6604, %v6605
    %v6607 = vand.u32 %v6606, 4294901760
    %6608 = vmatpush1.msra.mxu0 %v6607
    %6609 = vmatprep.subr.mxu0 0.0
    %v6610 = vand.u32 %v6477, 4294901760
    %v6611 = vsub.f32 %v6477, %v6610
    %v6612 = vand.u32 %v6611, 4294901760
    %v6613 = vsub.f32 %v6611, %v6612
    %v6614 = vand.u32 %v6613, 4294901760
    %6615 = vmatpush1.msra.mxu0 %v6614
    %6616 = vmatprep.subr.mxu0 0.0
    %v6617 = vand.u32 %v6476, 4294901760
    %v6618 = vsub.f32 %v6476, %v6617
    %v6619 = vand.u32 %v6618, 4294901760
    %v6620 = vsub.f32 %v6618, %v6619
    %v6621 = vand.u32 %v6620, 4294901760
    %6622 = vmatpush1.msra.mxu0 %v6621
    %6623 = vmatprep.subr.mxu0 0.0
    %v6624 = vand.u32 %v6475, 4294901760
    %v6625 = vsub.f32 %v6475, %v6624
    %v6626 = vand.u32 %v6625, 4294901760
    %v6627 = vsub.f32 %v6625, %v6626
    %v6628 = vand.u32 %v6627, 4294901760
    %6629 = vmatpush1.msra.mxu0 %v6628
    %6630 = vmatprep.subr.mxu0 0.0
    %v6631 = vand.u32 %v6474, 4294901760
    %v6632 = vsub.f32 %v6474, %v6631
    %v6633 = vand.u32 %v6632, 4294901760
    %v6634 = vsub.f32 %v6632, %v6633
    %v6635 = vand.u32 %v6634, 4294901760
    %6636 = vmatpush1.msra.mxu0 %v6635
    %6637 = vmatprep.subr.mxu0 0.0
    %v6638 = vand.u32 %v6473, 4294901760
    %v6639 = vsub.f32 %v6473, %v6638
    %v6640 = vand.u32 %v6639, 4294901760
    %v6641 = vsub.f32 %v6639, %v6640
    %v6642 = vand.u32 %v6641, 4294901760
    %6643 = vmatpush1.msra.mxu0 %v6642
    %6644 = vmatprep.subr.mxu0 0.0
    %v6645 = vand.u32 %v6472, 4294901760
    %v6646 = vsub.f32 %v6472, %v6645
    %v6647 = vand.u32 %v6646, 4294901760
    %v6648 = vsub.f32 %v6646, %v6647
    %v6649 = vand.u32 %v6648, 4294901760
    %6650 = vmatpush1.msra.mxu0 %v6649
    %6651 = vmatprep.subr.mxu0 0.0
    %6652 = vmatpush2.msra.mxu0 0.0
    %6653 = vmatprep.subr.mxu0 0.0
    %6654 = vmatpush2.msra.mxu0 0.0
    %6655 = vmatprep.subr.mxu0 0.0
    %6656 = vmatpush2.msra.mxu0 0.0
    %6657 = vmatprep.subr.mxu0 0.0
    %6658 = vmatpush2.msra.mxu0 0.0
    %6659 = vmatprep.subr.mxu0 0.0
    %6660 = vmatpush2.msra.mxu0 0.0
    %6661 = vmatprep.subr.mxu0 0.0
    %6662 = vmatpush2.msra.mxu0 0.0
    %6663 = vmatprep.subr.mxu0 0.0
    %6664 = vmatpush2.msra.mxu0 0.0
    %6665 = vmatprep.subr.mxu0 0.0
    %6666 = vmatpush2.msra.mxu0 0.0
    %6667 = vmatprep.subr.mxu0 0.0
    %6668 = vmatpush2.msra.mxu0 0.0
    %6669 = vmatprep.subr.mxu0 0.0
    %6670 = vmatpush2.msra.mxu0 0.0
    %6671 = vmatprep.subr.mxu0 0.0
    %6672 = vmatpush2.msra.mxu0 0.0
    %6673 = vmatprep.subr.mxu0 0.0
    %6674 = vmatpush2.msra.mxu0 0.0
    %6675 = vmatprep.subr.mxu0 0.0
    %6676 = vmatpush2.msra.mxu0 0.0
    %6677 = vmatprep.subr.mxu0 0.0
    %6678 = vmatpush2.msra.mxu0 0.0
    %6679 = vmatprep.subr.mxu0 0.0
    %6680 = vmatpush2.msra.mxu0 0.0
    %6681 = vmatprep.subr.mxu0 0.0
    %6682 = vmatpush2.msra.mxu0 0.0
    %6683 = vmatprep.mubr.f32.mxu0 0.0
    %v6684 = vand.u32 %v6494, 4294901760
    %6685 = vmatmul.mubr.f32.gmra.mxu0 %v6684
    %v6686 = vpop.f32.mrf.mxu0
    %v6687 = vadd.f32 %v6576, %v6686
    %v6688 = vpop.f32.mrf.mxu0
    %6689 = vdwg.mxu0
    %6690 = vmatprep.subr.mxu0 0.0
    %6691 = vmatpush1.msra.mxu0 0.0
    %6692 = vmatprep.subr.mxu0 0.0
    %6693 = vmatpush1.msra.mxu0 0.0
    %6694 = vmatprep.subr.mxu0 0.0
    %6695 = vmatpush1.msra.mxu0 0.0
    %6696 = vmatprep.subr.mxu0 0.0
    %6697 = vmatpush1.msra.mxu0 0.0
    %6698 = vmatprep.subr.mxu0 0.0
    %6699 = vmatpush1.msra.mxu0 0.0
    %6700 = vmatprep.subr.mxu0 0.0
    %6701 = vmatpush1.msra.mxu0 0.0
    %6702 = vmatprep.subr.mxu0 0.0
    %6703 = vmatpush1.msra.mxu0 0.0
    %6704 = vmatprep.subr.mxu0 0.0
    %6705 = vmatpush1.msra.mxu0 0.0
    %6706 = vmatprep.subr.mxu0 0.0
    %v6707 = vand.u32 %v6479, 4294901760
    %v6708 = vsub.f32 %v6479, %v6707
    %6709 = vmatpush1.msra.mxu0 %v6708
    %6710 = vmatprep.subr.mxu0 0.0
    %v6711 = vand.u32 %v6478, 4294901760
    %v6712 = vsub.f32 %v6478, %v6711
    %6713 = vmatpush1.msra.mxu0 %v6712
    %6714 = vmatprep.subr.mxu0 0.0
    %v6715 = vand.u32 %v6477, 4294901760
    %v6716 = vsub.f32 %v6477, %v6715
    %6717 = vmatpush1.msra.mxu0 %v6716
    %6718 = vmatprep.subr.mxu0 0.0
    %v6719 = vand.u32 %v6476, 4294901760
    %v6720 = vsub.f32 %v6476, %v6719
    %6721 = vmatpush1.msra.mxu0 %v6720
    %6722 = vmatprep.subr.mxu0 0.0
    %v6723 = vand.u32 %v6475, 4294901760
    %v6724 = vsub.f32 %v6475, %v6723
    %6725 = vmatpush1.msra.mxu0 %v6724
    %6726 = vmatprep.subr.mxu0 0.0
    %v6727 = vand.u32 %v6474, 4294901760
    %v6728 = vsub.f32 %v6474, %v6727
    %6729 = vmatpush1.msra.mxu0 %v6728
    %6730 = vmatprep.subr.mxu0 0.0
    %v6731 = vand.u32 %v6473, 4294901760
    %v6732 = vsub.f32 %v6473, %v6731
    %6733 = vmatpush1.msra.mxu0 %v6732
    %6734 = vmatprep.subr.mxu0 0.0
    %v6735 = vand.u32 %v6472, 4294901760
    %v6736 = vsub.f32 %v6472, %v6735
    %6737 = vmatpush1.msra.mxu0 %v6736
    %6738 = vmatprep.subr.mxu0 0.0
    %6739 = vmatpush2.msra.mxu0 0.0
    %6740 = vmatprep.subr.mxu0 0.0
    %6741 = vmatpush2.msra.mxu0 0.0
    %6742 = vmatprep.subr.mxu0 0.0
    %6743 = vmatpush2.msra.mxu0 0.0
    %6744 = vmatprep.subr.mxu0 0.0
    %6745 = vmatpush2.msra.mxu0 0.0
    %6746 = vmatprep.subr.mxu0 0.0
    %6747 = vmatpush2.msra.mxu0 0.0
    %6748 = vmatprep.subr.mxu0 0.0
    %6749 = vmatpush2.msra.mxu0 0.0
    %6750 = vmatprep.subr.mxu0 0.0
    %6751 = vmatpush2.msra.mxu0 0.0
    %6752 = vmatprep.subr.mxu0 0.0
    %6753 = vmatpush2.msra.mxu0 0.0
    %6754 = vmatprep.subr.mxu0 0.0
    %6755 = vmatpush2.msra.mxu0 0.0
    %6756 = vmatprep.subr.mxu0 0.0
    %6757 = vmatpush2.msra.mxu0 0.0
    %6758 = vmatprep.subr.mxu0 0.0
    %6759 = vmatpush2.msra.mxu0 0.0
    %6760 = vmatprep.subr.mxu0 0.0
    %6761 = vmatpush2.msra.mxu0 0.0
    %6762 = vmatprep.subr.mxu0 0.0
    %6763 = vmatpush2.msra.mxu0 0.0
    %6764 = vmatprep.subr.mxu0 0.0
    %6765 = vmatpush2.msra.mxu0 0.0
    %6766 = vmatprep.subr.mxu0 0.0
    %6767 = vmatpush2.msra.mxu0 0.0
    %6768 = vmatprep.subr.mxu0 0.0
    %6769 = vmatpush2.msra.mxu0 0.0
    %6770 = vmatprep.mubr.f32.mxu0 0.0
    %v6771 = vand.u32 %v6494, 4294901760
    %v6772 = vsub.f32 %v6494, %v6771
    %6773 = vmatmul.mubr.f32.gmra.mxu0 %v6772
    %v6774 = vpop.f32.mrf.mxu0
    %v6775 = vadd.f32 %v6687, %v6774
    %v6776 = vpop.f32.mrf.mxu0
    %6777 = vdwg.mxu0
    %6778 = vmatprep.subr.mxu0 0.0
    %6779 = vmatpush1.msra.mxu0 0.0
    %6780 = vmatprep.subr.mxu0 0.0
    %6781 = vmatpush1.msra.mxu0 0.0
    %6782 = vmatprep.subr.mxu0 0.0
    %6783 = vmatpush1.msra.mxu0 0.0
    %6784 = vmatprep.subr.mxu0 0.0
    %6785 = vmatpush1.msra.mxu0 0.0
    %6786 = vmatprep.subr.mxu0 0.0
    %6787 = vmatpush1.msra.mxu0 0.0
    %6788 = vmatprep.subr.mxu0 0.0
    %6789 = vmatpush1.msra.mxu0 0.0
    %6790 = vmatprep.subr.mxu0 0.0
    %6791 = vmatpush1.msra.mxu0 0.0
    %6792 = vmatprep.subr.mxu0 0.0
    %6793 = vmatpush1.msra.mxu0 0.0
    %6794 = vmatprep.subr.mxu0 0.0
    %v6795 = vand.u32 %v6479, 4294901760
    %6796 = vmatpush1.msra.mxu0 %v6795
    %6797 = vmatprep.subr.mxu0 0.0
    %v6798 = vand.u32 %v6478, 4294901760
    %6799 = vmatpush1.msra.mxu0 %v6798
    %6800 = vmatprep.subr.mxu0 0.0
    %v6801 = vand.u32 %v6477, 4294901760
    %6802 = vmatpush1.msra.mxu0 %v6801
    %6803 = vmatprep.subr.mxu0 0.0
    %v6804 = vand.u32 %v6476, 4294901760
    %6805 = vmatpush1.msra.mxu0 %v6804
    %6806 = vmatprep.subr.mxu0 0.0
    %v6807 = vand.u32 %v6475, 4294901760
    %6808 = vmatpush1.msra.mxu0 %v6807
    %6809 = vmatprep.subr.mxu0 0.0
    %v6810 = vand.u32 %v6474, 4294901760
    %6811 = vmatpush1.msra.mxu0 %v6810
    %6812 = vmatprep.subr.mxu0 0.0
    %v6813 = vand.u32 %v6473, 4294901760
    %6814 = vmatpush1.msra.mxu0 %v6813
    %6815 = vmatprep.subr.mxu0 0.0
    %v6816 = vand.u32 %v6472, 4294901760
    %6817 = vmatpush1.msra.mxu0 %v6816
    %6818 = vmatprep.subr.mxu0 0.0
    %6819 = vmatpush2.msra.mxu0 0.0
    %6820 = vmatprep.subr.mxu0 0.0
    %6821 = vmatpush2.msra.mxu0 0.0
    %6822 = vmatprep.subr.mxu0 0.0
    %6823 = vmatpush2.msra.mxu0 0.0
    %6824 = vmatprep.subr.mxu0 0.0
    %6825 = vmatpush2.msra.mxu0 0.0
    %6826 = vmatprep.subr.mxu0 0.0
    %6827 = vmatpush2.msra.mxu0 0.0
    %6828 = vmatprep.subr.mxu0 0.0
    %6829 = vmatpush2.msra.mxu0 0.0
    %6830 = vmatprep.subr.mxu0 0.0
    %6831 = vmatpush2.msra.mxu0 0.0
    %6832 = vmatprep.subr.mxu0 0.0
    %6833 = vmatpush2.msra.mxu0 0.0
    %6834 = vmatprep.subr.mxu0 0.0
    %6835 = vmatpush2.msra.mxu0 0.0
    %6836 = vmatprep.subr.mxu0 0.0
    %6837 = vmatpush2.msra.mxu0 0.0
    %6838 = vmatprep.subr.mxu0 0.0
    %6839 = vmatpush2.msra.mxu0 0.0
    %6840 = vmatprep.subr.mxu0 0.0
    %6841 = vmatpush2.msra.mxu0 0.0
    %6842 = vmatprep.subr.mxu0 0.0
    %6843 = vmatpush2.msra.mxu0 0.0
    %6844 = vmatprep.subr.mxu0 0.0
    %6845 = vmatpush2.msra.mxu0 0.0
    %6846 = vmatprep.subr.mxu0 0.0
    %6847 = vmatpush2.msra.mxu0 0.0
    %6848 = vmatprep.subr.mxu0 0.0
    %6849 = vmatpush2.msra.mxu0 0.0
    %6850 = vmatprep.mubr.f32.mxu0 0.0
    %v6851 = vand.u32 %v6494, 4294901760
    %v6852 = vsub.f32 %v6494, %v6851
    %v6853 = vand.u32 %v6852, 4294901760
    %6854 = vmatmul.mubr.f32.gmra.mxu0 %v6853
    %v6855 = vpop.f32.mrf.mxu0
    %v6856 = vadd.f32 %v6775, %v6855
    %v6857 = vpop.f32.mrf.mxu0
    %6858 = vdwg.mxu0
    %6859 = vmatprep.subr.mxu0 0.0
    %6860 = vmatpush1.msra.mxu0 0.0
    %6861 = vmatprep.subr.mxu0 0.0
    %6862 = vmatpush1.msra.mxu0 0.0
    %6863 = vmatprep.subr.mxu0 0.0
    %6864 = vmatpush1.msra.mxu0 0.0
    %6865 = vmatprep.subr.mxu0 0.0
    %6866 = vmatpush1.msra.mxu0 0.0
    %6867 = vmatprep.subr.mxu0 0.0
    %6868 = vmatpush1.msra.mxu0 0.0
    %6869 = vmatprep.subr.mxu0 0.0
    %6870 = vmatpush1.msra.mxu0 0.0
    %6871 = vmatprep.subr.mxu0 0.0
    %6872 = vmatpush1.msra.mxu0 0.0
    %6873 = vmatprep.subr.mxu0 0.0
    %6874 = vmatpush1.msra.mxu0 0.0
    %6875 = vmatprep.subr.mxu0 0.0
    %v6876 = vand.u32 %v6479, 4294901760
    %v6877 = vsub.f32 %v6479, %v6876
    %v6878 = vand.u32 %v6877, 4294901760
    %6879 = vmatpush1.msra.mxu0 %v6878
    %6880 = vmatprep.subr.mxu0 0.0
    %v6881 = vand.u32 %v6478, 4294901760
    %v6882 = vsub.f32 %v6478, %v6881
    %v6883 = vand.u32 %v6882, 4294901760
    %6884 = vmatpush1.msra.mxu0 %v6883
    %6885 = vmatprep.subr.mxu0 0.0
    %v6886 = vand.u32 %v6477, 4294901760
    %v6887 = vsub.f32 %v6477, %v6886
    %v6888 = vand.u32 %v6887, 4294901760
    %6889 = vmatpush1.msra.mxu0 %v6888
    %6890 = vmatprep.subr.mxu0 0.0
    %v6891 = vand.u32 %v6476, 4294901760
    %v6892 = vsub.f32 %v6476, %v6891
    %v6893 = vand.u32 %v6892, 4294901760
    %6894 = vmatpush1.msra.mxu0 %v6893
    %6895 = vmatprep.subr.mxu0 0.0
    %v6896 = vand.u32 %v6475, 4294901760
    %v6897 = vsub.f32 %v6475, %v6896
    %v6898 = vand.u32 %v6897, 4294901760
    %6899 = vmatpush1.msra.mxu0 %v6898
    %6900 = vmatprep.subr.mxu0 0.0
    %v6901 = vand.u32 %v6474, 4294901760
    %v6902 = vsub.f32 %v6474, %v6901
    %v6903 = vand.u32 %v6902, 4294901760
    %6904 = vmatpush1.msra.mxu0 %v6903
    %6905 = vmatprep.subr.mxu0 0.0
    %v6906 = vand.u32 %v6473, 4294901760
    %v6907 = vsub.f32 %v6473, %v6906
    %v6908 = vand.u32 %v6907, 4294901760
    %6909 = vmatpush1.msra.mxu0 %v6908
    %6910 = vmatprep.subr.mxu0 0.0
    %v6911 = vand.u32 %v6472, 4294901760
    %v6912 = vsub.f32 %v6472, %v6911
    %v6913 = vand.u32 %v6912, 4294901760
    %6914 = vmatpush1.msra.mxu0 %v6913
    %6915 = vmatprep.subr.mxu0 0.0
    %6916 = vmatpush2.msra.mxu0 0.0
    %6917 = vmatprep.subr.mxu0 0.0
    %6918 = vmatpush2.msra.mxu0 0.0
    %6919 = vmatprep.subr.mxu0 0.0
    %6920 = vmatpush2.msra.mxu0 0.0
    %6921 = vmatprep.subr.mxu0 0.0
    %6922 = vmatpush2.msra.mxu0 0.0
    %6923 = vmatprep.subr.mxu0 0.0
    %6924 = vmatpush2.msra.mxu0 0.0
    %6925 = vmatprep.subr.mxu0 0.0
    %6926 = vmatpush2.msra.mxu0 0.0
    %6927 = vmatprep.subr.mxu0 0.0
    %6928 = vmatpush2.msra.mxu0 0.0
    %6929 = vmatprep.subr.mxu0 0.0
    %6930 = vmatpush2.msra.mxu0 0.0
    %6931 = vmatprep.subr.mxu0 0.0
    %6932 = vmatpush2.msra.mxu0 0.0
    %6933 = vmatprep.subr.mxu0 0.0
    %6934 = vmatpush2.msra.mxu0 0.0
    %6935 = vmatprep.subr.mxu0 0.0
    %6936 = vmatpush2.msra.mxu0 0.0
    %6937 = vmatprep.subr.mxu0 0.0
    %6938 = vmatpush2.msra.mxu0 0.0
    %6939 = vmatprep.subr.mxu0 0.0
    %6940 = vmatpush2.msra.mxu0 0.0
    %6941 = vmatprep.subr.mxu0 0.0
    %6942 = vmatpush2.msra.mxu0 0.0
    %6943 = vmatprep.subr.mxu0 0.0
    %6944 = vmatpush2.msra.mxu0 0.0
    %6945 = vmatprep.subr.mxu0 0.0
    %6946 = vmatpush2.msra.mxu0 0.0
    %6947 = vmatprep.mubr.f32.mxu0 0.0
    %v6948 = vand.u32 %v6494, 4294901760
    %6949 = vmatmul.mubr.f32.gmra.mxu0 %v6948
    %v6950 = vpop.f32.mrf.mxu0
    %v6951 = vadd.f32 %v6856, %v6950
    %v6952 = vpop.f32.mrf.mxu0
    %6953 = vdwg.mxu0
    %6954 = vmatprep.subr.mxu0 0.0
    %6955 = vmatpush1.msra.mxu0 0.0
    %6956 = vmatprep.subr.mxu0 0.0
    %6957 = vmatpush1.msra.mxu0 0.0
    %6958 = vmatprep.subr.mxu0 0.0
    %6959 = vmatpush1.msra.mxu0 0.0
    %6960 = vmatprep.subr.mxu0 0.0
    %6961 = vmatpush1.msra.mxu0 0.0
    %6962 = vmatprep.subr.mxu0 0.0
    %6963 = vmatpush1.msra.mxu0 0.0
    %6964 = vmatprep.subr.mxu0 0.0
    %6965 = vmatpush1.msra.mxu0 0.0
    %6966 = vmatprep.subr.mxu0 0.0
    %6967 = vmatpush1.msra.mxu0 0.0
    %6968 = vmatprep.subr.mxu0 0.0
    %6969 = vmatpush1.msra.mxu0 0.0
    %6970 = vmatprep.subr.mxu0 0.0
    %v6971 = vand.u32 %v6479, 4294901760
    %6972 = vmatpush1.msra.mxu0 %v6971
    %6973 = vmatprep.subr.mxu0 0.0
    %v6974 = vand.u32 %v6478, 4294901760
    %6975 = vmatpush1.msra.mxu0 %v6974
    %6976 = vmatprep.subr.mxu0 0.0
    %v6977 = vand.u32 %v6477, 4294901760
    %6978 = vmatpush1.msra.mxu0 %v6977
    %6979 = vmatprep.subr.mxu0 0.0
    %v6980 = vand.u32 %v6476, 4294901760
    %6981 = vmatpush1.msra.mxu0 %v6980
    %6982 = vmatprep.subr.mxu0 0.0
    %v6983 = vand.u32 %v6475, 4294901760
    %6984 = vmatpush1.msra.mxu0 %v6983
    %6985 = vmatprep.subr.mxu0 0.0
    %v6986 = vand.u32 %v6474, 4294901760
    %6987 = vmatpush1.msra.mxu0 %v6986
    %6988 = vmatprep.subr.mxu0 0.0
    %v6989 = vand.u32 %v6473, 4294901760
    %6990 = vmatpush1.msra.mxu0 %v6989
    %6991 = vmatprep.subr.mxu0 0.0
    %v6992 = vand.u32 %v6472, 4294901760
    %6993 = vmatpush1.msra.mxu0 %v6992
    %6994 = vmatprep.subr.mxu0 0.0
    %6995 = vmatpush2.msra.mxu0 0.0
    %6996 = vmatprep.subr.mxu0 0.0
    %6997 = vmatpush2.msra.mxu0 0.0
    %6998 = vmatprep.subr.mxu0 0.0
    %6999 = vmatpush2.msra.mxu0 0.0
    %7000 = vmatprep.subr.mxu0 0.0
    %7001 = vmatpush2.msra.mxu0 0.0
    %7002 = vmatprep.subr.mxu0 0.0
    %7003 = vmatpush2.msra.mxu0 0.0
    %7004 = vmatprep.subr.mxu0 0.0
    %7005 = vmatpush2.msra.mxu0 0.0
    %7006 = vmatprep.subr.mxu0 0.0
    %7007 = vmatpush2.msra.mxu0 0.0
    %7008 = vmatprep.subr.mxu0 0.0
    %7009 = vmatpush2.msra.mxu0 0.0
    %7010 = vmatprep.subr.mxu0 0.0
    %7011 = vmatpush2.msra.mxu0 0.0
    %7012 = vmatprep.subr.mxu0 0.0
    %7013 = vmatpush2.msra.mxu0 0.0
    %7014 = vmatprep.subr.mxu0 0.0
    %7015 = vmatpush2.msra.mxu0 0.0
    %7016 = vmatprep.subr.mxu0 0.0
    %7017 = vmatpush2.msra.mxu0 0.0
    %7018 = vmatprep.subr.mxu0 0.0
    %7019 = vmatpush2.msra.mxu0 0.0
    %7020 = vmatprep.subr.mxu0 0.0
    %7021 = vmatpush2.msra.mxu0 0.0
    %7022 = vmatprep.subr.mxu0 0.0
    %7023 = vmatpush2.msra.mxu0 0.0
    %7024 = vmatprep.subr.mxu0 0.0
    %7025 = vmatpush2.msra.mxu0 0.0
    %7026 = vmatprep.mubr.f32.mxu0 0.0
    %v7027 = vand.u32 %v6494, 4294901760
    %7028 = vmatmul.mubr.f32.gmra.mxu0 %v7027
    %v7029 = vpop.f32.mrf.mxu0
    %v7030 = vadd.f32 %v6951, %v7029
    %v7031 = vpop.f32.mrf.mxu0
    %7032 = vdwg.mxu0
    %v7033 = vmul.f32 %v6451, %v6451
    %v7034 = vmul.f32 %v6457, %v6457
    %v7035 = vmul.f32 %v6463, %v6463
    %v7036 = vmul.f32 %v6469, %v6469
    %v7037 = vsel %vm37, %v7033, 0.0
    %v7038 = vsel %vm37, %v7034, 0.0
    %v7039 = vadd.f32 %v7037, %v7038
    %v7040 = vsel %vm37, %v7035, 0.0
    %v7041 = vadd.f32 %v7039, %v7040
    %v7042 = vsel %vm37, %v7036, 0.0
    %v7043 = vadd.f32 %v7041, %v7042
    %v7044 = vrot.slane %v7043, 4
    %v7045 = vadd.f32 %v7043, %v7044
    %v7046 = vrot.slane %v7045, 2
    %v7047 = vadd.f32 %v7045, %v7046
    %v7048 = vrot.slane %v7047, 1
    %v7049 = vadd.f32 %v7047, %v7048
    %v7051 = vsel %vm37, %v7049, 0
    %7053 = vmatprep.subr.mxu0 0.0
    %7054 = vmatpush1.msra.mxu0 0.0
    %7055 = vmatprep.subr.mxu0 0.0
    %7056 = vmatpush1.msra.mxu0 0.0
    %7057 = vmatprep.subr.mxu0 0.0
    %7058 = vmatpush1.msra.mxu0 0.0
    %7059 = vmatprep.subr.mxu0 0.0
    %7060 = vmatpush1.msra.mxu0 0.0
    %7061 = vmatprep.subr.mxu0 0.0
    %7062 = vmatpush1.msra.mxu0 0.0
    %7063 = vmatprep.subr.mxu0 0.0
    %7064 = vmatpush1.msra.mxu0 0.0
    %7065 = vmatprep.subr.mxu0 0.0
    %7066 = vmatpush1.msra.mxu0 0.0
    %7067 = vmatprep.subr.mxu0 0.0
    %7068 = vmatpush1.msra.mxu0 0.0
    %7069 = vmatprep.subr.mxu0 0.0
    %v7070 = vand.u32 %v6479, 4294901760
    %7071 = vmatpush1.msra.mxu0 %v7070
    %7072 = vmatprep.subr.mxu0 0.0
    %v7073 = vand.u32 %v6478, 4294901760
    %7074 = vmatpush1.msra.mxu0 %v7073
    %7075 = vmatprep.subr.mxu0 0.0
    %v7076 = vand.u32 %v6477, 4294901760
    %7077 = vmatpush1.msra.mxu0 %v7076
    %7078 = vmatprep.subr.mxu0 0.0
    %v7079 = vand.u32 %v6476, 4294901760
    %7080 = vmatpush1.msra.mxu0 %v7079
    %7081 = vmatprep.subr.mxu0 0.0
    %v7082 = vand.u32 %v6475, 4294901760
    %7083 = vmatpush1.msra.mxu0 %v7082
    %7084 = vmatprep.subr.mxu0 0.0
    %v7085 = vand.u32 %v6474, 4294901760
    %7086 = vmatpush1.msra.mxu0 %v7085
    %7087 = vmatprep.subr.mxu0 0.0
    %v7088 = vand.u32 %v6473, 4294901760
    %7089 = vmatpush1.msra.mxu0 %v7088
    %7090 = vmatprep.subr.mxu0 0.0
    %v7091 = vand.u32 %v6472, 4294901760
    %7092 = vmatpush1.msra.mxu0 %v7091
    %7093 = vmatprep.subr.mxu0 0.0
    %7094 = vmatpush2.msra.mxu0 0.0
    %7095 = vmatprep.subr.mxu0 0.0
    %7096 = vmatpush2.msra.mxu0 0.0
    %7097 = vmatprep.subr.mxu0 0.0
    %7098 = vmatpush2.msra.mxu0 0.0
    %7099 = vmatprep.subr.mxu0 0.0
    %7100 = vmatpush2.msra.mxu0 0.0
    %7101 = vmatprep.subr.mxu0 0.0
    %7102 = vmatpush2.msra.mxu0 0.0
    %7103 = vmatprep.subr.mxu0 0.0
    %7104 = vmatpush2.msra.mxu0 0.0
    %7105 = vmatprep.subr.mxu0 0.0
    %7106 = vmatpush2.msra.mxu0 0.0
    %7107 = vmatprep.subr.mxu0 0.0
    %7108 = vmatpush2.msra.mxu0 0.0
    %7109 = vmatprep.subr.mxu0 0.0
    %7110 = vmatpush2.msra.mxu0 0.0
    %7111 = vmatprep.subr.mxu0 0.0
    %7112 = vmatpush2.msra.mxu0 0.0
    %7113 = vmatprep.subr.mxu0 0.0
    %7114 = vmatpush2.msra.mxu0 0.0
    %7115 = vmatprep.subr.mxu0 0.0
    %7116 = vmatpush2.msra.mxu0 0.0
    %7117 = vmatprep.subr.mxu0 0.0
    %7118 = vmatpush2.msra.mxu0 0.0
    %7119 = vmatprep.subr.mxu0 0.0
    %7120 = vmatpush2.msra.mxu0 0.0
    %7121 = vmatprep.subr.mxu0 0.0
    %7122 = vmatpush2.msra.mxu0 0.0
    %7123 = vmatprep.subr.mxu0 0.0
    %7124 = vmatpush2.msra.mxu0 0.0
    %7125 = vmatprep.mubr.f32.mxu0 0.0
    %v7126 = vand.u32 %v7051, 4294901760
    %v7127 = vsub.f32 %v7051, %v7126
    %v7128 = vand.u32 %v7127, 4294901760
    %v7129 = vsub.f32 %v7127, %v7128
    %v7130 = vand.u32 %v7129, 4294901760
    %7131 = vmatmul.mubr.f32.gmra.mxu0 %v7130
    %v7132 = vpop.f32.mrf.mxu0
    %v7133 = vadd.f32 0.0, %v7132
    %v7134 = vpop.f32.mrf.mxu0
    %7135 = vdwg.mxu0
    %7136 = vmatprep.subr.mxu0 0.0
    %7137 = vmatpush1.msra.mxu0 0.0
    %7138 = vmatprep.subr.mxu0 0.0
    %7139 = vmatpush1.msra.mxu0 0.0
    %7140 = vmatprep.subr.mxu0 0.0
    %7141 = vmatpush1.msra.mxu0 0.0
    %7142 = vmatprep.subr.mxu0 0.0
    %7143 = vmatpush1.msra.mxu0 0.0
    %7144 = vmatprep.subr.mxu0 0.0
    %7145 = vmatpush1.msra.mxu0 0.0
    %7146 = vmatprep.subr.mxu0 0.0
    %7147 = vmatpush1.msra.mxu0 0.0
    %7148 = vmatprep.subr.mxu0 0.0
    %7149 = vmatpush1.msra.mxu0 0.0
    %7150 = vmatprep.subr.mxu0 0.0
    %7151 = vmatpush1.msra.mxu0 0.0
    %7152 = vmatprep.subr.mxu0 0.0
    %v7153 = vand.u32 %v6479, 4294901760
    %v7154 = vsub.f32 %v6479, %v7153
    %v7155 = vand.u32 %v7154, 4294901760
    %v7156 = vsub.f32 %v7154, %v7155
    %v7157 = vand.u32 %v7156, 4294901760
    %7158 = vmatpush1.msra.mxu0 %v7157
    %7159 = vmatprep.subr.mxu0 0.0
    %v7160 = vand.u32 %v6478, 4294901760
    %v7161 = vsub.f32 %v6478, %v7160
    %v7162 = vand.u32 %v7161, 4294901760
    %v7163 = vsub.f32 %v7161, %v7162
    %v7164 = vand.u32 %v7163, 4294901760
    %7165 = vmatpush1.msra.mxu0 %v7164
    %7166 = vmatprep.subr.mxu0 0.0
    %v7167 = vand.u32 %v6477, 4294901760
    %v7168 = vsub.f32 %v6477, %v7167
    %v7169 = vand.u32 %v7168, 4294901760
    %v7170 = vsub.f32 %v7168, %v7169
    %v7171 = vand.u32 %v7170, 4294901760
    %7172 = vmatpush1.msra.mxu0 %v7171
    %7173 = vmatprep.subr.mxu0 0.0
    %v7174 = vand.u32 %v6476, 4294901760
    %v7175 = vsub.f32 %v6476, %v7174
    %v7176 = vand.u32 %v7175, 4294901760
    %v7177 = vsub.f32 %v7175, %v7176
    %v7178 = vand.u32 %v7177, 4294901760
    %7179 = vmatpush1.msra.mxu0 %v7178
    %7180 = vmatprep.subr.mxu0 0.0
    %v7181 = vand.u32 %v6475, 4294901760
    %v7182 = vsub.f32 %v6475, %v7181
    %v7183 = vand.u32 %v7182, 4294901760
    %v7184 = vsub.f32 %v7182, %v7183
    %v7185 = vand.u32 %v7184, 4294901760
    %7186 = vmatpush1.msra.mxu0 %v7185
    %7187 = vmatprep.subr.mxu0 0.0
    %v7188 = vand.u32 %v6474, 4294901760
    %v7189 = vsub.f32 %v6474, %v7188
    %v7190 = vand.u32 %v7189, 4294901760
    %v7191 = vsub.f32 %v7189, %v7190
    %v7192 = vand.u32 %v7191, 4294901760
    %7193 = vmatpush1.msra.mxu0 %v7192
    %7194 = vmatprep.subr.mxu0 0.0
    %v7195 = vand.u32 %v6473, 4294901760
    %v7196 = vsub.f32 %v6473, %v7195
    %v7197 = vand.u32 %v7196, 4294901760
    %v7198 = vsub.f32 %v7196, %v7197
    %v7199 = vand.u32 %v7198, 4294901760
    %7200 = vmatpush1.msra.mxu0 %v7199
    %7201 = vmatprep.subr.mxu0 0.0
    %v7202 = vand.u32 %v6472, 4294901760
    %v7203 = vsub.f32 %v6472, %v7202
    %v7204 = vand.u32 %v7203, 4294901760
    %v7205 = vsub.f32 %v7203, %v7204
    %v7206 = vand.u32 %v7205, 4294901760
    %7207 = vmatpush1.msra.mxu0 %v7206
    %7208 = vmatprep.subr.mxu0 0.0
    %7209 = vmatpush2.msra.mxu0 0.0
    %7210 = vmatprep.subr.mxu0 0.0
    %7211 = vmatpush2.msra.mxu0 0.0
    %7212 = vmatprep.subr.mxu0 0.0
    %7213 = vmatpush2.msra.mxu0 0.0
    %7214 = vmatprep.subr.mxu0 0.0
    %7215 = vmatpush2.msra.mxu0 0.0
    %7216 = vmatprep.subr.mxu0 0.0
    %7217 = vmatpush2.msra.mxu0 0.0
    %7218 = vmatprep.subr.mxu0 0.0
    %7219 = vmatpush2.msra.mxu0 0.0
    %7220 = vmatprep.subr.mxu0 0.0
    %7221 = vmatpush2.msra.mxu0 0.0
    %7222 = vmatprep.subr.mxu0 0.0
    %7223 = vmatpush2.msra.mxu0 0.0
    %7224 = vmatprep.subr.mxu0 0.0
    %7225 = vmatpush2.msra.mxu0 0.0
    %7226 = vmatprep.subr.mxu0 0.0
    %7227 = vmatpush2.msra.mxu0 0.0
    %7228 = vmatprep.subr.mxu0 0.0
    %7229 = vmatpush2.msra.mxu0 0.0
    %7230 = vmatprep.subr.mxu0 0.0
    %7231 = vmatpush2.msra.mxu0 0.0
    %7232 = vmatprep.subr.mxu0 0.0
    %7233 = vmatpush2.msra.mxu0 0.0
    %7234 = vmatprep.subr.mxu0 0.0
    %7235 = vmatpush2.msra.mxu0 0.0
    %7236 = vmatprep.subr.mxu0 0.0
    %7237 = vmatpush2.msra.mxu0 0.0
    %7238 = vmatprep.subr.mxu0 0.0
    %7239 = vmatpush2.msra.mxu0 0.0
    %7240 = vmatprep.mubr.f32.mxu0 0.0
    %v7241 = vand.u32 %v7051, 4294901760
    %7242 = vmatmul.mubr.f32.gmra.mxu0 %v7241
    %v7243 = vpop.f32.mrf.mxu0
    %v7244 = vadd.f32 %v7133, %v7243
    %v7245 = vpop.f32.mrf.mxu0
    %7246 = vdwg.mxu0
    %7247 = vmatprep.subr.mxu0 0.0
    %7248 = vmatpush1.msra.mxu0 0.0
    %7249 = vmatprep.subr.mxu0 0.0
    %7250 = vmatpush1.msra.mxu0 0.0
    %7251 = vmatprep.subr.mxu0 0.0
    %7252 = vmatpush1.msra.mxu0 0.0
    %7253 = vmatprep.subr.mxu0 0.0
    %7254 = vmatpush1.msra.mxu0 0.0
    %7255 = vmatprep.subr.mxu0 0.0
    %7256 = vmatpush1.msra.mxu0 0.0
    %7257 = vmatprep.subr.mxu0 0.0
    %7258 = vmatpush1.msra.mxu0 0.0
    %7259 = vmatprep.subr.mxu0 0.0
    %7260 = vmatpush1.msra.mxu0 0.0
    %7261 = vmatprep.subr.mxu0 0.0
    %7262 = vmatpush1.msra.mxu0 0.0
    %7263 = vmatprep.subr.mxu0 0.0
    %v7264 = vand.u32 %v6479, 4294901760
    %v7265 = vsub.f32 %v6479, %v7264
    %7266 = vmatpush1.msra.mxu0 %v7265
    %7267 = vmatprep.subr.mxu0 0.0
    %v7268 = vand.u32 %v6478, 4294901760
    %v7269 = vsub.f32 %v6478, %v7268
    %7270 = vmatpush1.msra.mxu0 %v7269
    %7271 = vmatprep.subr.mxu0 0.0
    %v7272 = vand.u32 %v6477, 4294901760
    %v7273 = vsub.f32 %v6477, %v7272
    %7274 = vmatpush1.msra.mxu0 %v7273
    %7275 = vmatprep.subr.mxu0 0.0
    %v7276 = vand.u32 %v6476, 4294901760
    %v7277 = vsub.f32 %v6476, %v7276
    %7278 = vmatpush1.msra.mxu0 %v7277
    %7279 = vmatprep.subr.mxu0 0.0
    %v7280 = vand.u32 %v6475, 4294901760
    %v7281 = vsub.f32 %v6475, %v7280
    %7282 = vmatpush1.msra.mxu0 %v7281
    %7283 = vmatprep.subr.mxu0 0.0
    %v7284 = vand.u32 %v6474, 4294901760
    %v7285 = vsub.f32 %v6474, %v7284
    %7286 = vmatpush1.msra.mxu0 %v7285
    %7287 = vmatprep.subr.mxu0 0.0
    %v7288 = vand.u32 %v6473, 4294901760
    %v7289 = vsub.f32 %v6473, %v7288
    %7290 = vmatpush1.msra.mxu0 %v7289
    %7291 = vmatprep.subr.mxu0 0.0
    %v7292 = vand.u32 %v6472, 4294901760
    %v7293 = vsub.f32 %v6472, %v7292
    %7294 = vmatpush1.msra.mxu0 %v7293
    %7295 = vmatprep.subr.mxu0 0.0
    %7296 = vmatpush2.msra.mxu0 0.0
    %7297 = vmatprep.subr.mxu0 0.0
    %7298 = vmatpush2.msra.mxu0 0.0
    %7299 = vmatprep.subr.mxu0 0.0
    %7300 = vmatpush2.msra.mxu0 0.0
    %7301 = vmatprep.subr.mxu0 0.0
    %7302 = vmatpush2.msra.mxu0 0.0
    %7303 = vmatprep.subr.mxu0 0.0
    %7304 = vmatpush2.msra.mxu0 0.0
    %7305 = vmatprep.subr.mxu0 0.0
    %7306 = vmatpush2.msra.mxu0 0.0
    %7307 = vmatprep.subr.mxu0 0.0
    %7308 = vmatpush2.msra.mxu0 0.0
    %7309 = vmatprep.subr.mxu0 0.0
    %7310 = vmatpush2.msra.mxu0 0.0
    %7311 = vmatprep.subr.mxu0 0.0
    %7312 = vmatpush2.msra.mxu0 0.0
    %7313 = vmatprep.subr.mxu0 0.0
    %7314 = vmatpush2.msra.mxu0 0.0
    %7315 = vmatprep.subr.mxu0 0.0
    %7316 = vmatpush2.msra.mxu0 0.0
    %7317 = vmatprep.subr.mxu0 0.0
    %7318 = vmatpush2.msra.mxu0 0.0
    %7319 = vmatprep.subr.mxu0 0.0
    %7320 = vmatpush2.msra.mxu0 0.0
    %7321 = vmatprep.subr.mxu0 0.0
    %7322 = vmatpush2.msra.mxu0 0.0
    %7323 = vmatprep.subr.mxu0 0.0
    %7324 = vmatpush2.msra.mxu0 0.0
    %7325 = vmatprep.subr.mxu0 0.0
    %7326 = vmatpush2.msra.mxu0 0.0
    %7327 = vmatprep.mubr.f32.mxu0 0.0
    %v7328 = vand.u32 %v7051, 4294901760
    %v7329 = vsub.f32 %v7051, %v7328
    %7330 = vmatmul.mubr.f32.gmra.mxu0 %v7329
    %v7331 = vpop.f32.mrf.mxu0
    %v7332 = vadd.f32 %v7244, %v7331
    %v7333 = vpop.f32.mrf.mxu0
    %7334 = vdwg.mxu0
    %7335 = vmatprep.subr.mxu0 0.0
    %7336 = vmatpush1.msra.mxu0 0.0
    %7337 = vmatprep.subr.mxu0 0.0
    %7338 = vmatpush1.msra.mxu0 0.0
    %7339 = vmatprep.subr.mxu0 0.0
    %7340 = vmatpush1.msra.mxu0 0.0
    %7341 = vmatprep.subr.mxu0 0.0
    %7342 = vmatpush1.msra.mxu0 0.0
    %7343 = vmatprep.subr.mxu0 0.0
    %7344 = vmatpush1.msra.mxu0 0.0
    %7345 = vmatprep.subr.mxu0 0.0
    %7346 = vmatpush1.msra.mxu0 0.0
    %7347 = vmatprep.subr.mxu0 0.0
    %7348 = vmatpush1.msra.mxu0 0.0
    %7349 = vmatprep.subr.mxu0 0.0
    %7350 = vmatpush1.msra.mxu0 0.0
    %7351 = vmatprep.subr.mxu0 0.0
    %v7352 = vand.u32 %v6479, 4294901760
    %7353 = vmatpush1.msra.mxu0 %v7352
    %7354 = vmatprep.subr.mxu0 0.0
    %v7355 = vand.u32 %v6478, 4294901760
    %7356 = vmatpush1.msra.mxu0 %v7355
    %7357 = vmatprep.subr.mxu0 0.0
    %v7358 = vand.u32 %v6477, 4294901760
    %7359 = vmatpush1.msra.mxu0 %v7358
    %7360 = vmatprep.subr.mxu0 0.0
    %v7361 = vand.u32 %v6476, 4294901760
    %7362 = vmatpush1.msra.mxu0 %v7361
    %7363 = vmatprep.subr.mxu0 0.0
    %v7364 = vand.u32 %v6475, 4294901760
    %7365 = vmatpush1.msra.mxu0 %v7364
    %7366 = vmatprep.subr.mxu0 0.0
    %v7367 = vand.u32 %v6474, 4294901760
    %7368 = vmatpush1.msra.mxu0 %v7367
    %7369 = vmatprep.subr.mxu0 0.0
    %v7370 = vand.u32 %v6473, 4294901760
    %7371 = vmatpush1.msra.mxu0 %v7370
    %7372 = vmatprep.subr.mxu0 0.0
    %v7373 = vand.u32 %v6472, 4294901760
    %7374 = vmatpush1.msra.mxu0 %v7373
    %7375 = vmatprep.subr.mxu0 0.0
    %7376 = vmatpush2.msra.mxu0 0.0
    %7377 = vmatprep.subr.mxu0 0.0
    %7378 = vmatpush2.msra.mxu0 0.0
    %7379 = vmatprep.subr.mxu0 0.0
    %7380 = vmatpush2.msra.mxu0 0.0
    %7381 = vmatprep.subr.mxu0 0.0
    %7382 = vmatpush2.msra.mxu0 0.0
    %7383 = vmatprep.subr.mxu0 0.0
    %7384 = vmatpush2.msra.mxu0 0.0
    %7385 = vmatprep.subr.mxu0 0.0
    %7386 = vmatpush2.msra.mxu0 0.0
    %7387 = vmatprep.subr.mxu0 0.0
    %7388 = vmatpush2.msra.mxu0 0.0
    %7389 = vmatprep.subr.mxu0 0.0
    %7390 = vmatpush2.msra.mxu0 0.0
    %7391 = vmatprep.subr.mxu0 0.0
    %7392 = vmatpush2.msra.mxu0 0.0
    %7393 = vmatprep.subr.mxu0 0.0
    %7394 = vmatpush2.msra.mxu0 0.0
    %7395 = vmatprep.subr.mxu0 0.0
    %7396 = vmatpush2.msra.mxu0 0.0
    %7397 = vmatprep.subr.mxu0 0.0
    %7398 = vmatpush2.msra.mxu0 0.0
    %7399 = vmatprep.subr.mxu0 0.0
    %7400 = vmatpush2.msra.mxu0 0.0
    %7401 = vmatprep.subr.mxu0 0.0
    %7402 = vmatpush2.msra.mxu0 0.0
    %7403 = vmatprep.subr.mxu0 0.0
    %7404 = vmatpush2.msra.mxu0 0.0
    %7405 = vmatprep.subr.mxu0 0.0
    %7406 = vmatpush2.msra.mxu0 0.0
    %7407 = vmatprep.mubr.f32.mxu0 0.0
    %v7408 = vand.u32 %v7051, 4294901760
    %v7409 = vsub.f32 %v7051, %v7408
    %v7410 = vand.u32 %v7409, 4294901760
    %7411 = vmatmul.mubr.f32.gmra.mxu0 %v7410
    %v7412 = vpop.f32.mrf.mxu0
    %v7413 = vadd.f32 %v7332, %v7412
    %v7414 = vpop.f32.mrf.mxu0
    %7415 = vdwg.mxu0
    %7416 = vmatprep.subr.mxu0 0.0
    %7417 = vmatpush1.msra.mxu0 0.0
    %7418 = vmatprep.subr.mxu0 0.0
    %7419 = vmatpush1.msra.mxu0 0.0
    %7420 = vmatprep.subr.mxu0 0.0
    %7421 = vmatpush1.msra.mxu0 0.0
    %7422 = vmatprep.subr.mxu0 0.0
    %7423 = vmatpush1.msra.mxu0 0.0
    %7424 = vmatprep.subr.mxu0 0.0
    %7425 = vmatpush1.msra.mxu0 0.0
    %7426 = vmatprep.subr.mxu0 0.0
    %7427 = vmatpush1.msra.mxu0 0.0
    %7428 = vmatprep.subr.mxu0 0.0
    %7429 = vmatpush1.msra.mxu0 0.0
    %7430 = vmatprep.subr.mxu0 0.0
    %7431 = vmatpush1.msra.mxu0 0.0
    %7432 = vmatprep.subr.mxu0 0.0
    %v7433 = vand.u32 %v6479, 4294901760
    %v7434 = vsub.f32 %v6479, %v7433
    %v7435 = vand.u32 %v7434, 4294901760
    %7436 = vmatpush1.msra.mxu0 %v7435
    %7437 = vmatprep.subr.mxu0 0.0
    %v7438 = vand.u32 %v6478, 4294901760
    %v7439 = vsub.f32 %v6478, %v7438
    %v7440 = vand.u32 %v7439, 4294901760
    %7441 = vmatpush1.msra.mxu0 %v7440
    %7442 = vmatprep.subr.mxu0 0.0
    %v7443 = vand.u32 %v6477, 4294901760
    %v7444 = vsub.f32 %v6477, %v7443
    %v7445 = vand.u32 %v7444, 4294901760
    %7446 = vmatpush1.msra.mxu0 %v7445
    %7447 = vmatprep.subr.mxu0 0.0
    %v7448 = vand.u32 %v6476, 4294901760
    %v7449 = vsub.f32 %v6476, %v7448
    %v7450 = vand.u32 %v7449, 4294901760
    %7451 = vmatpush1.msra.mxu0 %v7450
    %7452 = vmatprep.subr.mxu0 0.0
    %v7453 = vand.u32 %v6475, 4294901760
    %v7454 = vsub.f32 %v6475, %v7453
    %v7455 = vand.u32 %v7454, 4294901760
    %7456 = vmatpush1.msra.mxu0 %v7455
    %7457 = vmatprep.subr.mxu0 0.0
    %v7458 = vand.u32 %v6474, 4294901760
    %v7459 = vsub.f32 %v6474, %v7458
    %v7460 = vand.u32 %v7459, 4294901760
    %7461 = vmatpush1.msra.mxu0 %v7460
    %7462 = vmatprep.subr.mxu0 0.0
    %v7463 = vand.u32 %v6473, 4294901760
    %v7464 = vsub.f32 %v6473, %v7463
    %v7465 = vand.u32 %v7464, 4294901760
    %7466 = vmatpush1.msra.mxu0 %v7465
    %7467 = vmatprep.subr.mxu0 0.0
    %v7468 = vand.u32 %v6472, 4294901760
    %v7469 = vsub.f32 %v6472, %v7468
    %v7470 = vand.u32 %v7469, 4294901760
    %7471 = vmatpush1.msra.mxu0 %v7470
    %7472 = vmatprep.subr.mxu0 0.0
    %7473 = vmatpush2.msra.mxu0 0.0
    %7474 = vmatprep.subr.mxu0 0.0
    %7475 = vmatpush2.msra.mxu0 0.0
    %7476 = vmatprep.subr.mxu0 0.0
    %7477 = vmatpush2.msra.mxu0 0.0
    %7478 = vmatprep.subr.mxu0 0.0
    %7479 = vmatpush2.msra.mxu0 0.0
    %7480 = vmatprep.subr.mxu0 0.0
    %7481 = vmatpush2.msra.mxu0 0.0
    %7482 = vmatprep.subr.mxu0 0.0
    %7483 = vmatpush2.msra.mxu0 0.0
    %7484 = vmatprep.subr.mxu0 0.0
    %7485 = vmatpush2.msra.mxu0 0.0
    %7486 = vmatprep.subr.mxu0 0.0
    %7487 = vmatpush2.msra.mxu0 0.0
    %7488 = vmatprep.subr.mxu0 0.0
    %7489 = vmatpush2.msra.mxu0 0.0
    %7490 = vmatprep.subr.mxu0 0.0
    %7491 = vmatpush2.msra.mxu0 0.0
    %7492 = vmatprep.subr.mxu0 0.0
    %7493 = vmatpush2.msra.mxu0 0.0
    %7494 = vmatprep.subr.mxu0 0.0
    %7495 = vmatpush2.msra.mxu0 0.0
    %7496 = vmatprep.subr.mxu0 0.0
    %7497 = vmatpush2.msra.mxu0 0.0
    %7498 = vmatprep.subr.mxu0 0.0
    %7499 = vmatpush2.msra.mxu0 0.0
    %7500 = vmatprep.subr.mxu0 0.0
    %7501 = vmatpush2.msra.mxu0 0.0
    %7502 = vmatprep.subr.mxu0 0.0
    %7503 = vmatpush2.msra.mxu0 0.0
    %7504 = vmatprep.mubr.f32.mxu0 0.0
    %v7505 = vand.u32 %v7051, 4294901760
    %7506 = vmatmul.mubr.f32.gmra.mxu0 %v7505
    %v7507 = vpop.f32.mrf.mxu0
    %v7508 = vadd.f32 %v7413, %v7507
    %v7509 = vpop.f32.mrf.mxu0
    %7510 = vdwg.mxu0
    %7511 = vmatprep.subr.mxu0 0.0
    %7512 = vmatpush1.msra.mxu0 0.0
    %7513 = vmatprep.subr.mxu0 0.0
    %7514 = vmatpush1.msra.mxu0 0.0
    %7515 = vmatprep.subr.mxu0 0.0
    %7516 = vmatpush1.msra.mxu0 0.0
    %7517 = vmatprep.subr.mxu0 0.0
    %7518 = vmatpush1.msra.mxu0 0.0
    %7519 = vmatprep.subr.mxu0 0.0
    %7520 = vmatpush1.msra.mxu0 0.0
    %7521 = vmatprep.subr.mxu0 0.0
    %7522 = vmatpush1.msra.mxu0 0.0
    %7523 = vmatprep.subr.mxu0 0.0
    %7524 = vmatpush1.msra.mxu0 0.0
    %7525 = vmatprep.subr.mxu0 0.0
    %7526 = vmatpush1.msra.mxu0 0.0
    %7527 = vmatprep.subr.mxu0 0.0
    %v7528 = vand.u32 %v6479, 4294901760
    %7529 = vmatpush1.msra.mxu0 %v7528
    %7530 = vmatprep.subr.mxu0 0.0
    %v7531 = vand.u32 %v6478, 4294901760
    %7532 = vmatpush1.msra.mxu0 %v7531
    %7533 = vmatprep.subr.mxu0 0.0
    %v7534 = vand.u32 %v6477, 4294901760
    %7535 = vmatpush1.msra.mxu0 %v7534
    %7536 = vmatprep.subr.mxu0 0.0
    %v7537 = vand.u32 %v6476, 4294901760
    %7538 = vmatpush1.msra.mxu0 %v7537
    %7539 = vmatprep.subr.mxu0 0.0
    %v7540 = vand.u32 %v6475, 4294901760
    %7541 = vmatpush1.msra.mxu0 %v7540
    %7542 = vmatprep.subr.mxu0 0.0
    %v7543 = vand.u32 %v6474, 4294901760
    %7544 = vmatpush1.msra.mxu0 %v7543
    %7545 = vmatprep.subr.mxu0 0.0
    %v7546 = vand.u32 %v6473, 4294901760
    %7547 = vmatpush1.msra.mxu0 %v7546
    %7548 = vmatprep.subr.mxu0 0.0
    %v7549 = vand.u32 %v6472, 4294901760
    %7550 = vmatpush1.msra.mxu0 %v7549
    %7551 = vmatprep.subr.mxu0 0.0
    %7552 = vmatpush2.msra.mxu0 0.0
    %7553 = vmatprep.subr.mxu0 0.0
    %7554 = vmatpush2.msra.mxu0 0.0
    %7555 = vmatprep.subr.mxu0 0.0
    %7556 = vmatpush2.msra.mxu0 0.0
    %7557 = vmatprep.subr.mxu0 0.0
    %7558 = vmatpush2.msra.mxu0 0.0
    %7559 = vmatprep.subr.mxu0 0.0
    %7560 = vmatpush2.msra.mxu0 0.0
    %7561 = vmatprep.subr.mxu0 0.0
    %7562 = vmatpush2.msra.mxu0 0.0
    %7563 = vmatprep.subr.mxu0 0.0
    %7564 = vmatpush2.msra.mxu0 0.0
    %7565 = vmatprep.subr.mxu0 0.0
    %7566 = vmatpush2.msra.mxu0 0.0
    %7567 = vmatprep.subr.mxu0 0.0
    %7568 = vmatpush2.msra.mxu0 0.0
    %7569 = vmatprep.subr.mxu0 0.0
    %7570 = vmatpush2.msra.mxu0 0.0
    %7571 = vmatprep.subr.mxu0 0.0
    %7572 = vmatpush2.msra.mxu0 0.0
    %7573 = vmatprep.subr.mxu0 0.0
    %7574 = vmatpush2.msra.mxu0 0.0
    %7575 = vmatprep.subr.mxu0 0.0
    %7576 = vmatpush2.msra.mxu0 0.0
    %7577 = vmatprep.subr.mxu0 0.0
    %7578 = vmatpush2.msra.mxu0 0.0
    %7579 = vmatprep.subr.mxu0 0.0
    %7580 = vmatpush2.msra.mxu0 0.0
    %7581 = vmatprep.subr.mxu0 0.0
    %7582 = vmatpush2.msra.mxu0 0.0
    %7583 = vmatprep.mubr.f32.mxu0 0.0
    %v7584 = vand.u32 %v7051, 4294901760
    %7585 = vmatmul.mubr.f32.gmra.mxu0 %v7584
    %v7586 = vpop.f32.mrf.mxu0
    %v7587 = vadd.f32 %v7508, %v7586
    %v7588 = vpop.f32.mrf.mxu0
    %7589 = vdwg.mxu0
    %v7590 = vmul.f32 %v7030, %v7030
    %v7591 = vsub.f32 %v7587, %v7590
    %v7592 = vld [vmem:[%s2 + $0x122] sm:$0x1]
    %v7593 = vld [vmem:[%s2 + $0x123] sm:$0x1]
    %v7594 = vlaneseq
    %v7595 = vshrl.u32 %v7594, 7
    %v7596 = vsub.s32 0, %v7595
    %v7597 = vrot.slane %v7030, %v7596
    %v7598 = vsub.f32 %v6451, %v7597
    %v7599 = vsub.f32 %v6457, %v7597
    %v7600 = vsub.f32 %v6463, %v7597
    %v7601 = vsub.f32 %v6469, %v7597
    %v7602 = vadd.f32 %v7591, 1e-05
    %v7603 = vrsqrt.pop %v7602
    %v7604 = vlaneseq
    %v7605 = vshrl.u32 %v7604, 7
    %v7606 = vsub.s32 0, %v7605
    %v7607 = vrot.slane %v7603, %v7606
    %v7608 = vmul.f32 %v7598, %v7607
    %v7609 = vmul.f32 %v7599, %v7607
    %v7610 = vmul.f32 %v7600, %v7607
    %v7611 = vmul.f32 %v7601, %v7607
    %v7612 = vlaneseq
    %v7613 = vshrl.u32 %v7612, 7
    %v7614 = vsub.s32 0, %v7613
    %v7615 = vrot.slane %v7592, %v7614
    %v7616 = vmul.f32 %v7608, %v7615
    %v7617 = vmul.f32 %v7609, %v7615
    %v7618 = vmul.f32 %v7610, %v7615
    %v7619 = vmul.f32 %v7611, %v7615
    %v7620 = vlaneseq
    %v7621 = vshrl.u32 %v7620, 7
    %v7622 = vsub.s32 0, %v7621
    %v7623 = vrot.slane %v7593, %v7622
    %v7624 = vadd.f32 %v7616, %v7623
    %v7625 = vadd.f32 %v7617, %v7623
    %v7626 = vadd.f32 %v7618, %v7623
    %v7627 = vadd.f32 %v7619, %v7623
    %v7628 = vmax.f32 %v7624, 0.0
    %v7629 = vmax.f32 %v7625, 0.0
    %v7630 = vmax.f32 %v7626, 0.0
    %v7631 = vmax.f32 %v7627, 0.0
    %v7632 = vld [vmem:[%s2 + $0x60] sm:$0xff]
    %v7633 = vld [vmem:[%s2 + $0x68] sm:$0xff]
    %v7634 = vld [vmem:[%s2 + $0x70] sm:$0xff]
    %v7635 = vld [vmem:[%s2 + $0x78] sm:$0xff]
    %v7636 = vld [vmem:[%s2 + $0x80] sm:$0xff]
    %v7637 = vld [vmem:[%s2 + $0x88] sm:$0xff]
    %v7638 = vld [vmem:[%s2 + $0x90] sm:$0xff]
    %v7639 = vld [vmem:[%s2 + $0x98] sm:$0xff]
    %v7641 = vsel %vm37, %v7628, 0
    %v7644 = vsel %vm37, %v7629, 0
    %v7647 = vsel %vm37, %v7630, 0
    %v7650 = vsel %vm37, %v7631, 0
    %7652 = vmatprep.subr.mxu0 0.0
    %7653 = vmatpush1.msra.mxu0 0.0
    %7654 = vmatprep.subr.mxu0 0.0
    %7655 = vmatpush1.msra.mxu0 0.0
    %7656 = vmatprep.subr.mxu0 0.0
    %7657 = vmatpush1.msra.mxu0 0.0
    %7658 = vmatprep.subr.mxu0 0.0
    %7659 = vmatpush1.msra.mxu0 0.0
    %7660 = vmatprep.subr.mxu0 0.0
    %7661 = vmatpush1.msra.mxu0 0.0
    %7662 = vmatprep.subr.mxu0 0.0
    %7663 = vmatpush1.msra.mxu0 0.0
    %7664 = vmatprep.subr.mxu0 0.0
    %7665 = vmatpush1.msra.mxu0 0.0
    %7666 = vmatprep.subr.mxu0 0.0
    %7667 = vmatpush1.msra.mxu0 0.0
    %7668 = vmatprep.subr.mxu0 0.0
    %v7669 = vand.u32 %v7639, 4294901760
    %7670 = vmatpush1.msra.mxu0 %v7669
    %7671 = vmatprep.subr.mxu0 0.0
    %v7672 = vand.u32 %v7638, 4294901760
    %7673 = vmatpush1.msra.mxu0 %v7672
    %7674 = vmatprep.subr.mxu0 0.0
    %v7675 = vand.u32 %v7637, 4294901760
    %7676 = vmatpush1.msra.mxu0 %v7675
    %7677 = vmatprep.subr.mxu0 0.0
    %v7678 = vand.u32 %v7636, 4294901760
    %7679 = vmatpush1.msra.mxu0 %v7678
    %7680 = vmatprep.subr.mxu0 0.0
    %v7681 = vand.u32 %v7635, 4294901760
    %7682 = vmatpush1.msra.mxu0 %v7681
    %7683 = vmatprep.subr.mxu0 0.0
    %v7684 = vand.u32 %v7634, 4294901760
    %7685 = vmatpush1.msra.mxu0 %v7684
    %7686 = vmatprep.subr.mxu0 0.0
    %v7687 = vand.u32 %v7633, 4294901760
    %7688 = vmatpush1.msra.mxu0 %v7687
    %7689 = vmatprep.subr.mxu0 0.0
    %v7690 = vand.u32 %v7632, 4294901760
    %7691 = vmatpush1.msra.mxu0 %v7690
    %7692 = vmatprep.subr.mxu0 0.0
    %7693 = vmatpush2.msra.mxu0 0.0
    %7694 = vmatprep.subr.mxu0 0.0
    %7695 = vmatpush2.msra.mxu0 0.0
    %7696 = vmatprep.subr.mxu0 0.0
    %7697 = vmatpush2.msra.mxu0 0.0
    %7698 = vmatprep.subr.mxu0 0.0
    %7699 = vmatpush2.msra.mxu0 0.0
    %7700 = vmatprep.subr.mxu0 0.0
    %7701 = vmatpush2.msra.mxu0 0.0
    %7702 = vmatprep.subr.mxu0 0.0
    %7703 = vmatpush2.msra.mxu0 0.0
    %7704 = vmatprep.subr.mxu0 0.0
    %7705 = vmatpush2.msra.mxu0 0.0
    %7706 = vmatprep.subr.mxu0 0.0
    %7707 = vmatpush2.msra.mxu0 0.0
    %7708 = vmatprep.subr.mxu0 0.0
    %7709 = vmatpush2.msra.mxu0 0.0
    %7710 = vmatprep.subr.mxu0 0.0
    %7711 = vmatpush2.msra.mxu0 0.0
    %7712 = vmatprep.subr.mxu0 0.0
    %7713 = vmatpush2.msra.mxu0 0.0
    %7714 = vmatprep.subr.mxu0 0.0
    %7715 = vmatpush2.msra.mxu0 0.0
    %7716 = vmatprep.subr.mxu0 0.0
    %7717 = vmatpush2.msra.mxu0 0.0
    %7718 = vmatprep.subr.mxu0 0.0
    %7719 = vmatpush2.msra.mxu0 0.0
    %7720 = vmatprep.subr.mxu0 0.0
    %7721 = vmatpush2.msra.mxu0 0.0
    %7722 = vmatprep.subr.mxu0 0.0
    %7723 = vmatpush2.msra.mxu0 0.0
    %7724 = vmatprep.mubr.f32.mxu0 0.0
    %v7725 = vand.u32 %v7641, 4294901760
    %v7726 = vsub.f32 %v7641, %v7725
    %v7727 = vand.u32 %v7726, 4294901760
    %v7728 = vsub.f32 %v7726, %v7727
    %v7729 = vand.u32 %v7728, 4294901760
    %7730 = vmatmul.mubr.f32.gmra.mxu0 %v7729
    %v7731 = vpop.f32.mrf.mxu0
    %v7732 = vadd.f32 0.0, %v7731
    %v7733 = vpop.f32.mrf.mxu0
    %7734 = vmatprep.mubr.f32.mxu0 0.0
    %v7735 = vand.u32 %v7644, 4294901760
    %v7736 = vsub.f32 %v7644, %v7735
    %v7737 = vand.u32 %v7736, 4294901760
    %v7738 = vsub.f32 %v7736, %v7737
    %v7739 = vand.u32 %v7738, 4294901760
    %7740 = vmatmul.mubr.f32.gmra.mxu0 %v7739
    %v7741 = vpop.f32.mrf.mxu0
    %v7742 = vadd.f32 0.0, %v7741
    %v7743 = vpop.f32.mrf.mxu0
    %7744 = vmatprep.mubr.f32.mxu0 0.0
    %v7745 = vand.u32 %v7647, 4294901760
    %v7746 = vsub.f32 %v7647, %v7745
    %v7747 = vand.u32 %v7746, 4294901760
    %v7748 = vsub.f32 %v7746, %v7747
    %v7749 = vand.u32 %v7748, 4294901760
    %7750 = vmatmul.mubr.f32.gmra.mxu0 %v7749
    %v7751 = vpop.f32.mrf.mxu0
    %v7752 = vadd.f32 0.0, %v7751
    %v7753 = vpop.f32.mrf.mxu0
    %7754 = vmatprep.mubr.f32.mxu0 0.0
    %v7755 = vand.u32 %v7650, 4294901760
    %v7756 = vsub.f32 %v7650, %v7755
    %v7757 = vand.u32 %v7756, 4294901760
    %v7758 = vsub.f32 %v7756, %v7757
    %v7759 = vand.u32 %v7758, 4294901760
    %7760 = vmatmul.mubr.f32.gmra.mxu0 %v7759
    %v7761 = vpop.f32.mrf.mxu0
    %v7762 = vadd.f32 0.0, %v7761
    %v7763 = vpop.f32.mrf.mxu0
    %7764 = vdwg.mxu0
    %7765 = vmatprep.subr.mxu0 0.0
    %7766 = vmatpush1.msra.mxu0 0.0
    %7767 = vmatprep.subr.mxu0 0.0
    %7768 = vmatpush1.msra.mxu0 0.0
    %7769 = vmatprep.subr.mxu0 0.0
    %7770 = vmatpush1.msra.mxu0 0.0
    %7771 = vmatprep.subr.mxu0 0.0
    %7772 = vmatpush1.msra.mxu0 0.0
    %7773 = vmatprep.subr.mxu0 0.0
    %7774 = vmatpush1.msra.mxu0 0.0
    %7775 = vmatprep.subr.mxu0 0.0
    %7776 = vmatpush1.msra.mxu0 0.0
    %7777 = vmatprep.subr.mxu0 0.0
    %7778 = vmatpush1.msra.mxu0 0.0
    %7779 = vmatprep.subr.mxu0 0.0
    %7780 = vmatpush1.msra.mxu0 0.0
    %7781 = vmatprep.subr.mxu0 0.0
    %v7782 = vand.u32 %v7639, 4294901760
    %v7783 = vsub.f32 %v7639, %v7782
    %v7784 = vand.u32 %v7783, 4294901760
    %v7785 = vsub.f32 %v7783, %v7784
    %v7786 = vand.u32 %v7785, 4294901760
    %7787 = vmatpush1.msra.mxu0 %v7786
    %7788 = vmatprep.subr.mxu0 0.0
    %v7789 = vand.u32 %v7638, 4294901760
    %v7790 = vsub.f32 %v7638, %v7789
    %v7791 = vand.u32 %v7790, 4294901760
    %v7792 = vsub.f32 %v7790, %v7791
    %v7793 = vand.u32 %v7792, 4294901760
    %7794 = vmatpush1.msra.mxu0 %v7793
    %7795 = vmatprep.subr.mxu0 0.0
    %v7796 = vand.u32 %v7637, 4294901760
    %v7797 = vsub.f32 %v7637, %v7796
    %v7798 = vand.u32 %v7797, 4294901760
    %v7799 = vsub.f32 %v7797, %v7798
    %v7800 = vand.u32 %v7799, 4294901760
    %7801 = vmatpush1.msra.mxu0 %v7800
    %7802 = vmatprep.subr.mxu0 0.0
    %v7803 = vand.u32 %v7636, 4294901760
    %v7804 = vsub.f32 %v7636, %v7803
    %v7805 = vand.u32 %v7804, 4294901760
    %v7806 = vsub.f32 %v7804, %v7805
    %v7807 = vand.u32 %v7806, 4294901760
    %7808 = vmatpush1.msra.mxu0 %v7807
    %7809 = vmatprep.subr.mxu0 0.0
    %v7810 = vand.u32 %v7635, 4294901760
    %v7811 = vsub.f32 %v7635, %v7810
    %v7812 = vand.u32 %v7811, 4294901760
    %v7813 = vsub.f32 %v7811, %v7812
    %v7814 = vand.u32 %v7813, 4294901760
    %7815 = vmatpush1.msra.mxu0 %v7814
    %7816 = vmatprep.subr.mxu0 0.0
    %v7817 = vand.u32 %v7634, 4294901760
    %v7818 = vsub.f32 %v7634, %v7817
    %v7819 = vand.u32 %v7818, 4294901760
    %v7820 = vsub.f32 %v7818, %v7819
    %v7821 = vand.u32 %v7820, 4294901760
    %7822 = vmatpush1.msra.mxu0 %v7821
    %7823 = vmatprep.subr.mxu0 0.0
    %v7824 = vand.u32 %v7633, 4294901760
    %v7825 = vsub.f32 %v7633, %v7824
    %v7826 = vand.u32 %v7825, 4294901760
    %v7827 = vsub.f32 %v7825, %v7826
    %v7828 = vand.u32 %v7827, 4294901760
    %7829 = vmatpush1.msra.mxu0 %v7828
    %7830 = vmatprep.subr.mxu0 0.0
    %v7831 = vand.u32 %v7632, 4294901760
    %v7832 = vsub.f32 %v7632, %v7831
    %v7833 = vand.u32 %v7832, 4294901760
    %v7834 = vsub.f32 %v7832, %v7833
    %v7835 = vand.u32 %v7834, 4294901760
    %7836 = vmatpush1.msra.mxu0 %v7835
    %7837 = vmatprep.subr.mxu0 0.0
    %7838 = vmatpush2.msra.mxu0 0.0
    %7839 = vmatprep.subr.mxu0 0.0
    %7840 = vmatpush2.msra.mxu0 0.0
    %7841 = vmatprep.subr.mxu0 0.0
    %7842 = vmatpush2.msra.mxu0 0.0
    %7843 = vmatprep.subr.mxu0 0.0
    %7844 = vmatpush2.msra.mxu0 0.0
    %7845 = vmatprep.subr.mxu0 0.0
    %7846 = vmatpush2.msra.mxu0 0.0
    %7847 = vmatprep.subr.mxu0 0.0
    %7848 = vmatpush2.msra.mxu0 0.0
    %7849 = vmatprep.subr.mxu0 0.0
    %7850 = vmatpush2.msra.mxu0 0.0
    %7851 = vmatprep.subr.mxu0 0.0
    %7852 = vmatpush2.msra.mxu0 0.0
    %7853 = vmatprep.subr.mxu0 0.0
    %7854 = vmatpush2.msra.mxu0 0.0
    %7855 = vmatprep.subr.mxu0 0.0
    %7856 = vmatpush2.msra.mxu0 0.0
    %7857 = vmatprep.subr.mxu0 0.0
    %7858 = vmatpush2.msra.mxu0 0.0
    %7859 = vmatprep.subr.mxu0 0.0
    %7860 = vmatpush2.msra.mxu0 0.0
    %7861 = vmatprep.subr.mxu0 0.0
    %7862 = vmatpush2.msra.mxu0 0.0
    %7863 = vmatprep.subr.mxu0 0.0
    %7864 = vmatpush2.msra.mxu0 0.0
    %7865 = vmatprep.subr.mxu0 0.0
    %7866 = vmatpush2.msra.mxu0 0.0
    %7867 = vmatprep.subr.mxu0 0.0
    %7868 = vmatpush2.msra.mxu0 0.0
    %7869 = vmatprep.mubr.f32.mxu0 0.0
    %v7870 = vand.u32 %v7641, 4294901760
    %7871 = vmatmul.mubr.f32.gmra.mxu0 %v7870
    %v7872 = vpop.f32.mrf.mxu0
    %v7873 = vadd.f32 %v7732, %v7872
    %v7874 = vpop.f32.mrf.mxu0
    %7875 = vmatprep.mubr.f32.mxu0 0.0
    %v7876 = vand.u32 %v7644, 4294901760
    %7877 = vmatmul.mubr.f32.gmra.mxu0 %v7876
    %v7878 = vpop.f32.mrf.mxu0
    %v7879 = vadd.f32 %v7742, %v7878
    %v7880 = vpop.f32.mrf.mxu0
    %7881 = vmatprep.mubr.f32.mxu0 0.0
    %v7882 = vand.u32 %v7647, 4294901760
    %7883 = vmatmul.mubr.f32.gmra.mxu0 %v7882
    %v7884 = vpop.f32.mrf.mxu0
    %v7885 = vadd.f32 %v7752, %v7884
    %v7886 = vpop.f32.mrf.mxu0
    %7887 = vmatprep.mubr.f32.mxu0 0.0
    %v7888 = vand.u32 %v7650, 4294901760
    %7889 = vmatmul.mubr.f32.gmra.mxu0 %v7888
    %v7890 = vpop.f32.mrf.mxu0
    %v7891 = vadd.f32 %v7762, %v7890
    %v7892 = vpop.f32.mrf.mxu0
    %7893 = vdwg.mxu0
    %7894 = vmatprep.subr.mxu0 0.0
    %7895 = vmatpush1.msra.mxu0 0.0
    %7896 = vmatprep.subr.mxu0 0.0
    %7897 = vmatpush1.msra.mxu0 0.0
    %7898 = vmatprep.subr.mxu0 0.0
    %7899 = vmatpush1.msra.mxu0 0.0
    %7900 = vmatprep.subr.mxu0 0.0
    %7901 = vmatpush1.msra.mxu0 0.0
    %7902 = vmatprep.subr.mxu0 0.0
    %7903 = vmatpush1.msra.mxu0 0.0
    %7904 = vmatprep.subr.mxu0 0.0
    %7905 = vmatpush1.msra.mxu0 0.0
    %7906 = vmatprep.subr.mxu0 0.0
    %7907 = vmatpush1.msra.mxu0 0.0
    %7908 = vmatprep.subr.mxu0 0.0
    %7909 = vmatpush1.msra.mxu0 0.0
    %7910 = vmatprep.subr.mxu0 0.0
    %v7911 = vand.u32 %v7639, 4294901760
    %v7912 = vsub.f32 %v7639, %v7911
    %7913 = vmatpush1.msra.mxu0 %v7912
    %7914 = vmatprep.subr.mxu0 0.0
    %v7915 = vand.u32 %v7638, 4294901760
    %v7916 = vsub.f32 %v7638, %v7915
    %7917 = vmatpush1.msra.mxu0 %v7916
    %7918 = vmatprep.subr.mxu0 0.0
    %v7919 = vand.u32 %v7637, 4294901760
    %v7920 = vsub.f32 %v7637, %v7919
    %7921 = vmatpush1.msra.mxu0 %v7920
    %7922 = vmatprep.subr.mxu0 0.0
    %v7923 = vand.u32 %v7636, 4294901760
    %v7924 = vsub.f32 %v7636, %v7923
    %7925 = vmatpush1.msra.mxu0 %v7924
    %7926 = vmatprep.subr.mxu0 0.0
    %v7927 = vand.u32 %v7635, 4294901760
    %v7928 = vsub.f32 %v7635, %v7927
    %7929 = vmatpush1.msra.mxu0 %v7928
    %7930 = vmatprep.subr.mxu0 0.0
    %v7931 = vand.u32 %v7634, 4294901760
    %v7932 = vsub.f32 %v7634, %v7931
    %7933 = vmatpush1.msra.mxu0 %v7932
    %7934 = vmatprep.subr.mxu0 0.0
    %v7935 = vand.u32 %v7633, 4294901760
    %v7936 = vsub.f32 %v7633, %v7935
    %7937 = vmatpush1.msra.mxu0 %v7936
    %7938 = vmatprep.subr.mxu0 0.0
    %v7939 = vand.u32 %v7632, 4294901760
    %v7940 = vsub.f32 %v7632, %v7939
    %7941 = vmatpush1.msra.mxu0 %v7940
    %7942 = vmatprep.subr.mxu0 0.0
    %7943 = vmatpush2.msra.mxu0 0.0
    %7944 = vmatprep.subr.mxu0 0.0
    %7945 = vmatpush2.msra.mxu0 0.0
    %7946 = vmatprep.subr.mxu0 0.0
    %7947 = vmatpush2.msra.mxu0 0.0
    %7948 = vmatprep.subr.mxu0 0.0
    %7949 = vmatpush2.msra.mxu0 0.0
    %7950 = vmatprep.subr.mxu0 0.0
    %7951 = vmatpush2.msra.mxu0 0.0
    %7952 = vmatprep.subr.mxu0 0.0
    %7953 = vmatpush2.msra.mxu0 0.0
    %7954 = vmatprep.subr.mxu0 0.0
    %7955 = vmatpush2.msra.mxu0 0.0
    %7956 = vmatprep.subr.mxu0 0.0
    %7957 = vmatpush2.msra.mxu0 0.0
    %7958 = vmatprep.subr.mxu0 0.0
    %7959 = vmatpush2.msra.mxu0 0.0
    %7960 = vmatprep.subr.mxu0 0.0
    %7961 = vmatpush2.msra.mxu0 0.0
    %7962 = vmatprep.subr.mxu0 0.0
    %7963 = vmatpush2.msra.mxu0 0.0
    %7964 = vmatprep.subr.mxu0 0.0
    %7965 = vmatpush2.msra.mxu0 0.0
    %7966 = vmatprep.subr.mxu0 0.0
    %7967 = vmatpush2.msra.mxu0 0.0
    %7968 = vmatprep.subr.mxu0 0.0
    %7969 = vmatpush2.msra.mxu0 0.0
    %7970 = vmatprep.subr.mxu0 0.0
    %7971 = vmatpush2.msra.mxu0 0.0
    %7972 = vmatprep.subr.mxu0 0.0
    %7973 = vmatpush2.msra.mxu0 0.0
    %7974 = vmatprep.mubr.f32.mxu0 0.0
    %v7975 = vand.u32 %v7641, 4294901760
    %v7976 = vsub.f32 %v7641, %v7975
    %7977 = vmatmul.mubr.f32.gmra.mxu0 %v7976
    %v7978 = vpop.f32.mrf.mxu0
    %v7979 = vadd.f32 %v7873, %v7978
    %v7980 = vpop.f32.mrf.mxu0
    %7981 = vmatprep.mubr.f32.mxu0 0.0
    %v7982 = vand.u32 %v7644, 4294901760
    %v7983 = vsub.f32 %v7644, %v7982
    %7984 = vmatmul.mubr.f32.gmra.mxu0 %v7983
    %v7985 = vpop.f32.mrf.mxu0
    %v7986 = vadd.f32 %v7879, %v7985
    %v7987 = vpop.f32.mrf.mxu0
    %7988 = vmatprep.mubr.f32.mxu0 0.0
    %v7989 = vand.u32 %v7647, 4294901760
    %v7990 = vsub.f32 %v7647, %v7989
    %7991 = vmatmul.mubr.f32.gmra.mxu0 %v7990
    %v7992 = vpop.f32.mrf.mxu0
    %v7993 = vadd.f32 %v7885, %v7992
    %v7994 = vpop.f32.mrf.mxu0
    %7995 = vmatprep.mubr.f32.mxu0 0.0
    %v7996 = vand.u32 %v7650, 4294901760
    %v7997 = vsub.f32 %v7650, %v7996
    %7998 = vmatmul.mubr.f32.gmra.mxu0 %v7997
    %v7999 = vpop.f32.mrf.mxu0
    %v8000 = vadd.f32 %v7891, %v7999
    %v8001 = vpop.f32.mrf.mxu0
    %8002 = vdwg.mxu0
    %8003 = vmatprep.subr.mxu0 0.0
    %8004 = vmatpush1.msra.mxu0 0.0
    %8005 = vmatprep.subr.mxu0 0.0
    %8006 = vmatpush1.msra.mxu0 0.0
    %8007 = vmatprep.subr.mxu0 0.0
    %8008 = vmatpush1.msra.mxu0 0.0
    %8009 = vmatprep.subr.mxu0 0.0
    %8010 = vmatpush1.msra.mxu0 0.0
    %8011 = vmatprep.subr.mxu0 0.0
    %8012 = vmatpush1.msra.mxu0 0.0
    %8013 = vmatprep.subr.mxu0 0.0
    %8014 = vmatpush1.msra.mxu0 0.0
    %8015 = vmatprep.subr.mxu0 0.0
    %8016 = vmatpush1.msra.mxu0 0.0
    %8017 = vmatprep.subr.mxu0 0.0
    %8018 = vmatpush1.msra.mxu0 0.0
    %8019 = vmatprep.subr.mxu0 0.0
    %v8020 = vand.u32 %v7639, 4294901760
    %8021 = vmatpush1.msra.mxu0 %v8020
    %8022 = vmatprep.subr.mxu0 0.0
    %v8023 = vand.u32 %v7638, 4294901760
    %8024 = vmatpush1.msra.mxu0 %v8023
    %8025 = vmatprep.subr.mxu0 0.0
    %v8026 = vand.u32 %v7637, 4294901760
    %8027 = vmatpush1.msra.mxu0 %v8026
    %8028 = vmatprep.subr.mxu0 0.0
    %v8029 = vand.u32 %v7636, 4294901760
    %8030 = vmatpush1.msra.mxu0 %v8029
    %8031 = vmatprep.subr.mxu0 0.0
    %v8032 = vand.u32 %v7635, 4294901760
    %8033 = vmatpush1.msra.mxu0 %v8032
    %8034 = vmatprep.subr.mxu0 0.0
    %v8035 = vand.u32 %v7634, 4294901760
    %8036 = vmatpush1.msra.mxu0 %v8035
    %8037 = vmatprep.subr.mxu0 0.0
    %v8038 = vand.u32 %v7633, 4294901760
    %8039 = vmatpush1.msra.mxu0 %v8038
    %8040 = vmatprep.subr.mxu0 0.0
    %v8041 = vand.u32 %v7632, 4294901760
    %8042 = vmatpush1.msra.mxu0 %v8041
    %8043 = vmatprep.subr.mxu0 0.0
    %8044 = vmatpush2.msra.mxu0 0.0
    %8045 = vmatprep.subr.mxu0 0.0
    %8046 = vmatpush2.msra.mxu0 0.0
    %8047 = vmatprep.subr.mxu0 0.0
    %8048 = vmatpush2.msra.mxu0 0.0
    %8049 = vmatprep.subr.mxu0 0.0
    %8050 = vmatpush2.msra.mxu0 0.0
    %8051 = vmatprep.subr.mxu0 0.0
    %8052 = vmatpush2.msra.mxu0 0.0
    %8053 = vmatprep.subr.mxu0 0.0
    %8054 = vmatpush2.msra.mxu0 0.0
    %8055 = vmatprep.subr.mxu0 0.0
    %8056 = vmatpush2.msra.mxu0 0.0
    %8057 = vmatprep.subr.mxu0 0.0
    %8058 = vmatpush2.msra.mxu0 0.0
    %8059 = vmatprep.subr.mxu0 0.0
    %8060 = vmatpush2.msra.mxu0 0.0
    %8061 = vmatprep.subr.mxu0 0.0
    %8062 = vmatpush2.msra.mxu0 0.0
    %8063 = vmatprep.subr.mxu0 0.0
    %8064 = vmatpush2.msra.mxu0 0.0
    %8065 = vmatprep.subr.mxu0 0.0
    %8066 = vmatpush2.msra.mxu0 0.0
    %8067 = vmatprep.subr.mxu0 0.0
    %8068 = vmatpush2.msra.mxu0 0.0
    %8069 = vmatprep.subr.mxu0 0.0
    %8070 = vmatpush2.msra.mxu0 0.0
    %8071 = vmatprep.subr.mxu0 0.0
    %8072 = vmatpush2.msra.mxu0 0.0
    %8073 = vmatprep.subr.mxu0 0.0
    %8074 = vmatpush2.msra.mxu0 0.0
    %8075 = vmatprep.mubr.f32.mxu0 0.0
    %v8076 = vand.u32 %v7641, 4294901760
    %v8077 = vsub.f32 %v7641, %v8076
    %v8078 = vand.u32 %v8077, 4294901760
    %8079 = vmatmul.mubr.f32.gmra.mxu0 %v8078
    %v8080 = vpop.f32.mrf.mxu0
    %v8081 = vadd.f32 %v7979, %v8080
    %v8082 = vpop.f32.mrf.mxu0
    %8083 = vmatprep.mubr.f32.mxu0 0.0
    %v8084 = vand.u32 %v7644, 4294901760
    %v8085 = vsub.f32 %v7644, %v8084
    %v8086 = vand.u32 %v8085, 4294901760
    %8087 = vmatmul.mubr.f32.gmra.mxu0 %v8086
    %v8088 = vpop.f32.mrf.mxu0
    %v8089 = vadd.f32 %v7986, %v8088
    %v8090 = vpop.f32.mrf.mxu0
    %8091 = vmatprep.mubr.f32.mxu0 0.0
    %v8092 = vand.u32 %v7647, 4294901760
    %v8093 = vsub.f32 %v7647, %v8092
    %v8094 = vand.u32 %v8093, 4294901760
    %8095 = vmatmul.mubr.f32.gmra.mxu0 %v8094
    %v8096 = vpop.f32.mrf.mxu0
    %v8097 = vadd.f32 %v7993, %v8096
    %v8098 = vpop.f32.mrf.mxu0
    %8099 = vmatprep.mubr.f32.mxu0 0.0
    %v8100 = vand.u32 %v7650, 4294901760
    %v8101 = vsub.f32 %v7650, %v8100
    %v8102 = vand.u32 %v8101, 4294901760
    %8103 = vmatmul.mubr.f32.gmra.mxu0 %v8102
    %v8104 = vpop.f32.mrf.mxu0
    %v8105 = vadd.f32 %v8000, %v8104
    %v8106 = vpop.f32.mrf.mxu0
    %8107 = vdwg.mxu0
    %8108 = vmatprep.subr.mxu0 0.0
    %8109 = vmatpush1.msra.mxu0 0.0
    %8110 = vmatprep.subr.mxu0 0.0
    %8111 = vmatpush1.msra.mxu0 0.0
    %8112 = vmatprep.subr.mxu0 0.0
    %8113 = vmatpush1.msra.mxu0 0.0
    %8114 = vmatprep.subr.mxu0 0.0
    %8115 = vmatpush1.msra.mxu0 0.0
    %8116 = vmatprep.subr.mxu0 0.0
    %8117 = vmatpush1.msra.mxu0 0.0
    %8118 = vmatprep.subr.mxu0 0.0
    %8119 = vmatpush1.msra.mxu0 0.0
    %8120 = vmatprep.subr.mxu0 0.0
    %8121 = vmatpush1.msra.mxu0 0.0
    %8122 = vmatprep.subr.mxu0 0.0
    %8123 = vmatpush1.msra.mxu0 0.0
    %8124 = vmatprep.subr.mxu0 0.0
    %v8125 = vand.u32 %v7639, 4294901760
    %v8126 = vsub.f32 %v7639, %v8125
    %v8127 = vand.u32 %v8126, 4294901760
    %8128 = vmatpush1.msra.mxu0 %v8127
    %8129 = vmatprep.subr.mxu0 0.0
    %v8130 = vand.u32 %v7638, 4294901760
    %v8131 = vsub.f32 %v7638, %v8130
    %v8132 = vand.u32 %v8131, 4294901760
    %8133 = vmatpush1.msra.mxu0 %v8132
    %8134 = vmatprep.subr.mxu0 0.0
    %v8135 = vand.u32 %v7637, 4294901760
    %v8136 = vsub.f32 %v7637, %v8135
    %v8137 = vand.u32 %v8136, 4294901760
    %8138 = vmatpush1.msra.mxu0 %v8137
    %8139 = vmatprep.subr.mxu0 0.0
    %v8140 = vand.u32 %v7636, 4294901760
    %v8141 = vsub.f32 %v7636, %v8140
    %v8142 = vand.u32 %v8141, 4294901760
    %8143 = vmatpush1.msra.mxu0 %v8142
    %8144 = vmatprep.subr.mxu0 0.0
    %v8145 = vand.u32 %v7635, 4294901760
    %v8146 = vsub.f32 %v7635, %v8145
    %v8147 = vand.u32 %v8146, 4294901760
    %8148 = vmatpush1.msra.mxu0 %v8147
    %8149 = vmatprep.subr.mxu0 0.0
    %v8150 = vand.u32 %v7634, 4294901760
    %v8151 = vsub.f32 %v7634, %v8150
    %v8152 = vand.u32 %v8151, 4294901760
    %8153 = vmatpush1.msra.mxu0 %v8152
    %8154 = vmatprep.subr.mxu0 0.0
    %v8155 = vand.u32 %v7633, 4294901760
    %v8156 = vsub.f32 %v7633, %v8155
    %v8157 = vand.u32 %v8156, 4294901760
    %8158 = vmatpush1.msra.mxu0 %v8157
    %8159 = vmatprep.subr.mxu0 0.0
    %v8160 = vand.u32 %v7632, 4294901760
    %v8161 = vsub.f32 %v7632, %v8160
    %v8162 = vand.u32 %v8161, 4294901760
    %8163 = vmatpush1.msra.mxu0 %v8162
    %8164 = vmatprep.subr.mxu0 0.0
    %8165 = vmatpush2.msra.mxu0 0.0
    %8166 = vmatprep.subr.mxu0 0.0
    %8167 = vmatpush2.msra.mxu0 0.0
    %8168 = vmatprep.subr.mxu0 0.0
    %8169 = vmatpush2.msra.mxu0 0.0
    %8170 = vmatprep.subr.mxu0 0.0
    %8171 = vmatpush2.msra.mxu0 0.0
    %8172 = vmatprep.subr.mxu0 0.0
    %8173 = vmatpush2.msra.mxu0 0.0
    %8174 = vmatprep.subr.mxu0 0.0
    %8175 = vmatpush2.msra.mxu0 0.0
    %8176 = vmatprep.subr.mxu0 0.0
    %8177 = vmatpush2.msra.mxu0 0.0
    %8178 = vmatprep.subr.mxu0 0.0
    %8179 = vmatpush2.msra.mxu0 0.0
    %8180 = vmatprep.subr.mxu0 0.0
    %8181 = vmatpush2.msra.mxu0 0.0
    %8182 = vmatprep.subr.mxu0 0.0
    %8183 = vmatpush2.msra.mxu0 0.0
    %8184 = vmatprep.subr.mxu0 0.0
    %8185 = vmatpush2.msra.mxu0 0.0
    %8186 = vmatprep.subr.mxu0 0.0
    %8187 = vmatpush2.msra.mxu0 0.0
    %8188 = vmatprep.subr.mxu0 0.0
    %8189 = vmatpush2.msra.mxu0 0.0
    %8190 = vmatprep.subr.mxu0 0.0
    %8191 = vmatpush2.msra.mxu0 0.0
    %8192 = vmatprep.subr.mxu0 0.0
    %8193 = vmatpush2.msra.mxu0 0.0
    %8194 = vmatprep.subr.mxu0 0.0
    %8195 = vmatpush2.msra.mxu0 0.0
    %8196 = vmatprep.mubr.f32.mxu0 0.0
    %v8197 = vand.u32 %v7641, 4294901760
    %8198 = vmatmul.mubr.f32.gmra.mxu0 %v8197
    %v8199 = vpop.f32.mrf.mxu0
    %v8200 = vadd.f32 %v8081, %v8199
    %v8201 = vpop.f32.mrf.mxu0
    %8202 = vmatprep.mubr.f32.mxu0 0.0
    %v8203 = vand.u32 %v7644, 4294901760
    %8204 = vmatmul.mubr.f32.gmra.mxu0 %v8203
    %v8205 = vpop.f32.mrf.mxu0
    %v8206 = vadd.f32 %v8089, %v8205
    %v8207 = vpop.f32.mrf.mxu0
    %8208 = vmatprep.mubr.f32.mxu0 0.0
    %v8209 = vand.u32 %v7647, 4294901760
    %8210 = vmatmul.mubr.f32.gmra.mxu0 %v8209
    %v8211 = vpop.f32.mrf.mxu0
    %v8212 = vadd.f32 %v8097, %v8211
    %v8213 = vpop.f32.mrf.mxu0
    %8214 = vmatprep.mubr.f32.mxu0 0.0
    %v8215 = vand.u32 %v7650, 4294901760
    %8216 = vmatmul.mubr.f32.gmra.mxu0 %v8215
    %v8217 = vpop.f32.mrf.mxu0
    %v8218 = vadd.f32 %v8105, %v8217
    %v8219 = vpop.f32.mrf.mxu0
    %8220 = vdwg.mxu0
    %8221 = vmatprep.subr.mxu0 0.0
    %8222 = vmatpush1.msra.mxu0 0.0
    %8223 = vmatprep.subr.mxu0 0.0
    %8224 = vmatpush1.msra.mxu0 0.0
    %8225 = vmatprep.subr.mxu0 0.0
    %8226 = vmatpush1.msra.mxu0 0.0
    %8227 = vmatprep.subr.mxu0 0.0
    %8228 = vmatpush1.msra.mxu0 0.0
    %8229 = vmatprep.subr.mxu0 0.0
    %8230 = vmatpush1.msra.mxu0 0.0
    %8231 = vmatprep.subr.mxu0 0.0
    %8232 = vmatpush1.msra.mxu0 0.0
    %8233 = vmatprep.subr.mxu0 0.0
    %8234 = vmatpush1.msra.mxu0 0.0
    %8235 = vmatprep.subr.mxu0 0.0
    %8236 = vmatpush1.msra.mxu0 0.0
    %8237 = vmatprep.subr.mxu0 0.0
    %v8238 = vand.u32 %v7639, 4294901760
    %8239 = vmatpush1.msra.mxu0 %v8238
    %8240 = vmatprep.subr.mxu0 0.0
    %v8241 = vand.u32 %v7638, 4294901760
    %8242 = vmatpush1.msra.mxu0 %v8241
    %8243 = vmatprep.subr.mxu0 0.0
    %v8244 = vand.u32 %v7637, 4294901760
    %8245 = vmatpush1.msra.mxu0 %v8244
    %8246 = vmatprep.subr.mxu0 0.0
    %v8247 = vand.u32 %v7636, 4294901760
    %8248 = vmatpush1.msra.mxu0 %v8247
    %8249 = vmatprep.subr.mxu0 0.0
    %v8250 = vand.u32 %v7635, 4294901760
    %8251 = vmatpush1.msra.mxu0 %v8250
    %8252 = vmatprep.subr.mxu0 0.0
    %v8253 = vand.u32 %v7634, 4294901760
    %8254 = vmatpush1.msra.mxu0 %v8253
    %8255 = vmatprep.subr.mxu0 0.0
    %v8256 = vand.u32 %v7633, 4294901760
    %8257 = vmatpush1.msra.mxu0 %v8256
    %8258 = vmatprep.subr.mxu0 0.0
    %v8259 = vand.u32 %v7632, 4294901760
    %8260 = vmatpush1.msra.mxu0 %v8259
    %8261 = vmatprep.subr.mxu0 0.0
    %8262 = vmatpush2.msra.mxu0 0.0
    %8263 = vmatprep.subr.mxu0 0.0
    %8264 = vmatpush2.msra.mxu0 0.0
    %8265 = vmatprep.subr.mxu0 0.0
    %8266 = vmatpush2.msra.mxu0 0.0
    %8267 = vmatprep.subr.mxu0 0.0
    %8268 = vmatpush2.msra.mxu0 0.0
    %8269 = vmatprep.subr.mxu0 0.0
    %8270 = vmatpush2.msra.mxu0 0.0
    %8271 = vmatprep.subr.mxu0 0.0
    %8272 = vmatpush2.msra.mxu0 0.0
    %8273 = vmatprep.subr.mxu0 0.0
    %8274 = vmatpush2.msra.mxu0 0.0
    %8275 = vmatprep.subr.mxu0 0.0
    %8276 = vmatpush2.msra.mxu0 0.0
    %8277 = vmatprep.subr.mxu0 0.0
    %8278 = vmatpush2.msra.mxu0 0.0
    %8279 = vmatprep.subr.mxu0 0.0
    %8280 = vmatpush2.msra.mxu0 0.0
    %8281 = vmatprep.subr.mxu0 0.0
    %8282 = vmatpush2.msra.mxu0 0.0
    %8283 = vmatprep.subr.mxu0 0.0
    %8284 = vmatpush2.msra.mxu0 0.0
    %8285 = vmatprep.subr.mxu0 0.0
    %8286 = vmatpush2.msra.mxu0 0.0
    %8287 = vmatprep.subr.mxu0 0.0
    %8288 = vmatpush2.msra.mxu0 0.0
    %8289 = vmatprep.subr.mxu0 0.0
    %8290 = vmatpush2.msra.mxu0 0.0
    %8291 = vmatprep.subr.mxu0 0.0
    %8292 = vmatpush2.msra.mxu0 0.0
    %8293 = vmatprep.mubr.f32.mxu0 0.0
    %v8294 = vand.u32 %v7641, 4294901760
    %8295 = vmatmul.mubr.f32.gmra.mxu0 %v8294
    %v8296 = vpop.f32.mrf.mxu0
    %v8297 = vadd.f32 %v8200, %v8296
    %v8298 = vpop.f32.mrf.mxu0
    %8299 = vmatprep.mubr.f32.mxu0 0.0
    %v8300 = vand.u32 %v7644, 4294901760
    %8301 = vmatmul.mubr.f32.gmra.mxu0 %v8300
    %v8302 = vpop.f32.mrf.mxu0
    %v8303 = vadd.f32 %v8206, %v8302
    %v8304 = vpop.f32.mrf.mxu0
    %8305 = vmatprep.mubr.f32.mxu0 0.0
    %v8306 = vand.u32 %v7647, 4294901760
    %8307 = vmatmul.mubr.f32.gmra.mxu0 %v8306
    %v8308 = vpop.f32.mrf.mxu0
    %v8309 = vadd.f32 %v8212, %v8308
    %v8310 = vpop.f32.mrf.mxu0
    %8311 = vmatprep.mubr.f32.mxu0 0.0
    %v8312 = vand.u32 %v7650, 4294901760
    %8313 = vmatmul.mubr.f32.gmra.mxu0 %v8312
    %v8314 = vpop.f32.mrf.mxu0
    %v8315 = vadd.f32 %v8218, %v8314
    %v8316 = vpop.f32.mrf.mxu0
    %8317 = vdwg.mxu0
    %v8318 = vld [vmem:[%s2 + $0xe0] sm:$0xff]
    %v8319 = vld [vmem:[%s2 + $0xe8] sm:$0xff]
    %v8320 = vld [vmem:[%s2 + $0xf0] sm:$0xff]
    %v8321 = vld [vmem:[%s2 + $0xf8] sm:$0xff]
    %v8322 = vld [vmem:[%s2 + $0x100] sm:$0xff]
    %v8323 = vld [vmem:[%s2 + $0x108] sm:$0xff]
    %v8324 = vld [vmem:[%s2 + $0x110] sm:$0xff]
    %v8325 = vld [vmem:[%s2 + $0x118] sm:$0xff]
    %v8326 = vsel %vm37, %v8297, 0.0
    %v8327 = vsel %vm37, %v8303, 0.0
    %v8328 = vadd.f32 %v8326, %v8327
    %v8329 = vsel %vm37, %v8309, 0.0
    %v8330 = vadd.f32 %v8328, %v8329
    %v8331 = vsel %vm37, %v8315, 0.0
    %v8332 = vadd.f32 %v8330, %v8331
    %v8333 = vrot.slane %v8332, 4
    %v8334 = vadd.f32 %v8332, %v8333
    %v8335 = vrot.slane %v8334, 2
    %v8336 = vadd.f32 %v8334, %v8335
    %v8337 = vrot.slane %v8336, 1
    %v8338 = vadd.f32 %v8336, %v8337
    %v8340 = vsel %vm37, %v8338, 0
    %8342 = vmatprep.subr.mxu0 0.0
    %8343 = vmatpush1.msra.mxu0 0.0
    %8344 = vmatprep.subr.mxu0 0.0
    %8345 = vmatpush1.msra.mxu0 0.0
    %8346 = vmatprep.subr.mxu0 0.0
    %8347 = vmatpush1.msra.mxu0 0.0
    %8348 = vmatprep.subr.mxu0 0.0
    %8349 = vmatpush1.msra.mxu0 0.0
    %8350 = vmatprep.subr.mxu0 0.0
    %8351 = vmatpush1.msra.mxu0 0.0
    %8352 = vmatprep.subr.mxu0 0.0
    %8353 = vmatpush1.msra.mxu0 0.0
    %8354 = vmatprep.subr.mxu0 0.0
    %8355 = vmatpush1.msra.mxu0 0.0
    %8356 = vmatprep.subr.mxu0 0.0
    %8357 = vmatpush1.msra.mxu0 0.0
    %8358 = vmatprep.subr.mxu0 0.0
    %v8359 = vand.u32 %v8325, 4294901760
    %8360 = vmatpush1.msra.mxu0 %v8359
    %8361 = vmatprep.subr.mxu0 0.0
    %v8362 = vand.u32 %v8324, 4294901760
    %8363 = vmatpush1.msra.mxu0 %v8362
    %8364 = vmatprep.subr.mxu0 0.0
    %v8365 = vand.u32 %v8323, 4294901760
    %8366 = vmatpush1.msra.mxu0 %v8365
    %8367 = vmatprep.subr.mxu0 0.0
    %v8368 = vand.u32 %v8322, 4294901760
    %8369 = vmatpush1.msra.mxu0 %v8368
    %8370 = vmatprep.subr.mxu0 0.0
    %v8371 = vand.u32 %v8321, 4294901760
    %8372 = vmatpush1.msra.mxu0 %v8371
    %8373 = vmatprep.subr.mxu0 0.0
    %v8374 = vand.u32 %v8320, 4294901760
    %8375 = vmatpush1.msra.mxu0 %v8374
    %8376 = vmatprep.subr.mxu0 0.0
    %v8377 = vand.u32 %v8319, 4294901760
    %8378 = vmatpush1.msra.mxu0 %v8377
    %8379 = vmatprep.subr.mxu0 0.0
    %v8380 = vand.u32 %v8318, 4294901760
    %8381 = vmatpush1.msra.mxu0 %v8380
    %8382 = vmatprep.subr.mxu0 0.0
    %8383 = vmatpush2.msra.mxu0 0.0
    %8384 = vmatprep.subr.mxu0 0.0
    %8385 = vmatpush2.msra.mxu0 0.0
    %8386 = vmatprep.subr.mxu0 0.0
    %8387 = vmatpush2.msra.mxu0 0.0
    %8388 = vmatprep.subr.mxu0 0.0
    %8389 = vmatpush2.msra.mxu0 0.0
    %8390 = vmatprep.subr.mxu0 0.0
    %8391 = vmatpush2.msra.mxu0 0.0
    %8392 = vmatprep.subr.mxu0 0.0
    %8393 = vmatpush2.msra.mxu0 0.0
    %8394 = vmatprep.subr.mxu0 0.0
    %8395 = vmatpush2.msra.mxu0 0.0
    %8396 = vmatprep.subr.mxu0 0.0
    %8397 = vmatpush2.msra.mxu0 0.0
    %8398 = vmatprep.subr.mxu0 0.0
    %8399 = vmatpush2.msra.mxu0 0.0
    %8400 = vmatprep.subr.mxu0 0.0
    %8401 = vmatpush2.msra.mxu0 0.0
    %8402 = vmatprep.subr.mxu0 0.0
    %8403 = vmatpush2.msra.mxu0 0.0
    %8404 = vmatprep.subr.mxu0 0.0
    %8405 = vmatpush2.msra.mxu0 0.0
    %8406 = vmatprep.subr.mxu0 0.0
    %8407 = vmatpush2.msra.mxu0 0.0
    %8408 = vmatprep.subr.mxu0 0.0
    %8409 = vmatpush2.msra.mxu0 0.0
    %8410 = vmatprep.subr.mxu0 0.0
    %8411 = vmatpush2.msra.mxu0 0.0
    %8412 = vmatprep.subr.mxu0 0.0
    %8413 = vmatpush2.msra.mxu0 0.0
    %8414 = vmatprep.mubr.f32.mxu0 0.0
    %v8415 = vand.u32 %v8340, 4294901760
    %v8416 = vsub.f32 %v8340, %v8415
    %v8417 = vand.u32 %v8416, 4294901760
    %v8418 = vsub.f32 %v8416, %v8417
    %v8419 = vand.u32 %v8418, 4294901760
    %8420 = vmatmul.mubr.f32.gmra.mxu0 %v8419
    %v8421 = vpop.f32.mrf.mxu0
    %v8422 = vadd.f32 0.0, %v8421
    %v8423 = vpop.f32.mrf.mxu0
    %8424 = vdwg.mxu0
    %8425 = vmatprep.subr.mxu0 0.0
    %8426 = vmatpush1.msra.mxu0 0.0
    %8427 = vmatprep.subr.mxu0 0.0
    %8428 = vmatpush1.msra.mxu0 0.0
    %8429 = vmatprep.subr.mxu0 0.0
    %8430 = vmatpush1.msra.mxu0 0.0
    %8431 = vmatprep.subr.mxu0 0.0
    %8432 = vmatpush1.msra.mxu0 0.0
    %8433 = vmatprep.subr.mxu0 0.0
    %8434 = vmatpush1.msra.mxu0 0.0
    %8435 = vmatprep.subr.mxu0 0.0
    %8436 = vmatpush1.msra.mxu0 0.0
    %8437 = vmatprep.subr.mxu0 0.0
    %8438 = vmatpush1.msra.mxu0 0.0
    %8439 = vmatprep.subr.mxu0 0.0
    %8440 = vmatpush1.msra.mxu0 0.0
    %8441 = vmatprep.subr.mxu0 0.0
    %v8442 = vand.u32 %v8325, 4294901760
    %v8443 = vsub.f32 %v8325, %v8442
    %v8444 = vand.u32 %v8443, 4294901760
    %v8445 = vsub.f32 %v8443, %v8444
    %v8446 = vand.u32 %v8445, 4294901760
    %8447 = vmatpush1.msra.mxu0 %v8446
    %8448 = vmatprep.subr.mxu0 0.0
    %v8449 = vand.u32 %v8324, 4294901760
    %v8450 = vsub.f32 %v8324, %v8449
    %v8451 = vand.u32 %v8450, 4294901760
    %v8452 = vsub.f32 %v8450, %v8451
    %v8453 = vand.u32 %v8452, 4294901760
    %8454 = vmatpush1.msra.mxu0 %v8453
    %8455 = vmatprep.subr.mxu0 0.0
    %v8456 = vand.u32 %v8323, 4294901760
    %v8457 = vsub.f32 %v8323, %v8456
    %v8458 = vand.u32 %v8457, 4294901760
    %v8459 = vsub.f32 %v8457, %v8458
    %v8460 = vand.u32 %v8459, 4294901760
    %8461 = vmatpush1.msra.mxu0 %v8460
    %8462 = vmatprep.subr.mxu0 0.0
    %v8463 = vand.u32 %v8322, 4294901760
    %v8464 = vsub.f32 %v8322, %v8463
    %v8465 = vand.u32 %v8464, 4294901760
    %v8466 = vsub.f32 %v8464, %v8465
    %v8467 = vand.u32 %v8466, 4294901760
    %8468 = vmatpush1.msra.mxu0 %v8467
    %8469 = vmatprep.subr.mxu0 0.0
    %v8470 = vand.u32 %v8321, 4294901760
    %v8471 = vsub.f32 %v8321, %v8470
    %v8472 = vand.u32 %v8471, 4294901760
    %v8473 = vsub.f32 %v8471, %v8472
    %v8474 = vand.u32 %v8473, 4294901760
    %8475 = vmatpush1.msra.mxu0 %v8474
    %8476 = vmatprep.subr.mxu0 0.0
    %v8477 = vand.u32 %v8320, 4294901760
    %v8478 = vsub.f32 %v8320, %v8477
    %v8479 = vand.u32 %v8478, 4294901760
    %v8480 = vsub.f32 %v8478, %v8479
    %v8481 = vand.u32 %v8480, 4294901760
    %8482 = vmatpush1.msra.mxu0 %v8481
    %8483 = vmatprep.subr.mxu0 0.0
    %v8484 = vand.u32 %v8319, 4294901760
    %v8485 = vsub.f32 %v8319, %v8484
    %v8486 = vand.u32 %v8485, 4294901760
    %v8487 = vsub.f32 %v8485, %v8486
    %v8488 = vand.u32 %v8487, 4294901760
    %8489 = vmatpush1.msra.mxu0 %v8488
    %8490 = vmatprep.subr.mxu0 0.0
    %v8491 = vand.u32 %v8318, 4294901760
    %v8492 = vsub.f32 %v8318, %v8491
    %v8493 = vand.u32 %v8492, 4294901760
    %v8494 = vsub.f32 %v8492, %v8493
    %v8495 = vand.u32 %v8494, 4294901760
    %8496 = vmatpush1.msra.mxu0 %v8495
    %8497 = vmatprep.subr.mxu0 0.0
    %8498 = vmatpush2.msra.mxu0 0.0
    %8499 = vmatprep.subr.mxu0 0.0
    %8500 = vmatpush2.msra.mxu0 0.0
    %8501 = vmatprep.subr.mxu0 0.0
    %8502 = vmatpush2.msra.mxu0 0.0
    %8503 = vmatprep.subr.mxu0 0.0
    %8504 = vmatpush2.msra.mxu0 0.0
    %8505 = vmatprep.subr.mxu0 0.0
    %8506 = vmatpush2.msra.mxu0 0.0
    %8507 = vmatprep.subr.mxu0 0.0
    %8508 = vmatpush2.msra.mxu0 0.0
    %8509 = vmatprep.subr.mxu0 0.0
    %8510 = vmatpush2.msra.mxu0 0.0
    %8511 = vmatprep.subr.mxu0 0.0
    %8512 = vmatpush2.msra.mxu0 0.0
    %8513 = vmatprep.subr.mxu0 0.0
    %8514 = vmatpush2.msra.mxu0 0.0
    %8515 = vmatprep.subr.mxu0 0.0
    %8516 = vmatpush2.msra.mxu0 0.0
    %8517 = vmatprep.subr.mxu0 0.0
    %8518 = vmatpush2.msra.mxu0 0.0
    %8519 = vmatprep.subr.mxu0 0.0
    %8520 = vmatpush2.msra.mxu0 0.0
    %8521 = vmatprep.subr.mxu0 0.0
    %8522 = vmatpush2.msra.mxu0 0.0
    %8523 = vmatprep.subr.mxu0 0.0
    %8524 = vmatpush2.msra.mxu0 0.0
    %8525 = vmatprep.subr.mxu0 0.0
    %8526 = vmatpush2.msra.mxu0 0.0
    %8527 = vmatprep.subr.mxu0 0.0
    %8528 = vmatpush2.msra.mxu0 0.0
    %8529 = vmatprep.mubr.f32.mxu0 0.0
    %v8530 = vand.u32 %v8340, 4294901760
    %8531 = vmatmul.mubr.f32.gmra.mxu0 %v8530
    %v8532 = vpop.f32.mrf.mxu0
    %v8533 = vadd.f32 %v8422, %v8532
    %v8534 = vpop.f32.mrf.mxu0
    %8535 = vdwg.mxu0
    %8536 = vmatprep.subr.mxu0 0.0
    %8537 = vmatpush1.msra.mxu0 0.0
    %8538 = vmatprep.subr.mxu0 0.0
    %8539 = vmatpush1.msra.mxu0 0.0
    %8540 = vmatprep.subr.mxu0 0.0
    %8541 = vmatpush1.msra.mxu0 0.0
    %8542 = vmatprep.subr.mxu0 0.0
    %8543 = vmatpush1.msra.mxu0 0.0
    %8544 = vmatprep.subr.mxu0 0.0
    %8545 = vmatpush1.msra.mxu0 0.0
    %8546 = vmatprep.subr.mxu0 0.0
    %8547 = vmatpush1.msra.mxu0 0.0
    %8548 = vmatprep.subr.mxu0 0.0
    %8549 = vmatpush1.msra.mxu0 0.0
    %8550 = vmatprep.subr.mxu0 0.0
    %8551 = vmatpush1.msra.mxu0 0.0
    %8552 = vmatprep.subr.mxu0 0.0
    %v8553 = vand.u32 %v8325, 4294901760
    %v8554 = vsub.f32 %v8325, %v8553
    %8555 = vmatpush1.msra.mxu0 %v8554
    %8556 = vmatprep.subr.mxu0 0.0
    %v8557 = vand.u32 %v8324, 4294901760
    %v8558 = vsub.f32 %v8324, %v8557
    %8559 = vmatpush1.msra.mxu0 %v8558
    %8560 = vmatprep.subr.mxu0 0.0
    %v8561 = vand.u32 %v8323, 4294901760
    %v8562 = vsub.f32 %v8323, %v8561
    %8563 = vmatpush1.msra.mxu0 %v8562
    %8564 = vmatprep.subr.mxu0 0.0
    %v8565 = vand.u32 %v8322, 4294901760
    %v8566 = vsub.f32 %v8322, %v8565
    %8567 = vmatpush1.msra.mxu0 %v8566
    %8568 = vmatprep.subr.mxu0 0.0
    %v8569 = vand.u32 %v8321, 4294901760
    %v8570 = vsub.f32 %v8321, %v8569
    %8571 = vmatpush1.msra.mxu0 %v8570
    %8572 = vmatprep.subr.mxu0 0.0
    %v8573 = vand.u32 %v8320, 4294901760
    %v8574 = vsub.f32 %v8320, %v8573
    %8575 = vmatpush1.msra.mxu0 %v8574
    %8576 = vmatprep.subr.mxu0 0.0
    %v8577 = vand.u32 %v8319, 4294901760
    %v8578 = vsub.f32 %v8319, %v8577
    %8579 = vmatpush1.msra.mxu0 %v8578
    %8580 = vmatprep.subr.mxu0 0.0
    %v8581 = vand.u32 %v8318, 4294901760
    %v8582 = vsub.f32 %v8318, %v8581
    %8583 = vmatpush1.msra.mxu0 %v8582
    %8584 = vmatprep.subr.mxu0 0.0
    %8585 = vmatpush2.msra.mxu0 0.0
    %8586 = vmatprep.subr.mxu0 0.0
    %8587 = vmatpush2.msra.mxu0 0.0
    %8588 = vmatprep.subr.mxu0 0.0
    %8589 = vmatpush2.msra.mxu0 0.0
    %8590 = vmatprep.subr.mxu0 0.0
    %8591 = vmatpush2.msra.mxu0 0.0
    %8592 = vmatprep.subr.mxu0 0.0
    %8593 = vmatpush2.msra.mxu0 0.0
    %8594 = vmatprep.subr.mxu0 0.0
    %8595 = vmatpush2.msra.mxu0 0.0
    %8596 = vmatprep.subr.mxu0 0.0
    %8597 = vmatpush2.msra.mxu0 0.0
    %8598 = vmatprep.subr.mxu0 0.0
    %8599 = vmatpush2.msra.mxu0 0.0
    %8600 = vmatprep.subr.mxu0 0.0
    %8601 = vmatpush2.msra.mxu0 0.0
    %8602 = vmatprep.subr.mxu0 0.0
    %8603 = vmatpush2.msra.mxu0 0.0
    %8604 = vmatprep.subr.mxu0 0.0
    %8605 = vmatpush2.msra.mxu0 0.0
    %8606 = vmatprep.subr.mxu0 0.0
    %8607 = vmatpush2.msra.mxu0 0.0
    %8608 = vmatprep.subr.mxu0 0.0
    %8609 = vmatpush2.msra.mxu0 0.0
    %8610 = vmatprep.subr.mxu0 0.0
    %8611 = vmatpush2.msra.mxu0 0.0
    %8612 = vmatprep.subr.mxu0 0.0
    %8613 = vmatpush2.msra.mxu0 0.0
    %8614 = vmatprep.subr.mxu0 0.0
    %8615 = vmatpush2.msra.mxu0 0.0
    %8616 = vmatprep.mubr.f32.mxu0 0.0
    %v8617 = vand.u32 %v8340, 4294901760
    %v8618 = vsub.f32 %v8340, %v8617
    %8619 = vmatmul.mubr.f32.gmra.mxu0 %v8618
    %v8620 = vpop.f32.mrf.mxu0
    %v8621 = vadd.f32 %v8533, %v8620
    %v8622 = vpop.f32.mrf.mxu0
    %8623 = vdwg.mxu0
    %8624 = vmatprep.subr.mxu0 0.0
    %8625 = vmatpush1.msra.mxu0 0.0
    %8626 = vmatprep.subr.mxu0 0.0
    %8627 = vmatpush1.msra.mxu0 0.0
    %8628 = vmatprep.subr.mxu0 0.0
    %8629 = vmatpush1.msra.mxu0 0.0
    %8630 = vmatprep.subr.mxu0 0.0
    %8631 = vmatpush1.msra.mxu0 0.0
    %8632 = vmatprep.subr.mxu0 0.0
    %8633 = vmatpush1.msra.mxu0 0.0
    %8634 = vmatprep.subr.mxu0 0.0
    %8635 = vmatpush1.msra.mxu0 0.0
    %8636 = vmatprep.subr.mxu0 0.0
    %8637 = vmatpush1.msra.mxu0 0.0
    %8638 = vmatprep.subr.mxu0 0.0
    %8639 = vmatpush1.msra.mxu0 0.0
    %8640 = vmatprep.subr.mxu0 0.0
    %v8641 = vand.u32 %v8325, 4294901760
    %8642 = vmatpush1.msra.mxu0 %v8641
    %8643 = vmatprep.subr.mxu0 0.0
    %v8644 = vand.u32 %v8324, 4294901760
    %8645 = vmatpush1.msra.mxu0 %v8644
    %8646 = vmatprep.subr.mxu0 0.0
    %v8647 = vand.u32 %v8323, 4294901760
    %8648 = vmatpush1.msra.mxu0 %v8647
    %8649 = vmatprep.subr.mxu0 0.0
    %v8650 = vand.u32 %v8322, 4294901760
    %8651 = vmatpush1.msra.mxu0 %v8650
    %8652 = vmatprep.subr.mxu0 0.0
    %v8653 = vand.u32 %v8321, 4294901760
    %8654 = vmatpush1.msra.mxu0 %v8653
    %8655 = vmatprep.subr.mxu0 0.0
    %v8656 = vand.u32 %v8320, 4294901760
    %8657 = vmatpush1.msra.mxu0 %v8656
    %8658 = vmatprep.subr.mxu0 0.0
    %v8659 = vand.u32 %v8319, 4294901760
    %8660 = vmatpush1.msra.mxu0 %v8659
    %8661 = vmatprep.subr.mxu0 0.0
    %v8662 = vand.u32 %v8318, 4294901760
    %8663 = vmatpush1.msra.mxu0 %v8662
    %8664 = vmatprep.subr.mxu0 0.0
    %8665 = vmatpush2.msra.mxu0 0.0
    %8666 = vmatprep.subr.mxu0 0.0
    %8667 = vmatpush2.msra.mxu0 0.0
    %8668 = vmatprep.subr.mxu0 0.0
    %8669 = vmatpush2.msra.mxu0 0.0
    %8670 = vmatprep.subr.mxu0 0.0
    %8671 = vmatpush2.msra.mxu0 0.0
    %8672 = vmatprep.subr.mxu0 0.0
    %8673 = vmatpush2.msra.mxu0 0.0
    %8674 = vmatprep.subr.mxu0 0.0
    %8675 = vmatpush2.msra.mxu0 0.0
    %8676 = vmatprep.subr.mxu0 0.0
    %8677 = vmatpush2.msra.mxu0 0.0
    %8678 = vmatprep.subr.mxu0 0.0
    %8679 = vmatpush2.msra.mxu0 0.0
    %8680 = vmatprep.subr.mxu0 0.0
    %8681 = vmatpush2.msra.mxu0 0.0
    %8682 = vmatprep.subr.mxu0 0.0
    %8683 = vmatpush2.msra.mxu0 0.0
    %8684 = vmatprep.subr.mxu0 0.0
    %8685 = vmatpush2.msra.mxu0 0.0
    %8686 = vmatprep.subr.mxu0 0.0
    %8687 = vmatpush2.msra.mxu0 0.0
    %8688 = vmatprep.subr.mxu0 0.0
    %8689 = vmatpush2.msra.mxu0 0.0
    %8690 = vmatprep.subr.mxu0 0.0
    %8691 = vmatpush2.msra.mxu0 0.0
    %8692 = vmatprep.subr.mxu0 0.0
    %8693 = vmatpush2.msra.mxu0 0.0
    %8694 = vmatprep.subr.mxu0 0.0
    %8695 = vmatpush2.msra.mxu0 0.0
    %8696 = vmatprep.mubr.f32.mxu0 0.0
    %v8697 = vand.u32 %v8340, 4294901760
    %v8698 = vsub.f32 %v8340, %v8697
    %v8699 = vand.u32 %v8698, 4294901760
    %8700 = vmatmul.mubr.f32.gmra.mxu0 %v8699
    %v8701 = vpop.f32.mrf.mxu0
    %v8702 = vadd.f32 %v8621, %v8701
    %v8703 = vpop.f32.mrf.mxu0
    %8704 = vdwg.mxu0
    %8705 = vmatprep.subr.mxu0 0.0
    %8706 = vmatpush1.msra.mxu0 0.0
    %8707 = vmatprep.subr.mxu0 0.0
    %8708 = vmatpush1.msra.mxu0 0.0
    %8709 = vmatprep.subr.mxu0 0.0
    %8710 = vmatpush1.msra.mxu0 0.0
    %8711 = vmatprep.subr.mxu0 0.0
    %8712 = vmatpush1.msra.mxu0 0.0
    %8713 = vmatprep.subr.mxu0 0.0
    %8714 = vmatpush1.msra.mxu0 0.0
    %8715 = vmatprep.subr.mxu0 0.0
    %8716 = vmatpush1.msra.mxu0 0.0
    %8717 = vmatprep.subr.mxu0 0.0
    %8718 = vmatpush1.msra.mxu0 0.0
    %8719 = vmatprep.subr.mxu0 0.0
    %8720 = vmatpush1.msra.mxu0 0.0
    %8721 = vmatprep.subr.mxu0 0.0
    %v8722 = vand.u32 %v8325, 4294901760
    %v8723 = vsub.f32 %v8325, %v8722
    %v8724 = vand.u32 %v8723, 4294901760
    %8725 = vmatpush1.msra.mxu0 %v8724
    %8726 = vmatprep.subr.mxu0 0.0
    %v8727 = vand.u32 %v8324, 4294901760
    %v8728 = vsub.f32 %v8324, %v8727
    %v8729 = vand.u32 %v8728, 4294901760
    %8730 = vmatpush1.msra.mxu0 %v8729
    %8731 = vmatprep.subr.mxu0 0.0
    %v8732 = vand.u32 %v8323, 4294901760
    %v8733 = vsub.f32 %v8323, %v8732
    %v8734 = vand.u32 %v8733, 4294901760
    %8735 = vmatpush1.msra.mxu0 %v8734
    %8736 = vmatprep.subr.mxu0 0.0
    %v8737 = vand.u32 %v8322, 4294901760
    %v8738 = vsub.f32 %v8322, %v8737
    %v8739 = vand.u32 %v8738, 4294901760
    %8740 = vmatpush1.msra.mxu0 %v8739
    %8741 = vmatprep.subr.mxu0 0.0
    %v8742 = vand.u32 %v8321, 4294901760
    %v8743 = vsub.f32 %v8321, %v8742
    %v8744 = vand.u32 %v8743, 4294901760
    %8745 = vmatpush1.msra.mxu0 %v8744
    %8746 = vmatprep.subr.mxu0 0.0
    %v8747 = vand.u32 %v8320, 4294901760
    %v8748 = vsub.f32 %v8320, %v8747
    %v8749 = vand.u32 %v8748, 4294901760
    %8750 = vmatpush1.msra.mxu0 %v8749
    %8751 = vmatprep.subr.mxu0 0.0
    %v8752 = vand.u32 %v8319, 4294901760
    %v8753 = vsub.f32 %v8319, %v8752
    %v8754 = vand.u32 %v8753, 4294901760
    %8755 = vmatpush1.msra.mxu0 %v8754
    %8756 = vmatprep.subr.mxu0 0.0
    %v8757 = vand.u32 %v8318, 4294901760
    %v8758 = vsub.f32 %v8318, %v8757
    %v8759 = vand.u32 %v8758, 4294901760
    %8760 = vmatpush1.msra.mxu0 %v8759
    %8761 = vmatprep.subr.mxu0 0.0
    %8762 = vmatpush2.msra.mxu0 0.0
    %8763 = vmatprep.subr.mxu0 0.0
    %8764 = vmatpush2.msra.mxu0 0.0
    %8765 = vmatprep.subr.mxu0 0.0
    %8766 = vmatpush2.msra.mxu0 0.0
    %8767 = vmatprep.subr.mxu0 0.0
    %8768 = vmatpush2.msra.mxu0 0.0
    %8769 = vmatprep.subr.mxu0 0.0
    %8770 = vmatpush2.msra.mxu0 0.0
    %8771 = vmatprep.subr.mxu0 0.0
    %8772 = vmatpush2.msra.mxu0 0.0
    %8773 = vmatprep.subr.mxu0 0.0
    %8774 = vmatpush2.msra.mxu0 0.0
    %8775 = vmatprep.subr.mxu0 0.0
    %8776 = vmatpush2.msra.mxu0 0.0
    %8777 = vmatprep.subr.mxu0 0.0
    %8778 = vmatpush2.msra.mxu0 0.0
    %8779 = vmatprep.subr.mxu0 0.0
    %8780 = vmatpush2.msra.mxu0 0.0
    %8781 = vmatprep.subr.mxu0 0.0
    %8782 = vmatpush2.msra.mxu0 0.0
    %8783 = vmatprep.subr.mxu0 0.0
    %8784 = vmatpush2.msra.mxu0 0.0
    %8785 = vmatprep.subr.mxu0 0.0
    %8786 = vmatpush2.msra.mxu0 0.0
    %8787 = vmatprep.subr.mxu0 0.0
    %8788 = vmatpush2.msra.mxu0 0.0
    %8789 = vmatprep.subr.mxu0 0.0
    %8790 = vmatpush2.msra.mxu0 0.0
    %8791 = vmatprep.subr.mxu0 0.0
    %8792 = vmatpush2.msra.mxu0 0.0
    %8793 = vmatprep.mubr.f32.mxu0 0.0
    %v8794 = vand.u32 %v8340, 4294901760
    %8795 = vmatmul.mubr.f32.gmra.mxu0 %v8794
    %v8796 = vpop.f32.mrf.mxu0
    %v8797 = vadd.f32 %v8702, %v8796
    %v8798 = vpop.f32.mrf.mxu0
    %8799 = vdwg.mxu0
    %8800 = vmatprep.subr.mxu0 0.0
    %8801 = vmatpush1.msra.mxu0 0.0
    %8802 = vmatprep.subr.mxu0 0.0
    %8803 = vmatpush1.msra.mxu0 0.0
    %8804 = vmatprep.subr.mxu0 0.0
    %8805 = vmatpush1.msra.mxu0 0.0
    %8806 = vmatprep.subr.mxu0 0.0
    %8807 = vmatpush1.msra.mxu0 0.0
    %8808 = vmatprep.subr.mxu0 0.0
    %8809 = vmatpush1.msra.mxu0 0.0
    %8810 = vmatprep.subr.mxu0 0.0
    %8811 = vmatpush1.msra.mxu0 0.0
    %8812 = vmatprep.subr.mxu0 0.0
    %8813 = vmatpush1.msra.mxu0 0.0
    %8814 = vmatprep.subr.mxu0 0.0
    %8815 = vmatpush1.msra.mxu0 0.0
    %8816 = vmatprep.subr.mxu0 0.0
    %v8817 = vand.u32 %v8325, 4294901760
    %8818 = vmatpush1.msra.mxu0 %v8817
    %8819 = vmatprep.subr.mxu0 0.0
    %v8820 = vand.u32 %v8324, 4294901760
    %8821 = vmatpush1.msra.mxu0 %v8820
    %8822 = vmatprep.subr.mxu0 0.0
    %v8823 = vand.u32 %v8323, 4294901760
    %8824 = vmatpush1.msra.mxu0 %v8823
    %8825 = vmatprep.subr.mxu0 0.0
    %v8826 = vand.u32 %v8322, 4294901760
    %8827 = vmatpush1.msra.mxu0 %v8826
    %8828 = vmatprep.subr.mxu0 0.0
    %v8829 = vand.u32 %v8321, 4294901760
    %8830 = vmatpush1.msra.mxu0 %v8829
    %8831 = vmatprep.subr.mxu0 0.0
    %v8832 = vand.u32 %v8320, 4294901760
    %8833 = vmatpush1.msra.mxu0 %v8832
    %8834 = vmatprep.subr.mxu0 0.0
    %v8835 = vand.u32 %v8319, 4294901760
    %8836 = vmatpush1.msra.mxu0 %v8835
    %8837 = vmatprep.subr.mxu0 0.0
    %v8838 = vand.u32 %v8318, 4294901760
    %8839 = vmatpush1.msra.mxu0 %v8838
    %8840 = vmatprep.subr.mxu0 0.0
    %8841 = vmatpush2.msra.mxu0 0.0
    %8842 = vmatprep.subr.mxu0 0.0
    %8843 = vmatpush2.msra.mxu0 0.0
    %8844 = vmatprep.subr.mxu0 0.0
    %8845 = vmatpush2.msra.mxu0 0.0
    %8846 = vmatprep.subr.mxu0 0.0
    %8847 = vmatpush2.msra.mxu0 0.0
    %8848 = vmatprep.subr.mxu0 0.0
    %8849 = vmatpush2.msra.mxu0 0.0
    %8850 = vmatprep.subr.mxu0 0.0
    %8851 = vmatpush2.msra.mxu0 0.0
    %8852 = vmatprep.subr.mxu0 0.0
    %8853 = vmatpush2.msra.mxu0 0.0
    %8854 = vmatprep.subr.mxu0 0.0
    %8855 = vmatpush2.msra.mxu0 0.0
    %8856 = vmatprep.subr.mxu0 0.0
    %8857 = vmatpush2.msra.mxu0 0.0
    %8858 = vmatprep.subr.mxu0 0.0
    %8859 = vmatpush2.msra.mxu0 0.0
    %8860 = vmatprep.subr.mxu0 0.0
    %8861 = vmatpush2.msra.mxu0 0.0
    %8862 = vmatprep.subr.mxu0 0.0
    %8863 = vmatpush2.msra.mxu0 0.0
    %8864 = vmatprep.subr.mxu0 0.0
    %8865 = vmatpush2.msra.mxu0 0.0
    %8866 = vmatprep.subr.mxu0 0.0
    %8867 = vmatpush2.msra.mxu0 0.0
    %8868 = vmatprep.subr.mxu0 0.0
    %8869 = vmatpush2.msra.mxu0 0.0
    %8870 = vmatprep.subr.mxu0 0.0
    %8871 = vmatpush2.msra.mxu0 0.0
    %8872 = vmatprep.mubr.f32.mxu0 0.0
    %v8873 = vand.u32 %v8340, 4294901760
    %8874 = vmatmul.mubr.f32.gmra.mxu0 %v8873
    %v8875 = vpop.f32.mrf.mxu0
    %v8876 = vadd.f32 %v8797, %v8875
    %v8877 = vpop.f32.mrf.mxu0
    %8878 = vdwg.mxu0
    %v8879 = vmul.f32 %v8297, %v8297
    %v8880 = vmul.f32 %v8303, %v8303
    %v8881 = vmul.f32 %v8309, %v8309
    %v8882 = vmul.f32 %v8315, %v8315
    %v8883 = vsel %vm37, %v8879, 0.0
    %v8884 = vsel %vm37, %v8880, 0.0
    %v8885 = vadd.f32 %v8883, %v8884
    %v8886 = vsel %vm37, %v8881, 0.0
    %v8887 = vadd.f32 %v8885, %v8886
    %v8888 = vsel %vm37, %v8882, 0.0
    %v8889 = vadd.f32 %v8887, %v8888
    %v8890 = vrot.slane %v8889, 4
    %v8891 = vadd.f32 %v8889, %v8890
    %v8892 = vrot.slane %v8891, 2
    %v8893 = vadd.f32 %v8891, %v8892
    %v8894 = vrot.slane %v8893, 1
    %v8895 = vadd.f32 %v8893, %v8894
    %v8897 = vsel %vm37, %v8895, 0
    %8899 = vmatprep.subr.mxu0 0.0
    %8900 = vmatpush1.msra.mxu0 0.0
    %8901 = vmatprep.subr.mxu0 0.0
    %8902 = vmatpush1.msra.mxu0 0.0
    %8903 = vmatprep.subr.mxu0 0.0
    %8904 = vmatpush1.msra.mxu0 0.0
    %8905 = vmatprep.subr.mxu0 0.0
    %8906 = vmatpush1.msra.mxu0 0.0
    %8907 = vmatprep.subr.mxu0 0.0
    %8908 = vmatpush1.msra.mxu0 0.0
    %8909 = vmatprep.subr.mxu0 0.0
    %8910 = vmatpush1.msra.mxu0 0.0
    %8911 = vmatprep.subr.mxu0 0.0
    %8912 = vmatpush1.msra.mxu0 0.0
    %8913 = vmatprep.subr.mxu0 0.0
    %8914 = vmatpush1.msra.mxu0 0.0
    %8915 = vmatprep.subr.mxu0 0.0
    %v8916 = vand.u32 %v8325, 4294901760
    %8917 = vmatpush1.msra.mxu0 %v8916
    %8918 = vmatprep.subr.mxu0 0.0
    %v8919 = vand.u32 %v8324, 4294901760
    %8920 = vmatpush1.msra.mxu0 %v8919
    %8921 = vmatprep.subr.mxu0 0.0
    %v8922 = vand.u32 %v8323, 4294901760
    %8923 = vmatpush1.msra.mxu0 %v8922
    %8924 = vmatprep.subr.mxu0 0.0
    %v8925 = vand.u32 %v8322, 4294901760
    %8926 = vmatpush1.msra.mxu0 %v8925
    %8927 = vmatprep.subr.mxu0 0.0
    %v8928 = vand.u32 %v8321, 4294901760
    %8929 = vmatpush1.msra.mxu0 %v8928
    %8930 = vmatprep.subr.mxu0 0.0
    %v8931 = vand.u32 %v8320, 4294901760
    %8932 = vmatpush1.msra.mxu0 %v8931
    %8933 = vmatprep.subr.mxu0 0.0
    %v8934 = vand.u32 %v8319, 4294901760
    %8935 = vmatpush1.msra.mxu0 %v8934
    %8936 = vmatprep.subr.mxu0 0.0
    %v8937 = vand.u32 %v8318, 4294901760
    %8938 = vmatpush1.msra.mxu0 %v8937
    %8939 = vmatprep.subr.mxu0 0.0
    %8940 = vmatpush2.msra.mxu0 0.0
    %8941 = vmatprep.subr.mxu0 0.0
    %8942 = vmatpush2.msra.mxu0 0.0
    %8943 = vmatprep.subr.mxu0 0.0
    %8944 = vmatpush2.msra.mxu0 0.0
    %8945 = vmatprep.subr.mxu0 0.0
    %8946 = vmatpush2.msra.mxu0 0.0
    %8947 = vmatprep.subr.mxu0 0.0
    %8948 = vmatpush2.msra.mxu0 0.0
    %8949 = vmatprep.subr.mxu0 0.0
    %8950 = vmatpush2.msra.mxu0 0.0
    %8951 = vmatprep.subr.mxu0 0.0
    %8952 = vmatpush2.msra.mxu0 0.0
    %8953 = vmatprep.subr.mxu0 0.0
    %8954 = vmatpush2.msra.mxu0 0.0
    %8955 = vmatprep.subr.mxu0 0.0
    %8956 = vmatpush2.msra.mxu0 0.0
    %8957 = vmatprep.subr.mxu0 0.0
    %8958 = vmatpush2.msra.mxu0 0.0
    %8959 = vmatprep.subr.mxu0 0.0
    %8960 = vmatpush2.msra.mxu0 0.0
    %8961 = vmatprep.subr.mxu0 0.0
    %8962 = vmatpush2.msra.mxu0 0.0
    %8963 = vmatprep.subr.mxu0 0.0
    %8964 = vmatpush2.msra.mxu0 0.0
    %8965 = vmatprep.subr.mxu0 0.0
    %8966 = vmatpush2.msra.mxu0 0.0
    %8967 = vmatprep.subr.mxu0 0.0
    %8968 = vmatpush2.msra.mxu0 0.0
    %8969 = vmatprep.subr.mxu0 0.0
    %8970 = vmatpush2.msra.mxu0 0.0
    %8971 = vmatprep.mubr.f32.mxu0 0.0
    %v8972 = vand.u32 %v8897, 4294901760
    %v8973 = vsub.f32 %v8897, %v8972
    %v8974 = vand.u32 %v8973, 4294901760
    %v8975 = vsub.f32 %v8973, %v8974
    %v8976 = vand.u32 %v8975, 4294901760
    %8977 = vmatmul.mubr.f32.gmra.mxu0 %v8976
    %v8978 = vpop.f32.mrf.mxu0
    %v8979 = vadd.f32 0.0, %v8978
    %v8980 = vpop.f32.mrf.mxu0
    %8981 = vdwg.mxu0
    %8982 = vmatprep.subr.mxu0 0.0
    %8983 = vmatpush1.msra.mxu0 0.0
    %8984 = vmatprep.subr.mxu0 0.0
    %8985 = vmatpush1.msra.mxu0 0.0
    %8986 = vmatprep.subr.mxu0 0.0
    %8987 = vmatpush1.msra.mxu0 0.0
    %8988 = vmatprep.subr.mxu0 0.0
    %8989 = vmatpush1.msra.mxu0 0.0
    %8990 = vmatprep.subr.mxu0 0.0
    %8991 = vmatpush1.msra.mxu0 0.0
    %8992 = vmatprep.subr.mxu0 0.0
    %8993 = vmatpush1.msra.mxu0 0.0
    %8994 = vmatprep.subr.mxu0 0.0
    %8995 = vmatpush1.msra.mxu0 0.0
    %8996 = vmatprep.subr.mxu0 0.0
    %8997 = vmatpush1.msra.mxu0 0.0
    %8998 = vmatprep.subr.mxu0 0.0
    %v8999 = vand.u32 %v8325, 4294901760
    %v9000 = vsub.f32 %v8325, %v8999
    %v9001 = vand.u32 %v9000, 4294901760
    %v9002 = vsub.f32 %v9000, %v9001
    %v9003 = vand.u32 %v9002, 4294901760
    %9004 = vmatpush1.msra.mxu0 %v9003
    %9005 = vmatprep.subr.mxu0 0.0
    %v9006 = vand.u32 %v8324, 4294901760
    %v9007 = vsub.f32 %v8324, %v9006
    %v9008 = vand.u32 %v9007, 4294901760
    %v9009 = vsub.f32 %v9007, %v9008
    %v9010 = vand.u32 %v9009, 4294901760
    %9011 = vmatpush1.msra.mxu0 %v9010
    %9012 = vmatprep.subr.mxu0 0.0
    %v9013 = vand.u32 %v8323, 4294901760
    %v9014 = vsub.f32 %v8323, %v9013
    %v9015 = vand.u32 %v9014, 4294901760
    %v9016 = vsub.f32 %v9014, %v9015
    %v9017 = vand.u32 %v9016, 4294901760
    %9018 = vmatpush1.msra.mxu0 %v9017
    %9019 = vmatprep.subr.mxu0 0.0
    %v9020 = vand.u32 %v8322, 4294901760
    %v9021 = vsub.f32 %v8322, %v9020
    %v9022 = vand.u32 %v9021, 4294901760
    %v9023 = vsub.f32 %v9021, %v9022
    %v9024 = vand.u32 %v9023, 4294901760
    %9025 = vmatpush1.msra.mxu0 %v9024
    %9026 = vmatprep.subr.mxu0 0.0
    %v9027 = vand.u32 %v8321, 4294901760
    %v9028 = vsub.f32 %v8321, %v9027
    %v9029 = vand.u32 %v9028, 4294901760
    %v9030 = vsub.f32 %v9028, %v9029
    %v9031 = vand.u32 %v9030, 4294901760
    %9032 = vmatpush1.msra.mxu0 %v9031
    %9033 = vmatprep.subr.mxu0 0.0
    %v9034 = vand.u32 %v8320, 4294901760
    %v9035 = vsub.f32 %v8320, %v9034
    %v9036 = vand.u32 %v9035, 4294901760
    %v9037 = vsub.f32 %v9035, %v9036
    %v9038 = vand.u32 %v9037, 4294901760
    %9039 = vmatpush1.msra.mxu0 %v9038
    %9040 = vmatprep.subr.mxu0 0.0
    %v9041 = vand.u32 %v8319, 4294901760
    %v9042 = vsub.f32 %v8319, %v9041
    %v9043 = vand.u32 %v9042, 4294901760
    %v9044 = vsub.f32 %v9042, %v9043
    %v9045 = vand.u32 %v9044, 4294901760
    %9046 = vmatpush1.msra.mxu0 %v9045
    %9047 = vmatprep.subr.mxu0 0.0
    %v9048 = vand.u32 %v8318, 4294901760
    %v9049 = vsub.f32 %v8318, %v9048
    %v9050 = vand.u32 %v9049, 4294901760
    %v9051 = vsub.f32 %v9049, %v9050
    %v9052 = vand.u32 %v9051, 4294901760
    %9053 = vmatpush1.msra.mxu0 %v9052
    %9054 = vmatprep.subr.mxu0 0.0
    %9055 = vmatpush2.msra.mxu0 0.0
    %9056 = vmatprep.subr.mxu0 0.0
    %9057 = vmatpush2.msra.mxu0 0.0
    %9058 = vmatprep.subr.mxu0 0.0
    %9059 = vmatpush2.msra.mxu0 0.0
    %9060 = vmatprep.subr.mxu0 0.0
    %9061 = vmatpush2.msra.mxu0 0.0
    %9062 = vmatprep.subr.mxu0 0.0
    %9063 = vmatpush2.msra.mxu0 0.0
    %9064 = vmatprep.subr.mxu0 0.0
    %9065 = vmatpush2.msra.mxu0 0.0
    %9066 = vmatprep.subr.mxu0 0.0
    %9067 = vmatpush2.msra.mxu0 0.0
    %9068 = vmatprep.subr.mxu0 0.0
    %9069 = vmatpush2.msra.mxu0 0.0
    %9070 = vmatprep.subr.mxu0 0.0
    %9071 = vmatpush2.msra.mxu0 0.0
    %9072 = vmatprep.subr.mxu0 0.0
    %9073 = vmatpush2.msra.mxu0 0.0
    %9074 = vmatprep.subr.mxu0 0.0
    %9075 = vmatpush2.msra.mxu0 0.0
    %9076 = vmatprep.subr.mxu0 0.0
    %9077 = vmatpush2.msra.mxu0 0.0
    %9078 = vmatprep.subr.mxu0 0.0
    %9079 = vmatpush2.msra.mxu0 0.0
    %9080 = vmatprep.subr.mxu0 0.0
    %9081 = vmatpush2.msra.mxu0 0.0
    %9082 = vmatprep.subr.mxu0 0.0
    %9083 = vmatpush2.msra.mxu0 0.0
    %9084 = vmatprep.subr.mxu0 0.0
    %9085 = vmatpush2.msra.mxu0 0.0
    %9086 = vmatprep.mubr.f32.mxu0 0.0
    %v9087 = vand.u32 %v8897, 4294901760
    %9088 = vmatmul.mubr.f32.gmra.mxu0 %v9087
    %v9089 = vpop.f32.mrf.mxu0
    %v9090 = vadd.f32 %v8979, %v9089
    %v9091 = vpop.f32.mrf.mxu0
    %9092 = vdwg.mxu0
    %9093 = vmatprep.subr.mxu0 0.0
    %9094 = vmatpush1.msra.mxu0 0.0
    %9095 = vmatprep.subr.mxu0 0.0
    %9096 = vmatpush1.msra.mxu0 0.0
    %9097 = vmatprep.subr.mxu0 0.0
    %9098 = vmatpush1.msra.mxu0 0.0
    %9099 = vmatprep.subr.mxu0 0.0
    %9100 = vmatpush1.msra.mxu0 0.0
    %9101 = vmatprep.subr.mxu0 0.0
    %9102 = vmatpush1.msra.mxu0 0.0
    %9103 = vmatprep.subr.mxu0 0.0
    %9104 = vmatpush1.msra.mxu0 0.0
    %9105 = vmatprep.subr.mxu0 0.0
    %9106 = vmatpush1.msra.mxu0 0.0
    %9107 = vmatprep.subr.mxu0 0.0
    %9108 = vmatpush1.msra.mxu0 0.0
    %9109 = vmatprep.subr.mxu0 0.0
    %v9110 = vand.u32 %v8325, 4294901760
    %v9111 = vsub.f32 %v8325, %v9110
    %9112 = vmatpush1.msra.mxu0 %v9111
    %9113 = vmatprep.subr.mxu0 0.0
    %v9114 = vand.u32 %v8324, 4294901760
    %v9115 = vsub.f32 %v8324, %v9114
    %9116 = vmatpush1.msra.mxu0 %v9115
    %9117 = vmatprep.subr.mxu0 0.0
    %v9118 = vand.u32 %v8323, 4294901760
    %v9119 = vsub.f32 %v8323, %v9118
    %9120 = vmatpush1.msra.mxu0 %v9119
    %9121 = vmatprep.subr.mxu0 0.0
    %v9122 = vand.u32 %v8322, 4294901760
    %v9123 = vsub.f32 %v8322, %v9122
    %9124 = vmatpush1.msra.mxu0 %v9123
    %9125 = vmatprep.subr.mxu0 0.0
    %v9126 = vand.u32 %v8321, 4294901760
    %v9127 = vsub.f32 %v8321, %v9126
    %9128 = vmatpush1.msra.mxu0 %v9127
    %9129 = vmatprep.subr.mxu0 0.0
    %v9130 = vand.u32 %v8320, 4294901760
    %v9131 = vsub.f32 %v8320, %v9130
    %9132 = vmatpush1.msra.mxu0 %v9131
    %9133 = vmatprep.subr.mxu0 0.0
    %v9134 = vand.u32 %v8319, 4294901760
    %v9135 = vsub.f32 %v8319, %v9134
    %9136 = vmatpush1.msra.mxu0 %v9135
    %9137 = vmatprep.subr.mxu0 0.0
    %v9138 = vand.u32 %v8318, 4294901760
    %v9139 = vsub.f32 %v8318, %v9138
    %9140 = vmatpush1.msra.mxu0 %v9139
    %9141 = vmatprep.subr.mxu0 0.0
    %9142 = vmatpush2.msra.mxu0 0.0
    %9143 = vmatprep.subr.mxu0 0.0
    %9144 = vmatpush2.msra.mxu0 0.0
    %9145 = vmatprep.subr.mxu0 0.0
    %9146 = vmatpush2.msra.mxu0 0.0
    %9147 = vmatprep.subr.mxu0 0.0
    %9148 = vmatpush2.msra.mxu0 0.0
    %9149 = vmatprep.subr.mxu0 0.0
    %9150 = vmatpush2.msra.mxu0 0.0
    %9151 = vmatprep.subr.mxu0 0.0
    %9152 = vmatpush2.msra.mxu0 0.0
    %9153 = vmatprep.subr.mxu0 0.0
    %9154 = vmatpush2.msra.mxu0 0.0
    %9155 = vmatprep.subr.mxu0 0.0
    %9156 = vmatpush2.msra.mxu0 0.0
    %9157 = vmatprep.subr.mxu0 0.0
    %9158 = vmatpush2.msra.mxu0 0.0
    %9159 = vmatprep.subr.mxu0 0.0
    %9160 = vmatpush2.msra.mxu0 0.0
    %9161 = vmatprep.subr.mxu0 0.0
    %9162 = vmatpush2.msra.mxu0 0.0
    %9163 = vmatprep.subr.mxu0 0.0
    %9164 = vmatpush2.msra.mxu0 0.0
    %9165 = vmatprep.subr.mxu0 0.0
    %9166 = vmatpush2.msra.mxu0 0.0
    %9167 = vmatprep.subr.mxu0 0.0
    %9168 = vmatpush2.msra.mxu0 0.0
    %9169 = vmatprep.subr.mxu0 0.0
    %9170 = vmatpush2.msra.mxu0 0.0
    %9171 = vmatprep.subr.mxu0 0.0
    %9172 = vmatpush2.msra.mxu0 0.0
    %9173 = vmatprep.mubr.f32.mxu0 0.0
    %v9174 = vand.u32 %v8897, 4294901760
    %v9175 = vsub.f32 %v8897, %v9174
    %9176 = vmatmul.mubr.f32.gmra.mxu0 %v9175
    %v9177 = vpop.f32.mrf.mxu0
    %v9178 = vadd.f32 %v9090, %v9177
    %v9179 = vpop.f32.mrf.mxu0
    %9180 = vdwg.mxu0
    %9181 = vmatprep.subr.mxu0 0.0
    %9182 = vmatpush1.msra.mxu0 0.0
    %9183 = vmatprep.subr.mxu0 0.0
    %9184 = vmatpush1.msra.mxu0 0.0
    %9185 = vmatprep.subr.mxu0 0.0
    %9186 = vmatpush1.msra.mxu0 0.0
    %9187 = vmatprep.subr.mxu0 0.0
    %9188 = vmatpush1.msra.mxu0 0.0
    %9189 = vmatprep.subr.mxu0 0.0
    %9190 = vmatpush1.msra.mxu0 0.0
    %9191 = vmatprep.subr.mxu0 0.0
    %9192 = vmatpush1.msra.mxu0 0.0
    %9193 = vmatprep.subr.mxu0 0.0
    %9194 = vmatpush1.msra.mxu0 0.0
    %9195 = vmatprep.subr.mxu0 0.0
    %9196 = vmatpush1.msra.mxu0 0.0
    %9197 = vmatprep.subr.mxu0 0.0
    %v9198 = vand.u32 %v8325, 4294901760
    %9199 = vmatpush1.msra.mxu0 %v9198
    %9200 = vmatprep.subr.mxu0 0.0
    %v9201 = vand.u32 %v8324, 4294901760
    %9202 = vmatpush1.msra.mxu0 %v9201
    %9203 = vmatprep.subr.mxu0 0.0
    %v9204 = vand.u32 %v8323, 4294901760
    %9205 = vmatpush1.msra.mxu0 %v9204
    %9206 = vmatprep.subr.mxu0 0.0
    %v9207 = vand.u32 %v8322, 4294901760
    %9208 = vmatpush1.msra.mxu0 %v9207
    %9209 = vmatprep.subr.mxu0 0.0
    %v9210 = vand.u32 %v8321, 4294901760
    %9211 = vmatpush1.msra.mxu0 %v9210
    %9212 = vmatprep.subr.mxu0 0.0
    %v9213 = vand.u32 %v8320, 4294901760
    %9214 = vmatpush1.msra.mxu0 %v9213
    %9215 = vmatprep.subr.mxu0 0.0
    %v9216 = vand.u32 %v8319, 4294901760
    %9217 = vmatpush1.msra.mxu0 %v9216
    %9218 = vmatprep.subr.mxu0 0.0
    %v9219 = vand.u32 %v8318, 4294901760
    %9220 = vmatpush1.msra.mxu0 %v9219
    %9221 = vmatprep.subr.mxu0 0.0
    %9222 = vmatpush2.msra.mxu0 0.0
    %9223 = vmatprep.subr.mxu0 0.0
    %9224 = vmatpush2.msra.mxu0 0.0
    %9225 = vmatprep.subr.mxu0 0.0
    %9226 = vmatpush2.msra.mxu0 0.0
    %9227 = vmatprep.subr.mxu0 0.0
    %9228 = vmatpush2.msra.mxu0 0.0
    %9229 = vmatprep.subr.mxu0 0.0
    %9230 = vmatpush2.msra.mxu0 0.0
    %9231 = vmatprep.subr.mxu0 0.0
    %9232 = vmatpush2.msra.mxu0 0.0
    %9233 = vmatprep.subr.mxu0 0.0
    %9234 = vmatpush2.msra.mxu0 0.0
    %9235 = vmatprep.subr.mxu0 0.0
    %9236 = vmatpush2.msra.mxu0 0.0
    %9237 = vmatprep.subr.mxu0 0.0
    %9238 = vmatpush2.msra.mxu0 0.0
    %9239 = vmatprep.subr.mxu0 0.0
    %9240 = vmatpush2.msra.mxu0 0.0
    %9241 = vmatprep.subr.mxu0 0.0
    %9242 = vmatpush2.msra.mxu0 0.0
    %9243 = vmatprep.subr.mxu0 0.0
    %9244 = vmatpush2.msra.mxu0 0.0
    %9245 = vmatprep.subr.mxu0 0.0
    %9246 = vmatpush2.msra.mxu0 0.0
    %9247 = vmatprep.subr.mxu0 0.0
    %9248 = vmatpush2.msra.mxu0 0.0
    %9249 = vmatprep.subr.mxu0 0.0
    %9250 = vmatpush2.msra.mxu0 0.0
    %9251 = vmatprep.subr.mxu0 0.0
    %9252 = vmatpush2.msra.mxu0 0.0
    %9253 = vmatprep.mubr.f32.mxu0 0.0
    %v9254 = vand.u32 %v8897, 4294901760
    %v9255 = vsub.f32 %v8897, %v9254
    %v9256 = vand.u32 %v9255, 4294901760
    %9257 = vmatmul.mubr.f32.gmra.mxu0 %v9256
    %v9258 = vpop.f32.mrf.mxu0
    %v9259 = vadd.f32 %v9178, %v9258
    %v9260 = vpop.f32.mrf.mxu0
    %9261 = vdwg.mxu0
    %9262 = vmatprep.subr.mxu0 0.0
    %9263 = vmatpush1.msra.mxu0 0.0
    %9264 = vmatprep.subr.mxu0 0.0
    %9265 = vmatpush1.msra.mxu0 0.0
    %9266 = vmatprep.subr.mxu0 0.0
    %9267 = vmatpush1.msra.mxu0 0.0
    %9268 = vmatprep.subr.mxu0 0.0
    %9269 = vmatpush1.msra.mxu0 0.0
    %9270 = vmatprep.subr.mxu0 0.0
    %9271 = vmatpush1.msra.mxu0 0.0
    %9272 = vmatprep.subr.mxu0 0.0
    %9273 = vmatpush1.msra.mxu0 0.0
    %9274 = vmatprep.subr.mxu0 0.0
    %9275 = vmatpush1.msra.mxu0 0.0
    %9276 = vmatprep.subr.mxu0 0.0
    %9277 = vmatpush1.msra.mxu0 0.0
    %9278 = vmatprep.subr.mxu0 0.0
    %v9279 = vand.u32 %v8325, 4294901760
    %v9280 = vsub.f32 %v8325, %v9279
    %v9281 = vand.u32 %v9280, 4294901760
    %9282 = vmatpush1.msra.mxu0 %v9281
    %9283 = vmatprep.subr.mxu0 0.0
    %v9284 = vand.u32 %v8324, 4294901760
    %v9285 = vsub.f32 %v8324, %v9284
    %v9286 = vand.u32 %v9285, 4294901760
    %9287 = vmatpush1.msra.mxu0 %v9286
    %9288 = vmatprep.subr.mxu0 0.0
    %v9289 = vand.u32 %v8323, 4294901760
    %v9290 = vsub.f32 %v8323, %v9289
    %v9291 = vand.u32 %v9290, 4294901760
    %9292 = vmatpush1.msra.mxu0 %v9291
    %9293 = vmatprep.subr.mxu0 0.0
    %v9294 = vand.u32 %v8322, 4294901760
    %v9295 = vsub.f32 %v8322, %v9294
    %v9296 = vand.u32 %v9295, 4294901760
    %9297 = vmatpush1.msra.mxu0 %v9296
    %9298 = vmatprep.subr.mxu0 0.0
    %v9299 = vand.u32 %v8321, 4294901760
    %v9300 = vsub.f32 %v8321, %v9299
    %v9301 = vand.u32 %v9300, 4294901760
    %9302 = vmatpush1.msra.mxu0 %v9301
    %9303 = vmatprep.subr.mxu0 0.0
    %v9304 = vand.u32 %v8320, 4294901760
    %v9305 = vsub.f32 %v8320, %v9304
    %v9306 = vand.u32 %v9305, 4294901760
    %9307 = vmatpush1.msra.mxu0 %v9306
    %9308 = vmatprep.subr.mxu0 0.0
    %v9309 = vand.u32 %v8319, 4294901760
    %v9310 = vsub.f32 %v8319, %v9309
    %v9311 = vand.u32 %v9310, 4294901760
    %9312 = vmatpush1.msra.mxu0 %v9311
    %9313 = vmatprep.subr.mxu0 0.0
    %v9314 = vand.u32 %v8318, 4294901760
    %v9315 = vsub.f32 %v8318, %v9314
    %v9316 = vand.u32 %v9315, 4294901760
    %9317 = vmatpush1.msra.mxu0 %v9316
    %9318 = vmatprep.subr.mxu0 0.0
    %9319 = vmatpush2.msra.mxu0 0.0
    %9320 = vmatprep.subr.mxu0 0.0
    %9321 = vmatpush2.msra.mxu0 0.0
    %9322 = vmatprep.subr.mxu0 0.0
    %9323 = vmatpush2.msra.mxu0 0.0
    %9324 = vmatprep.subr.mxu0 0.0
    %9325 = vmatpush2.msra.mxu0 0.0
    %9326 = vmatprep.subr.mxu0 0.0
    %9327 = vmatpush2.msra.mxu0 0.0
    %9328 = vmatprep.subr.mxu0 0.0
    %9329 = vmatpush2.msra.mxu0 0.0
    %9330 = vmatprep.subr.mxu0 0.0
    %9331 = vmatpush2.msra.mxu0 0.0
    %9332 = vmatprep.subr.mxu0 0.0
    %9333 = vmatpush2.msra.mxu0 0.0
    %9334 = vmatprep.subr.mxu0 0.0
    %9335 = vmatpush2.msra.mxu0 0.0
    %9336 = vmatprep.subr.mxu0 0.0
    %9337 = vmatpush2.msra.mxu0 0.0
    %9338 = vmatprep.subr.mxu0 0.0
    %9339 = vmatpush2.msra.mxu0 0.0
    %9340 = vmatprep.subr.mxu0 0.0
    %9341 = vmatpush2.msra.mxu0 0.0
    %9342 = vmatprep.subr.mxu0 0.0
    %9343 = vmatpush2.msra.mxu0 0.0
    %9344 = vmatprep.subr.mxu0 0.0
    %9345 = vmatpush2.msra.mxu0 0.0
    %9346 = vmatprep.subr.mxu0 0.0
    %9347 = vmatpush2.msra.mxu0 0.0
    %9348 = vmatprep.subr.mxu0 0.0
    %9349 = vmatpush2.msra.mxu0 0.0
    %9350 = vmatprep.mubr.f32.mxu0 0.0
    %v9351 = vand.u32 %v8897, 4294901760
    %9352 = vmatmul.mubr.f32.gmra.mxu0 %v9351
    %v9353 = vpop.f32.mrf.mxu0
    %v9354 = vadd.f32 %v9259, %v9353
    %v9355 = vpop.f32.mrf.mxu0
    %9356 = vdwg.mxu0
    %9357 = vmatprep.subr.mxu0 0.0
    %9358 = vmatpush1.msra.mxu0 0.0
    %9359 = vmatprep.subr.mxu0 0.0
    %9360 = vmatpush1.msra.mxu0 0.0
    %9361 = vmatprep.subr.mxu0 0.0
    %9362 = vmatpush1.msra.mxu0 0.0
    %9363 = vmatprep.subr.mxu0 0.0
    %9364 = vmatpush1.msra.mxu0 0.0
    %9365 = vmatprep.subr.mxu0 0.0
    %9366 = vmatpush1.msra.mxu0 0.0
    %9367 = vmatprep.subr.mxu0 0.0
    %9368 = vmatpush1.msra.mxu0 0.0
    %9369 = vmatprep.subr.mxu0 0.0
    %9370 = vmatpush1.msra.mxu0 0.0
    %9371 = vmatprep.subr.mxu0 0.0
    %9372 = vmatpush1.msra.mxu0 0.0
    %9373 = vmatprep.subr.mxu0 0.0
    %v9374 = vand.u32 %v8325, 4294901760
    %9375 = vmatpush1.msra.mxu0 %v9374
    %9376 = vmatprep.subr.mxu0 0.0
    %v9377 = vand.u32 %v8324, 4294901760
    %9378 = vmatpush1.msra.mxu0 %v9377
    %9379 = vmatprep.subr.mxu0 0.0
    %v9380 = vand.u32 %v8323, 4294901760
    %9381 = vmatpush1.msra.mxu0 %v9380
    %9382 = vmatprep.subr.mxu0 0.0
    %v9383 = vand.u32 %v8322, 4294901760
    %9384 = vmatpush1.msra.mxu0 %v9383
    %9385 = vmatprep.subr.mxu0 0.0
    %v9386 = vand.u32 %v8321, 4294901760
    %9387 = vmatpush1.msra.mxu0 %v9386
    %9388 = vmatprep.subr.mxu0 0.0
    %v9389 = vand.u32 %v8320, 4294901760
    %9390 = vmatpush1.msra.mxu0 %v9389
    %9391 = vmatprep.subr.mxu0 0.0
    %v9392 = vand.u32 %v8319, 4294901760
    %9393 = vmatpush1.msra.mxu0 %v9392
    %9394 = vmatprep.subr.mxu0 0.0
    %v9395 = vand.u32 %v8318, 4294901760
    %9396 = vmatpush1.msra.mxu0 %v9395
    %9397 = vmatprep.subr.mxu0 0.0
    %9398 = vmatpush2.msra.mxu0 0.0
    %9399 = vmatprep.subr.mxu0 0.0
    %9400 = vmatpush2.msra.mxu0 0.0
    %9401 = vmatprep.subr.mxu0 0.0
    %9402 = vmatpush2.msra.mxu0 0.0
    %9403 = vmatprep.subr.mxu0 0.0
    %9404 = vmatpush2.msra.mxu0 0.0
    %9405 = vmatprep.subr.mxu0 0.0
    %9406 = vmatpush2.msra.mxu0 0.0
    %9407 = vmatprep.subr.mxu0 0.0
    %9408 = vmatpush2.msra.mxu0 0.0
    %9409 = vmatprep.subr.mxu0 0.0
    %9410 = vmatpush2.msra.mxu0 0.0
    %9411 = vmatprep.subr.mxu0 0.0
    %9412 = vmatpush2.msra.mxu0 0.0
    %9413 = vmatprep.subr.mxu0 0.0
    %9414 = vmatpush2.msra.mxu0 0.0
    %9415 = vmatprep.subr.mxu0 0.0
    %9416 = vmatpush2.msra.mxu0 0.0
    %9417 = vmatprep.subr.mxu0 0.0
    %9418 = vmatpush2.msra.mxu0 0.0
    %9419 = vmatprep.subr.mxu0 0.0
    %9420 = vmatpush2.msra.mxu0 0.0
    %9421 = vmatprep.subr.mxu0 0.0
    %9422 = vmatpush2.msra.mxu0 0.0
    %9423 = vmatprep.subr.mxu0 0.0
    %9424 = vmatpush2.msra.mxu0 0.0
    %9425 = vmatprep.subr.mxu0 0.0
    %9426 = vmatpush2.msra.mxu0 0.0
    %9427 = vmatprep.subr.mxu0 0.0
    %9428 = vmatpush2.msra.mxu0 0.0
    %9429 = vmatprep.mubr.f32.mxu0 0.0
    %v9430 = vand.u32 %v8897, 4294901760
    %9431 = vmatmul.mubr.f32.gmra.mxu0 %v9430
    %v9432 = vpop.f32.mrf.mxu0
    %v9433 = vadd.f32 %v9354, %v9432
    %v9434 = vpop.f32.mrf.mxu0
    %9435 = vdwg.mxu0
    %v9436 = vmul.f32 %v8876, %v8876
    %v9437 = vsub.f32 %v9433, %v9436
    %v9438 = vld [vmem:[%s2 + $0x124] sm:$0x1]
    %v9439 = vld [vmem:[%s2 + $0x125] sm:$0x1]
    %v9440 = vlaneseq
    %v9441 = vshrl.u32 %v9440, 7
    %v9442 = vsub.s32 0, %v9441
    %v9443 = vrot.slane %v8876, %v9442
    %v9444 = vsub.f32 %v8297, %v9443
    %v9445 = vsub.f32 %v8303, %v9443
    %v9446 = vsub.f32 %v8309, %v9443
    %v9447 = vsub.f32 %v8315, %v9443
    %v9448 = vadd.f32 %v9437, 1e-05
    %v9449 = vrsqrt.pop %v9448
    %v9450 = vlaneseq
    %v9451 = vshrl.u32 %v9450, 7
    %v9452 = vsub.s32 0, %v9451
    %v9453 = vrot.slane %v9449, %v9452
    %v9454 = vmul.f32 %v9444, %v9453
    %v9455 = vmul.f32 %v9445, %v9453
    %v9456 = vmul.f32 %v9446, %v9453
    %v9457 = vmul.f32 %v9447, %v9453
    %v9458 = vlaneseq
    %v9459 = vshrl.u32 %v9458, 7
    %v9460 = vsub.s32 0, %v9459
    %v9461 = vrot.slane %v9438, %v9460
    %v9462 = vmul.f32 %v9454, %v9461
    %v9463 = vmul.f32 %v9455, %v9461
    %v9464 = vmul.f32 %v9456, %v9461
    %v9465 = vmul.f32 %v9457, %v9461
    %v9466 = vlaneseq
    %v9467 = vshrl.u32 %v9466, 7
    %v9468 = vsub.s32 0, %v9467
    %v9469 = vrot.slane %v9439, %v9468
    %v9470 = vadd.f32 %v9462, %v9469
    %v9471 = vadd.f32 %v9463, %v9469
    %v9472 = vadd.f32 %v9464, %v9469
    %v9473 = vadd.f32 %v9465, %v9469
    %v9474 = vsub.f32 0.0, %v9470
    %v9475 = vsub.f32 0.0, %v9471
    %v9476 = vsub.f32 0.0, %v9472
    %v9477 = vsub.f32 0.0, %v9473
    %v9478 = vmul.f32 %v9474, 1.442695
    %v9479 = vpow.pop %v9478
    %v9480 = vmul.f32 %v9475, 1.442695
    %v9481 = vpow.pop %v9480
    %v9482 = vmul.f32 %v9476, 1.442695
    %v9483 = vpow.pop %v9482
    %v9484 = vmul.f32 %v9477, 1.442695
    %v9485 = vpow.pop %v9484
    %v9486 = vadd.f32 %v9479, 1.0
    %v9487 = vadd.f32 %v9481, 1.0
    %v9488 = vadd.f32 %v9483, 1.0
    %v9489 = vadd.f32 %v9485, 1.0
    %v9490 = vrcp.pop %v9486
    %v9491 = vrcp.pop %v9487
    %v9492 = vrcp.pop %v9488
    %v9493 = vrcp.pop %v9489
    %9494 = vst.msk [vmem:[%s5] sm:$0xff] %vm37, %v9490
    %9495 = vst.msk [vmem:[%s5 + $0x8] sm:$0xff] %vm37, %v9491
    %9496 = vst.msk [vmem:[%s5 + $0x10] sm:$0xff] %vm37, %v9492
    %9497 = vst.msk [vmem:[%s5 + $0x18] sm:$0xff] %vm37, %v9493
    // Predicated region
    $region22: #{vae_forward.1} parent=1 // pred_check
      _
    $region23: #{vae_forward.1} parent=1 // pred_check_branch
      %9499 = sbr.rel (0) target = $region25
    $region24: #{vae_forward.1} parent=1 // pred_region
      _
    $region25: #{vae_forward.1} parent=1 // pred_fallthru
      _
    // Predicated region
    $region26: #{vae_forward.1} parent=1 // pred_check
      _
    $region27: #{vae_forward.1} parent=1 // pred_check_branch
      %9501 = sbr.rel (0) target = $region29
    $region28: #{vae_forward.1} parent=1 // pred_region
      %s9503 = ssub.s32 32, 32
      %9504 = vsyncadd [#allocation5], %s9503
      %s9506 = sshll.u32 [#allocation4], 4
      %s9507 = int_to_ptr.vmem [resolvable:$true] %s9506
      %9509 = dma.vmem_to_hbm [thread:$0]  %s9507, 32, %s6, [#allocation5]
    $region29: #{vae_forward.1} parent=1 // pred_fallthru
      _
    // Predicated region
    $region30: #{vae_forward.1} parent=1 // pred_check
      _
    $region31: #{vae_forward.1} parent=1 // pred_check_branch
      %9511 = sbr.rel (0) target = $region33
    $region32: #{vae_forward.1} parent=1 // pred_region
      %s9513 = ssub.s32 32, 32
      %9514 = vsyncadd [#allocation7], %s9513
      %s9516 = sshll.u32 [#allocation6], 4
      %s9517 = int_to_ptr.vmem [resolvable:$true] %s9516
      %9519 = dma.vmem_to_hbm [thread:$0]  %s9517, 32, %s7, [#allocation7]
    $region33: #{vae_forward.1} parent=1 // pred_fallthru
      _
    // Predicated region
    $region34: #{vae_forward.1} parent=1 // pred_check
      _
    $region35: #{vae_forward.1} parent=1 // pred_check_branch
      %9521 = sbr.rel (0) target = $region37
    $region36: #{vae_forward.1} parent=1 // pred_region
      _
    $region37: #{vae_forward.1} parent=1 // pred_fallthru
      _
    // Predicated region
    $region38: #{vae_forward.1} parent=1 // pred_check
      _
    $region39: #{vae_forward.1} parent=1 // pred_check_branch
      %9523 = sbr.rel (0) target = $region41
    $region40: #{vae_forward.1} parent=1 // pred_region
      %9524 = dma.done [#allocation5], 32
    $region41: #{vae_forward.1} parent=1 // pred_fallthru
      _
    // Predicated region
    $region42: #{vae_forward.1} parent=1 // pred_check
      _
    $region43: #{vae_forward.1} parent=1 // pred_check_branch
      %9526 = sbr.rel (0) target = $region45
    $region44: #{vae_forward.1} parent=1 // pred_region
      %9527 = dma.done [#allocation7], 32
    $region45: #{vae_forward.1} parent=1 // pred_fallthru
      _
    %9528 = vsyncpa [#allocation5], 1
    %9529 = vsyncpa [#allocation7], 1

</llo_original>
